<compile_context>
chip_gen: v7x
topology: tpu7x:2x2x1
jax: 0.10.0
libtpu: 0.0.40
codegen_flags: <defaults>
</compile_context>

<pallas_src>
import functools
import math

import numpy as np
import jax
import jax.numpy as jnp
from jax.experimental import pallas as pl
from jax.experimental.pallas import tpu as pltpu


# ----------------------------------------------------------------------------
# helpers
# ----------------------------------------------------------------------------
def _layernorm(x, w, b, eps=1e-5):
    mu = jnp.mean(x, axis=-1, keepdims=True)
    var = jnp.mean(jnp.square(x - mu), axis=-1, keepdims=True)
    return (x - mu) * jax.lax.rsqrt(var + eps) * w + b


# ----------------------------------------------------------------------------
# the single fused Pallas kernel
# ----------------------------------------------------------------------------
def fused_forward_kernel(
        # LSTM / embedding
        x_ref, wih_ref, whh_ref, lb_ref, pos_ref, amask_ref,
        # stacked encoder weights (leading dim = num_layers)
        wqkv_ref, bqkv_ref, wo_ref, bo_ref, ln1w_ref, ln1b_ref,
        wf1_ref, bf1_ref, wf2_ref, bf2_ref, ln2w_ref, ln2b_ref,
        # classification head
        w1cat_ref, hmask_ref, rpool_ref, b1_ref, w2_ref, b2_ref,
        # output
        out_ref,
        # scratch
        xg_scr, h_scr, c_scr,
        *, num_layers, nhead, n_players, scale):
    """Whole LSTM_Transformer forward in VMEM.

    x_ref:    (T*B2, 2)  time-major per-player trajectories, B2 = N*P_pad rows.
    wih_ref:  (2, 4H)    fused (i|f|o|g) input weights   (H = hidden_dim, Hl padded).
    whh_ref:  (H, 4H)    fused recurrent weights.
    lb_ref:   (1, 4H)    combined bias (b_ih + b_hh).
    pos_ref:  (B2, H)    positional one-hot in the zero-padded last 3 hidden cols.
    amask_ref:(B2, B2)   additive attention mask (block-diagonal, real keys only).
    w1cat_ref:(H, P*H)   reduce_layer weight rearranged per player block.
    hmask_ref:(B2, P*H)  per-row player-block selection mask.
    rpool_ref:(N, B2)    per-batch row pooling matrix (real players only).
    """
    B2, H = h_scr.shape
    T = x_ref.shape[0] // B2
    hd = H // nhead

    # ---------------- LSTM ----------------
    # Hoisted input projection as VPU broadcast-FMA (K=2 matmul would underfill MXU).
    xg_scr[...] = (x_ref[:, 0:1] * wih_ref[0:1, :]
                   + x_ref[:, 1:2] * wih_ref[1:2, :]
                   + lb_ref[...])

    h_scr[...] = jnp.zeros_like(h_scr)
    c_scr[...] = jnp.zeros_like(c_scr)

    def step(t, carry):
        # B2 is forced to a multiple of 8 in the wrapper, so this hint is valid.
        row0 = pl.multiple_of(t * B2, 8)
        gates = (xg_scr[pl.ds(row0, B2), :]
                 + jnp.dot(h_scr[...], whh_ref[...],
                           preferred_element_type=jnp.float32))          # (B2, 4H)
        sig = jax.nn.sigmoid(gates[:, :3 * H])         # i | f | o  contiguous
        g = jnp.tanh(gates[:, 3 * H:])
        i = sig[:, 0:H]
        f = sig[:, H:2 * H]
        o = sig[:, 2 * H:3 * H]
        c = f * c_scr[...] + i * g
        c_scr[...] = c
        h_scr[...] = o * jnp.tanh(c)
        return carry

    jax.lax.fori_loop(0, T, step, 0, unroll=True)      # T=8: fully unrolled

    # Padded hidden columns stay exactly zero, so adding pos_ref reproduces
    # torch.cat((h, pos_e), dim=-1).
    src = h_scr[...] + pos_ref[...]                    # (B2, H)

    # ---------------- Transformer encoder ----------------
    amask = amask_ref[...]
    for l in range(num_layers):
        qkv = (jnp.dot(src, wqkv_ref[l], preferred_element_type=jnp.float32)
               + bqkv_ref[l])                          # (B2, 3H)
        wo = wo_ref[l]
        attn = jnp.zeros((B2, H), jnp.float32)
        for hh in range(nhead):                        # static, small head count
            qh = qkv[:, hh * hd:(hh + 1) * hd]
            kh = qkv[:, H + hh * hd:H + (hh + 1) * hd]
            vh = qkv[:, 2 * H + hh * hd:2 * H + (hh + 1) * hd]
            s = (jnp.einsum('sd,td->st', qh, kh,
                            preferred_element_type=jnp.float32) * scale
                 + amask)                              # (B2, B2), block-masked
            m = jnp.max(s, axis=-1, keepdims=True)
            e = jnp.exp(s - m)
            p = e / jnp.sum(e, axis=-1, keepdims=True)  # exact softmax
            ctx = jnp.dot(p, vh, preferred_element_type=jnp.float32)      # (B2, hd)
            # fold straight into the out-projection (no lane concat)
            attn = attn + jnp.dot(ctx, wo[hh * hd:(hh + 1) * hd, :],
                                  preferred_element_type=jnp.float32)
        attn = attn + bo_ref[l]
        x1 = _layernorm(src + attn, ln1w_ref[l], ln1b_ref[l])
        ff = jnp.maximum(jnp.dot(x1, wf1_ref[l],
                                 preferred_element_type=jnp.float32) + bf1_ref[l],
                         0.0)
        ff = jnp.dot(ff, wf2_ref[l], preferred_element_type=jnp.float32) + bf2_ref[l]
        src = _layernorm(x1 + ff, ln2w_ref[l], ln2b_ref[l])

    # ---------------- classification head ----------------
    # reduce_layer without any (N, 11*H) reshape:
    #   t_full[b, p*H+j] = src[b,:] @ W1_block_p ; mask keeps only b's own player p;
    #   lane-fold over p; pool rows of each batch element.
    t_full = jnp.dot(src, w1cat_ref[...],
                     preferred_element_type=jnp.float32)                 # (B2, P*H)
    t_full = t_full * hmask_ref[...]
    u = jnp.zeros((B2, H), jnp.float32)
    for p_i in range(n_players):
        u = u + t_full[:, p_i * H:(p_i + 1) * H]
    hmid = jnp.maximum(jnp.dot(rpool_ref[...], u,
                               preferred_element_type=jnp.float32) + b1_ref[...],
                       0.0)                                              # (N, H)
    out_ref[...] = jax.nn.sigmoid(
        jnp.dot(hmid, w2_ref[...], preferred_element_type=jnp.float32) + b2_ref[...])


# ----------------------------------------------------------------------------
# wrapper: one pallas_call for the whole forward
# ----------------------------------------------------------------------------
def lstm_transformer_forward(x, pp, nhead):
    """Pallas implementation of LSTM_Transformer.forward (pred_type='classification')."""
    N, T, E = x.shape
    P = E // 2
    H = pp['lstm']['whh'].shape[0]
    B2 = pp['pos_rows'].shape[0]                       # N * P_pad (multiple of 8)
    P_pad = B2 // N
    L = pp['enc']['wqkv'].shape[0]
    out_dim = pp['head']['w2'].shape[1]

    # get_embedding rearrangement: per-player trajectories, players padded to 16,
    # time-major, rows b = n*P_pad + p.  (Tiny XLA glue fused inside the jit.)
    xr = x.reshape(N, T, P, 2)
    xr = jnp.pad(xr, ((0, 0), (0, 0), (0, P_pad - P), (0, 0)))
    x_flat = xr.transpose(1, 0, 2, 3).reshape(T * B2, 2)

    kernel = functools.partial(
        fused_forward_kernel, num_layers=L, nhead=nhead, n_players=P,
        scale=1.0 / math.sqrt(H // nhead))

    enc = pp['enc']
    hp = pp['head']
    lp = pp['lstm']
    args = (x_flat, lp['wih'], lp['whh'], lp['b'], pp['pos_rows'], pp['amask'],
            enc['wqkv'], enc['bqkv'], enc['wo'], enc['bo'],
            enc['ln1w'], enc['ln1b'], enc['wf1'], enc['bf1'],
            enc['wf2'], enc['bf2'], enc['ln2w'], enc['ln2b'],
            hp['w1cat'], hp['hmask'], hp['rpool'], hp['b1'], hp['w2'], hp['b2'])

    return pl.pallas_call(
        kernel,
        out_shape=jax.ShapeDtypeStruct((N, out_dim), jnp.float32),
        in_specs=[pl.BlockSpec(memory_space=pltpu.MemorySpace.VMEM)] * len(args),
        out_specs=pl.BlockSpec(memory_space=pltpu.MemorySpace.VMEM),
        scratch_shapes=[pltpu.VMEM((T * B2, 4 * H), jnp.float32),   # pre-projected gates
                        pltpu.VMEM((B2, H), jnp.float32),            # h
                        pltpu.VMEM((B2, H), jnp.float32)],           # c
    )(*args)


# ----------------------------------------------------------------------------
# deterministic parameter init (synthetic weights, shapes per __init__)
# ----------------------------------------------------------------------------
def init_params(key, hidden_dim, nhead, n_offense, n_defense, out_dim, num_layers):
    Hl = hidden_dim - 3
    H = hidden_dim
    P = 1 + n_offense + n_defense
    keys = iter(jax.random.split(key, 128))

    def rnd(shape, scale=0.1):
        return scale * jax.random.normal(next(keys), shape, jnp.float32)

    lstm = {}
    for g in ('i', 'f', 'g', 'o'):
        lstm['wih_' + g] = rnd((2, Hl))          # transposed vs. torch (4H, in)
        lstm['whh_' + g] = rnd((Hl, Hl))
        lstm['b_' + g] = rnd((1, Hl))            # b_ih + b_hh combined

    layers = []
    for _ in range(num_layers):
        layers.append(dict(
            wq=rnd((H, H)), bq=rnd((1, H)),
            wk=rnd((H, H)), bk=rnd((1, H)),
            wv=rnd((H, H)), bv=rnd((1, H)),
            wo=rnd((H, H)), bo=rnd((1, H)),
            ln1w=jnp.ones((1, H), jnp.float32), ln1b=jnp.zeros((1, H), jnp.float32),
            wf1=rnd((H, H)), bf1=rnd((1, H)),    # dim_feedforward = hidden_dim
            wf2=rnd((H, H)), bf2=rnd((1, H)),
            ln2w=jnp.ones((1, H), jnp.float32), ln2b=jnp.zeros((1, H), jnp.float32),
        ))

    head = dict(w1=rnd((P * H, H)), b1=rnd((1, H)),
                w2=rnd((H, out_dim)), b2=rnd((1, out_dim)))

    pos_e = jnp.concatenate([
        jnp.array([[1., 0., 0.]], jnp.float32),
        jnp.tile(jnp.array([[0., 1., 0.]], jnp.float32), (n_offense, 1)),
        jnp.tile(jnp.array([[0., 0., 1.]], jnp.float32), (n_defense, 1)),
    ], axis=0)                                    # (P, 3)

    return dict(lstm=lstm, layers=layers, head=head, pos_e=pos_e)


def prepare_pallas_params(params, N):
    """One-time transform: fuse LSTM gates in (i,f,o,g) order, pad Hl->H (=Hl+3),
    fuse QKV, stack encoder layers, pad players 11->16 rows, and precompute the
    attention / head masks.  Zero padding keeps exact equivalence."""
    lp = params['lstm']
    Hl = lp['wih_i'].shape[1]
    H = params['layers'][0]['wq'].shape[0]
    assert Hl + 3 == H
    P = params['pos_e'].shape[0]
    P_pad = ((P + 7) // 8) * 8                    # 16
    B2 = N * P_pad

    def pad_last(a, width):
        return jnp.pad(a, [(0, 0)] * (a.ndim - 1) + [(0, width - a.shape[-1])])

    # fused LSTM gates, order (i, f, o, g) -> sigmoid on one contiguous 3H slab
    gate_order = ('i', 'f', 'o', 'g')
    wih = jnp.concatenate([pad_last(lp['wih_' + g], H) for g in gate_order], axis=1)
    whh = jnp.concatenate([pad_last(lp['whh_' + g], H) for g in gate_order], axis=1)
    whh = jnp.pad(whh, ((0, H - Hl), (0, 0)))                    # (H, 4H)
    bias = jnp.concatenate([pad_last(lp['b_' + g], H) for g in gate_order], axis=1)

    # positional one-hot lives in the (always-zero) last 3 hidden columns
    pos_pad = jnp.pad(params['pos_e'], ((0, 0), (Hl, 0)))        # (P, H)
    pos_block = jnp.pad(pos_pad, ((0, P_pad - P), (0, 0)))       # (P_pad, H)
    pos_rows = jnp.tile(pos_block, (N, 1))                       # (B2, H)

    # additive attention mask: attend only within one's own batch block and
    # only to real (non-padded) key rows
    q_idx = np.arange(B2)
    k_idx = np.arange(B2)
    same_block = (q_idx[:, None] // P_pad) == (k_idx[None, :] // P_pad)
    real_key = (k_idx[None, :] % P_pad) < P
    amask = np.where(same_block & real_key, 0.0, -1e30).astype(np.float32)

    # stacked encoder weights (leading dim = num_layers)
    per_layer = []
    for p_ in params['layers']:
        per_layer.append(dict(
            wqkv=jnp.concatenate([p_['wq'], p_['wk'], p_['wv']], axis=1),   # (H, 3H)
            bqkv=jnp.concatenate([p_['bq'], p_['bk'], p_['bv']], axis=1),   # (1, 3H)
            wo=p_['wo'], bo=p_['bo'],
            ln1w=p_['ln1w'], ln1b=p_['ln1b'],
            wf1=p_['wf1'], bf1=p_['bf1'], wf2=p_['wf2'], bf2=p_['bf2'],
            ln2w=p_['ln2w'], ln2b=p_['ln2b'],
        ))
    enc = {k: jnp.stack([lyr[k] for lyr in per_layer], axis=0)
           for k in per_layer[0]}

    # head: reduce_layer weight rearranged per player block + selection masks
    hp = params['head']
    Hh = hp['b1'].shape[1]                        # == H
    w1cat = hp['w1'].reshape(P, H, Hh).transpose(1, 0, 2).reshape(H, P * Hh)
    hmask = np.zeros((B2, P * Hh), np.float32)
    rpool = np.zeros((N, B2), np.float32)
    for n in range(N):
        for p in range(P):
            hmask[n * P_pad + p, p * Hh:(p + 1) * Hh] = 1.0
            rpool[n, n * P_pad + p] = 1.0

    return dict(
        lstm=dict(wih=wih, whh=whh, b=bias),
        pos_rows=pos_rows,
        amask=jnp.asarray(amask),
        enc=enc,
        head=dict(w1cat=w1cat, hmask=jnp.asarray(hmask), rpool=jnp.asarray(rpool),
                  b1=hp['b1'], w2=hp['w2'], b2=hp['b2']),
    )


# ----------------------------------------------------------------------------
# pure-JAX reference (un-fused, un-padded math) for a sanity check
# ----------------------------------------------------------------------------
def reference_forward(x, params, nhead):
    N, T, E = x.shape
    P = E // 2
    xp = x.reshape(N, T, P, 2).transpose(0, 2, 1, 3).reshape(N * P, T, 2)
    lp = params['lstm']
    Hl = lp['wih_i'].shape[1]
    B = N * P
    h = jnp.zeros((B, Hl), jnp.float32)
    c = jnp.zeros((B, Hl), jnp.float32)
    for t in range(T):
        xt = xp[:, t, :]

        def gate(g):
            return xt @ lp['wih_' + g] + h @ lp['whh_' + g] + lp['b_' + g]

        i = jax.nn.sigmoid(gate('i'))
        f = jax.nn.sigmoid(gate('f'))
        g_ = jnp.tanh(gate('g'))
        o = jax.nn.sigmoid(gate('o'))
        c = f * c + i * g_
        h = o * jnp.tanh(c)

    emb = jnp.concatenate(
        [h.reshape(N, P, Hl), jnp.broadcast_to(params['pos_e'], (N, P, 3))], -1)
    src = emb.transpose(1, 0, 2)
    H = src.shape[-1]
    hd = H // nhead
    for p in params['layers']:
        S = src.shape[0]
        x2 = src.reshape(S * N, H)
        q = x2 @ p['wq'] + p['bq']
        k = x2 @ p['wk'] + p['bk']
        v = x2 @ p['wv'] + p['bv']

        def sh(t):
            return t.reshape(S, N, nhead, hd).transpose(1, 2, 0, 3)

        qh, kh, vh = sh(q), sh(k), sh(v)
        s = jnp.einsum('nhsd,nhtd->nhst', qh, kh) / math.sqrt(hd)
        a = jax.nn.softmax(s, -1)
        ctx = jnp.einsum('nhst,nhtd->nhsd', a, vh).transpose(2, 0, 1, 3).reshape(S * N, H)
        x2 = _layernorm(x2 + (ctx @ p['wo'] + p['bo']), p['ln1w'], p['ln1b'])
        ff = jnp.maximum(x2 @ p['wf1'] + p['bf1'], 0.0) @ p['wf2'] + p['bf2']
        x2 = _layernorm(x2 + ff, p['ln2w'], p['ln2b'])
        src = x2.reshape(S, N, H)
    feat = src.transpose(1, 0, 2).reshape(N, -1)
    hp = params['head']
    hmid = jnp.maximum(feat @ hp['w1'] + hp['b1'], 0.0)
    return jax.nn.sigmoid(hmid @ hp['w2'] + hp['b2'])


# ----------------------------------------------------------------------------
# main
# ----------------------------------------------------------------------------
if __name__ == "__main__":
    # model hyper-params (classification branch; 1 ball + 5 offense + 5 defense)
    hidden_dim = 32
    nhead = 4            # hidden_dim % nhead == 0 (module default 16 also works)
    n_offense = 5
    n_defense = 5
    out_dim = 3
    num_layers = 2

    N, T = 2, 8
    E = 2 * (1 + n_offense + n_defense)          # 22

    key = jax.random.PRNGKey(0)
    kx, kp = jax.random.split(key)
    x = jax.random.normal(kx, (N, T, E), jnp.float32)
    params = init_params(kp, hidden_dim, nhead, n_offense, n_defense,
                         out_dim, num_layers)
    pparams = prepare_pallas_params(params, N)

    # TODO(synk): dropout layers are identity here (eval-mode forward semantics).
    fwd = jax.jit(lstm_transformer_forward, static_argnums=(2,))
    out = jax.block_until_ready(fwd(x, pparams, nhead))

    ref = jax.block_until_ready(
        jax.jit(reference_forward, static_argnums=(2,))(x, params, nhead))
    np.testing.assert_allclose(np.asarray(out), np.asarray(ref),
                               rtol=2e-3, atol=2e-3)
    assert out.shape == (N, out_dim)
    assert bool(jnp.all(jnp.isfinite(out)))

    print("KERNEL_OK")
</pallas_src>

<mosaic_0001>
module attributes {stable_mosaic.version = 11 : i64} {
  func.func @fused_forward_kernel(%arg0: memref<256x2xf32, #tpu.memory_space<vmem>>, %arg1: memref<2x128xf32, #tpu.memory_space<vmem>>, %arg2: memref<32x128xf32, #tpu.memory_space<vmem>>, %arg3: memref<1x128xf32, #tpu.memory_space<vmem>>, %arg4: memref<32x32xf32, #tpu.memory_space<vmem>>, %arg5: memref<32x32xf32, #tpu.memory_space<vmem>>, %arg6: memref<2x32x96xf32, #tpu.memory_space<vmem>>, %arg7: memref<2x1x96xf32, #tpu.memory_space<vmem>>, %arg8: memref<2x32x32xf32, #tpu.memory_space<vmem>>, %arg9: memref<2x1x32xf32, #tpu.memory_space<vmem>>, %arg10: memref<2x1x32xf32, #tpu.memory_space<vmem>>, %arg11: memref<2x1x32xf32, #tpu.memory_space<vmem>>, %arg12: memref<2x32x32xf32, #tpu.memory_space<vmem>>, %arg13: memref<2x1x32xf32, #tpu.memory_space<vmem>>, %arg14: memref<2x32x32xf32, #tpu.memory_space<vmem>>, %arg15: memref<2x1x32xf32, #tpu.memory_space<vmem>>, %arg16: memref<2x1x32xf32, #tpu.memory_space<vmem>>, %arg17: memref<2x1x32xf32, #tpu.memory_space<vmem>>, %arg18: memref<32x352xf32, #tpu.memory_space<vmem>>, %arg19: memref<32x352xf32, #tpu.memory_space<vmem>>, %arg20: memref<2x32xf32, #tpu.memory_space<vmem>>, %arg21: memref<1x32xf32, #tpu.memory_space<vmem>>, %arg22: memref<32x3xf32, #tpu.memory_space<vmem>>, %arg23: memref<1x3xf32, #tpu.memory_space<vmem>>, %arg24: memref<2x3xf32, #tpu.memory_space<vmem>>, %arg25: memref<256x128xf32, #tpu.memory_space<vmem>>, %arg26: memref<32x32xf32, #tpu.memory_space<vmem>>, %arg27: memref<32x32xf32, #tpu.memory_space<vmem>>) attributes {dimension_semantics = [], scalar_prefetch = 0 : i64, scratch_operands = 3 : i64, tpu.core_type = #tpu.core_type<tc>} {
    %c0 = arith.constant 0 : index
    %c0_0 = arith.constant 0 : index
    %0 = vector.load %arg0[%c0, %c0_0] : memref<256x2xf32, #tpu.memory_space<vmem>>, vector<256x1xf32>
    %c0_1 = arith.constant 0 : index
    %c0_2 = arith.constant 0 : index
    %1 = vector.load %arg1[%c0_1, %c0_2] : memref<2x128xf32, #tpu.memory_space<vmem>>, vector<1x128xf32>
    %2 = vector.broadcast %0 : vector<256x1xf32> to vector<256x128xf32>
    %3 = vector.broadcast %1 : vector<1x128xf32> to vector<256x128xf32>
    %4 = arith.mulf %2, %3 : vector<256x128xf32>
    %c0_3 = arith.constant 0 : index
    %c1 = arith.constant 1 : index
    %5 = vector.load %arg0[%c0_3, %c1] : memref<256x2xf32, #tpu.memory_space<vmem>>, vector<256x1xf32>
    %c1_4 = arith.constant 1 : index
    %c0_5 = arith.constant 0 : index
    %6 = vector.load %arg1[%c1_4, %c0_5] : memref<2x128xf32, #tpu.memory_space<vmem>>, vector<1x128xf32>
    %7 = vector.broadcast %5 : vector<256x1xf32> to vector<256x128xf32>
    %8 = vector.broadcast %6 : vector<1x128xf32> to vector<256x128xf32>
    %9 = arith.mulf %7, %8 : vector<256x128xf32>
    %10 = arith.addf %4, %9 : vector<256x128xf32>
    %c0_6 = arith.constant 0 : index
    %c0_7 = arith.constant 0 : index
    %11 = vector.load %arg3[%c0_6, %c0_7] : memref<1x128xf32, #tpu.memory_space<vmem>>, vector<1x128xf32>
    %12 = vector.broadcast %11 : vector<1x128xf32> to vector<256x128xf32>
    %13 = arith.addf %10, %12 : vector<256x128xf32>
    %c0_8 = arith.constant 0 : index
    %c0_9 = arith.constant 0 : index
    %14 = vector.load %arg25[%c0_8, %c0_9] : memref<256x128xf32, #tpu.memory_space<vmem>>, vector<256x128xf32>
    tpu.vector_store %arg25[%c0_8, %c0_9], %13 {strides = array<i32>} : memref<256x128xf32, #tpu.memory_space<vmem>>, vector<256x128xf32>,
    %cst = arith.constant 0.000000e+00 : f32
    %15 = vector.broadcast %cst : f32 to vector<32x32xf32>
    %c0_10 = arith.constant 0 : index
    %c0_11 = arith.constant 0 : index
    %16 = vector.load %arg26[%c0_10, %c0_11] : memref<32x32xf32, #tpu.memory_space<vmem>>, vector<32x32xf32>
    tpu.vector_store %arg26[%c0_10, %c0_11], %15 {strides = array<i32>} : memref<32x32xf32, #tpu.memory_space<vmem>>, vector<32x32xf32>,
    %cst_12 = arith.constant 0.000000e+00 : f32
    %17 = vector.broadcast %cst_12 : f32 to vector<32x32xf32>
    %c0_13 = arith.constant 0 : index
    %c0_14 = arith.constant 0 : index
    %18 = vector.load %arg27[%c0_13, %c0_14] : memref<32x32xf32, #tpu.memory_space<vmem>>, vector<32x32xf32>
    tpu.vector_store %arg27[%c0_13, %c0_14], %17 {strides = array<i32>} : memref<32x32xf32, #tpu.memory_space<vmem>>, vector<32x32xf32>,
    %c0_i32 = arith.constant 0 : i32
    %c32_i32 = arith.constant 32 : i32
    %19 = arith.muli %c0_i32, %c32_i32 : i32
    %20 = tpu.assume_multiple %19, 8 : i32
    %21 = arith.index_cast %20 : i32 to index
    %c0_15 = arith.constant 0 : index
    %22 = vector.load %arg25[%21, %c0_15] : memref<256x128xf32, #tpu.memory_space<vmem>>, vector<32x128xf32>
    %c0_16 = arith.constant 0 : index
    %c0_17 = arith.constant 0 : index
    %23 = vector.load %arg26[%c0_16, %c0_17] : memref<32x32xf32, #tpu.memory_space<vmem>>, vector<32x32xf32>
    %c0_18 = arith.constant 0 : index
    %c0_19 = arith.constant 0 : index
    %24 = vector.load %arg2[%c0_18, %c0_19] : memref<32x128xf32, #tpu.memory_space<vmem>>, vector<32x128xf32>
    %cst_20 = arith.constant dense<0.000000e+00> : vector<32x128xf32>
    %25 = tpu.matmul %23, %24, %cst_20 {dimension_numbers = #tpu.dot_dimension_numbers<[1], [0], [0], [1], [0, 0, 1, 1], [], []>} : vector<32x32xf32>, vector<32x128xf32>, vector<32x128xf32> -> vector<32x128xf32>
    %26 = arith.addf %22, %25 : vector<32x128xf32>
    %27 = vector.extract_strided_slice %26 {offsets = [0, 0], sizes = [32, 96], strides = [1, 1]} : vector<32x128xf32> to vector<32x96xf32>
    %28 = arith.negf %27 : vector<32x96xf32>
    %29 = math.exp %28 : vector<32x96xf32>
    %cst_21 = arith.constant 1.000000e+00 : f32
    %30 = vector.broadcast %cst_21 : f32 to vector<32x96xf32>
    %31 = arith.addf %30, %29 : vector<32x96xf32>
    %32 = arith.divf %30, %31 : vector<32x96xf32>
    %33 = vector.extract_strided_slice %26 {offsets = [0, 96], sizes = [32, 32], strides = [1, 1]} : vector<32x128xf32> to vector<32x32xf32>
    %34 = math.tanh %33 : vector<32x32xf32>
    %35 = vector.extract_strided_slice %32 {offsets = [0, 0], sizes = [32, 32], strides = [1, 1]} : vector<32x96xf32> to vector<32x32xf32>
    %36 = vector.extract_strided_slice %32 {offsets = [0, 32], sizes = [32, 32], strides = [1, 1]} : vector<32x96xf32> to vector<32x32xf32>
    %37 = vector.extract_strided_slice %32 {offsets = [0, 64], sizes = [32, 32], strides = [1, 1]} : vector<32x96xf32> to vector<32x32xf32>
    %c0_22 = arith.constant 0 : index
    %c0_23 = arith.constant 0 : index
    %38 = vector.load %arg27[%c0_22, %c0_23] : memref<32x32xf32, #tpu.memory_space<vmem>>, vector<32x32xf32>
    %39 = arith.mulf %36, %38 : vector<32x32xf32>
    %40 = arith.mulf %35, %34 : vector<32x32xf32>
    %41 = arith.addf %39, %40 : vector<32x32xf32>
    %c0_24 = arith.constant 0 : index
    %c0_25 = arith.constant 0 : index
    %42 = vector.load %arg27[%c0_24, %c0_25] : memref<32x32xf32, #tpu.memory_space<vmem>>, vector<32x32xf32>
    tpu.vector_store %arg27[%c0_24, %c0_25], %41 {strides = array<i32>} : memref<32x32xf32, #tpu.memory_space<vmem>>, vector<32x32xf32>,
    %43 = math.tanh %41 : vector<32x32xf32>
    %44 = arith.mulf %37, %43 : vector<32x32xf32>
    %c0_26 = arith.constant 0 : index
    %c0_27 = arith.constant 0 : index
    %45 = vector.load %arg26[%c0_26, %c0_27] : memref<32x32xf32, #tpu.memory_space<vmem>>, vector<32x32xf32>
    tpu.vector_store %arg26[%c0_26, %c0_27], %44 {strides = array<i32>} : memref<32x32xf32, #tpu.memory_space<vmem>>, vector<32x32xf32>,
    %c1_i32 = arith.constant 1 : i32
    %c32_i32_28 = arith.constant 32 : i32
    %46 = arith.muli %c1_i32, %c32_i32_28 : i32
    %47 = tpu.assume_multiple %46, 8 : i32
    %48 = arith.index_cast %47 : i32 to index
    %c0_29 = arith.constant 0 : index
    %49 = vector.load %arg25[%48, %c0_29] : memref<256x128xf32, #tpu.memory_space<vmem>>, vector<32x128xf32>
    %c0_30 = arith.constant 0 : index
    %c0_31 = arith.constant 0 : index
    %50 = vector.load %arg26[%c0_30, %c0_31] : memref<32x32xf32, #tpu.memory_space<vmem>>, vector<32x32xf32>
    %c0_32 = arith.constant 0 : index
    %c0_33 = arith.constant 0 : index
    %51 = vector.load %arg2[%c0_32, %c0_33] : memref<32x128xf32, #tpu.memory_space<vmem>>, vector<32x128xf32>
    %cst_34 = arith.constant dense<0.000000e+00> : vector<32x128xf32>
    %52 = tpu.matmul %50, %51, %cst_34 {dimension_numbers = #tpu.dot_dimension_numbers<[1], [0], [0], [1], [0, 0, 1, 1], [], []>} : vector<32x32xf32>, vector<32x128xf32>, vector<32x128xf32> -> vector<32x128xf32>
    %53 = arith.addf %49, %52 : vector<32x128xf32>
    %54 = vector.extract_strided_slice %53 {offsets = [0, 0], sizes = [32, 96], strides = [1, 1]} : vector<32x128xf32> to vector<32x96xf32>
    %55 = arith.negf %54 : vector<32x96xf32>
    %56 = math.exp %55 : vector<32x96xf32>
    %cst_35 = arith.constant 1.000000e+00 : f32
    %57 = vector.broadcast %cst_35 : f32 to vector<32x96xf32>
    %58 = arith.addf %57, %56 : vector<32x96xf32>
    %59 = arith.divf %57, %58 : vector<32x96xf32>
    %60 = vector.extract_strided_slice %53 {offsets = [0, 96], sizes = [32, 32], strides = [1, 1]} : vector<32x128xf32> to vector<32x32xf32>
    %61 = math.tanh %60 : vector<32x32xf32>
    %62 = vector.extract_strided_slice %59 {offsets = [0, 0], sizes = [32, 32], strides = [1, 1]} : vector<32x96xf32> to vector<32x32xf32>
    %63 = vector.extract_strided_slice %59 {offsets = [0, 32], sizes = [32, 32], strides = [1, 1]} : vector<32x96xf32> to vector<32x32xf32>
    %64 = vector.extract_strided_slice %59 {offsets = [0, 64], sizes = [32, 32], strides = [1, 1]} : vector<32x96xf32> to vector<32x32xf32>
    %c0_36 = arith.constant 0 : index
    %c0_37 = arith.constant 0 : index
    %65 = vector.load %arg27[%c0_36, %c0_37] : memref<32x32xf32, #tpu.memory_space<vmem>>, vector<32x32xf32>
    %66 = arith.mulf %63, %65 : vector<32x32xf32>
    %67 = arith.mulf %62, %61 : vector<32x32xf32>
    %68 = arith.addf %66, %67 : vector<32x32xf32>
    %c0_38 = arith.constant 0 : index
    %c0_39 = arith.constant 0 : index
    %69 = vector.load %arg27[%c0_38, %c0_39] : memref<32x32xf32, #tpu.memory_space<vmem>>, vector<32x32xf32>
    tpu.vector_store %arg27[%c0_38, %c0_39], %68 {strides = array<i32>} : memref<32x32xf32, #tpu.memory_space<vmem>>, vector<32x32xf32>,
    %70 = math.tanh %68 : vector<32x32xf32>
    %71 = arith.mulf %64, %70 : vector<32x32xf32>
    %c0_40 = arith.constant 0 : index
    %c0_41 = arith.constant 0 : index
    %72 = vector.load %arg26[%c0_40, %c0_41] : memref<32x32xf32, #tpu.memory_space<vmem>>, vector<32x32xf32>
    tpu.vector_store %arg26[%c0_40, %c0_41], %71 {strides = array<i32>} : memref<32x32xf32, #tpu.memory_space<vmem>>, vector<32x32xf32>,
    %c2_i32 = arith.constant 2 : i32
    %c32_i32_42 = arith.constant 32 : i32
    %73 = arith.muli %c2_i32, %c32_i32_42 : i32
    %74 = tpu.assume_multiple %73, 8 : i32
    %75 = arith.index_cast %74 : i32 to index
    %c0_43 = arith.constant 0 : index
    %76 = vector.load %arg25[%75, %c0_43] : memref<256x128xf32, #tpu.memory_space<vmem>>, vector<32x128xf32>
    %c0_44 = arith.constant 0 : index
    %c0_45 = arith.constant 0 : index
    %77 = vector.load %arg26[%c0_44, %c0_45] : memref<32x32xf32, #tpu.memory_space<vmem>>, vector<32x32xf32>
    %c0_46 = arith.constant 0 : index
    %c0_47 = arith.constant 0 : index
    %78 = vector.load %arg2[%c0_46, %c0_47] : memref<32x128xf32, #tpu.memory_space<vmem>>, vector<32x128xf32>
    %cst_48 = arith.constant dense<0.000000e+00> : vector<32x128xf32>
    %79 = tpu.matmul %77, %78, %cst_48 {dimension_numbers = #tpu.dot_dimension_numbers<[1], [0], [0], [1], [0, 0, 1, 1], [], []>} : vector<32x32xf32>, vector<32x128xf32>, vector<32x128xf32> -> vector<32x128xf32>
    %80 = arith.addf %76, %79 : vector<32x128xf32>
    %81 = vector.extract_strided_slice %80 {offsets = [0, 0], sizes = [32, 96], strides = [1, 1]} : vector<32x128xf32> to vector<32x96xf32>
    %82 = arith.negf %81 : vector<32x96xf32>
    %83 = math.exp %82 : vector<32x96xf32>
    %cst_49 = arith.constant 1.000000e+00 : f32
    %84 = vector.broadcast %cst_49 : f32 to vector<32x96xf32>
    %85 = arith.addf %84, %83 : vector<32x96xf32>
    %86 = arith.divf %84, %85 : vector<32x96xf32>
    %87 = vector.extract_strided_slice %80 {offsets = [0, 96], sizes = [32, 32], strides = [1, 1]} : vector<32x128xf32> to vector<32x32xf32>
    %88 = math.tanh %87 : vector<32x32xf32>
    %89 = vector.extract_strided_slice %86 {offsets = [0, 0], sizes = [32, 32], strides = [1, 1]} : vector<32x96xf32> to vector<32x32xf32>
    %90 = vector.extract_strided_slice %86 {offsets = [0, 32], sizes = [32, 32], strides = [1, 1]} : vector<32x96xf32> to vector<32x32xf32>
    %91 = vector.extract_strided_slice %86 {offsets = [0, 64], sizes = [32, 32], strides = [1, 1]} : vector<32x96xf32> to vector<32x32xf32>
    %c0_50 = arith.constant 0 : index
    %c0_51 = arith.constant 0 : index
    %92 = vector.load %arg27[%c0_50, %c0_51] : memref<32x32xf32, #tpu.memory_space<vmem>>, vector<32x32xf32>
    %93 = arith.mulf %90, %92 : vector<32x32xf32>
    %94 = arith.mulf %89, %88 : vector<32x32xf32>
    %95 = arith.addf %93, %94 : vector<32x32xf32>
    %c0_52 = arith.constant 0 : index
    %c0_53 = arith.constant 0 : index
    %96 = vector.load %arg27[%c0_52, %c0_53] : memref<32x32xf32, #tpu.memory_space<vmem>>, vector<32x32xf32>
    tpu.vector_store %arg27[%c0_52, %c0_53], %95 {strides = array<i32>} : memref<32x32xf32, #tpu.memory_space<vmem>>, vector<32x32xf32>,
    %97 = math.tanh %95 : vector<32x32xf32>
    %98 = arith.mulf %91, %97 : vector<32x32xf32>
    %c0_54 = arith.constant 0 : index
    %c0_55 = arith.constant 0 : index
    %99 = vector.load %arg26[%c0_54, %c0_55] : memref<32x32xf32, #tpu.memory_space<vmem>>, vector<32x32xf32>
    tpu.vector_store %arg26[%c0_54, %c0_55], %98 {strides = array<i32>} : memref<32x32xf32, #tpu.memory_space<vmem>>, vector<32x32xf32>,
    %c3_i32 = arith.constant 3 : i32
    %c32_i32_56 = arith.constant 32 : i32
    %100 = arith.muli %c3_i32, %c32_i32_56 : i32
    %101 = tpu.assume_multiple %100, 8 : i32
    %102 = arith.index_cast %101 : i32 to index
    %c0_57 = arith.constant 0 : index
    %103 = vector.load %arg25[%102, %c0_57] : memref<256x128xf32, #tpu.memory_space<vmem>>, vector<32x128xf32>
    %c0_58 = arith.constant 0 : index
    %c0_59 = arith.constant 0 : index
    %104 = vector.load %arg26[%c0_58, %c0_59] : memref<32x32xf32, #tpu.memory_space<vmem>>, vector<32x32xf32>
    %c0_60 = arith.constant 0 : index
    %c0_61 = arith.constant 0 : index
    %105 = vector.load %arg2[%c0_60, %c0_61] : memref<32x128xf32, #tpu.memory_space<vmem>>, vector<32x128xf32>
    %cst_62 = arith.constant dense<0.000000e+00> : vector<32x128xf32>
    %106 = tpu.matmul %104, %105, %cst_62 {dimension_numbers = #tpu.dot_dimension_numbers<[1], [0], [0], [1], [0, 0, 1, 1], [], []>} : vector<32x32xf32>, vector<32x128xf32>, vector<32x128xf32> -> vector<32x128xf32>
    %107 = arith.addf %103, %106 : vector<32x128xf32>
    %108 = vector.extract_strided_slice %107 {offsets = [0, 0], sizes = [32, 96], strides = [1, 1]} : vector<32x128xf32> to vector<32x96xf32>
    %109 = arith.negf %108 : vector<32x96xf32>
    %110 = math.exp %109 : vector<32x96xf32>
    %cst_63 = arith.constant 1.000000e+00 : f32
    %111 = vector.broadcast %cst_63 : f32 to vector<32x96xf32>
    %112 = arith.addf %111, %110 : vector<32x96xf32>
    %113 = arith.divf %111, %112 : vector<32x96xf32>
    %114 = vector.extract_strided_slice %107 {offsets = [0, 96], sizes = [32, 32], strides = [1, 1]} : vector<32x128xf32> to vector<32x32xf32>
    %115 = math.tanh %114 : vector<32x32xf32>
    %116 = vector.extract_strided_slice %113 {offsets = [0, 0], sizes = [32, 32], strides = [1, 1]} : vector<32x96xf32> to vector<32x32xf32>
    %117 = vector.extract_strided_slice %113 {offsets = [0, 32], sizes = [32, 32], strides = [1, 1]} : vector<32x96xf32> to vector<32x32xf32>
    %118 = vector.extract_strided_slice %113 {offsets = [0, 64], sizes = [32, 32], strides = [1, 1]} : vector<32x96xf32> to vector<32x32xf32>
    %c0_64 = arith.constant 0 : index
    %c0_65 = arith.constant 0 : index
    %119 = vector.load %arg27[%c0_64, %c0_65] : memref<32x32xf32, #tpu.memory_space<vmem>>, vector<32x32xf32>
    %120 = arith.mulf %117, %119 : vector<32x32xf32>
    %121 = arith.mulf %116, %115 : vector<32x32xf32>
    %122 = arith.addf %120, %121 : vector<32x32xf32>
    %c0_66 = arith.constant 0 : index
    %c0_67 = arith.constant 0 : index
    %123 = vector.load %arg27[%c0_66, %c0_67] : memref<32x32xf32, #tpu.memory_space<vmem>>, vector<32x32xf32>
    tpu.vector_store %arg27[%c0_66, %c0_67], %122 {strides = array<i32>} : memref<32x32xf32, #tpu.memory_space<vmem>>, vector<32x32xf32>,
    %124 = math.tanh %122 : vector<32x32xf32>
    %125 = arith.mulf %118, %124 : vector<32x32xf32>
    %c0_68 = arith.constant 0 : index
    %c0_69 = arith.constant 0 : index
    %126 = vector.load %arg26[%c0_68, %c0_69] : memref<32x32xf32, #tpu.memory_space<vmem>>, vector<32x32xf32>
    tpu.vector_store %arg26[%c0_68, %c0_69], %125 {strides = array<i32>} : memref<32x32xf32, #tpu.memory_space<vmem>>, vector<32x32xf32>,
    %c4_i32 = arith.constant 4 : i32
    %c32_i32_70 = arith.constant 32 : i32
    %127 = arith.muli %c4_i32, %c32_i32_70 : i32
    %128 = tpu.assume_multiple %127, 8 : i32
    %129 = arith.index_cast %128 : i32 to index
    %c0_71 = arith.constant 0 : index
    %130 = vector.load %arg25[%129, %c0_71] : memref<256x128xf32, #tpu.memory_space<vmem>>, vector<32x128xf32>
    %c0_72 = arith.constant 0 : index
    %c0_73 = arith.constant 0 : index
    %131 = vector.load %arg26[%c0_72, %c0_73] : memref<32x32xf32, #tpu.memory_space<vmem>>, vector<32x32xf32>
    %c0_74 = arith.constant 0 : index
    %c0_75 = arith.constant 0 : index
    %132 = vector.load %arg2[%c0_74, %c0_75] : memref<32x128xf32, #tpu.memory_space<vmem>>, vector<32x128xf32>
    %cst_76 = arith.constant dense<0.000000e+00> : vector<32x128xf32>
    %133 = tpu.matmul %131, %132, %cst_76 {dimension_numbers = #tpu.dot_dimension_numbers<[1], [0], [0], [1], [0, 0, 1, 1], [], []>} : vector<32x32xf32>, vector<32x128xf32>, vector<32x128xf32> -> vector<32x128xf32>
    %134 = arith.addf %130, %133 : vector<32x128xf32>
    %135 = vector.extract_strided_slice %134 {offsets = [0, 0], sizes = [32, 96], strides = [1, 1]} : vector<32x128xf32> to vector<32x96xf32>
    %136 = arith.negf %135 : vector<32x96xf32>
    %137 = math.exp %136 : vector<32x96xf32>
    %cst_77 = arith.constant 1.000000e+00 : f32
    %138 = vector.broadcast %cst_77 : f32 to vector<32x96xf32>
    %139 = arith.addf %138, %137 : vector<32x96xf32>
    %140 = arith.divf %138, %139 : vector<32x96xf32>
    %141 = vector.extract_strided_slice %134 {offsets = [0, 96], sizes = [32, 32], strides = [1, 1]} : vector<32x128xf32> to vector<32x32xf32>
    %142 = math.tanh %141 : vector<32x32xf32>
    %143 = vector.extract_strided_slice %140 {offsets = [0, 0], sizes = [32, 32], strides = [1, 1]} : vector<32x96xf32> to vector<32x32xf32>
    %144 = vector.extract_strided_slice %140 {offsets = [0, 32], sizes = [32, 32], strides = [1, 1]} : vector<32x96xf32> to vector<32x32xf32>
    %145 = vector.extract_strided_slice %140 {offsets = [0, 64], sizes = [32, 32], strides = [1, 1]} : vector<32x96xf32> to vector<32x32xf32>
    %c0_78 = arith.constant 0 : index
    %c0_79 = arith.constant 0 : index
    %146 = vector.load %arg27[%c0_78, %c0_79] : memref<32x32xf32, #tpu.memory_space<vmem>>, vector<32x32xf32>
    %147 = arith.mulf %144, %146 : vector<32x32xf32>
    %148 = arith.mulf %143, %142 : vector<32x32xf32>
    %149 = arith.addf %147, %148 : vector<32x32xf32>
    %c0_80 = arith.constant 0 : index
    %c0_81 = arith.constant 0 : index
    %150 = vector.load %arg27[%c0_80, %c0_81] : memref<32x32xf32, #tpu.memory_space<vmem>>, vector<32x32xf32>
    tpu.vector_store %arg27[%c0_80, %c0_81], %149 {strides = array<i32>} : memref<32x32xf32, #tpu.memory_space<vmem>>, vector<32x32xf32>,
    %151 = math.tanh %149 : vector<32x32xf32>
    %152 = arith.mulf %145, %151 : vector<32x32xf32>
    %c0_82 = arith.constant 0 : index
    %c0_83 = arith.constant 0 : index
    %153 = vector.load %arg26[%c0_82, %c0_83] : memref<32x32xf32, #tpu.memory_space<vmem>>, vector<32x32xf32>
    tpu.vector_store %arg26[%c0_82, %c0_83], %152 {strides = array<i32>} : memref<32x32xf32, #tpu.memory_space<vmem>>, vector<32x32xf32>,
    %c5_i32 = arith.constant 5 : i32
    %c32_i32_84 = arith.constant 32 : i32
    %154 = arith.muli %c5_i32, %c32_i32_84 : i32
    %155 = tpu.assume_multiple %154, 8 : i32
    %156 = arith.index_cast %155 : i32 to index
    %c0_85 = arith.constant 0 : index
    %157 = vector.load %arg25[%156, %c0_85] : memref<256x128xf32, #tpu.memory_space<vmem>>, vector<32x128xf32>
    %c0_86 = arith.constant 0 : index
    %c0_87 = arith.constant 0 : index
    %158 = vector.load %arg26[%c0_86, %c0_87] : memref<32x32xf32, #tpu.memory_space<vmem>>, vector<32x32xf32>
    %c0_88 = arith.constant 0 : index
    %c0_89 = arith.constant 0 : index
    %159 = vector.load %arg2[%c0_88, %c0_89] : memref<32x128xf32, #tpu.memory_space<vmem>>, vector<32x128xf32>
    %cst_90 = arith.constant dense<0.000000e+00> : vector<32x128xf32>
    %160 = tpu.matmul %158, %159, %cst_90 {dimension_numbers = #tpu.dot_dimension_numbers<[1], [0], [0], [1], [0, 0, 1, 1], [], []>} : vector<32x32xf32>, vector<32x128xf32>, vector<32x128xf32> -> vector<32x128xf32>
    %161 = arith.addf %157, %160 : vector<32x128xf32>
    %162 = vector.extract_strided_slice %161 {offsets = [0, 0], sizes = [32, 96], strides = [1, 1]} : vector<32x128xf32> to vector<32x96xf32>
    %163 = arith.negf %162 : vector<32x96xf32>
    %164 = math.exp %163 : vector<32x96xf32>
    %cst_91 = arith.constant 1.000000e+00 : f32
    %165 = vector.broadcast %cst_91 : f32 to vector<32x96xf32>
    %166 = arith.addf %165, %164 : vector<32x96xf32>
    %167 = arith.divf %165, %166 : vector<32x96xf32>
    %168 = vector.extract_strided_slice %161 {offsets = [0, 96], sizes = [32, 32], strides = [1, 1]} : vector<32x128xf32> to vector<32x32xf32>
    %169 = math.tanh %168 : vector<32x32xf32>
    %170 = vector.extract_strided_slice %167 {offsets = [0, 0], sizes = [32, 32], strides = [1, 1]} : vector<32x96xf32> to vector<32x32xf32>
    %171 = vector.extract_strided_slice %167 {offsets = [0, 32], sizes = [32, 32], strides = [1, 1]} : vector<32x96xf32> to vector<32x32xf32>
    %172 = vector.extract_strided_slice %167 {offsets = [0, 64], sizes = [32, 32], strides = [1, 1]} : vector<32x96xf32> to vector<32x32xf32>
    %c0_92 = arith.constant 0 : index
    %c0_93 = arith.constant 0 : index
    %173 = vector.load %arg27[%c0_92, %c0_93] : memref<32x32xf32, #tpu.memory_space<vmem>>, vector<32x32xf32>
    %174 = arith.mulf %171, %173 : vector<32x32xf32>
    %175 = arith.mulf %170, %169 : vector<32x32xf32>
    %176 = arith.addf %174, %175 : vector<32x32xf32>
    %c0_94 = arith.constant 0 : index
    %c0_95 = arith.constant 0 : index
    %177 = vector.load %arg27[%c0_94, %c0_95] : memref<32x32xf32, #tpu.memory_space<vmem>>, vector<32x32xf32>
    tpu.vector_store %arg27[%c0_94, %c0_95], %176 {strides = array<i32>} : memref<32x32xf32, #tpu.memory_space<vmem>>, vector<32x32xf32>,
    %178 = math.tanh %176 : vector<32x32xf32>
    %179 = arith.mulf %172, %178 : vector<32x32xf32>
    %c0_96 = arith.constant 0 : index
    %c0_97 = arith.constant 0 : index
    %180 = vector.load %arg26[%c0_96, %c0_97] : memref<32x32xf32, #tpu.memory_space<vmem>>, vector<32x32xf32>
    tpu.vector_store %arg26[%c0_96, %c0_97], %179 {strides = array<i32>} : memref<32x32xf32, #tpu.memory_space<vmem>>, vector<32x32xf32>,
    %c6_i32 = arith.constant 6 : i32
    %c32_i32_98 = arith.constant 32 : i32
    %181 = arith.muli %c6_i32, %c32_i32_98 : i32
    %182 = tpu.assume_multiple %181, 8 : i32
    %183 = arith.index_cast %182 : i32 to index
    %c0_99 = arith.constant 0 : index
    %184 = vector.load %arg25[%183, %c0_99] : memref<256x128xf32, #tpu.memory_space<vmem>>, vector<32x128xf32>
    %c0_100 = arith.constant 0 : index
    %c0_101 = arith.constant 0 : index
    %185 = vector.load %arg26[%c0_100, %c0_101] : memref<32x32xf32, #tpu.memory_space<vmem>>, vector<32x32xf32>
    %c0_102 = arith.constant 0 : index
    %c0_103 = arith.constant 0 : index
    %186 = vector.load %arg2[%c0_102, %c0_103] : memref<32x128xf32, #tpu.memory_space<vmem>>, vector<32x128xf32>
    %cst_104 = arith.constant dense<0.000000e+00> : vector<32x128xf32>
    %187 = tpu.matmul %185, %186, %cst_104 {dimension_numbers = #tpu.dot_dimension_numbers<[1], [0], [0], [1], [0, 0, 1, 1], [], []>} : vector<32x32xf32>, vector<32x128xf32>, vector<32x128xf32> -> vector<32x128xf32>
    %188 = arith.addf %184, %187 : vector<32x128xf32>
    %189 = vector.extract_strided_slice %188 {offsets = [0, 0], sizes = [32, 96], strides = [1, 1]} : vector<32x128xf32> to vector<32x96xf32>
    %190 = arith.negf %189 : vector<32x96xf32>
    %191 = math.exp %190 : vector<32x96xf32>
    %cst_105 = arith.constant 1.000000e+00 : f32
    %192 = vector.broadcast %cst_105 : f32 to vector<32x96xf32>
    %193 = arith.addf %192, %191 : vector<32x96xf32>
    %194 = arith.divf %192, %193 : vector<32x96xf32>
    %195 = vector.extract_strided_slice %188 {offsets = [0, 96], sizes = [32, 32], strides = [1, 1]} : vector<32x128xf32> to vector<32x32xf32>
    %196 = math.tanh %195 : vector<32x32xf32>
    %197 = vector.extract_strided_slice %194 {offsets = [0, 0], sizes = [32, 32], strides = [1, 1]} : vector<32x96xf32> to vector<32x32xf32>
    %198 = vector.extract_strided_slice %194 {offsets = [0, 32], sizes = [32, 32], strides = [1, 1]} : vector<32x96xf32> to vector<32x32xf32>
    %199 = vector.extract_strided_slice %194 {offsets = [0, 64], sizes = [32, 32], strides = [1, 1]} : vector<32x96xf32> to vector<32x32xf32>
    %c0_106 = arith.constant 0 : index
    %c0_107 = arith.constant 0 : index
    %200 = vector.load %arg27[%c0_106, %c0_107] : memref<32x32xf32, #tpu.memory_space<vmem>>, vector<32x32xf32>
    %201 = arith.mulf %198, %200 : vector<32x32xf32>
    %202 = arith.mulf %197, %196 : vector<32x32xf32>
    %203 = arith.addf %201, %202 : vector<32x32xf32>
    %c0_108 = arith.constant 0 : index
    %c0_109 = arith.constant 0 : index
    %204 = vector.load %arg27[%c0_108, %c0_109] : memref<32x32xf32, #tpu.memory_space<vmem>>, vector<32x32xf32>
    tpu.vector_store %arg27[%c0_108, %c0_109], %203 {strides = array<i32>} : memref<32x32xf32, #tpu.memory_space<vmem>>, vector<32x32xf32>,
    %205 = math.tanh %203 : vector<32x32xf32>
    %206 = arith.mulf %199, %205 : vector<32x32xf32>
    %c0_110 = arith.constant 0 : index
    %c0_111 = arith.constant 0 : index
    %207 = vector.load %arg26[%c0_110, %c0_111] : memref<32x32xf32, #tpu.memory_space<vmem>>, vector<32x32xf32>
    tpu.vector_store %arg26[%c0_110, %c0_111], %206 {strides = array<i32>} : memref<32x32xf32, #tpu.memory_space<vmem>>, vector<32x32xf32>,
    %c7_i32 = arith.constant 7 : i32
    %c32_i32_112 = arith.constant 32 : i32
    %208 = arith.muli %c7_i32, %c32_i32_112 : i32
    %209 = tpu.assume_multiple %208, 8 : i32
    %210 = arith.index_cast %209 : i32 to index
    %c0_113 = arith.constant 0 : index
    %211 = vector.load %arg25[%210, %c0_113] : memref<256x128xf32, #tpu.memory_space<vmem>>, vector<32x128xf32>
    %c0_114 = arith.constant 0 : index
    %c0_115 = arith.constant 0 : index
    %212 = vector.load %arg26[%c0_114, %c0_115] : memref<32x32xf32, #tpu.memory_space<vmem>>, vector<32x32xf32>
    %c0_116 = arith.constant 0 : index
    %c0_117 = arith.constant 0 : index
    %213 = vector.load %arg2[%c0_116, %c0_117] : memref<32x128xf32, #tpu.memory_space<vmem>>, vector<32x128xf32>
    %cst_118 = arith.constant dense<0.000000e+00> : vector<32x128xf32>
    %214 = tpu.matmul %212, %213, %cst_118 {dimension_numbers = #tpu.dot_dimension_numbers<[1], [0], [0], [1], [0, 0, 1, 1], [], []>} : vector<32x32xf32>, vector<32x128xf32>, vector<32x128xf32> -> vector<32x128xf32>
    %215 = arith.addf %211, %214 : vector<32x128xf32>
    %216 = vector.extract_strided_slice %215 {offsets = [0, 0], sizes = [32, 96], strides = [1, 1]} : vector<32x128xf32> to vector<32x96xf32>
    %217 = arith.negf %216 : vector<32x96xf32>
    %218 = math.exp %217 : vector<32x96xf32>
    %cst_119 = arith.constant 1.000000e+00 : f32
    %219 = vector.broadcast %cst_119 : f32 to vector<32x96xf32>
    %220 = arith.addf %219, %218 : vector<32x96xf32>
    %221 = arith.divf %219, %220 : vector<32x96xf32>
    %222 = vector.extract_strided_slice %215 {offsets = [0, 96], sizes = [32, 32], strides = [1, 1]} : vector<32x128xf32> to vector<32x32xf32>
    %223 = math.tanh %222 : vector<32x32xf32>
    %224 = vector.extract_strided_slice %221 {offsets = [0, 0], sizes = [32, 32], strides = [1, 1]} : vector<32x96xf32> to vector<32x32xf32>
    %225 = vector.extract_strided_slice %221 {offsets = [0, 32], sizes = [32, 32], strides = [1, 1]} : vector<32x96xf32> to vector<32x32xf32>
    %226 = vector.extract_strided_slice %221 {offsets = [0, 64], sizes = [32, 32], strides = [1, 1]} : vector<32x96xf32> to vector<32x32xf32>
    %c0_120 = arith.constant 0 : index
    %c0_121 = arith.constant 0 : index
    %227 = vector.load %arg27[%c0_120, %c0_121] : memref<32x32xf32, #tpu.memory_space<vmem>>, vector<32x32xf32>
    %228 = arith.mulf %225, %227 : vector<32x32xf32>
    %229 = arith.mulf %224, %223 : vector<32x32xf32>
    %230 = arith.addf %228, %229 : vector<32x32xf32>
    %c0_122 = arith.constant 0 : index
    %c0_123 = arith.constant 0 : index
    %231 = vector.load %arg27[%c0_122, %c0_123] : memref<32x32xf32, #tpu.memory_space<vmem>>, vector<32x32xf32>
    tpu.vector_store %arg27[%c0_122, %c0_123], %230 {strides = array<i32>} : memref<32x32xf32, #tpu.memory_space<vmem>>, vector<32x32xf32>,
    %232 = math.tanh %230 : vector<32x32xf32>
    %233 = arith.mulf %226, %232 : vector<32x32xf32>
    %c0_124 = arith.constant 0 : index
    %c0_125 = arith.constant 0 : index
    %234 = vector.load %arg26[%c0_124, %c0_125] : memref<32x32xf32, #tpu.memory_space<vmem>>, vector<32x32xf32>
    tpu.vector_store %arg26[%c0_124, %c0_125], %233 {strides = array<i32>} : memref<32x32xf32, #tpu.memory_space<vmem>>, vector<32x32xf32>,
    %c8_i32 = arith.constant 8 : i32
    %c0_126 = arith.constant 0 : index
    %c0_127 = arith.constant 0 : index
    %235 = vector.load %arg26[%c0_126, %c0_127] : memref<32x32xf32, #tpu.memory_space<vmem>>, vector<32x32xf32>
    %c0_128 = arith.constant 0 : index
    %c0_129 = arith.constant 0 : index
    %236 = vector.load %arg4[%c0_128, %c0_129] : memref<32x32xf32, #tpu.memory_space<vmem>>, vector<32x32xf32>
    %237 = arith.addf %235, %236 : vector<32x32xf32>
    %c0_130 = arith.constant 0 : index
    %c0_131 = arith.constant 0 : index
    %238 = vector.load %arg5[%c0_130, %c0_131] : memref<32x32xf32, #tpu.memory_space<vmem>>, vector<32x32xf32>
    %c0_132 = arith.constant 0 : index
    %c0_133 = arith.constant 0 : index
    %c0_134 = arith.constant 0 : index
    %239 = vector.load %arg6[%c0_132, %c0_133, %c0_134] : memref<2x32x96xf32, #tpu.memory_space<vmem>>, vector<1x32x96xf32>
    %240 = vector.shape_cast %239 : vector<1x32x96xf32> to vector<32x96xf32>
    %cst_135 = arith.constant dense<0.000000e+00> : vector<32x96xf32>
    %241 = tpu.matmul %237, %240, %cst_135 {dimension_numbers = #tpu.dot_dimension_numbers<[1], [0], [0], [1], [0, 0, 1, 1], [], []>} : vector<32x32xf32>, vector<32x96xf32>, vector<32x96xf32> -> vector<32x96xf32>
    %c0_136 = arith.constant 0 : index
    %c0_137 = arith.constant 0 : index
    %c0_138 = arith.constant 0 : index
    %242 = vector.load %arg7[%c0_136, %c0_137, %c0_138] : memref<2x1x96xf32, #tpu.memory_space<vmem>>, vector<1x1x96xf32>
    %243 = vector.shape_cast %242 : vector<1x1x96xf32> to vector<1x96xf32>
    %244 = vector.broadcast %243 : vector<1x96xf32> to vector<32x96xf32>
    %245 = arith.addf %241, %244 : vector<32x96xf32>
    %c0_139 = arith.constant 0 : index
    %c0_140 = arith.constant 0 : index
    %c0_141 = arith.constant 0 : index
    %246 = vector.load %arg8[%c0_139, %c0_140, %c0_141] : memref<2x32x32xf32, #tpu.memory_space<vmem>>, vector<1x32x32xf32>
    %247 = vector.shape_cast %246 : vector<1x32x32xf32> to vector<32x32xf32>
    %cst_142 = arith.constant 0.000000e+00 : f32
    %248 = vector.broadcast %cst_142 : f32 to vector<32x32xf32>
    %249 = vector.extract_strided_slice %245 {offsets = [0, 0], sizes = [32, 8], strides = [1, 1]} : vector<32x96xf32> to vector<32x8xf32>
    %250 = vector.extract_strided_slice %245 {offsets = [0, 32], sizes = [32, 8], strides = [1, 1]} : vector<32x96xf32> to vector<32x8xf32>
    %251 = vector.extract_strided_slice %245 {offsets = [0, 64], sizes = [32, 8], strides = [1, 1]} : vector<32x96xf32> to vector<32x8xf32>
    "tpu.trace_start"() <{level = 10 : i32, message = "sd,td->st"}> : () -> ()
    %cst_143 = arith.constant dense<0.000000e+00> : vector<32x32xf32>
    %252 = tpu.matmul %249, %250, %cst_143 {dimension_numbers = #tpu.dot_dimension_numbers<[1], [1], [0], [0], [0, 0, 1, 0], [], []>} : vector<32x8xf32>, vector<32x8xf32>, vector<32x32xf32> -> vector<32x32xf32>
    "tpu.trace_stop"() : () -> ()
    %cst_144 = arith.constant 0.353553385 : f32
    %253 = vector.broadcast %cst_144 : f32 to vector<32x32xf32>
    %254 = arith.mulf %252, %253 : vector<32x32xf32>
    %255 = arith.addf %254, %238 : vector<32x32xf32>
    %cst_145 = arith.constant dense<0xFF800000> : vector<32xf32>
    %256 = vector.multi_reduction <maximumf>, %255, %cst_145 [1] : vector<32x32xf32> to vector<32xf32>
    %257 = vector.shape_cast %256 : vector<32xf32> to vector<32x1xf32>
    %258 = vector.broadcast %257 : vector<32x1xf32> to vector<32x32xf32>
    %259 = arith.subf %255, %258 : vector<32x32xf32>
    %260 = math.exp %259 : vector<32x32xf32>
    %cst_146 = arith.constant dense<0.000000e+00> : vector<32xf32>
    %261 = vector.multi_reduction <add>, %260, %cst_146 [1] : vector<32x32xf32> to vector<32xf32>
    %262 = vector.shape_cast %261 : vector<32xf32> to vector<32x1xf32>
    %263 = vector.broadcast %262 : vector<32x1xf32> to vector<32x32xf32>
    %264 = arith.divf %260, %263 : vector<32x32xf32>
    %cst_147 = arith.constant dense<0.000000e+00> : vector<32x8xf32>
    %265 = tpu.matmul %264, %251, %cst_147 {dimension_numbers = #tpu.dot_dimension_numbers<[1], [0], [0], [1], [0, 0, 1, 1], [], []>} : vector<32x32xf32>, vector<32x8xf32>, vector<32x8xf32> -> vector<32x8xf32>
    %266 = vector.extract_strided_slice %247 {offsets = [0, 0], sizes = [8, 32], strides = [1, 1]} : vector<32x32xf32> to vector<8x32xf32>
    %cst_148 = arith.constant dense<0.000000e+00> : vector<32x32xf32>
    %267 = tpu.matmul %265, %266, %cst_148 {dimension_numbers = #tpu.dot_dimension_numbers<[1], [0], [0], [1], [0, 0, 1, 1], [], []>} : vector<32x8xf32>, vector<8x32xf32>, vector<32x32xf32> -> vector<32x32xf32>
    %268 = arith.addf %248, %267 : vector<32x32xf32>
    %269 = vector.extract_strided_slice %245 {offsets = [0, 8], sizes = [32, 8], strides = [1, 1]} : vector<32x96xf32> to vector<32x8xf32>
    %270 = vector.extract_strided_slice %245 {offsets = [0, 40], sizes = [32, 8], strides = [1, 1]} : vector<32x96xf32> to vector<32x8xf32>
    %271 = vector.extract_strided_slice %245 {offsets = [0, 72], sizes = [32, 8], strides = [1, 1]} : vector<32x96xf32> to vector<32x8xf32>
    "tpu.trace_start"() <{level = 10 : i32, message = "sd,td->st"}> : () -> ()
    %cst_149 = arith.constant dense<0.000000e+00> : vector<32x32xf32>
    %272 = tpu.matmul %269, %270, %cst_149 {dimension_numbers = #tpu.dot_dimension_numbers<[1], [1], [0], [0], [0, 0, 1, 0], [], []>} : vector<32x8xf32>, vector<32x8xf32>, vector<32x32xf32> -> vector<32x32xf32>
    "tpu.trace_stop"() : () -> ()
    %cst_150 = arith.constant 0.353553385 : f32
    %273 = vector.broadcast %cst_150 : f32 to vector<32x32xf32>
    %274 = arith.mulf %272, %273 : vector<32x32xf32>
    %275 = arith.addf %274, %238 : vector<32x32xf32>
    %cst_151 = arith.constant dense<0xFF800000> : vector<32xf32>
    %276 = vector.multi_reduction <maximumf>, %275, %cst_151 [1] : vector<32x32xf32> to vector<32xf32>
    %277 = vector.shape_cast %276 : vector<32xf32> to vector<32x1xf32>
    %278 = vector.broadcast %277 : vector<32x1xf32> to vector<32x32xf32>
    %279 = arith.subf %275, %278 : vector<32x32xf32>
    %280 = math.exp %279 : vector<32x32xf32>
    %cst_152 = arith.constant dense<0.000000e+00> : vector<32xf32>
    %281 = vector.multi_reduction <add>, %280, %cst_152 [1] : vector<32x32xf32> to vector<32xf32>
    %282 = vector.shape_cast %281 : vector<32xf32> to vector<32x1xf32>
    %283 = vector.broadcast %282 : vector<32x1xf32> to vector<32x32xf32>
    %284 = arith.divf %280, %283 : vector<32x32xf32>
    %cst_153 = arith.constant dense<0.000000e+00> : vector<32x8xf32>
    %285 = tpu.matmul %284, %271, %cst_153 {dimension_numbers = #tpu.dot_dimension_numbers<[1], [0], [0], [1], [0, 0, 1, 1], [], []>} : vector<32x32xf32>, vector<32x8xf32>, vector<32x8xf32> -> vector<32x8xf32>
    %286 = vector.extract_strided_slice %247 {offsets = [8, 0], sizes = [8, 32], strides = [1, 1]} : vector<32x32xf32> to vector<8x32xf32>
    %cst_154 = arith.constant dense<0.000000e+00> : vector<32x32xf32>
    %287 = tpu.matmul %285, %286, %cst_154 {dimension_numbers = #tpu.dot_dimension_numbers<[1], [0], [0], [1], [0, 0, 1, 1], [], []>} : vector<32x8xf32>, vector<8x32xf32>, vector<32x32xf32> -> vector<32x32xf32>
    %288 = arith.addf %268, %287 : vector<32x32xf32>
    %289 = vector.extract_strided_slice %245 {offsets = [0, 16], sizes = [32, 8], strides = [1, 1]} : vector<32x96xf32> to vector<32x8xf32>
    %290 = vector.extract_strided_slice %245 {offsets = [0, 48], sizes = [32, 8], strides = [1, 1]} : vector<32x96xf32> to vector<32x8xf32>
    %291 = vector.extract_strided_slice %245 {offsets = [0, 80], sizes = [32, 8], strides = [1, 1]} : vector<32x96xf32> to vector<32x8xf32>
    "tpu.trace_start"() <{level = 10 : i32, message = "sd,td->st"}> : () -> ()
    %cst_155 = arith.constant dense<0.000000e+00> : vector<32x32xf32>
    %292 = tpu.matmul %289, %290, %cst_155 {dimension_numbers = #tpu.dot_dimension_numbers<[1], [1], [0], [0], [0, 0, 1, 0], [], []>} : vector<32x8xf32>, vector<32x8xf32>, vector<32x32xf32> -> vector<32x32xf32>
    "tpu.trace_stop"() : () -> ()
    %cst_156 = arith.constant 0.353553385 : f32
    %293 = vector.broadcast %cst_156 : f32 to vector<32x32xf32>
    %294 = arith.mulf %292, %293 : vector<32x32xf32>
    %295 = arith.addf %294, %238 : vector<32x32xf32>
    %cst_157 = arith.constant dense<0xFF800000> : vector<32xf32>
    %296 = vector.multi_reduction <maximumf>, %295, %cst_157 [1] : vector<32x32xf32> to vector<32xf32>
    %297 = vector.shape_cast %296 : vector<32xf32> to vector<32x1xf32>
    %298 = vector.broadcast %297 : vector<32x1xf32> to vector<32x32xf32>
    %299 = arith.subf %295, %298 : vector<32x32xf32>
    %300 = math.exp %299 : vector<32x32xf32>
    %cst_158 = arith.constant dense<0.000000e+00> : vector<32xf32>
    %301 = vector.multi_reduction <add>, %300, %cst_158 [1] : vector<32x32xf32> to vector<32xf32>
    %302 = vector.shape_cast %301 : vector<32xf32> to vector<32x1xf32>
    %303 = vector.broadcast %302 : vector<32x1xf32> to vector<32x32xf32>
    %304 = arith.divf %300, %303 : vector<32x32xf32>
    %cst_159 = arith.constant dense<0.000000e+00> : vector<32x8xf32>
    %305 = tpu.matmul %304, %291, %cst_159 {dimension_numbers = #tpu.dot_dimension_numbers<[1], [0], [0], [1], [0, 0, 1, 1], [], []>} : vector<32x32xf32>, vector<32x8xf32>, vector<32x8xf32> -> vector<32x8xf32>
    %306 = vector.extract_strided_slice %247 {offsets = [16, 0], sizes = [8, 32], strides = [1, 1]} : vector<32x32xf32> to vector<8x32xf32>
    %cst_160 = arith.constant dense<0.000000e+00> : vector<32x32xf32>
    %307 = tpu.matmul %305, %306, %cst_160 {dimension_numbers = #tpu.dot_dimension_numbers<[1], [0], [0], [1], [0, 0, 1, 1], [], []>} : vector<32x8xf32>, vector<8x32xf32>, vector<32x32xf32> -> vector<32x32xf32>
    %308 = arith.addf %288, %307 : vector<32x32xf32>
    %309 = vector.extract_strided_slice %245 {offsets = [0, 24], sizes = [32, 8], strides = [1, 1]} : vector<32x96xf32> to vector<32x8xf32>
    %310 = vector.extract_strided_slice %245 {offsets = [0, 56], sizes = [32, 8], strides = [1, 1]} : vector<32x96xf32> to vector<32x8xf32>
    %311 = vector.extract_strided_slice %245 {offsets = [0, 88], sizes = [32, 8], strides = [1, 1]} : vector<32x96xf32> to vector<32x8xf32>
    "tpu.trace_start"() <{level = 10 : i32, message = "sd,td->st"}> : () -> ()
    %cst_161 = arith.constant dense<0.000000e+00> : vector<32x32xf32>
    %312 = tpu.matmul %309, %310, %cst_161 {dimension_numbers = #tpu.dot_dimension_numbers<[1], [1], [0], [0], [0, 0, 1, 0], [], []>} : vector<32x8xf32>, vector<32x8xf32>, vector<32x32xf32> -> vector<32x32xf32>
    "tpu.trace_stop"() : () -> ()
    %cst_162 = arith.constant 0.353553385 : f32
    %313 = vector.broadcast %cst_162 : f32 to vector<32x32xf32>
    %314 = arith.mulf %312, %313 : vector<32x32xf32>
    %315 = arith.addf %314, %238 : vector<32x32xf32>
    %cst_163 = arith.constant dense<0xFF800000> : vector<32xf32>
    %316 = vector.multi_reduction <maximumf>, %315, %cst_163 [1] : vector<32x32xf32> to vector<32xf32>
    %317 = vector.shape_cast %316 : vector<32xf32> to vector<32x1xf32>
    %318 = vector.broadcast %317 : vector<32x1xf32> to vector<32x32xf32>
    %319 = arith.subf %315, %318 : vector<32x32xf32>
    %320 = math.exp %319 : vector<32x32xf32>
    %cst_164 = arith.constant dense<0.000000e+00> : vector<32xf32>
    %321 = vector.multi_reduction <add>, %320, %cst_164 [1] : vector<32x32xf32> to vector<32xf32>
    %322 = vector.shape_cast %321 : vector<32xf32> to vector<32x1xf32>
    %323 = vector.broadcast %322 : vector<32x1xf32> to vector<32x32xf32>
    %324 = arith.divf %320, %323 : vector<32x32xf32>
    %cst_165 = arith.constant dense<0.000000e+00> : vector<32x8xf32>
    %325 = tpu.matmul %324, %311, %cst_165 {dimension_numbers = #tpu.dot_dimension_numbers<[1], [0], [0], [1], [0, 0, 1, 1], [], []>} : vector<32x32xf32>, vector<32x8xf32>, vector<32x8xf32> -> vector<32x8xf32>
    %326 = vector.extract_strided_slice %247 {offsets = [24, 0], sizes = [8, 32], strides = [1, 1]} : vector<32x32xf32> to vector<8x32xf32>
    %cst_166 = arith.constant dense<0.000000e+00> : vector<32x32xf32>
    %327 = tpu.matmul %325, %326, %cst_166 {dimension_numbers = #tpu.dot_dimension_numbers<[1], [0], [0], [1], [0, 0, 1, 1], [], []>} : vector<32x8xf32>, vector<8x32xf32>, vector<32x32xf32> -> vector<32x32xf32>
    %328 = arith.addf %308, %327 : vector<32x32xf32>
    %c0_167 = arith.constant 0 : index
    %c0_168 = arith.constant 0 : index
    %c0_169 = arith.constant 0 : index
    %329 = vector.load %arg9[%c0_167, %c0_168, %c0_169] : memref<2x1x32xf32, #tpu.memory_space<vmem>>, vector<1x1x32xf32>
    %330 = vector.shape_cast %329 : vector<1x1x32xf32> to vector<1x32xf32>
    %331 = vector.broadcast %330 : vector<1x32xf32> to vector<32x32xf32>
    %332 = arith.addf %328, %331 : vector<32x32xf32>
    %333 = arith.addf %237, %332 : vector<32x32xf32>
    %c0_170 = arith.constant 0 : index
    %c0_171 = arith.constant 0 : index
    %c0_172 = arith.constant 0 : index
    %334 = vector.load %arg10[%c0_170, %c0_171, %c0_172] : memref<2x1x32xf32, #tpu.memory_space<vmem>>, vector<1x1x32xf32>
    %335 = vector.shape_cast %334 : vector<1x1x32xf32> to vector<1x32xf32>
    %c0_173 = arith.constant 0 : index
    %c0_174 = arith.constant 0 : index
    %c0_175 = arith.constant 0 : index
    %336 = vector.load %arg11[%c0_173, %c0_174, %c0_175] : memref<2x1x32xf32, #tpu.memory_space<vmem>>, vector<1x1x32xf32>
    %337 = vector.shape_cast %336 : vector<1x1x32xf32> to vector<1x32xf32>
    %cst_176 = arith.constant dense<0.000000e+00> : vector<32xf32>
    %338 = vector.multi_reduction <add>, %333, %cst_176 [1] : vector<32x32xf32> to vector<32xf32>
    %339 = vector.shape_cast %338 : vector<32xf32> to vector<32x1xf32>
    %cst_177 = arith.constant 3.200000e+01 : f32
    %340 = vector.broadcast %cst_177 : f32 to vector<32x1xf32>
    %341 = arith.divf %339, %340 : vector<32x1xf32>
    %342 = vector.broadcast %341 : vector<32x1xf32> to vector<32x32xf32>
    %343 = arith.subf %333, %342 : vector<32x32xf32>
    %344 = arith.mulf %343, %343 : vector<32x32xf32>
    %cst_178 = arith.constant dense<0.000000e+00> : vector<32xf32>
    %345 = vector.multi_reduction <add>, %344, %cst_178 [1] : vector<32x32xf32> to vector<32xf32>
    %346 = vector.shape_cast %345 : vector<32xf32> to vector<32x1xf32>
    %cst_179 = arith.constant 3.200000e+01 : f32
    %347 = vector.broadcast %cst_179 : f32 to vector<32x1xf32>
    %348 = arith.divf %346, %347 : vector<32x1xf32>
    %349 = vector.broadcast %341 : vector<32x1xf32> to vector<32x32xf32>
    %350 = arith.subf %333, %349 : vector<32x32xf32>
    %cst_180 = arith.constant 9.99999974E-6 : f32
    %351 = vector.broadcast %cst_180 : f32 to vector<32x1xf32>
    %352 = arith.addf %348, %351 : vector<32x1xf32>
    %353 = math.rsqrt %352 : vector<32x1xf32>
    %354 = vector.broadcast %353 : vector<32x1xf32> to vector<32x32xf32>
    %355 = arith.mulf %350, %354 : vector<32x32xf32>
    %356 = vector.broadcast %335 : vector<1x32xf32> to vector<32x32xf32>
    %357 = arith.mulf %355, %356 : vector<32x32xf32>
    %358 = vector.broadcast %337 : vector<1x32xf32> to vector<32x32xf32>
    %359 = arith.addf %357, %358 : vector<32x32xf32>
    %c0_181 = arith.constant 0 : index
    %c0_182 = arith.constant 0 : index
    %c0_183 = arith.constant 0 : index
    %360 = vector.load %arg12[%c0_181, %c0_182, %c0_183] : memref<2x32x32xf32, #tpu.memory_space<vmem>>, vector<1x32x32xf32>
    %361 = vector.shape_cast %360 : vector<1x32x32xf32> to vector<32x32xf32>
    %cst_184 = arith.constant dense<0.000000e+00> : vector<32x32xf32>
    %362 = tpu.matmul %359, %361, %cst_184 {dimension_numbers = #tpu.dot_dimension_numbers<[1], [0], [0], [1], [0, 0, 1, 1], [], []>} : vector<32x32xf32>, vector<32x32xf32>, vector<32x32xf32> -> vector<32x32xf32>
    %c0_185 = arith.constant 0 : index
    %c0_186 = arith.constant 0 : index
    %c0_187 = arith.constant 0 : index
    %363 = vector.load %arg13[%c0_185, %c0_186, %c0_187] : memref<2x1x32xf32, #tpu.memory_space<vmem>>, vector<1x1x32xf32>
    %364 = vector.shape_cast %363 : vector<1x1x32xf32> to vector<1x32xf32>
    %365 = vector.broadcast %364 : vector<1x32xf32> to vector<32x32xf32>
    %366 = arith.addf %362, %365 : vector<32x32xf32>
    %cst_188 = arith.constant 0.000000e+00 : f32
    %367 = vector.broadcast %cst_188 : f32 to vector<32x32xf32>
    %368 = arith.maximumf %366, %367 : vector<32x32xf32>
    %c0_189 = arith.constant 0 : index
    %c0_190 = arith.constant 0 : index
    %c0_191 = arith.constant 0 : index
    %369 = vector.load %arg14[%c0_189, %c0_190, %c0_191] : memref<2x32x32xf32, #tpu.memory_space<vmem>>, vector<1x32x32xf32>
    %370 = vector.shape_cast %369 : vector<1x32x32xf32> to vector<32x32xf32>
    %cst_192 = arith.constant dense<0.000000e+00> : vector<32x32xf32>
    %371 = tpu.matmul %368, %370, %cst_192 {dimension_numbers = #tpu.dot_dimension_numbers<[1], [0], [0], [1], [0, 0, 1, 1], [], []>} : vector<32x32xf32>, vector<32x32xf32>, vector<32x32xf32> -> vector<32x32xf32>
    %c0_193 = arith.constant 0 : index
    %c0_194 = arith.constant 0 : index
    %c0_195 = arith.constant 0 : index
    %372 = vector.load %arg15[%c0_193, %c0_194, %c0_195] : memref<2x1x32xf32, #tpu.memory_space<vmem>>, vector<1x1x32xf32>
    %373 = vector.shape_cast %372 : vector<1x1x32xf32> to vector<1x32xf32>
    %374 = vector.broadcast %373 : vector<1x32xf32> to vector<32x32xf32>
    %375 = arith.addf %371, %374 : vector<32x32xf32>
    %376 = arith.addf %359, %375 : vector<32x32xf32>
    %c0_196 = arith.constant 0 : index
    %c0_197 = arith.constant 0 : index
    %c0_198 = arith.constant 0 : index
    %377 = vector.load %arg16[%c0_196, %c0_197, %c0_198] : memref<2x1x32xf32, #tpu.memory_space<vmem>>, vector<1x1x32xf32>
    %378 = vector.shape_cast %377 : vector<1x1x32xf32> to vector<1x32xf32>
    %c0_199 = arith.constant 0 : index
    %c0_200 = arith.constant 0 : index
    %c0_201 = arith.constant 0 : index
    %379 = vector.load %arg17[%c0_199, %c0_200, %c0_201] : memref<2x1x32xf32, #tpu.memory_space<vmem>>, vector<1x1x32xf32>
    %380 = vector.shape_cast %379 : vector<1x1x32xf32> to vector<1x32xf32>
    %cst_202 = arith.constant dense<0.000000e+00> : vector<32xf32>
    %381 = vector.multi_reduction <add>, %376, %cst_202 [1] : vector<32x32xf32> to vector<32xf32>
    %382 = vector.shape_cast %381 : vector<32xf32> to vector<32x1xf32>
    %cst_203 = arith.constant 3.200000e+01 : f32
    %383 = vector.broadcast %cst_203 : f32 to vector<32x1xf32>
    %384 = arith.divf %382, %383 : vector<32x1xf32>
    %385 = vector.broadcast %384 : vector<32x1xf32> to vector<32x32xf32>
    %386 = arith.subf %376, %385 : vector<32x32xf32>
    %387 = arith.mulf %386, %386 : vector<32x32xf32>
    %cst_204 = arith.constant dense<0.000000e+00> : vector<32xf32>
    %388 = vector.multi_reduction <add>, %387, %cst_204 [1] : vector<32x32xf32> to vector<32xf32>
    %389 = vector.shape_cast %388 : vector<32xf32> to vector<32x1xf32>
    %cst_205 = arith.constant 3.200000e+01 : f32
    %390 = vector.broadcast %cst_205 : f32 to vector<32x1xf32>
    %391 = arith.divf %389, %390 : vector<32x1xf32>
    %392 = vector.broadcast %384 : vector<32x1xf32> to vector<32x32xf32>
    %393 = arith.subf %376, %392 : vector<32x32xf32>
    %cst_206 = arith.constant 9.99999974E-6 : f32
    %394 = vector.broadcast %cst_206 : f32 to vector<32x1xf32>
    %395 = arith.addf %391, %394 : vector<32x1xf32>
    %396 = math.rsqrt %395 : vector<32x1xf32>
    %397 = vector.broadcast %396 : vector<32x1xf32> to vector<32x32xf32>
    %398 = arith.mulf %393, %397 : vector<32x32xf32>
    %399 = vector.broadcast %378 : vector<1x32xf32> to vector<32x32xf32>
    %400 = arith.mulf %398, %399 : vector<32x32xf32>
    %401 = vector.broadcast %380 : vector<1x32xf32> to vector<32x32xf32>
    %402 = arith.addf %400, %401 : vector<32x32xf32>
    %c1_207 = arith.constant 1 : index
    %c0_208 = arith.constant 0 : index
    %c0_209 = arith.constant 0 : index
    %403 = vector.load %arg6[%c1_207, %c0_208, %c0_209] : memref<2x32x96xf32, #tpu.memory_space<vmem>>, vector<1x32x96xf32>
    %404 = vector.shape_cast %403 : vector<1x32x96xf32> to vector<32x96xf32>
    %cst_210 = arith.constant dense<0.000000e+00> : vector<32x96xf32>
    %405 = tpu.matmul %402, %404, %cst_210 {dimension_numbers = #tpu.dot_dimension_numbers<[1], [0], [0], [1], [0, 0, 1, 1], [], []>} : vector<32x32xf32>, vector<32x96xf32>, vector<32x96xf32> -> vector<32x96xf32>
    %c1_211 = arith.constant 1 : index
    %c0_212 = arith.constant 0 : index
    %c0_213 = arith.constant 0 : index
    %406 = vector.load %arg7[%c1_211, %c0_212, %c0_213] : memref<2x1x96xf32, #tpu.memory_space<vmem>>, vector<1x1x96xf32>
    %407 = vector.shape_cast %406 : vector<1x1x96xf32> to vector<1x96xf32>
    %408 = vector.broadcast %407 : vector<1x96xf32> to vector<32x96xf32>
    %409 = arith.addf %405, %408 : vector<32x96xf32>
    %c1_214 = arith.constant 1 : index
    %c0_215 = arith.constant 0 : index
    %c0_216 = arith.constant 0 : index
    %410 = vector.load %arg8[%c1_214, %c0_215, %c0_216] : memref<2x32x32xf32, #tpu.memory_space<vmem>>, vector<1x32x32xf32>
    %411 = vector.shape_cast %410 : vector<1x32x32xf32> to vector<32x32xf32>
    %cst_217 = arith.constant 0.000000e+00 : f32
    %412 = vector.broadcast %cst_217 : f32 to vector<32x32xf32>
    %413 = vector.extract_strided_slice %409 {offsets = [0, 0], sizes = [32, 8], strides = [1, 1]} : vector<32x96xf32> to vector<32x8xf32>
    %414 = vector.extract_strided_slice %409 {offsets = [0, 32], sizes = [32, 8], strides = [1, 1]} : vector<32x96xf32> to vector<32x8xf32>
    %415 = vector.extract_strided_slice %409 {offsets = [0, 64], sizes = [32, 8], strides = [1, 1]} : vector<32x96xf32> to vector<32x8xf32>
    "tpu.trace_start"() <{level = 10 : i32, message = "sd,td->st"}> : () -> ()
    %cst_218 = arith.constant dense<0.000000e+00> : vector<32x32xf32>
    %416 = tpu.matmul %413, %414, %cst_218 {dimension_numbers = #tpu.dot_dimension_numbers<[1], [1], [0], [0], [0, 0, 1, 0], [], []>} : vector<32x8xf32>, vector<32x8xf32>, vector<32x32xf32> -> vector<32x32xf32>
    "tpu.trace_stop"() : () -> ()
    %cst_219 = arith.constant 0.353553385 : f32
    %417 = vector.broadcast %cst_219 : f32 to vector<32x32xf32>
    %418 = arith.mulf %416, %417 : vector<32x32xf32>
    %419 = arith.addf %418, %238 : vector<32x32xf32>
    %cst_220 = arith.constant dense<0xFF800000> : vector<32xf32>
    %420 = vector.multi_reduction <maximumf>, %419, %cst_220 [1] : vector<32x32xf32> to vector<32xf32>
    %421 = vector.shape_cast %420 : vector<32xf32> to vector<32x1xf32>
    %422 = vector.broadcast %421 : vector<32x1xf32> to vector<32x32xf32>
    %423 = arith.subf %419, %422 : vector<32x32xf32>
    %424 = math.exp %423 : vector<32x32xf32>
    %cst_221 = arith.constant dense<0.000000e+00> : vector<32xf32>
    %425 = vector.multi_reduction <add>, %424, %cst_221 [1] : vector<32x32xf32> to vector<32xf32>
    %426 = vector.shape_cast %425 : vector<32xf32> to vector<32x1xf32>
    %427 = vector.broadcast %426 : vector<32x1xf32> to vector<32x32xf32>
    %428 = arith.divf %424, %427 : vector<32x32xf32>
    %cst_222 = arith.constant dense<0.000000e+00> : vector<32x8xf32>
    %429 = tpu.matmul %428, %415, %cst_222 {dimension_numbers = #tpu.dot_dimension_numbers<[1], [0], [0], [1], [0, 0, 1, 1], [], []>} : vector<32x32xf32>, vector<32x8xf32>, vector<32x8xf32> -> vector<32x8xf32>
    %430 = vector.extract_strided_slice %411 {offsets = [0, 0], sizes = [8, 32], strides = [1, 1]} : vector<32x32xf32> to vector<8x32xf32>
    %cst_223 = arith.constant dense<0.000000e+00> : vector<32x32xf32>
    %431 = tpu.matmul %429, %430, %cst_223 {dimension_numbers = #tpu.dot_dimension_numbers<[1], [0], [0], [1], [0, 0, 1, 1], [], []>} : vector<32x8xf32>, vector<8x32xf32>, vector<32x32xf32> -> vector<32x32xf32>
    %432 = arith.addf %412, %431 : vector<32x32xf32>
    %433 = vector.extract_strided_slice %409 {offsets = [0, 8], sizes = [32, 8], strides = [1, 1]} : vector<32x96xf32> to vector<32x8xf32>
    %434 = vector.extract_strided_slice %409 {offsets = [0, 40], sizes = [32, 8], strides = [1, 1]} : vector<32x96xf32> to vector<32x8xf32>
    %435 = vector.extract_strided_slice %409 {offsets = [0, 72], sizes = [32, 8], strides = [1, 1]} : vector<32x96xf32> to vector<32x8xf32>
    "tpu.trace_start"() <{level = 10 : i32, message = "sd,td->st"}> : () -> ()
    %cst_224 = arith.constant dense<0.000000e+00> : vector<32x32xf32>
    %436 = tpu.matmul %433, %434, %cst_224 {dimension_numbers = #tpu.dot_dimension_numbers<[1], [1], [0], [0], [0, 0, 1, 0], [], []>} : vector<32x8xf32>, vector<32x8xf32>, vector<32x32xf32> -> vector<32x32xf32>
    "tpu.trace_stop"() : () -> ()
    %cst_225 = arith.constant 0.353553385 : f32
    %437 = vector.broadcast %cst_225 : f32 to vector<32x32xf32>
    %438 = arith.mulf %436, %437 : vector<32x32xf32>
    %439 = arith.addf %438, %238 : vector<32x32xf32>
    %cst_226 = arith.constant dense<0xFF800000> : vector<32xf32>
    %440 = vector.multi_reduction <maximumf>, %439, %cst_226 [1] : vector<32x32xf32> to vector<32xf32>
    %441 = vector.shape_cast %440 : vector<32xf32> to vector<32x1xf32>
    %442 = vector.broadcast %441 : vector<32x1xf32> to vector<32x32xf32>
    %443 = arith.subf %439, %442 : vector<32x32xf32>
    %444 = math.exp %443 : vector<32x32xf32>
    %cst_227 = arith.constant dense<0.000000e+00> : vector<32xf32>
    %445 = vector.multi_reduction <add>, %444, %cst_227 [1] : vector<32x32xf32> to vector<32xf32>
    %446 = vector.shape_cast %445 : vector<32xf32> to vector<32x1xf32>
    %447 = vector.broadcast %446 : vector<32x1xf32> to vector<32x32xf32>
    %448 = arith.divf %444, %447 : vector<32x32xf32>
    %cst_228 = arith.constant dense<0.000000e+00> : vector<32x8xf32>
    %449 = tpu.matmul %448, %435, %cst_228 {dimension_numbers = #tpu.dot_dimension_numbers<[1], [0], [0], [1], [0, 0, 1, 1], [], []>} : vector<32x32xf32>, vector<32x8xf32>, vector<32x8xf32> -> vector<32x8xf32>
    %450 = vector.extract_strided_slice %411 {offsets = [8, 0], sizes = [8, 32], strides = [1, 1]} : vector<32x32xf32> to vector<8x32xf32>
    %cst_229 = arith.constant dense<0.000000e+00> : vector<32x32xf32>
    %451 = tpu.matmul %449, %450, %cst_229 {dimension_numbers = #tpu.dot_dimension_numbers<[1], [0], [0], [1], [0, 0, 1, 1], [], []>} : vector<32x8xf32>, vector<8x32xf32>, vector<32x32xf32> -> vector<32x32xf32>
    %452 = arith.addf %432, %451 : vector<32x32xf32>
    %453 = vector.extract_strided_slice %409 {offsets = [0, 16], sizes = [32, 8], strides = [1, 1]} : vector<32x96xf32> to vector<32x8xf32>
    %454 = vector.extract_strided_slice %409 {offsets = [0, 48], sizes = [32, 8], strides = [1, 1]} : vector<32x96xf32> to vector<32x8xf32>
    %455 = vector.extract_strided_slice %409 {offsets = [0, 80], sizes = [32, 8], strides = [1, 1]} : vector<32x96xf32> to vector<32x8xf32>
    "tpu.trace_start"() <{level = 10 : i32, message = "sd,td->st"}> : () -> ()
    %cst_230 = arith.constant dense<0.000000e+00> : vector<32x32xf32>
    %456 = tpu.matmul %453, %454, %cst_230 {dimension_numbers = #tpu.dot_dimension_numbers<[1], [1], [0], [0], [0, 0, 1, 0], [], []>} : vector<32x8xf32>, vector<32x8xf32>, vector<32x32xf32> -> vector<32x32xf32>
    "tpu.trace_stop"() : () -> ()
    %cst_231 = arith.constant 0.353553385 : f32
    %457 = vector.broadcast %cst_231 : f32 to vector<32x32xf32>
    %458 = arith.mulf %456, %457 : vector<32x32xf32>
    %459 = arith.addf %458, %238 : vector<32x32xf32>
    %cst_232 = arith.constant dense<0xFF800000> : vector<32xf32>
    %460 = vector.multi_reduction <maximumf>, %459, %cst_232 [1] : vector<32x32xf32> to vector<32xf32>
    %461 = vector.shape_cast %460 : vector<32xf32> to vector<32x1xf32>
    %462 = vector.broadcast %461 : vector<32x1xf32> to vector<32x32xf32>
    %463 = arith.subf %459, %462 : vector<32x32xf32>
    %464 = math.exp %463 : vector<32x32xf32>
    %cst_233 = arith.constant dense<0.000000e+00> : vector<32xf32>
    %465 = vector.multi_reduction <add>, %464, %cst_233 [1] : vector<32x32xf32> to vector<32xf32>
    %466 = vector.shape_cast %465 : vector<32xf32> to vector<32x1xf32>
    %467 = vector.broadcast %466 : vector<32x1xf32> to vector<32x32xf32>
    %468 = arith.divf %464, %467 : vector<32x32xf32>
    %cst_234 = arith.constant dense<0.000000e+00> : vector<32x8xf32>
    %469 = tpu.matmul %468, %455, %cst_234 {dimension_numbers = #tpu.dot_dimension_numbers<[1], [0], [0], [1], [0, 0, 1, 1], [], []>} : vector<32x32xf32>, vector<32x8xf32>, vector<32x8xf32> -> vector<32x8xf32>
    %470 = vector.extract_strided_slice %411 {offsets = [16, 0], sizes = [8, 32], strides = [1, 1]} : vector<32x32xf32> to vector<8x32xf32>
    %cst_235 = arith.constant dense<0.000000e+00> : vector<32x32xf32>
    %471 = tpu.matmul %469, %470, %cst_235 {dimension_numbers = #tpu.dot_dimension_numbers<[1], [0], [0], [1], [0, 0, 1, 1], [], []>} : vector<32x8xf32>, vector<8x32xf32>, vector<32x32xf32> -> vector<32x32xf32>
    %472 = arith.addf %452, %471 : vector<32x32xf32>
    %473 = vector.extract_strided_slice %409 {offsets = [0, 24], sizes = [32, 8], strides = [1, 1]} : vector<32x96xf32> to vector<32x8xf32>
    %474 = vector.extract_strided_slice %409 {offsets = [0, 56], sizes = [32, 8], strides = [1, 1]} : vector<32x96xf32> to vector<32x8xf32>
    %475 = vector.extract_strided_slice %409 {offsets = [0, 88], sizes = [32, 8], strides = [1, 1]} : vector<32x96xf32> to vector<32x8xf32>
    "tpu.trace_start"() <{level = 10 : i32, message = "sd,td->st"}> : () -> ()
    %cst_236 = arith.constant dense<0.000000e+00> : vector<32x32xf32>
    %476 = tpu.matmul %473, %474, %cst_236 {dimension_numbers = #tpu.dot_dimension_numbers<[1], [1], [0], [0], [0, 0, 1, 0], [], []>} : vector<32x8xf32>, vector<32x8xf32>, vector<32x32xf32> -> vector<32x32xf32>
    "tpu.trace_stop"() : () -> ()
    %cst_237 = arith.constant 0.353553385 : f32
    %477 = vector.broadcast %cst_237 : f32 to vector<32x32xf32>
    %478 = arith.mulf %476, %477 : vector<32x32xf32>
    %479 = arith.addf %478, %238 : vector<32x32xf32>
    %cst_238 = arith.constant dense<0xFF800000> : vector<32xf32>
    %480 = vector.multi_reduction <maximumf>, %479, %cst_238 [1] : vector<32x32xf32> to vector<32xf32>
    %481 = vector.shape_cast %480 : vector<32xf32> to vector<32x1xf32>
    %482 = vector.broadcast %481 : vector<32x1xf32> to vector<32x32xf32>
    %483 = arith.subf %479, %482 : vector<32x32xf32>
    %484 = math.exp %483 : vector<32x32xf32>
    %cst_239 = arith.constant dense<0.000000e+00> : vector<32xf32>
    %485 = vector.multi_reduction <add>, %484, %cst_239 [1] : vector<32x32xf32> to vector<32xf32>
    %486 = vector.shape_cast %485 : vector<32xf32> to vector<32x1xf32>
    %487 = vector.broadcast %486 : vector<32x1xf32> to vector<32x32xf32>
    %488 = arith.divf %484, %487 : vector<32x32xf32>
    %cst_240 = arith.constant dense<0.000000e+00> : vector<32x8xf32>
    %489 = tpu.matmul %488, %475, %cst_240 {dimension_numbers = #tpu.dot_dimension_numbers<[1], [0], [0], [1], [0, 0, 1, 1], [], []>} : vector<32x32xf32>, vector<32x8xf32>, vector<32x8xf32> -> vector<32x8xf32>
    %490 = vector.extract_strided_slice %411 {offsets = [24, 0], sizes = [8, 32], strides = [1, 1]} : vector<32x32xf32> to vector<8x32xf32>
    %cst_241 = arith.constant dense<0.000000e+00> : vector<32x32xf32>
    %491 = tpu.matmul %489, %490, %cst_241 {dimension_numbers = #tpu.dot_dimension_numbers<[1], [0], [0], [1], [0, 0, 1, 1], [], []>} : vector<32x8xf32>, vector<8x32xf32>, vector<32x32xf32> -> vector<32x32xf32>
    %492 = arith.addf %472, %491 : vector<32x32xf32>
    %c1_242 = arith.constant 1 : index
    %c0_243 = arith.constant 0 : index
    %c0_244 = arith.constant 0 : index
    %493 = vector.load %arg9[%c1_242, %c0_243, %c0_244] : memref<2x1x32xf32, #tpu.memory_space<vmem>>, vector<1x1x32xf32>
    %494 = vector.shape_cast %493 : vector<1x1x32xf32> to vector<1x32xf32>
    %495 = vector.broadcast %494 : vector<1x32xf32> to vector<32x32xf32>
    %496 = arith.addf %492, %495 : vector<32x32xf32>
    %497 = arith.addf %402, %496 : vector<32x32xf32>
    %c1_245 = arith.constant 1 : index
    %c0_246 = arith.constant 0 : index
    %c0_247 = arith.constant 0 : index
    %498 = vector.load %arg10[%c1_245, %c0_246, %c0_247] : memref<2x1x32xf32, #tpu.memory_space<vmem>>, vector<1x1x32xf32>
    %499 = vector.shape_cast %498 : vector<1x1x32xf32> to vector<1x32xf32>
    %c1_248 = arith.constant 1 : index
    %c0_249 = arith.constant 0 : index
    %c0_250 = arith.constant 0 : index
    %500 = vector.load %arg11[%c1_248, %c0_249, %c0_250] : memref<2x1x32xf32, #tpu.memory_space<vmem>>, vector<1x1x32xf32>
    %501 = vector.shape_cast %500 : vector<1x1x32xf32> to vector<1x32xf32>
    %cst_251 = arith.constant dense<0.000000e+00> : vector<32xf32>
    %502 = vector.multi_reduction <add>, %497, %cst_251 [1] : vector<32x32xf32> to vector<32xf32>
    %503 = vector.shape_cast %502 : vector<32xf32> to vector<32x1xf32>
    %cst_252 = arith.constant 3.200000e+01 : f32
    %504 = vector.broadcast %cst_252 : f32 to vector<32x1xf32>
    %505 = arith.divf %503, %504 : vector<32x1xf32>
    %506 = vector.broadcast %505 : vector<32x1xf32> to vector<32x32xf32>
    %507 = arith.subf %497, %506 : vector<32x32xf32>
    %508 = arith.mulf %507, %507 : vector<32x32xf32>
    %cst_253 = arith.constant dense<0.000000e+00> : vector<32xf32>
    %509 = vector.multi_reduction <add>, %508, %cst_253 [1] : vector<32x32xf32> to vector<32xf32>
    %510 = vector.shape_cast %509 : vector<32xf32> to vector<32x1xf32>
    %cst_254 = arith.constant 3.200000e+01 : f32
    %511 = vector.broadcast %cst_254 : f32 to vector<32x1xf32>
    %512 = arith.divf %510, %511 : vector<32x1xf32>
    %513 = vector.broadcast %505 : vector<32x1xf32> to vector<32x32xf32>
    %514 = arith.subf %497, %513 : vector<32x32xf32>
    %cst_255 = arith.constant 9.99999974E-6 : f32
    %515 = vector.broadcast %cst_255 : f32 to vector<32x1xf32>
    %516 = arith.addf %512, %515 : vector<32x1xf32>
    %517 = math.rsqrt %516 : vector<32x1xf32>
    %518 = vector.broadcast %517 : vector<32x1xf32> to vector<32x32xf32>
    %519 = arith.mulf %514, %518 : vector<32x32xf32>
    %520 = vector.broadcast %499 : vector<1x32xf32> to vector<32x32xf32>
    %521 = arith.mulf %519, %520 : vector<32x32xf32>
    %522 = vector.broadcast %501 : vector<1x32xf32> to vector<32x32xf32>
    %523 = arith.addf %521, %522 : vector<32x32xf32>
    %c1_256 = arith.constant 1 : index
    %c0_257 = arith.constant 0 : index
    %c0_258 = arith.constant 0 : index
    %524 = vector.load %arg12[%c1_256, %c0_257, %c0_258] : memref<2x32x32xf32, #tpu.memory_space<vmem>>, vector<1x32x32xf32>
    %525 = vector.shape_cast %524 : vector<1x32x32xf32> to vector<32x32xf32>
    %cst_259 = arith.constant dense<0.000000e+00> : vector<32x32xf32>
    %526 = tpu.matmul %523, %525, %cst_259 {dimension_numbers = #tpu.dot_dimension_numbers<[1], [0], [0], [1], [0, 0, 1, 1], [], []>} : vector<32x32xf32>, vector<32x32xf32>, vector<32x32xf32> -> vector<32x32xf32>
    %c1_260 = arith.constant 1 : index
    %c0_261 = arith.constant 0 : index
    %c0_262 = arith.constant 0 : index
    %527 = vector.load %arg13[%c1_260, %c0_261, %c0_262] : memref<2x1x32xf32, #tpu.memory_space<vmem>>, vector<1x1x32xf32>
    %528 = vector.shape_cast %527 : vector<1x1x32xf32> to vector<1x32xf32>
    %529 = vector.broadcast %528 : vector<1x32xf32> to vector<32x32xf32>
    %530 = arith.addf %526, %529 : vector<32x32xf32>
    %cst_263 = arith.constant 0.000000e+00 : f32
    %531 = vector.broadcast %cst_263 : f32 to vector<32x32xf32>
    %532 = arith.maximumf %530, %531 : vector<32x32xf32>
    %c1_264 = arith.constant 1 : index
    %c0_265 = arith.constant 0 : index
    %c0_266 = arith.constant 0 : index
    %533 = vector.load %arg14[%c1_264, %c0_265, %c0_266] : memref<2x32x32xf32, #tpu.memory_space<vmem>>, vector<1x32x32xf32>
    %534 = vector.shape_cast %533 : vector<1x32x32xf32> to vector<32x32xf32>
    %cst_267 = arith.constant dense<0.000000e+00> : vector<32x32xf32>
    %535 = tpu.matmul %532, %534, %cst_267 {dimension_numbers = #tpu.dot_dimension_numbers<[1], [0], [0], [1], [0, 0, 1, 1], [], []>} : vector<32x32xf32>, vector<32x32xf32>, vector<32x32xf32> -> vector<32x32xf32>
    %c1_268 = arith.constant 1 : index
    %c0_269 = arith.constant 0 : index
    %c0_270 = arith.constant 0 : index
    %536 = vector.load %arg15[%c1_268, %c0_269, %c0_270] : memref<2x1x32xf32, #tpu.memory_space<vmem>>, vector<1x1x32xf32>
    %537 = vector.shape_cast %536 : vector<1x1x32xf32> to vector<1x32xf32>
    %538 = vector.broadcast %537 : vector<1x32xf32> to vector<32x32xf32>
    %539 = arith.addf %535, %538 : vector<32x32xf32>
    %540 = arith.addf %523, %539 : vector<32x32xf32>
    %c1_271 = arith.constant 1 : index
    %c0_272 = arith.constant 0 : index
    %c0_273 = arith.constant 0 : index
    %541 = vector.load %arg16[%c1_271, %c0_272, %c0_273] : memref<2x1x32xf32, #tpu.memory_space<vmem>>, vector<1x1x32xf32>
    %542 = vector.shape_cast %541 : vector<1x1x32xf32> to vector<1x32xf32>
    %c1_274 = arith.constant 1 : index
    %c0_275 = arith.constant 0 : index
    %c0_276 = arith.constant 0 : index
    %543 = vector.load %arg17[%c1_274, %c0_275, %c0_276] : memref<2x1x32xf32, #tpu.memory_space<vmem>>, vector<1x1x32xf32>
    %544 = vector.shape_cast %543 : vector<1x1x32xf32> to vector<1x32xf32>
    %cst_277 = arith.constant dense<0.000000e+00> : vector<32xf32>
    %545 = vector.multi_reduction <add>, %540, %cst_277 [1] : vector<32x32xf32> to vector<32xf32>
    %546 = vector.shape_cast %545 : vector<32xf32> to vector<32x1xf32>
    %cst_278 = arith.constant 3.200000e+01 : f32
    %547 = vector.broadcast %cst_278 : f32 to vector<32x1xf32>
    %548 = arith.divf %546, %547 : vector<32x1xf32>
    %549 = vector.broadcast %548 : vector<32x1xf32> to vector<32x32xf32>
    %550 = arith.subf %540, %549 : vector<32x32xf32>
    %551 = arith.mulf %550, %550 : vector<32x32xf32>
    %cst_279 = arith.constant dense<0.000000e+00> : vector<32xf32>
    %552 = vector.multi_reduction <add>, %551, %cst_279 [1] : vector<32x32xf32> to vector<32xf32>
    %553 = vector.shape_cast %552 : vector<32xf32> to vector<32x1xf32>
    %cst_280 = arith.constant 3.200000e+01 : f32
    %554 = vector.broadcast %cst_280 : f32 to vector<32x1xf32>
    %555 = arith.divf %553, %554 : vector<32x1xf32>
    %556 = vector.broadcast %548 : vector<32x1xf32> to vector<32x32xf32>
    %557 = arith.subf %540, %556 : vector<32x32xf32>
    %cst_281 = arith.constant 9.99999974E-6 : f32
    %558 = vector.broadcast %cst_281 : f32 to vector<32x1xf32>
    %559 = arith.addf %555, %558 : vector<32x1xf32>
    %560 = math.rsqrt %559 : vector<32x1xf32>
    %561 = vector.broadcast %560 : vector<32x1xf32> to vector<32x32xf32>
    %562 = arith.mulf %557, %561 : vector<32x32xf32>
    %563 = vector.broadcast %542 : vector<1x32xf32> to vector<32x32xf32>
    %564 = arith.mulf %562, %563 : vector<32x32xf32>
    %565 = vector.broadcast %544 : vector<1x32xf32> to vector<32x32xf32>
    %566 = arith.addf %564, %565 : vector<32x32xf32>
    %c0_282 = arith.constant 0 : index
    %c0_283 = arith.constant 0 : index
    %567 = vector.load %arg18[%c0_282, %c0_283] : memref<32x352xf32, #tpu.memory_space<vmem>>, vector<32x352xf32>
    %cst_284 = arith.constant dense<0.000000e+00> : vector<32x352xf32>
    %568 = tpu.matmul %566, %567, %cst_284 {dimension_numbers = #tpu.dot_dimension_numbers<[1], [0], [0], [1], [0, 0, 1, 1], [], []>} : vector<32x32xf32>, vector<32x352xf32>, vector<32x352xf32> -> vector<32x352xf32>
    %c0_285 = arith.constant 0 : index
    %c0_286 = arith.constant 0 : index
    %569 = vector.load %arg19[%c0_285, %c0_286] : memref<32x352xf32, #tpu.memory_space<vmem>>, vector<32x352xf32>
    %570 = arith.mulf %568, %569 : vector<32x352xf32>
    %cst_287 = arith.constant 0.000000e+00 : f32
    %571 = vector.broadcast %cst_287 : f32 to vector<32x32xf32>
    %572 = vector.extract_strided_slice %570 {offsets = [0, 0], sizes = [32, 32], strides = [1, 1]} : vector<32x352xf32> to vector<32x32xf32>
    %573 = arith.addf %571, %572 : vector<32x32xf32>
    %574 = vector.extract_strided_slice %570 {offsets = [0, 32], sizes = [32, 32], strides = [1, 1]} : vector<32x352xf32> to vector<32x32xf32>
    %575 = arith.addf %573, %574 : vector<32x32xf32>
    %576 = vector.extract_strided_slice %570 {offsets = [0, 64], sizes = [32, 32], strides = [1, 1]} : vector<32x352xf32> to vector<32x32xf32>
    %577 = arith.addf %575, %576 : vector<32x32xf32>
    %578 = vector.extract_strided_slice %570 {offsets = [0, 96], sizes = [32, 32], strides = [1, 1]} : vector<32x352xf32> to vector<32x32xf32>
    %579 = arith.addf %577, %578 : vector<32x32xf32>
    %580 = vector.extract_strided_slice %570 {offsets = [0, 128], sizes = [32, 32], strides = [1, 1]} : vector<32x352xf32> to vector<32x32xf32>
    %581 = arith.addf %579, %580 : vector<32x32xf32>
    %582 = vector.extract_strided_slice %570 {offsets = [0, 160], sizes = [32, 32], strides = [1, 1]} : vector<32x352xf32> to vector<32x32xf32>
    %583 = arith.addf %581, %582 : vector<32x32xf32>
    %584 = vector.extract_strided_slice %570 {offsets = [0, 192], sizes = [32, 32], strides = [1, 1]} : vector<32x352xf32> to vector<32x32xf32>
    %585 = arith.addf %583, %584 : vector<32x32xf32>
    %586 = vector.extract_strided_slice %570 {offsets = [0, 224], sizes = [32, 32], strides = [1, 1]} : vector<32x352xf32> to vector<32x32xf32>
    %587 = arith.addf %585, %586 : vector<32x32xf32>
    %588 = vector.extract_strided_slice %570 {offsets = [0, 256], sizes = [32, 32], strides = [1, 1]} : vector<32x352xf32> to vector<32x32xf32>
    %589 = arith.addf %587, %588 : vector<32x32xf32>
    %590 = vector.extract_strided_slice %570 {offsets = [0, 288], sizes = [32, 32], strides = [1, 1]} : vector<32x352xf32> to vector<32x32xf32>
    %591 = arith.addf %589, %590 : vector<32x32xf32>
    %592 = vector.extract_strided_slice %570 {offsets = [0, 320], sizes = [32, 32], strides = [1, 1]} : vector<32x352xf32> to vector<32x32xf32>
    %593 = arith.addf %591, %592 : vector<32x32xf32>
    %c0_288 = arith.constant 0 : index
    %c0_289 = arith.constant 0 : index
    %594 = vector.load %arg20[%c0_288, %c0_289] : memref<2x32xf32, #tpu.memory_space<vmem>>, vector<2x32xf32>
    %cst_290 = arith.constant dense<0.000000e+00> : vector<2x32xf32>
    %595 = tpu.matmul %594, %593, %cst_290 {dimension_numbers = #tpu.dot_dimension_numbers<[1], [0], [0], [1], [0, 0, 1, 1], [], []>} : vector<2x32xf32>, vector<32x32xf32>, vector<2x32xf32> -> vector<2x32xf32>
    %c0_291 = arith.constant 0 : index
    %c0_292 = arith.constant 0 : index
    %596 = vector.load %arg21[%c0_291, %c0_292] : memref<1x32xf32, #tpu.memory_space<vmem>>, vector<1x32xf32>
    %597 = vector.broadcast %596 : vector<1x32xf32> to vector<2x32xf32>
    %598 = arith.addf %595, %597 : vector<2x32xf32>
    %cst_293 = arith.constant 0.000000e+00 : f32
    %599 = vector.broadcast %cst_293 : f32 to vector<2x32xf32>
    %600 = arith.maximumf %598, %599 : vector<2x32xf32>
    %c0_294 = arith.constant 0 : index
    %c0_295 = arith.constant 0 : index
    %601 = vector.load %arg22[%c0_294, %c0_295] : memref<32x3xf32, #tpu.memory_space<vmem>>, vector<32x3xf32>
    %cst_296 = arith.constant dense<0.000000e+00> : vector<2x3xf32>
    %602 = tpu.matmul %600, %601, %cst_296 {dimension_numbers = #tpu.dot_dimension_numbers<[1], [0], [0], [1], [0, 0, 1, 1], [], []>} : vector<2x32xf32>, vector<32x3xf32>, vector<2x3xf32> -> vector<2x3xf32>
    %c0_297 = arith.constant 0 : index
    %c0_298 = arith.constant 0 : index
    %603 = vector.load %arg23[%c0_297, %c0_298] : memref<1x3xf32, #tpu.memory_space<vmem>>, vector<1x3xf32>
    %604 = vector.broadcast %603 : vector<1x3xf32> to vector<2x3xf32>
    %605 = arith.addf %602, %604 : vector<2x3xf32>
    %606 = arith.negf %605 : vector<2x3xf32>
    %607 = math.exp %606 : vector<2x3xf32>
    %cst_299 = arith.constant 1.000000e+00 : f32
    %608 = vector.broadcast %cst_299 : f32 to vector<2x3xf32>
    %609 = arith.addf %608, %607 : vector<2x3xf32>
    %610 = arith.divf %608, %609 : vector<2x3xf32>
    %c0_300 = arith.constant 0 : index
    %c0_301 = arith.constant 0 : index
    %611 = vector.load %arg24[%c0_300, %c0_301] : memref<2x3xf32, #tpu.memory_space<vmem>>, vector<2x3xf32>
    tpu.vector_store %arg24[%c0_300, %c0_301], %610 {strides = array<i32>} : memref<2x3xf32, #tpu.memory_space<vmem>>, vector<2x3xf32>,
    return
  }
}

</mosaic_0001>

<llo_original>
// kernel: lstm_transformer_forward.1
$region0: #{lstm_transformer_forward.1}
  #allocation0 [shape = 'u32[]', space=smem, size = 0x4, offset = 0x4, fixed_abs, tag = 'smem constant byte address 0x4 - core index']
  #allocation1 [shape = 'u32[144,128]{1,0:T(1,128)}', space=vmem, size = 0x12000, scoped, tag = 'internal scratch']
  #allocation2 [shape = 'f32[256,128]{1,0:T(8,128)}', space=vmem, size = 0x20000, scoped, tag = 'scratch operand']
  #allocation3 [shape = 'f32[32,32]{1,0:T(8,128)}', space=vmem, size = 0x4000, scoped, tag = 'scratch operand']
  #allocation4 [shape = 'f32[32,32]{1,0:T(8,128)}', space=vmem, size = 0x4000, scoped, tag = 'scratch operand']
  %s0 = inlined_call_operand.vmem [shape: f32[256,2], index: 0, kind: input, shape index: {}]
  %s1 = inlined_call_operand.hbm [shape: f32[2,128], index: 1, kind: input, shape index: {}]
  %s2 = inlined_call_operand.vmem [shape: f32[32,128], index: 2, kind: input, shape index: {}]
  %s3 = inlined_call_operand.vmem [shape: f32[1,128], index: 3, kind: input, shape index: {}]
  %s4 = inlined_call_operand.vmem [shape: f32[32,32], index: 4, kind: input, shape index: {}]
  %s5 = inlined_call_operand.vmem [shape: f32[32,32], index: 5, kind: input, shape index: {}]
  %s6 = inlined_call_operand.vmem [shape: f32[2,32,96], index: 6, kind: input, shape index: {}]
  %s7 = inlined_call_operand.vmem [shape: f32[2,1,96], index: 7, kind: input, shape index: {}]
  %s8 = inlined_call_operand.vmem [shape: f32[2,32,32], index: 8, kind: input, shape index: {}]
  %s9 = inlined_call_operand.vmem [shape: f32[2,1,32], index: 9, kind: input, shape index: {}]
  %s10 = inlined_call_operand.vmem [shape: f32[2,1,32], index: 10, kind: input, shape index: {}]
  %s11 = inlined_call_operand.vmem [shape: f32[2,1,32], index: 11, kind: input, shape index: {}]
  %s12 = inlined_call_operand.vmem [shape: f32[2,32,32], index: 12, kind: input, shape index: {}]
  %s13 = inlined_call_operand.vmem [shape: f32[2,1,32], index: 13, kind: input, shape index: {}]
  %s14 = inlined_call_operand.vmem [shape: f32[2,32,32], index: 14, kind: input, shape index: {}]
  %s15 = inlined_call_operand.vmem [shape: f32[2,1,32], index: 15, kind: input, shape index: {}]
  %s16 = inlined_call_operand.hbm [shape: f32[2,1,32], index: 16, kind: input, shape index: {}]
  %s17 = inlined_call_operand.vmem [shape: f32[2,1,32], index: 17, kind: input, shape index: {}]
  %s18 = inlined_call_operand.vmem [shape: f32[32,352], index: 18, kind: input, shape index: {}]
  %s19 = inlined_call_operand.vmem [shape: f32[32,352], index: 19, kind: input, shape index: {}]
  %s20 = inlined_call_operand.hbm [shape: f32[2,32], index: 20, kind: input, shape index: {}]
  %s21 = inlined_call_operand.hbm [shape: f32[1,32], index: 21, kind: input, shape index: {}]
  %s22 = inlined_call_operand.vmem [shape: f32[32,3], index: 22, kind: input, shape index: {}]
  %s23 = inlined_call_operand.hbm [shape: f32[1,3], index: 23, kind: input, shape index: {}]
  %s24 = inlined_call_operand.hbm [shape: f32[2,3], index: 24, kind: output, shape index: {}]
  %s25 = sld [smem:[#allocation0]]
  $region126: #{lstm_transformer_forward.1} parent=0
    _
  %s27 = ssub.s32 1, %s25
  %s28 = scalar_select 0, %s27, %s25
  $region1: #{lstm_transformer_forward.1} parent=0
    #allocation5 [shape = 'u8[1024]{0}', space=vmem, size = 0x400, scoped, tag = 'input window, operand 1, single buffered']
    #allocation6 [shape = 's32[1]{0}', space=sflag, size = 0x4, scoped, tag = 'scoped memory for lstm_transformer_forward.1']
    #allocation7 [shape = 's32[1]{0}', space=sflag, size = 0x4, scoped, tag = 'scoped memory for lstm_transformer_forward.1']
    #allocation8 [shape = 'u8[1024]{0}', space=vmem, size = 0x400, scoped, tag = 'input window, operand 16, single buffered']
    #allocation9 [shape = 's32[1]{0}', space=sflag, size = 0x4, scoped, tag = 'scoped memory for lstm_transformer_forward.1']
    #allocation10 [shape = 'u8[1024]{0}', space=vmem, size = 0x400, scoped, tag = 'input window, operand 20, single buffered']
    #allocation11 [shape = 'u8[512]{0}', space=vmem, size = 0x400, scoped, tag = 'input window, operand 21, single buffered']
    #allocation12 [shape = 's32[1]{0}', space=sflag, size = 0x4, scoped, tag = 'scoped memory for lstm_transformer_forward.1']
    #allocation13 [shape = 'u8[512]{0}', space=vmem, size = 0x400, scoped, tag = 'input window, operand 23, single buffered']
    #allocation14 [shape = 'u8[1024]{0}', space=vmem, size = 0x400, scoped, tag = 'output window, operand 0, single buffered']
    %29 = vsyncpa [#allocation6], 0
    %30 = vsyncpa [#allocation9], 0
    %31 = vsyncpa [#allocation12], 0
    %32 = vsyncpa [#allocation7], 0
    // Predicated region
    $region2: #{lstm_transformer_forward.1} parent=1 // pred_check
      _
    $region3: #{lstm_transformer_forward.1} parent=1 // pred_check_branch
      %34 = sbr.rel (0) target = $region5
    $region4: #{lstm_transformer_forward.1} parent=1 // pred_region
      _
    $region5: #{lstm_transformer_forward.1} parent=1 // pred_fallthru
      _
    // Predicated region
    $region6: #{lstm_transformer_forward.1} parent=1 // pred_check
      _
    $region7: #{lstm_transformer_forward.1} parent=1 // pred_check_branch
      %36 = sbr.rel (0) target = $region9
    $region8: #{lstm_transformer_forward.1} parent=1 // pred_region
      %s38 = ssub.s32 32, 32
      %39 = vsyncadd [#allocation6], %s38
      %s41 = sshll.u32 [#allocation5], 4
      %s42 = int_to_ptr.vmem [resolvable:$true] %s41
      %44 = dma.hbm_to_vmem [thread:$0]  %s1, 32, %s42, [#allocation6]
    $region9: #{lstm_transformer_forward.1} parent=1 // pred_fallthru
      _
    // Predicated region
    $region10: #{lstm_transformer_forward.1} parent=1 // pred_check
      _
    $region11: #{lstm_transformer_forward.1} parent=1 // pred_check_branch
      %46 = sbr.rel (0) target = $region13
    $region12: #{lstm_transformer_forward.1} parent=1 // pred_region
      _
    $region13: #{lstm_transformer_forward.1} parent=1 // pred_fallthru
      _
    // Predicated region
    $region14: #{lstm_transformer_forward.1} parent=1 // pred_check
      _
    $region15: #{lstm_transformer_forward.1} parent=1 // pred_check_branch
      %48 = sbr.rel (0) target = $region17
    $region16: #{lstm_transformer_forward.1} parent=1 // pred_region
      _
    $region17: #{lstm_transformer_forward.1} parent=1 // pred_fallthru
      _
    // Predicated region
    $region18: #{lstm_transformer_forward.1} parent=1 // pred_check
      _
    $region19: #{lstm_transformer_forward.1} parent=1 // pred_check_branch
      %50 = sbr.rel (0) target = $region21
    $region20: #{lstm_transformer_forward.1} parent=1 // pred_region
      _
    $region21: #{lstm_transformer_forward.1} parent=1 // pred_fallthru
      _
    // Predicated region
    $region22: #{lstm_transformer_forward.1} parent=1 // pred_check
      _
    $region23: #{lstm_transformer_forward.1} parent=1 // pred_check_branch
      %52 = sbr.rel (0) target = $region25
    $region24: #{lstm_transformer_forward.1} parent=1 // pred_region
      _
    $region25: #{lstm_transformer_forward.1} parent=1 // pred_fallthru
      _
    // Predicated region
    $region26: #{lstm_transformer_forward.1} parent=1 // pred_check
      _
    $region27: #{lstm_transformer_forward.1} parent=1 // pred_check_branch
      %54 = sbr.rel (0) target = $region29
    $region28: #{lstm_transformer_forward.1} parent=1 // pred_region
      _
    $region29: #{lstm_transformer_forward.1} parent=1 // pred_fallthru
      _
    // Predicated region
    $region30: #{lstm_transformer_forward.1} parent=1 // pred_check
      _
    $region31: #{lstm_transformer_forward.1} parent=1 // pred_check_branch
      %56 = sbr.rel (0) target = $region33
    $region32: #{lstm_transformer_forward.1} parent=1 // pred_region
      _
    $region33: #{lstm_transformer_forward.1} parent=1 // pred_fallthru
      _
    // Predicated region
    $region34: #{lstm_transformer_forward.1} parent=1 // pred_check
      _
    $region35: #{lstm_transformer_forward.1} parent=1 // pred_check_branch
      %58 = sbr.rel (0) target = $region37
    $region36: #{lstm_transformer_forward.1} parent=1 // pred_region
      _
    $region37: #{lstm_transformer_forward.1} parent=1 // pred_fallthru
      _
    // Predicated region
    $region38: #{lstm_transformer_forward.1} parent=1 // pred_check
      _
    $region39: #{lstm_transformer_forward.1} parent=1 // pred_check_branch
      %60 = sbr.rel (0) target = $region41
    $region40: #{lstm_transformer_forward.1} parent=1 // pred_region
      _
    $region41: #{lstm_transformer_forward.1} parent=1 // pred_fallthru
      _
    // Predicated region
    $region42: #{lstm_transformer_forward.1} parent=1 // pred_check
      _
    $region43: #{lstm_transformer_forward.1} parent=1 // pred_check_branch
      %62 = sbr.rel (0) target = $region45
    $region44: #{lstm_transformer_forward.1} parent=1 // pred_region
      _
    $region45: #{lstm_transformer_forward.1} parent=1 // pred_fallthru
      _
    // Predicated region
    $region46: #{lstm_transformer_forward.1} parent=1 // pred_check
      _
    $region47: #{lstm_transformer_forward.1} parent=1 // pred_check_branch
      %64 = sbr.rel (0) target = $region49
    $region48: #{lstm_transformer_forward.1} parent=1 // pred_region
      _
    $region49: #{lstm_transformer_forward.1} parent=1 // pred_fallthru
      _
    // Predicated region
    $region50: #{lstm_transformer_forward.1} parent=1 // pred_check
      _
    $region51: #{lstm_transformer_forward.1} parent=1 // pred_check_branch
      %66 = sbr.rel (0) target = $region53
    $region52: #{lstm_transformer_forward.1} parent=1 // pred_region
      _
    $region53: #{lstm_transformer_forward.1} parent=1 // pred_fallthru
      _
    // Predicated region
    $region54: #{lstm_transformer_forward.1} parent=1 // pred_check
      _
    $region55: #{lstm_transformer_forward.1} parent=1 // pred_check_branch
      %68 = sbr.rel (0) target = $region57
    $region56: #{lstm_transformer_forward.1} parent=1 // pred_region
      _
    $region57: #{lstm_transformer_forward.1} parent=1 // pred_fallthru
      _
    // Predicated region
    $region58: #{lstm_transformer_forward.1} parent=1 // pred_check
      _
    $region59: #{lstm_transformer_forward.1} parent=1 // pred_check_branch
      %70 = sbr.rel (0) target = $region61
    $region60: #{lstm_transformer_forward.1} parent=1 // pred_region
      _
    $region61: #{lstm_transformer_forward.1} parent=1 // pred_fallthru
      _
    // Predicated region
    $region62: #{lstm_transformer_forward.1} parent=1 // pred_check
      _
    $region63: #{lstm_transformer_forward.1} parent=1 // pred_check_branch
      %72 = sbr.rel (0) target = $region65
    $region64: #{lstm_transformer_forward.1} parent=1 // pred_region
      _
    $region65: #{lstm_transformer_forward.1} parent=1 // pred_fallthru
      _
    // Predicated region
    $region66: #{lstm_transformer_forward.1} parent=1 // pred_check
      _
    $region67: #{lstm_transformer_forward.1} parent=1 // pred_check_branch
      %74 = sbr.rel (0) target = $region69
    $region68: #{lstm_transformer_forward.1} parent=1 // pred_region
      %s76 = ssub.s32 32, 32
      %77 = vsyncadd [#allocation9], %s76
      %s78 = sshll.u32 [#allocation8], 4
      %s79 = int_to_ptr.vmem [resolvable:$true] %s78
      %84 = dma.hbm_to_vmem [thread:$0]  %s16, 32, %s79, [#allocation9], 16, 16, 1
    $region69: #{lstm_transformer_forward.1} parent=1 // pred_fallthru
      _
    // Predicated region
    $region70: #{lstm_transformer_forward.1} parent=1 // pred_check
      _
    $region71: #{lstm_transformer_forward.1} parent=1 // pred_check_branch
      %86 = sbr.rel (0) target = $region73
    $region72: #{lstm_transformer_forward.1} parent=1 // pred_region
      _
    $region73: #{lstm_transformer_forward.1} parent=1 // pred_fallthru
      _
    // Predicated region
    $region74: #{lstm_transformer_forward.1} parent=1 // pred_check
      _
    $region75: #{lstm_transformer_forward.1} parent=1 // pred_check_branch
      %88 = sbr.rel (0) target = $region77
    $region76: #{lstm_transformer_forward.1} parent=1 // pred_region
      _
    $region77: #{lstm_transformer_forward.1} parent=1 // pred_fallthru
      _
    // Predicated region
    $region78: #{lstm_transformer_forward.1} parent=1 // pred_check
      _
    $region79: #{lstm_transformer_forward.1} parent=1 // pred_check_branch
      %90 = sbr.rel (0) target = $region81
    $region80: #{lstm_transformer_forward.1} parent=1 // pred_region
      _
    $region81: #{lstm_transformer_forward.1} parent=1 // pred_fallthru
      _
    // Predicated region
    $region82: #{lstm_transformer_forward.1} parent=1 // pred_check
      _
    $region83: #{lstm_transformer_forward.1} parent=1 // pred_check_branch
      %92 = sbr.rel (0) target = $region85
    $region84: #{lstm_transformer_forward.1} parent=1 // pred_region
      %s94 = ssub.s32 32, 32
      %95 = vsyncadd [#allocation9], %s94
      %s97 = sshll.u32 [#allocation10], 4
      %s98 = int_to_ptr.vmem [resolvable:$true] %s97
      %100 = dma.hbm_to_vmem [thread:$0]  %s20, 32, %s98, [#allocation9]
    $region85: #{lstm_transformer_forward.1} parent=1 // pred_fallthru
      _
    // Predicated region
    $region86: #{lstm_transformer_forward.1} parent=1 // pred_check
      _
    $region87: #{lstm_transformer_forward.1} parent=1 // pred_check_branch
      %102 = sbr.rel (0) target = $region89
    $region88: #{lstm_transformer_forward.1} parent=1 // pred_region
      %s104 = ssub.s32 16, 16
      %105 = vsyncadd [#allocation12], %s104
      %s107 = sshll.u32 [#allocation11], 4
      %s108 = int_to_ptr.vmem [resolvable:$true] %s107
      %110 = dma.hbm_to_vmem [thread:$0]  %s21, 16, %s108, [#allocation12]
    $region89: #{lstm_transformer_forward.1} parent=1 // pred_fallthru
      _
    // Predicated region
    $region90: #{lstm_transformer_forward.1} parent=1 // pred_check
      _
    $region91: #{lstm_transformer_forward.1} parent=1 // pred_check_branch
      %112 = sbr.rel (0) target = $region93
    $region92: #{lstm_transformer_forward.1} parent=1 // pred_region
      _
    $region93: #{lstm_transformer_forward.1} parent=1 // pred_fallthru
      _
    // Predicated region
    $region94: #{lstm_transformer_forward.1} parent=1 // pred_check
      _
    $region95: #{lstm_transformer_forward.1} parent=1 // pred_check_branch
      %114 = sbr.rel (0) target = $region97
    $region96: #{lstm_transformer_forward.1} parent=1 // pred_region
      %s116 = ssub.s32 16, 16
      %117 = vsyncadd [#allocation12], %s116
      %s119 = sshll.u32 [#allocation13], 4
      %s120 = int_to_ptr.vmem [resolvable:$true] %s119
      %122 = dma.hbm_to_vmem [thread:$0]  %s23, 16, %s120, [#allocation12]
    $region97: #{lstm_transformer_forward.1} parent=1 // pred_fallthru
      _
    // Predicated region
    $region98: #{lstm_transformer_forward.1} parent=1 // pred_check
      _
    $region99: #{lstm_transformer_forward.1} parent=1 // pred_check_branch
      %124 = sbr.rel (0) target = $region101
    $region100: #{lstm_transformer_forward.1} parent=1 // pred_region
      %125 = dma.done [#allocation6], 32
    $region101: #{lstm_transformer_forward.1} parent=1 // pred_fallthru
      _
    // Predicated region
    $region102: #{lstm_transformer_forward.1} parent=1 // pred_check
      _
    $region103: #{lstm_transformer_forward.1} parent=1 // pred_check_branch
      %127 = sbr.rel (0) target = $region105
    $region104: #{lstm_transformer_forward.1} parent=1 // pred_region
      %128 = dma.done [#allocation9], 32
    $region105: #{lstm_transformer_forward.1} parent=1 // pred_fallthru
      _
    // Predicated region
    $region106: #{lstm_transformer_forward.1} parent=1 // pred_check
      _
    $region107: #{lstm_transformer_forward.1} parent=1 // pred_check_branch
      %130 = sbr.rel (0) target = $region109
    $region108: #{lstm_transformer_forward.1} parent=1 // pred_region
      %131 = dma.done [#allocation9], 32
    $region109: #{lstm_transformer_forward.1} parent=1 // pred_fallthru
      _
    // Predicated region
    $region110: #{lstm_transformer_forward.1} parent=1 // pred_check
      _
    $region111: #{lstm_transformer_forward.1} parent=1 // pred_check_branch
      %133 = sbr.rel (0) target = $region113
    $region112: #{lstm_transformer_forward.1} parent=1 // pred_region
      %134 = dma.done [#allocation12], 16
    $region113: #{lstm_transformer_forward.1} parent=1 // pred_fallthru
      _
    // Predicated region
    $region114: #{lstm_transformer_forward.1} parent=1 // pred_check
      _
    $region115: #{lstm_transformer_forward.1} parent=1 // pred_check_branch
      %136 = sbr.rel (0) target = $region117
    $region116: #{lstm_transformer_forward.1} parent=1 // pred_region
      %137 = dma.done [#allocation12], 16
    $region117: #{lstm_transformer_forward.1} parent=1 // pred_fallthru
      _
    %v138 = vld [vmem:[%s0] sm:$0xff]
    %v139 = vld [vmem:[%s0 + $0x8] sm:$0xff]
    %v140 = vld [vmem:[%s0 + $0x10] sm:$0xff]
    %v141 = vld [vmem:[%s0 + $0x18] sm:$0xff]
    %v142 = vld [vmem:[%s0 + $0x20] sm:$0xff]
    %v143 = vld [vmem:[%s0 + $0x28] sm:$0xff]
    %v144 = vld [vmem:[%s0 + $0x30] sm:$0xff]
    %v145 = vld [vmem:[%s0 + $0x38] sm:$0xff]
    %v146 = vld [vmem:[%s0 + $0x40] sm:$0xff]
    %v147 = vld [vmem:[%s0 + $0x48] sm:$0xff]
    %v148 = vld [vmem:[%s0 + $0x50] sm:$0xff]
    %v149 = vld [vmem:[%s0 + $0x58] sm:$0xff]
    %v150 = vld [vmem:[%s0 + $0x60] sm:$0xff]
    %v151 = vld [vmem:[%s0 + $0x68] sm:$0xff]
    %v152 = vld [vmem:[%s0 + $0x70] sm:$0xff]
    %v153 = vld [vmem:[%s0 + $0x78] sm:$0xff]
    %v154 = vld [vmem:[%s0 + $0x80] sm:$0xff]
    %v155 = vld [vmem:[%s0 + $0x88] sm:$0xff]
    %v156 = vld [vmem:[%s0 + $0x90] sm:$0xff]
    %v157 = vld [vmem:[%s0 + $0x98] sm:$0xff]
    %v158 = vld [vmem:[%s0 + $0xa0] sm:$0xff]
    %v159 = vld [vmem:[%s0 + $0xa8] sm:$0xff]
    %v160 = vld [vmem:[%s0 + $0xb0] sm:$0xff]
    %v161 = vld [vmem:[%s0 + $0xb8] sm:$0xff]
    %v162 = vld [vmem:[%s0 + $0xc0] sm:$0xff]
    %v163 = vld [vmem:[%s0 + $0xc8] sm:$0xff]
    %v164 = vld [vmem:[%s0 + $0xd0] sm:$0xff]
    %v165 = vld [vmem:[%s0 + $0xd8] sm:$0xff]
    %v166 = vld [vmem:[%s0 + $0xe0] sm:$0xff]
    %v167 = vld [vmem:[%s0 + $0xe8] sm:$0xff]
    %v168 = vld [vmem:[%s0 + $0xf0] sm:$0xff]
    %v169 = vld [vmem:[%s0 + $0xf8] sm:$0xff]
    %v170 = vld [vmem:[#allocation5] sm:$0x1]
    %172 = vset.pattern.permute.xlu0 0
    %173 = vperm.xlu0 %172, %v138
    %v174 = vpop.permute.xlu0 %173
    %177 = vset.pattern.permute.xlu0 0
    %178 = vperm.xlu0 %177, %v139
    %v179 = vpop.permute.xlu0 %178
    %182 = vset.pattern.permute.xlu0 0
    %183 = vperm.xlu0 %182, %v140
    %v184 = vpop.permute.xlu0 %183
    %187 = vset.pattern.permute.xlu0 0
    %188 = vperm.xlu0 %187, %v141
    %v189 = vpop.permute.xlu0 %188
    %192 = vset.pattern.permute.xlu0 0
    %193 = vperm.xlu0 %192, %v142
    %v194 = vpop.permute.xlu0 %193
    %197 = vset.pattern.permute.xlu0 0
    %198 = vperm.xlu0 %197, %v143
    %v199 = vpop.permute.xlu0 %198
    %202 = vset.pattern.permute.xlu0 0
    %203 = vperm.xlu0 %202, %v144
    %v204 = vpop.permute.xlu0 %203
    %207 = vset.pattern.permute.xlu0 0
    %208 = vperm.xlu0 %207, %v145
    %v209 = vpop.permute.xlu0 %208
    %212 = vset.pattern.permute.xlu0 0
    %213 = vperm.xlu0 %212, %v146
    %v214 = vpop.permute.xlu0 %213
    %217 = vset.pattern.permute.xlu0 0
    %218 = vperm.xlu0 %217, %v147
    %v219 = vpop.permute.xlu0 %218
    %222 = vset.pattern.permute.xlu0 0
    %223 = vperm.xlu0 %222, %v148
    %v224 = vpop.permute.xlu0 %223
    %227 = vset.pattern.permute.xlu0 0
    %228 = vperm.xlu0 %227, %v149
    %v229 = vpop.permute.xlu0 %228
    %232 = vset.pattern.permute.xlu0 0
    %233 = vperm.xlu0 %232, %v150
    %v234 = vpop.permute.xlu0 %233
    %237 = vset.pattern.permute.xlu0 0
    %238 = vperm.xlu0 %237, %v151
    %v239 = vpop.permute.xlu0 %238
    %242 = vset.pattern.permute.xlu0 0
    %243 = vperm.xlu0 %242, %v152
    %v244 = vpop.permute.xlu0 %243
    %247 = vset.pattern.permute.xlu0 0
    %248 = vperm.xlu0 %247, %v153
    %v249 = vpop.permute.xlu0 %248
    %252 = vset.pattern.permute.xlu0 0
    %253 = vperm.xlu0 %252, %v154
    %v254 = vpop.permute.xlu0 %253
    %257 = vset.pattern.permute.xlu0 0
    %258 = vperm.xlu0 %257, %v155
    %v259 = vpop.permute.xlu0 %258
    %262 = vset.pattern.permute.xlu0 0
    %263 = vperm.xlu0 %262, %v156
    %v264 = vpop.permute.xlu0 %263
    %267 = vset.pattern.permute.xlu0 0
    %268 = vperm.xlu0 %267, %v157
    %v269 = vpop.permute.xlu0 %268
    %272 = vset.pattern.permute.xlu0 0
    %273 = vperm.xlu0 %272, %v158
    %v274 = vpop.permute.xlu0 %273
    %277 = vset.pattern.permute.xlu0 0
    %278 = vperm.xlu0 %277, %v159
    %v279 = vpop.permute.xlu0 %278
    %282 = vset.pattern.permute.xlu0 0
    %283 = vperm.xlu0 %282, %v160
    %v284 = vpop.permute.xlu0 %283
    %287 = vset.pattern.permute.xlu0 0
    %288 = vperm.xlu0 %287, %v161
    %v289 = vpop.permute.xlu0 %288
    %292 = vset.pattern.permute.xlu0 0
    %293 = vperm.xlu0 %292, %v162
    %v294 = vpop.permute.xlu0 %293
    %297 = vset.pattern.permute.xlu0 0
    %298 = vperm.xlu0 %297, %v163
    %v299 = vpop.permute.xlu0 %298
    %302 = vset.pattern.permute.xlu0 0
    %303 = vperm.xlu0 %302, %v164
    %v304 = vpop.permute.xlu0 %303
    %307 = vset.pattern.permute.xlu0 0
    %308 = vperm.xlu0 %307, %v165
    %v309 = vpop.permute.xlu0 %308
    %312 = vset.pattern.permute.xlu0 0
    %313 = vperm.xlu0 %312, %v166
    %v314 = vpop.permute.xlu0 %313
    %317 = vset.pattern.permute.xlu0 0
    %318 = vperm.xlu0 %317, %v167
    %v319 = vpop.permute.xlu0 %318
    %322 = vset.pattern.permute.xlu0 0
    %323 = vperm.xlu0 %322, %v168
    %v324 = vpop.permute.xlu0 %323
    %327 = vset.pattern.permute.xlu0 0
    %328 = vperm.xlu0 %327, %v169
    %v329 = vpop.permute.xlu0 %328
    %v331 = vlaneseq
    %v332 = vshrl.u32 %v331, 7
    %v333 = vsub.s32 0, %v332
    %v334 = vrot.slane %v170, %v333
    %v335 = vmul.f32 %v174, %v334
    %v336 = vmul.f32 %v179, %v334
    %v337 = vmul.f32 %v184, %v334
    %v338 = vmul.f32 %v189, %v334
    %v339 = vmul.f32 %v194, %v334
    %v340 = vmul.f32 %v199, %v334
    %v341 = vmul.f32 %v204, %v334
    %v342 = vmul.f32 %v209, %v334
    %v343 = vmul.f32 %v214, %v334
    %v344 = vmul.f32 %v219, %v334
    %v345 = vmul.f32 %v224, %v334
    %v346 = vmul.f32 %v229, %v334
    %v347 = vmul.f32 %v234, %v334
    %v348 = vmul.f32 %v239, %v334
    %v349 = vmul.f32 %v244, %v334
    %v350 = vmul.f32 %v249, %v334
    %v351 = vmul.f32 %v254, %v334
    %v352 = vmul.f32 %v259, %v334
    %v353 = vmul.f32 %v264, %v334
    %v354 = vmul.f32 %v269, %v334
    %v355 = vmul.f32 %v274, %v334
    %v356 = vmul.f32 %v279, %v334
    %v357 = vmul.f32 %v284, %v334
    %v358 = vmul.f32 %v289, %v334
    %v359 = vmul.f32 %v294, %v334
    %v360 = vmul.f32 %v299, %v334
    %v361 = vmul.f32 %v304, %v334
    %v362 = vmul.f32 %v309, %v334
    %v363 = vmul.f32 %v314, %v334
    %v364 = vmul.f32 %v319, %v334
    %v365 = vmul.f32 %v324, %v334
    %v366 = vmul.f32 %v329, %v334
    %v367 = vld [vmem:[#allocation5 + $0x1] sm:$0x1]
    %368 = vset.pattern.permute.xlu0 1
    %369 = vperm.xlu0 %368, %v138
    %v370 = vpop.permute.xlu0 %369
    %372 = vset.pattern.permute.xlu0 1
    %373 = vperm.xlu0 %372, %v139
    %v374 = vpop.permute.xlu0 %373
    %376 = vset.pattern.permute.xlu0 1
    %377 = vperm.xlu0 %376, %v140
    %v378 = vpop.permute.xlu0 %377
    %380 = vset.pattern.permute.xlu0 1
    %381 = vperm.xlu0 %380, %v141
    %v382 = vpop.permute.xlu0 %381
    %384 = vset.pattern.permute.xlu0 1
    %385 = vperm.xlu0 %384, %v142
    %v386 = vpop.permute.xlu0 %385
    %388 = vset.pattern.permute.xlu0 1
    %389 = vperm.xlu0 %388, %v143
    %v390 = vpop.permute.xlu0 %389
    %392 = vset.pattern.permute.xlu0 1
    %393 = vperm.xlu0 %392, %v144
    %v394 = vpop.permute.xlu0 %393
    %396 = vset.pattern.permute.xlu0 1
    %397 = vperm.xlu0 %396, %v145
    %v398 = vpop.permute.xlu0 %397
    %400 = vset.pattern.permute.xlu0 1
    %401 = vperm.xlu0 %400, %v146
    %v402 = vpop.permute.xlu0 %401
    %404 = vset.pattern.permute.xlu0 1
    %405 = vperm.xlu0 %404, %v147
    %v406 = vpop.permute.xlu0 %405
    %408 = vset.pattern.permute.xlu0 1
    %409 = vperm.xlu0 %408, %v148
    %v410 = vpop.permute.xlu0 %409
    %412 = vset.pattern.permute.xlu0 1
    %413 = vperm.xlu0 %412, %v149
    %v414 = vpop.permute.xlu0 %413
    %416 = vset.pattern.permute.xlu0 1
    %417 = vperm.xlu0 %416, %v150
    %v418 = vpop.permute.xlu0 %417
    %420 = vset.pattern.permute.xlu0 1
    %421 = vperm.xlu0 %420, %v151
    %v422 = vpop.permute.xlu0 %421
    %424 = vset.pattern.permute.xlu0 1
    %425 = vperm.xlu0 %424, %v152
    %v426 = vpop.permute.xlu0 %425
    %428 = vset.pattern.permute.xlu0 1
    %429 = vperm.xlu0 %428, %v153
    %v430 = vpop.permute.xlu0 %429
    %432 = vset.pattern.permute.xlu0 1
    %433 = vperm.xlu0 %432, %v154
    %v434 = vpop.permute.xlu0 %433
    %436 = vset.pattern.permute.xlu0 1
    %437 = vperm.xlu0 %436, %v155
    %v438 = vpop.permute.xlu0 %437
    %440 = vset.pattern.permute.xlu0 1
    %441 = vperm.xlu0 %440, %v156
    %v442 = vpop.permute.xlu0 %441
    %444 = vset.pattern.permute.xlu0 1
    %445 = vperm.xlu0 %444, %v157
    %v446 = vpop.permute.xlu0 %445
    %448 = vset.pattern.permute.xlu0 1
    %449 = vperm.xlu0 %448, %v158
    %v450 = vpop.permute.xlu0 %449
    %452 = vset.pattern.permute.xlu0 1
    %453 = vperm.xlu0 %452, %v159
    %v454 = vpop.permute.xlu0 %453
    %456 = vset.pattern.permute.xlu0 1
    %457 = vperm.xlu0 %456, %v160
    %v458 = vpop.permute.xlu0 %457
    %460 = vset.pattern.permute.xlu0 1
    %461 = vperm.xlu0 %460, %v161
    %v462 = vpop.permute.xlu0 %461
    %464 = vset.pattern.permute.xlu0 1
    %465 = vperm.xlu0 %464, %v162
    %v466 = vpop.permute.xlu0 %465
    %468 = vset.pattern.permute.xlu0 1
    %469 = vperm.xlu0 %468, %v163
    %v470 = vpop.permute.xlu0 %469
    %472 = vset.pattern.permute.xlu0 1
    %473 = vperm.xlu0 %472, %v164
    %v474 = vpop.permute.xlu0 %473
    %476 = vset.pattern.permute.xlu0 1
    %477 = vperm.xlu0 %476, %v165
    %v478 = vpop.permute.xlu0 %477
    %480 = vset.pattern.permute.xlu0 1
    %481 = vperm.xlu0 %480, %v166
    %v482 = vpop.permute.xlu0 %481
    %484 = vset.pattern.permute.xlu0 1
    %485 = vperm.xlu0 %484, %v167
    %v486 = vpop.permute.xlu0 %485
    %488 = vset.pattern.permute.xlu0 1
    %489 = vperm.xlu0 %488, %v168
    %v490 = vpop.permute.xlu0 %489
    %492 = vset.pattern.permute.xlu0 1
    %493 = vperm.xlu0 %492, %v169
    %v494 = vpop.permute.xlu0 %493
    %v496 = vlaneseq
    %v497 = vshrl.u32 %v496, 7
    %v498 = vsub.s32 0, %v497
    %v499 = vrot.slane %v367, %v498
    %v500 = vmul.f32 %v370, %v499
    %v501 = vmul.f32 %v374, %v499
    %v502 = vmul.f32 %v378, %v499
    %v503 = vmul.f32 %v382, %v499
    %v504 = vmul.f32 %v386, %v499
    %v505 = vmul.f32 %v390, %v499
    %v506 = vmul.f32 %v394, %v499
    %v507 = vmul.f32 %v398, %v499
    %v508 = vmul.f32 %v402, %v499
    %v509 = vmul.f32 %v406, %v499
    %v510 = vmul.f32 %v410, %v499
    %v511 = vmul.f32 %v414, %v499
    %v512 = vmul.f32 %v418, %v499
    %v513 = vmul.f32 %v422, %v499
    %v514 = vmul.f32 %v426, %v499
    %v515 = vmul.f32 %v430, %v499
    %v516 = vmul.f32 %v434, %v499
    %v517 = vmul.f32 %v438, %v499
    %v518 = vmul.f32 %v442, %v499
    %v519 = vmul.f32 %v446, %v499
    %v520 = vmul.f32 %v450, %v499
    %v521 = vmul.f32 %v454, %v499
    %v522 = vmul.f32 %v458, %v499
    %v523 = vmul.f32 %v462, %v499
    %v524 = vmul.f32 %v466, %v499
    %v525 = vmul.f32 %v470, %v499
    %v526 = vmul.f32 %v474, %v499
    %v527 = vmul.f32 %v478, %v499
    %v528 = vmul.f32 %v482, %v499
    %v529 = vmul.f32 %v486, %v499
    %v530 = vmul.f32 %v490, %v499
    %v531 = vmul.f32 %v494, %v499
    %v532 = vadd.f32 %v335, %v500
    %v533 = vadd.f32 %v336, %v501
    %v534 = vadd.f32 %v337, %v502
    %v535 = vadd.f32 %v338, %v503
    %v536 = vadd.f32 %v339, %v504
    %v537 = vadd.f32 %v340, %v505
    %v538 = vadd.f32 %v341, %v506
    %v539 = vadd.f32 %v342, %v507
    %v540 = vadd.f32 %v343, %v508
    %v541 = vadd.f32 %v344, %v509
    %v542 = vadd.f32 %v345, %v510
    %v543 = vadd.f32 %v346, %v511
    %v544 = vadd.f32 %v347, %v512
    %v545 = vadd.f32 %v348, %v513
    %v546 = vadd.f32 %v349, %v514
    %v547 = vadd.f32 %v350, %v515
    %v548 = vadd.f32 %v351, %v516
    %v549 = vadd.f32 %v352, %v517
    %v550 = vadd.f32 %v353, %v518
    %v551 = vadd.f32 %v354, %v519
    %v552 = vadd.f32 %v355, %v520
    %v553 = vadd.f32 %v356, %v521
    %v554 = vadd.f32 %v357, %v522
    %v555 = vadd.f32 %v358, %v523
    %v556 = vadd.f32 %v359, %v524
    %v557 = vadd.f32 %v360, %v525
    %v558 = vadd.f32 %v361, %v526
    %v559 = vadd.f32 %v362, %v527
    %v560 = vadd.f32 %v363, %v528
    %v561 = vadd.f32 %v364, %v529
    %v562 = vadd.f32 %v365, %v530
    %v563 = vadd.f32 %v366, %v531
    %v564 = vld [vmem:[%s3] sm:$0x1]
    %v566 = vlaneseq
    %v567 = vshrl.u32 %v566, 7
    %v568 = vsub.s32 0, %v567
    %v569 = vrot.slane %v564, %v568
    %v571 = vadd.f32 %v532, %v569
    %v572 = vadd.f32 %v533, %v569
    %v573 = vadd.f32 %v534, %v569
    %v574 = vadd.f32 %v535, %v569
    %v575 = vadd.f32 %v536, %v569
    %v576 = vadd.f32 %v537, %v569
    %v577 = vadd.f32 %v538, %v569
    %v578 = vadd.f32 %v539, %v569
    %v579 = vadd.f32 %v540, %v569
    %v580 = vadd.f32 %v541, %v569
    %v581 = vadd.f32 %v542, %v569
    %v582 = vadd.f32 %v543, %v569
    %v583 = vadd.f32 %v544, %v569
    %v584 = vadd.f32 %v545, %v569
    %v585 = vadd.f32 %v546, %v569
    %v586 = vadd.f32 %v547, %v569
    %v587 = vadd.f32 %v548, %v569
    %v588 = vadd.f32 %v549, %v569
    %v589 = vadd.f32 %v550, %v569
    %v590 = vadd.f32 %v551, %v569
    %v591 = vadd.f32 %v552, %v569
    %v592 = vadd.f32 %v553, %v569
    %v593 = vadd.f32 %v554, %v569
    %v594 = vadd.f32 %v555, %v569
    %v595 = vadd.f32 %v556, %v569
    %v596 = vadd.f32 %v557, %v569
    %v597 = vadd.f32 %v558, %v569
    %v598 = vadd.f32 %v559, %v569
    %v599 = vadd.f32 %v560, %v569
    %v600 = vadd.f32 %v561, %v569
    %v601 = vadd.f32 %v562, %v569
    %v602 = vadd.f32 %v563, %v569
    %603 = vst [vmem:[#allocation2] sm:$0xff] %v571
    %604 = vst [vmem:[#allocation2 + $0x8] sm:$0xff] %v572
    %605 = vst [vmem:[#allocation2 + $0x10] sm:$0xff] %v573
    %606 = vst [vmem:[#allocation2 + $0x18] sm:$0xff] %v574
    %607 = vst [vmem:[#allocation2 + $0x20] sm:$0xff] %v575
    %608 = vst [vmem:[#allocation2 + $0x28] sm:$0xff] %v576
    %609 = vst [vmem:[#allocation2 + $0x30] sm:$0xff] %v577
    %610 = vst [vmem:[#allocation2 + $0x38] sm:$0xff] %v578
    %611 = vst [vmem:[#allocation2 + $0x40] sm:$0xff] %v579
    %612 = vst [vmem:[#allocation2 + $0x48] sm:$0xff] %v580
    %613 = vst [vmem:[#allocation2 + $0x50] sm:$0xff] %v581
    %614 = vst [vmem:[#allocation2 + $0x58] sm:$0xff] %v582
    %615 = vst [vmem:[#allocation2 + $0x60] sm:$0xff] %v583
    %616 = vst [vmem:[#allocation2 + $0x68] sm:$0xff] %v584
    %617 = vst [vmem:[#allocation2 + $0x70] sm:$0xff] %v585
    %618 = vst [vmem:[#allocation2 + $0x78] sm:$0xff] %v586
    %619 = vst [vmem:[#allocation2 + $0x80] sm:$0xff] %v587
    %620 = vst [vmem:[#allocation2 + $0x88] sm:$0xff] %v588
    %621 = vst [vmem:[#allocation2 + $0x90] sm:$0xff] %v589
    %622 = vst [vmem:[#allocation2 + $0x98] sm:$0xff] %v590
    %623 = vst [vmem:[#allocation2 + $0xa0] sm:$0xff] %v591
    %624 = vst [vmem:[#allocation2 + $0xa8] sm:$0xff] %v592
    %625 = vst [vmem:[#allocation2 + $0xb0] sm:$0xff] %v593
    %626 = vst [vmem:[#allocation2 + $0xb8] sm:$0xff] %v594
    %627 = vst [vmem:[#allocation2 + $0xc0] sm:$0xff] %v595
    %628 = vst [vmem:[#allocation2 + $0xc8] sm:$0xff] %v596
    %629 = vst [vmem:[#allocation2 + $0xd0] sm:$0xff] %v597
    %630 = vst [vmem:[#allocation2 + $0xd8] sm:$0xff] %v598
    %631 = vst [vmem:[#allocation2 + $0xe0] sm:$0xff] %v599
    %632 = vst [vmem:[#allocation2 + $0xe8] sm:$0xff] %v600
    %633 = vst [vmem:[#allocation2 + $0xf0] sm:$0xff] %v601
    %634 = vst [vmem:[#allocation2 + $0xf8] sm:$0xff] %v602
    %vm635 = vcmask 261120
    %636 = vst.msk [vmem:[#allocation3] sm:$0xff] %vm635, 0.0
    %637 = vst.msk [vmem:[#allocation3 + $0x8] sm:$0xff] %vm635, 0.0
    %638 = vst.msk [vmem:[#allocation3 + $0x10] sm:$0xff] %vm635, 0.0
    %639 = vst.msk [vmem:[#allocation3 + $0x18] sm:$0xff] %vm635, 0.0
    %640 = vst.msk [vmem:[#allocation4] sm:$0xff] %vm635, 0.0
    %641 = vst.msk [vmem:[#allocation4 + $0x8] sm:$0xff] %vm635, 0.0
    %642 = vst.msk [vmem:[#allocation4 + $0x10] sm:$0xff] %vm635, 0.0
    %643 = vst.msk [vmem:[#allocation4 + $0x18] sm:$0xff] %vm635, 0.0
    %v644 = vld [vmem:[#allocation2] sm:$0xff]
    %v645 = vld [vmem:[#allocation2 + $0x8] sm:$0xff]
    %v646 = vld [vmem:[#allocation2 + $0x10] sm:$0xff]
    %v647 = vld [vmem:[#allocation2 + $0x18] sm:$0xff]
    %v648 = vld [vmem:[#allocation3] sm:$0xff]
    %v649 = vld [vmem:[#allocation3 + $0x8] sm:$0xff]
    %v650 = vld [vmem:[#allocation3 + $0x10] sm:$0xff]
    %v651 = vld [vmem:[#allocation3 + $0x18] sm:$0xff]
    %v652 = vld [vmem:[%s2] sm:$0xff]
    %v653 = vld [vmem:[%s2 + $0x8] sm:$0xff]
    %v654 = vld [vmem:[%s2 + $0x10] sm:$0xff]
    %v655 = vld [vmem:[%s2 + $0x18] sm:$0xff]
    %v657 = vsel %vm635, %v648, 0
    %v660 = vsel %vm635, %v649, 0
    %v663 = vsel %vm635, %v650, 0
    %v666 = vsel %vm635, %v651, 0
    %668 = vmatprep.subr.mxu0 0.0
    %669 = vmatpush1.msra.mxu0 %v652
    %670 = vmatprep.subr.mxu0 0.0
    %671 = vmatpush1.msra.mxu0 %v653
    %672 = vmatprep.subr.mxu0 0.0
    %673 = vmatpush1.msra.mxu0 %v654
    %674 = vmatprep.subr.mxu0 0.0
    %675 = vmatpush1.msra.mxu0 %v655
    %676 = vmatprep.subr.mxu0 0.0
    %677 = vmatpush1.msra.mxu0 0.0
    %678 = vmatprep.subr.mxu0 0.0
    %679 = vmatpush1.msra.mxu0 0.0
    %680 = vmatprep.subr.mxu0 0.0
    %681 = vmatpush1.msra.mxu0 0.0
    %682 = vmatprep.subr.mxu0 0.0
    %683 = vmatpush1.msra.mxu0 0.0
    %684 = vmatprep.subr.mxu0 0.0
    %685 = vmatpush1.msra.mxu0 0.0
    %686 = vmatprep.subr.mxu0 0.0
    %687 = vmatpush1.msra.mxu0 0.0
    %688 = vmatprep.subr.mxu0 0.0
    %689 = vmatpush1.msra.mxu0 0.0
    %690 = vmatprep.subr.mxu0 0.0
    %691 = vmatpush1.msra.mxu0 0.0
    %692 = vmatprep.subr.mxu0 0.0
    %693 = vmatpush1.msra.mxu0 0.0
    %694 = vmatprep.subr.mxu0 0.0
    %695 = vmatpush1.msra.mxu0 0.0
    %696 = vmatprep.subr.mxu0 0.0
    %697 = vmatpush1.msra.mxu0 0.0
    %698 = vmatprep.subr.mxu0 0.0
    %699 = vmatpush1.msra.mxu0 0.0
    %700 = vmatprep.subr.mxu0 0.0
    %701 = vmatpush1.msra.mxu0 0.0
    %702 = vmatprep.subr.mxu0 0.0
    %703 = vmatpush1.msra.mxu0 0.0
    %704 = vmatprep.subr.mxu0 0.0
    %705 = vmatpush1.msra.mxu0 0.0
    %706 = vmatprep.subr.mxu0 0.0
    %707 = vmatpush1.msra.mxu0 0.0
    %708 = vmatprep.subr.mxu0 0.0
    %709 = vmatpush1.msra.mxu0 0.0
    %710 = vmatprep.subr.mxu0 0.0
    %711 = vmatpush1.msra.mxu0 0.0
    %712 = vmatprep.subr.mxu0 0.0
    %713 = vmatpush1.msra.mxu0 0.0
    %714 = vmatprep.subr.mxu0 0.0
    %715 = vmatpush1.msra.mxu0 0.0
    %716 = vmatprep.subr.mxu0 0.0
    %717 = vmatpush1.msra.mxu0 0.0
    %718 = vmatprep.subr.mxu0 0.0
    %719 = vmatpush1.msra.mxu0 0.0
    %720 = vmatprep.subr.mxu0 0.0
    %721 = vmatpush1.msra.mxu0 0.0
    %722 = vmatprep.subr.mxu0 0.0
    %723 = vmatpush1.msra.mxu0 0.0
    %724 = vmatprep.subr.mxu0 0.0
    %725 = vmatpush1.msra.mxu0 0.0
    %726 = vmatprep.subr.mxu0 0.0
    %727 = vmatpush1.msra.mxu0 0.0
    %728 = vmatprep.subr.mxu0 0.0
    %729 = vmatpush1.msra.mxu0 0.0
    %730 = vmatprep.subr.mxu0 0.0
    %731 = vmatpush1.msra.mxu0 0.0
    %732 = vmatprep.mubr.f32.mxu0 0.0
    %733 = vmatmul.mubr.f32.gmra.mrb[0].mxu0 %v657
    %v734 = vpop.f32.mrb[0].mxu0
    %v735 = vadd.f32 0.0, %v734
    %v736 = vpop.f32.mrb[0].mxu0
    %737 = vmatprep.mubr.f32.mxu0 0.0
    %738 = vmatmul.mubr.f32.gmra.mrb[0].mxu0 %v660
    %v739 = vpop.f32.mrb[0].mxu0
    %v740 = vadd.f32 0.0, %v739
    %v741 = vpop.f32.mrb[0].mxu0
    %742 = vmatprep.mubr.f32.mxu0 0.0
    %743 = vmatmul.mubr.f32.gmra.mrb[0].mxu0 %v663
    %v744 = vpop.f32.mrb[0].mxu0
    %v745 = vadd.f32 0.0, %v744
    %v746 = vpop.f32.mrb[0].mxu0
    %747 = vmatprep.mubr.f32.mxu0 0.0
    %748 = vmatmul.mubr.f32.gmra.mrb[0].mxu0 %v666
    %v749 = vpop.f32.mrb[0].mxu0
    %v750 = vadd.f32 0.0, %v749
    %v751 = vpop.f32.mrb[0].mxu0
    %752 = vdwg.mxu0
    %v753 = vadd.f32 %v644, %v735
    %v754 = vadd.f32 %v645, %v740
    %v755 = vadd.f32 %v646, %v745
    %v756 = vadd.f32 %v647, %v750
    %v757 = vxor.u32 %v753, 2147483648
    %v758 = vxor.u32 %v754, 2147483648
    %v759 = vxor.u32 %v755, 2147483648
    %v760 = vxor.u32 %v756, 2147483648
    %v761 = vmul.f32 %v757, 1.442695
    %v762 = vpow.pop %v761
    %v763 = vmul.f32 %v758, 1.442695
    %v764 = vpow.pop %v763
    %v765 = vmul.f32 %v759, 1.442695
    %v766 = vpow.pop %v765
    %v767 = vmul.f32 %v760, 1.442695
    %v768 = vpow.pop %v767
    %v769 = vadd.f32 %v762, 1.0
    %v770 = vadd.f32 %v764, 1.0
    %v771 = vadd.f32 %v766, 1.0
    %v772 = vadd.f32 %v768, 1.0
    %v773 = vrcp.pop %v769
    %v774 = vmul.f32 1.0, %v773
    %v775 = vrcp.pop %v770
    %v776 = vmul.f32 1.0, %v775
    %v777 = vrcp.pop %v771
    %v778 = vmul.f32 1.0, %v777
    %v779 = vrcp.pop %v772
    %v780 = vmul.f32 1.0, %v779
    %v781 = vtanh.pop %v753
    %v782 = vtanh.pop %v754
    %v783 = vtanh.pop %v755
    %v784 = vtanh.pop %v756
    %v785 = vld [vmem:[#allocation4] sm:$0xff]
    %v786 = vld [vmem:[#allocation4 + $0x8] sm:$0xff]
    %v787 = vld [vmem:[#allocation4 + $0x10] sm:$0xff]
    %v788 = vld [vmem:[#allocation4 + $0x18] sm:$0xff]
    %793 = vrot.lane.b32.xlu0 %v785, 32
    %v794 = vpop.permute.xlu0 %793
    %795 = vrot.lane.b32.xlu0 %v786, 32
    %v796 = vpop.permute.xlu0 %795
    %797 = vrot.lane.b32.xlu0 %v787, 32
    %v798 = vpop.permute.xlu0 %797
    %799 = vrot.lane.b32.xlu0 %v788, 32
    %v800 = vpop.permute.xlu0 %799
    %v805 = vmul.f32 %v774, %v794
    %v806 = vmul.f32 %v776, %v796
    %v807 = vmul.f32 %v778, %v798
    %v808 = vmul.f32 %v780, %v800
    %813 = vrot.lane.b32.xlu0 %v781, 32
    %v814 = vpop.permute.xlu0 %813
    %815 = vrot.lane.b32.xlu0 %v782, 32
    %v816 = vpop.permute.xlu0 %815
    %817 = vrot.lane.b32.xlu0 %v783, 32
    %v818 = vpop.permute.xlu0 %817
    %819 = vrot.lane.b32.xlu0 %v784, 32
    %v820 = vpop.permute.xlu0 %819
    %v825 = vmul.f32 %v774, %v814
    %v826 = vmul.f32 %v776, %v816
    %v827 = vmul.f32 %v778, %v818
    %v828 = vmul.f32 %v780, %v820
    %833 = vrot.lane.b32.xlu0 %v825, 32
    %v834 = vpop.permute.xlu0 %833
    %835 = vrot.lane.b32.xlu0 %v826, 32
    %v836 = vpop.permute.xlu0 %835
    %837 = vrot.lane.b32.xlu0 %v827, 32
    %v838 = vpop.permute.xlu0 %837
    %839 = vrot.lane.b32.xlu0 %v828, 32
    %v840 = vpop.permute.xlu0 %839
    %v845 = vadd.f32 %v805, %v834
    %v846 = vadd.f32 %v806, %v836
    %v847 = vadd.f32 %v807, %v838
    %v848 = vadd.f32 %v808, %v840
    %853 = vrot.lane.b32.xlu0 %v845, 96
    %v854 = vpop.permute.xlu0 %853
    %855 = vrot.lane.b32.xlu0 %v846, 96
    %v856 = vpop.permute.xlu0 %855
    %857 = vrot.lane.b32.xlu0 %v847, 96
    %v858 = vpop.permute.xlu0 %857
    %859 = vrot.lane.b32.xlu0 %v848, 96
    %v860 = vpop.permute.xlu0 %859
    %865 = vst.msk [vmem:[#allocation4] sm:$0xff] %vm635, %v854
    %866 = vst.msk [vmem:[#allocation4 + $0x8] sm:$0xff] %vm635, %v856
    %867 = vst.msk [vmem:[#allocation4 + $0x10] sm:$0xff] %vm635, %v858
    %868 = vst.msk [vmem:[#allocation4 + $0x18] sm:$0xff] %vm635, %v860
    %v869 = vtanh.pop %v845
    %v870 = vtanh.pop %v846
    %v871 = vtanh.pop %v847
    %v872 = vtanh.pop %v848
    %877 = vrot.lane.b32.xlu0 %v869, 32
    %v878 = vpop.permute.xlu0 %877
    %879 = vrot.lane.b32.xlu0 %v870, 32
    %v880 = vpop.permute.xlu0 %879
    %881 = vrot.lane.b32.xlu0 %v871, 32
    %v882 = vpop.permute.xlu0 %881
    %883 = vrot.lane.b32.xlu0 %v872, 32
    %v884 = vpop.permute.xlu0 %883
    %v889 = vmul.f32 %v774, %v878
    %v890 = vmul.f32 %v776, %v880
    %v891 = vmul.f32 %v778, %v882
    %v892 = vmul.f32 %v780, %v884
    %897 = vrot.lane.b32.xlu0 %v889, 64
    %v898 = vpop.permute.xlu0 %897
    %899 = vrot.lane.b32.xlu0 %v890, 64
    %v900 = vpop.permute.xlu0 %899
    %901 = vrot.lane.b32.xlu0 %v891, 64
    %v902 = vpop.permute.xlu0 %901
    %903 = vrot.lane.b32.xlu0 %v892, 64
    %v904 = vpop.permute.xlu0 %903
    %909 = vst.msk [vmem:[#allocation3] sm:$0xff] %vm635, %v898
    %910 = vst.msk [vmem:[#allocation3 + $0x8] sm:$0xff] %vm635, %v900
    %911 = vst.msk [vmem:[#allocation3 + $0x10] sm:$0xff] %vm635, %v902
    %912 = vst.msk [vmem:[#allocation3 + $0x18] sm:$0xff] %vm635, %v904
    %s913 = scalar_lea.vmem [#allocation2], 32
    %v914 = vld [vmem:[%s913] sm:$0xff]
    %v915 = vld [vmem:[%s913 + $0x8] sm:$0xff]
    %v916 = vld [vmem:[%s913 + $0x10] sm:$0xff]
    %v917 = vld [vmem:[%s913 + $0x18] sm:$0xff]
    %v918 = vld [vmem:[#allocation3] sm:$0xff]
    %v919 = vld [vmem:[#allocation3 + $0x8] sm:$0xff]
    %v920 = vld [vmem:[#allocation3 + $0x10] sm:$0xff]
    %v921 = vld [vmem:[#allocation3 + $0x18] sm:$0xff]
    %v922 = vld [vmem:[%s2] sm:$0xff]
    %v923 = vld [vmem:[%s2 + $0x8] sm:$0xff]
    %v924 = vld [vmem:[%s2 + $0x10] sm:$0xff]
    %v925 = vld [vmem:[%s2 + $0x18] sm:$0xff]
    %v927 = vsel %vm635, %v918, 0
    %v930 = vsel %vm635, %v919, 0
    %v933 = vsel %vm635, %v920, 0
    %v936 = vsel %vm635, %v921, 0
    %938 = vmatprep.subr.mxu0 0.0
    %939 = vmatpush1.msra.mxu0 %v922
    %940 = vmatprep.subr.mxu0 0.0
    %941 = vmatpush1.msra.mxu0 %v923
    %942 = vmatprep.subr.mxu0 0.0
    %943 = vmatpush1.msra.mxu0 %v924
    %944 = vmatprep.subr.mxu0 0.0
    %945 = vmatpush1.msra.mxu0 %v925
    %946 = vmatprep.subr.mxu0 0.0
    %947 = vmatpush1.msra.mxu0 0.0
    %948 = vmatprep.subr.mxu0 0.0
    %949 = vmatpush1.msra.mxu0 0.0
    %950 = vmatprep.subr.mxu0 0.0
    %951 = vmatpush1.msra.mxu0 0.0
    %952 = vmatprep.subr.mxu0 0.0
    %953 = vmatpush1.msra.mxu0 0.0
    %954 = vmatprep.subr.mxu0 0.0
    %955 = vmatpush1.msra.mxu0 0.0
    %956 = vmatprep.subr.mxu0 0.0
    %957 = vmatpush1.msra.mxu0 0.0
    %958 = vmatprep.subr.mxu0 0.0
    %959 = vmatpush1.msra.mxu0 0.0
    %960 = vmatprep.subr.mxu0 0.0
    %961 = vmatpush1.msra.mxu0 0.0
    %962 = vmatprep.subr.mxu0 0.0
    %963 = vmatpush1.msra.mxu0 0.0
    %964 = vmatprep.subr.mxu0 0.0
    %965 = vmatpush1.msra.mxu0 0.0
    %966 = vmatprep.subr.mxu0 0.0
    %967 = vmatpush1.msra.mxu0 0.0
    %968 = vmatprep.subr.mxu0 0.0
    %969 = vmatpush1.msra.mxu0 0.0
    %970 = vmatprep.subr.mxu0 0.0
    %971 = vmatpush1.msra.mxu0 0.0
    %972 = vmatprep.subr.mxu0 0.0
    %973 = vmatpush1.msra.mxu0 0.0
    %974 = vmatprep.subr.mxu0 0.0
    %975 = vmatpush1.msra.mxu0 0.0
    %976 = vmatprep.subr.mxu0 0.0
    %977 = vmatpush1.msra.mxu0 0.0
    %978 = vmatprep.subr.mxu0 0.0
    %979 = vmatpush1.msra.mxu0 0.0
    %980 = vmatprep.subr.mxu0 0.0
    %981 = vmatpush1.msra.mxu0 0.0
    %982 = vmatprep.subr.mxu0 0.0
    %983 = vmatpush1.msra.mxu0 0.0
    %984 = vmatprep.subr.mxu0 0.0
    %985 = vmatpush1.msra.mxu0 0.0
    %986 = vmatprep.subr.mxu0 0.0
    %987 = vmatpush1.msra.mxu0 0.0
    %988 = vmatprep.subr.mxu0 0.0
    %989 = vmatpush1.msra.mxu0 0.0
    %990 = vmatprep.subr.mxu0 0.0
    %991 = vmatpush1.msra.mxu0 0.0
    %992 = vmatprep.subr.mxu0 0.0
    %993 = vmatpush1.msra.mxu0 0.0
    %994 = vmatprep.subr.mxu0 0.0
    %995 = vmatpush1.msra.mxu0 0.0
    %996 = vmatprep.subr.mxu0 0.0
    %997 = vmatpush1.msra.mxu0 0.0
    %998 = vmatprep.subr.mxu0 0.0
    %999 = vmatpush1.msra.mxu0 0.0
    %1000 = vmatprep.subr.mxu0 0.0
    %1001 = vmatpush1.msra.mxu0 0.0
    %1002 = vmatprep.mubr.f32.mxu0 0.0
    %1003 = vmatmul.mubr.f32.gmra.mrb[0].mxu0 %v927
    %v1004 = vpop.f32.mrb[0].mxu0
    %v1005 = vadd.f32 0.0, %v1004
    %v1006 = vpop.f32.mrb[0].mxu0
    %1007 = vmatprep.mubr.f32.mxu0 0.0
    %1008 = vmatmul.mubr.f32.gmra.mrb[0].mxu0 %v930
    %v1009 = vpop.f32.mrb[0].mxu0
    %v1010 = vadd.f32 0.0, %v1009
    %v1011 = vpop.f32.mrb[0].mxu0
    %1012 = vmatprep.mubr.f32.mxu0 0.0
    %1013 = vmatmul.mubr.f32.gmra.mrb[0].mxu0 %v933
    %v1014 = vpop.f32.mrb[0].mxu0
    %v1015 = vadd.f32 0.0, %v1014
    %v1016 = vpop.f32.mrb[0].mxu0
    %1017 = vmatprep.mubr.f32.mxu0 0.0
    %1018 = vmatmul.mubr.f32.gmra.mrb[0].mxu0 %v936
    %v1019 = vpop.f32.mrb[0].mxu0
    %v1020 = vadd.f32 0.0, %v1019
    %v1021 = vpop.f32.mrb[0].mxu0
    %1022 = vdwg.mxu0
    %v1023 = vadd.f32 %v914, %v1005
    %v1024 = vadd.f32 %v915, %v1010
    %v1025 = vadd.f32 %v916, %v1015
    %v1026 = vadd.f32 %v917, %v1020
    %v1027 = vxor.u32 %v1023, 2147483648
    %v1028 = vxor.u32 %v1024, 2147483648
    %v1029 = vxor.u32 %v1025, 2147483648
    %v1030 = vxor.u32 %v1026, 2147483648
    %v1031 = vmul.f32 %v1027, 1.442695
    %v1032 = vpow.pop %v1031
    %v1033 = vmul.f32 %v1028, 1.442695
    %v1034 = vpow.pop %v1033
    %v1035 = vmul.f32 %v1029, 1.442695
    %v1036 = vpow.pop %v1035
    %v1037 = vmul.f32 %v1030, 1.442695
    %v1038 = vpow.pop %v1037
    %v1039 = vadd.f32 %v1032, 1.0
    %v1040 = vadd.f32 %v1034, 1.0
    %v1041 = vadd.f32 %v1036, 1.0
    %v1042 = vadd.f32 %v1038, 1.0
    %v1043 = vrcp.pop %v1039
    %v1044 = vmul.f32 1.0, %v1043
    %v1045 = vrcp.pop %v1040
    %v1046 = vmul.f32 1.0, %v1045
    %v1047 = vrcp.pop %v1041
    %v1048 = vmul.f32 1.0, %v1047
    %v1049 = vrcp.pop %v1042
    %v1050 = vmul.f32 1.0, %v1049
    %v1051 = vtanh.pop %v1023
    %v1052 = vtanh.pop %v1024
    %v1053 = vtanh.pop %v1025
    %v1054 = vtanh.pop %v1026
    %v1055 = vld [vmem:[#allocation4] sm:$0xff]
    %v1056 = vld [vmem:[#allocation4 + $0x8] sm:$0xff]
    %v1057 = vld [vmem:[#allocation4 + $0x10] sm:$0xff]
    %v1058 = vld [vmem:[#allocation4 + $0x18] sm:$0xff]
    %1063 = vrot.lane.b32.xlu0 %v1055, 32
    %v1064 = vpop.permute.xlu0 %1063
    %1065 = vrot.lane.b32.xlu0 %v1056, 32
    %v1066 = vpop.permute.xlu0 %1065
    %1067 = vrot.lane.b32.xlu0 %v1057, 32
    %v1068 = vpop.permute.xlu0 %1067
    %1069 = vrot.lane.b32.xlu0 %v1058, 32
    %v1070 = vpop.permute.xlu0 %1069
    %v1075 = vmul.f32 %v1044, %v1064
    %v1076 = vmul.f32 %v1046, %v1066
    %v1077 = vmul.f32 %v1048, %v1068
    %v1078 = vmul.f32 %v1050, %v1070
    %1083 = vrot.lane.b32.xlu0 %v1051, 32
    %v1084 = vpop.permute.xlu0 %1083
    %1085 = vrot.lane.b32.xlu0 %v1052, 32
    %v1086 = vpop.permute.xlu0 %1085
    %1087 = vrot.lane.b32.xlu0 %v1053, 32
    %v1088 = vpop.permute.xlu0 %1087
    %1089 = vrot.lane.b32.xlu0 %v1054, 32
    %v1090 = vpop.permute.xlu0 %1089
    %v1095 = vmul.f32 %v1044, %v1084
    %v1096 = vmul.f32 %v1046, %v1086
    %v1097 = vmul.f32 %v1048, %v1088
    %v1098 = vmul.f32 %v1050, %v1090
    %1103 = vrot.lane.b32.xlu0 %v1095, 32
    %v1104 = vpop.permute.xlu0 %1103
    %1105 = vrot.lane.b32.xlu0 %v1096, 32
    %v1106 = vpop.permute.xlu0 %1105
    %1107 = vrot.lane.b32.xlu0 %v1097, 32
    %v1108 = vpop.permute.xlu0 %1107
    %1109 = vrot.lane.b32.xlu0 %v1098, 32
    %v1110 = vpop.permute.xlu0 %1109
    %v1115 = vadd.f32 %v1075, %v1104
    %v1116 = vadd.f32 %v1076, %v1106
    %v1117 = vadd.f32 %v1077, %v1108
    %v1118 = vadd.f32 %v1078, %v1110
    %1123 = vrot.lane.b32.xlu0 %v1115, 96
    %v1124 = vpop.permute.xlu0 %1123
    %1125 = vrot.lane.b32.xlu0 %v1116, 96
    %v1126 = vpop.permute.xlu0 %1125
    %1127 = vrot.lane.b32.xlu0 %v1117, 96
    %v1128 = vpop.permute.xlu0 %1127
    %1129 = vrot.lane.b32.xlu0 %v1118, 96
    %v1130 = vpop.permute.xlu0 %1129
    %1135 = vst.msk [vmem:[#allocation4] sm:$0xff] %vm635, %v1124
    %1136 = vst.msk [vmem:[#allocation4 + $0x8] sm:$0xff] %vm635, %v1126
    %1137 = vst.msk [vmem:[#allocation4 + $0x10] sm:$0xff] %vm635, %v1128
    %1138 = vst.msk [vmem:[#allocation4 + $0x18] sm:$0xff] %vm635, %v1130
    %v1139 = vtanh.pop %v1115
    %v1140 = vtanh.pop %v1116
    %v1141 = vtanh.pop %v1117
    %v1142 = vtanh.pop %v1118
    %1147 = vrot.lane.b32.xlu0 %v1139, 32
    %v1148 = vpop.permute.xlu0 %1147
    %1149 = vrot.lane.b32.xlu0 %v1140, 32
    %v1150 = vpop.permute.xlu0 %1149
    %1151 = vrot.lane.b32.xlu0 %v1141, 32
    %v1152 = vpop.permute.xlu0 %1151
    %1153 = vrot.lane.b32.xlu0 %v1142, 32
    %v1154 = vpop.permute.xlu0 %1153
    %v1159 = vmul.f32 %v1044, %v1148
    %v1160 = vmul.f32 %v1046, %v1150
    %v1161 = vmul.f32 %v1048, %v1152
    %v1162 = vmul.f32 %v1050, %v1154
    %1167 = vrot.lane.b32.xlu0 %v1159, 64
    %v1168 = vpop.permute.xlu0 %1167
    %1169 = vrot.lane.b32.xlu0 %v1160, 64
    %v1170 = vpop.permute.xlu0 %1169
    %1171 = vrot.lane.b32.xlu0 %v1161, 64
    %v1172 = vpop.permute.xlu0 %1171
    %1173 = vrot.lane.b32.xlu0 %v1162, 64
    %v1174 = vpop.permute.xlu0 %1173
    %1179 = vst.msk [vmem:[#allocation3] sm:$0xff] %vm635, %v1168
    %1180 = vst.msk [vmem:[#allocation3 + $0x8] sm:$0xff] %vm635, %v1170
    %1181 = vst.msk [vmem:[#allocation3 + $0x10] sm:$0xff] %vm635, %v1172
    %1182 = vst.msk [vmem:[#allocation3 + $0x18] sm:$0xff] %vm635, %v1174
    %s1183 = scalar_lea.vmem [#allocation2], 64
    %v1184 = vld [vmem:[%s1183] sm:$0xff]
    %v1185 = vld [vmem:[%s1183 + $0x8] sm:$0xff]
    %v1186 = vld [vmem:[%s1183 + $0x10] sm:$0xff]
    %v1187 = vld [vmem:[%s1183 + $0x18] sm:$0xff]
    %v1188 = vld [vmem:[#allocation3] sm:$0xff]
    %v1189 = vld [vmem:[#allocation3 + $0x8] sm:$0xff]
    %v1190 = vld [vmem:[#allocation3 + $0x10] sm:$0xff]
    %v1191 = vld [vmem:[#allocation3 + $0x18] sm:$0xff]
    %v1192 = vld [vmem:[%s2] sm:$0xff]
    %v1193 = vld [vmem:[%s2 + $0x8] sm:$0xff]
    %v1194 = vld [vmem:[%s2 + $0x10] sm:$0xff]
    %v1195 = vld [vmem:[%s2 + $0x18] sm:$0xff]
    %v1197 = vsel %vm635, %v1188, 0
    %v1200 = vsel %vm635, %v1189, 0
    %v1203 = vsel %vm635, %v1190, 0
    %v1206 = vsel %vm635, %v1191, 0
    %1208 = vmatprep.subr.mxu0 0.0
    %1209 = vmatpush1.msra.mxu0 %v1192
    %1210 = vmatprep.subr.mxu0 0.0
    %1211 = vmatpush1.msra.mxu0 %v1193
    %1212 = vmatprep.subr.mxu0 0.0
    %1213 = vmatpush1.msra.mxu0 %v1194
    %1214 = vmatprep.subr.mxu0 0.0
    %1215 = vmatpush1.msra.mxu0 %v1195
    %1216 = vmatprep.subr.mxu0 0.0
    %1217 = vmatpush1.msra.mxu0 0.0
    %1218 = vmatprep.subr.mxu0 0.0
    %1219 = vmatpush1.msra.mxu0 0.0
    %1220 = vmatprep.subr.mxu0 0.0
    %1221 = vmatpush1.msra.mxu0 0.0
    %1222 = vmatprep.subr.mxu0 0.0
    %1223 = vmatpush1.msra.mxu0 0.0
    %1224 = vmatprep.subr.mxu0 0.0
    %1225 = vmatpush1.msra.mxu0 0.0
    %1226 = vmatprep.subr.mxu0 0.0
    %1227 = vmatpush1.msra.mxu0 0.0
    %1228 = vmatprep.subr.mxu0 0.0
    %1229 = vmatpush1.msra.mxu0 0.0
    %1230 = vmatprep.subr.mxu0 0.0
    %1231 = vmatpush1.msra.mxu0 0.0
    %1232 = vmatprep.subr.mxu0 0.0
    %1233 = vmatpush1.msra.mxu0 0.0
    %1234 = vmatprep.subr.mxu0 0.0
    %1235 = vmatpush1.msra.mxu0 0.0
    %1236 = vmatprep.subr.mxu0 0.0
    %1237 = vmatpush1.msra.mxu0 0.0
    %1238 = vmatprep.subr.mxu0 0.0
    %1239 = vmatpush1.msra.mxu0 0.0
    %1240 = vmatprep.subr.mxu0 0.0
    %1241 = vmatpush1.msra.mxu0 0.0
    %1242 = vmatprep.subr.mxu0 0.0
    %1243 = vmatpush1.msra.mxu0 0.0
    %1244 = vmatprep.subr.mxu0 0.0
    %1245 = vmatpush1.msra.mxu0 0.0
    %1246 = vmatprep.subr.mxu0 0.0
    %1247 = vmatpush1.msra.mxu0 0.0
    %1248 = vmatprep.subr.mxu0 0.0
    %1249 = vmatpush1.msra.mxu0 0.0
    %1250 = vmatprep.subr.mxu0 0.0
    %1251 = vmatpush1.msra.mxu0 0.0
    %1252 = vmatprep.subr.mxu0 0.0
    %1253 = vmatpush1.msra.mxu0 0.0
    %1254 = vmatprep.subr.mxu0 0.0
    %1255 = vmatpush1.msra.mxu0 0.0
    %1256 = vmatprep.subr.mxu0 0.0
    %1257 = vmatpush1.msra.mxu0 0.0
    %1258 = vmatprep.subr.mxu0 0.0
    %1259 = vmatpush1.msra.mxu0 0.0
    %1260 = vmatprep.subr.mxu0 0.0
    %1261 = vmatpush1.msra.mxu0 0.0
    %1262 = vmatprep.subr.mxu0 0.0
    %1263 = vmatpush1.msra.mxu0 0.0
    %1264 = vmatprep.subr.mxu0 0.0
    %1265 = vmatpush1.msra.mxu0 0.0
    %1266 = vmatprep.subr.mxu0 0.0
    %1267 = vmatpush1.msra.mxu0 0.0
    %1268 = vmatprep.subr.mxu0 0.0
    %1269 = vmatpush1.msra.mxu0 0.0
    %1270 = vmatprep.subr.mxu0 0.0
    %1271 = vmatpush1.msra.mxu0 0.0
    %1272 = vmatprep.mubr.f32.mxu0 0.0
    %1273 = vmatmul.mubr.f32.gmra.mrb[0].mxu0 %v1197
    %v1274 = vpop.f32.mrb[0].mxu0
    %v1275 = vadd.f32 0.0, %v1274
    %v1276 = vpop.f32.mrb[0].mxu0
    %1277 = vmatprep.mubr.f32.mxu0 0.0
    %1278 = vmatmul.mubr.f32.gmra.mrb[0].mxu0 %v1200
    %v1279 = vpop.f32.mrb[0].mxu0
    %v1280 = vadd.f32 0.0, %v1279
    %v1281 = vpop.f32.mrb[0].mxu0
    %1282 = vmatprep.mubr.f32.mxu0 0.0
    %1283 = vmatmul.mubr.f32.gmra.mrb[0].mxu0 %v1203
    %v1284 = vpop.f32.mrb[0].mxu0
    %v1285 = vadd.f32 0.0, %v1284
    %v1286 = vpop.f32.mrb[0].mxu0
    %1287 = vmatprep.mubr.f32.mxu0 0.0
    %1288 = vmatmul.mubr.f32.gmra.mrb[0].mxu0 %v1206
    %v1289 = vpop.f32.mrb[0].mxu0
    %v1290 = vadd.f32 0.0, %v1289
    %v1291 = vpop.f32.mrb[0].mxu0
    %1292 = vdwg.mxu0
    %v1293 = vadd.f32 %v1184, %v1275
    %v1294 = vadd.f32 %v1185, %v1280
    %v1295 = vadd.f32 %v1186, %v1285
    %v1296 = vadd.f32 %v1187, %v1290
    %v1297 = vxor.u32 %v1293, 2147483648
    %v1298 = vxor.u32 %v1294, 2147483648
    %v1299 = vxor.u32 %v1295, 2147483648
    %v1300 = vxor.u32 %v1296, 2147483648
    %v1301 = vmul.f32 %v1297, 1.442695
    %v1302 = vpow.pop %v1301
    %v1303 = vmul.f32 %v1298, 1.442695
    %v1304 = vpow.pop %v1303
    %v1305 = vmul.f32 %v1299, 1.442695
    %v1306 = vpow.pop %v1305
    %v1307 = vmul.f32 %v1300, 1.442695
    %v1308 = vpow.pop %v1307
    %v1309 = vadd.f32 %v1302, 1.0
    %v1310 = vadd.f32 %v1304, 1.0
    %v1311 = vadd.f32 %v1306, 1.0
    %v1312 = vadd.f32 %v1308, 1.0
    %v1313 = vrcp.pop %v1309
    %v1314 = vmul.f32 1.0, %v1313
    %v1315 = vrcp.pop %v1310
    %v1316 = vmul.f32 1.0, %v1315
    %v1317 = vrcp.pop %v1311
    %v1318 = vmul.f32 1.0, %v1317
    %v1319 = vrcp.pop %v1312
    %v1320 = vmul.f32 1.0, %v1319
    %v1321 = vtanh.pop %v1293
    %v1322 = vtanh.pop %v1294
    %v1323 = vtanh.pop %v1295
    %v1324 = vtanh.pop %v1296
    %v1325 = vld [vmem:[#allocation4] sm:$0xff]
    %v1326 = vld [vmem:[#allocation4 + $0x8] sm:$0xff]
    %v1327 = vld [vmem:[#allocation4 + $0x10] sm:$0xff]
    %v1328 = vld [vmem:[#allocation4 + $0x18] sm:$0xff]
    %1333 = vrot.lane.b32.xlu0 %v1325, 32
    %v1334 = vpop.permute.xlu0 %1333
    %1335 = vrot.lane.b32.xlu0 %v1326, 32
    %v1336 = vpop.permute.xlu0 %1335
    %1337 = vrot.lane.b32.xlu0 %v1327, 32
    %v1338 = vpop.permute.xlu0 %1337
    %1339 = vrot.lane.b32.xlu0 %v1328, 32
    %v1340 = vpop.permute.xlu0 %1339
    %v1345 = vmul.f32 %v1314, %v1334
    %v1346 = vmul.f32 %v1316, %v1336
    %v1347 = vmul.f32 %v1318, %v1338
    %v1348 = vmul.f32 %v1320, %v1340
    %1353 = vrot.lane.b32.xlu0 %v1321, 32
    %v1354 = vpop.permute.xlu0 %1353
    %1355 = vrot.lane.b32.xlu0 %v1322, 32
    %v1356 = vpop.permute.xlu0 %1355
    %1357 = vrot.lane.b32.xlu0 %v1323, 32
    %v1358 = vpop.permute.xlu0 %1357
    %1359 = vrot.lane.b32.xlu0 %v1324, 32
    %v1360 = vpop.permute.xlu0 %1359
    %v1365 = vmul.f32 %v1314, %v1354
    %v1366 = vmul.f32 %v1316, %v1356
    %v1367 = vmul.f32 %v1318, %v1358
    %v1368 = vmul.f32 %v1320, %v1360
    %1373 = vrot.lane.b32.xlu0 %v1365, 32
    %v1374 = vpop.permute.xlu0 %1373
    %1375 = vrot.lane.b32.xlu0 %v1366, 32
    %v1376 = vpop.permute.xlu0 %1375
    %1377 = vrot.lane.b32.xlu0 %v1367, 32
    %v1378 = vpop.permute.xlu0 %1377
    %1379 = vrot.lane.b32.xlu0 %v1368, 32
    %v1380 = vpop.permute.xlu0 %1379
    %v1385 = vadd.f32 %v1345, %v1374
    %v1386 = vadd.f32 %v1346, %v1376
    %v1387 = vadd.f32 %v1347, %v1378
    %v1388 = vadd.f32 %v1348, %v1380
    %1393 = vrot.lane.b32.xlu0 %v1385, 96
    %v1394 = vpop.permute.xlu0 %1393
    %1395 = vrot.lane.b32.xlu0 %v1386, 96
    %v1396 = vpop.permute.xlu0 %1395
    %1397 = vrot.lane.b32.xlu0 %v1387, 96
    %v1398 = vpop.permute.xlu0 %1397
    %1399 = vrot.lane.b32.xlu0 %v1388, 96
    %v1400 = vpop.permute.xlu0 %1399
    %1405 = vst.msk [vmem:[#allocation4] sm:$0xff] %vm635, %v1394
    %1406 = vst.msk [vmem:[#allocation4 + $0x8] sm:$0xff] %vm635, %v1396
    %1407 = vst.msk [vmem:[#allocation4 + $0x10] sm:$0xff] %vm635, %v1398
    %1408 = vst.msk [vmem:[#allocation4 + $0x18] sm:$0xff] %vm635, %v1400
    %v1409 = vtanh.pop %v1385
    %v1410 = vtanh.pop %v1386
    %v1411 = vtanh.pop %v1387
    %v1412 = vtanh.pop %v1388
    %1417 = vrot.lane.b32.xlu0 %v1409, 32
    %v1418 = vpop.permute.xlu0 %1417
    %1419 = vrot.lane.b32.xlu0 %v1410, 32
    %v1420 = vpop.permute.xlu0 %1419
    %1421 = vrot.lane.b32.xlu0 %v1411, 32
    %v1422 = vpop.permute.xlu0 %1421
    %1423 = vrot.lane.b32.xlu0 %v1412, 32
    %v1424 = vpop.permute.xlu0 %1423
    %v1429 = vmul.f32 %v1314, %v1418
    %v1430 = vmul.f32 %v1316, %v1420
    %v1431 = vmul.f32 %v1318, %v1422
    %v1432 = vmul.f32 %v1320, %v1424
    %1437 = vrot.lane.b32.xlu0 %v1429, 64
    %v1438 = vpop.permute.xlu0 %1437
    %1439 = vrot.lane.b32.xlu0 %v1430, 64
    %v1440 = vpop.permute.xlu0 %1439
    %1441 = vrot.lane.b32.xlu0 %v1431, 64
    %v1442 = vpop.permute.xlu0 %1441
    %1443 = vrot.lane.b32.xlu0 %v1432, 64
    %v1444 = vpop.permute.xlu0 %1443
    %1449 = vst.msk [vmem:[#allocation3] sm:$0xff] %vm635, %v1438
    %1450 = vst.msk [vmem:[#allocation3 + $0x8] sm:$0xff] %vm635, %v1440
    %1451 = vst.msk [vmem:[#allocation3 + $0x10] sm:$0xff] %vm635, %v1442
    %1452 = vst.msk [vmem:[#allocation3 + $0x18] sm:$0xff] %vm635, %v1444
    %s1453 = scalar_lea.vmem [#allocation2], 96
    %v1454 = vld [vmem:[%s1453] sm:$0xff]
    %v1455 = vld [vmem:[%s1453 + $0x8] sm:$0xff]
    %v1456 = vld [vmem:[%s1453 + $0x10] sm:$0xff]
    %v1457 = vld [vmem:[%s1453 + $0x18] sm:$0xff]
    %v1458 = vld [vmem:[#allocation3] sm:$0xff]
    %v1459 = vld [vmem:[#allocation3 + $0x8] sm:$0xff]
    %v1460 = vld [vmem:[#allocation3 + $0x10] sm:$0xff]
    %v1461 = vld [vmem:[#allocation3 + $0x18] sm:$0xff]
    %v1462 = vld [vmem:[%s2] sm:$0xff]
    %v1463 = vld [vmem:[%s2 + $0x8] sm:$0xff]
    %v1464 = vld [vmem:[%s2 + $0x10] sm:$0xff]
    %v1465 = vld [vmem:[%s2 + $0x18] sm:$0xff]
    %v1467 = vsel %vm635, %v1458, 0
    %v1470 = vsel %vm635, %v1459, 0
    %v1473 = vsel %vm635, %v1460, 0
    %v1476 = vsel %vm635, %v1461, 0
    %1478 = vmatprep.subr.mxu0 0.0
    %1479 = vmatpush1.msra.mxu0 %v1462
    %1480 = vmatprep.subr.mxu0 0.0
    %1481 = vmatpush1.msra.mxu0 %v1463
    %1482 = vmatprep.subr.mxu0 0.0
    %1483 = vmatpush1.msra.mxu0 %v1464
    %1484 = vmatprep.subr.mxu0 0.0
    %1485 = vmatpush1.msra.mxu0 %v1465
    %1486 = vmatprep.subr.mxu0 0.0
    %1487 = vmatpush1.msra.mxu0 0.0
    %1488 = vmatprep.subr.mxu0 0.0
    %1489 = vmatpush1.msra.mxu0 0.0
    %1490 = vmatprep.subr.mxu0 0.0
    %1491 = vmatpush1.msra.mxu0 0.0
    %1492 = vmatprep.subr.mxu0 0.0
    %1493 = vmatpush1.msra.mxu0 0.0
    %1494 = vmatprep.subr.mxu0 0.0
    %1495 = vmatpush1.msra.mxu0 0.0
    %1496 = vmatprep.subr.mxu0 0.0
    %1497 = vmatpush1.msra.mxu0 0.0
    %1498 = vmatprep.subr.mxu0 0.0
    %1499 = vmatpush1.msra.mxu0 0.0
    %1500 = vmatprep.subr.mxu0 0.0
    %1501 = vmatpush1.msra.mxu0 0.0
    %1502 = vmatprep.subr.mxu0 0.0
    %1503 = vmatpush1.msra.mxu0 0.0
    %1504 = vmatprep.subr.mxu0 0.0
    %1505 = vmatpush1.msra.mxu0 0.0
    %1506 = vmatprep.subr.mxu0 0.0
    %1507 = vmatpush1.msra.mxu0 0.0
    %1508 = vmatprep.subr.mxu0 0.0
    %1509 = vmatpush1.msra.mxu0 0.0
    %1510 = vmatprep.subr.mxu0 0.0
    %1511 = vmatpush1.msra.mxu0 0.0
    %1512 = vmatprep.subr.mxu0 0.0
    %1513 = vmatpush1.msra.mxu0 0.0
    %1514 = vmatprep.subr.mxu0 0.0
    %1515 = vmatpush1.msra.mxu0 0.0
    %1516 = vmatprep.subr.mxu0 0.0
    %1517 = vmatpush1.msra.mxu0 0.0
    %1518 = vmatprep.subr.mxu0 0.0
    %1519 = vmatpush1.msra.mxu0 0.0
    %1520 = vmatprep.subr.mxu0 0.0
    %1521 = vmatpush1.msra.mxu0 0.0
    %1522 = vmatprep.subr.mxu0 0.0
    %1523 = vmatpush1.msra.mxu0 0.0
    %1524 = vmatprep.subr.mxu0 0.0
    %1525 = vmatpush1.msra.mxu0 0.0
    %1526 = vmatprep.subr.mxu0 0.0
    %1527 = vmatpush1.msra.mxu0 0.0
    %1528 = vmatprep.subr.mxu0 0.0
    %1529 = vmatpush1.msra.mxu0 0.0
    %1530 = vmatprep.subr.mxu0 0.0
    %1531 = vmatpush1.msra.mxu0 0.0
    %1532 = vmatprep.subr.mxu0 0.0
    %1533 = vmatpush1.msra.mxu0 0.0
    %1534 = vmatprep.subr.mxu0 0.0
    %1535 = vmatpush1.msra.mxu0 0.0
    %1536 = vmatprep.subr.mxu0 0.0
    %1537 = vmatpush1.msra.mxu0 0.0
    %1538 = vmatprep.subr.mxu0 0.0
    %1539 = vmatpush1.msra.mxu0 0.0
    %1540 = vmatprep.subr.mxu0 0.0
    %1541 = vmatpush1.msra.mxu0 0.0
    %1542 = vmatprep.mubr.f32.mxu0 0.0
    %1543 = vmatmul.mubr.f32.gmra.mrb[0].mxu0 %v1467
    %v1544 = vpop.f32.mrb[0].mxu0
    %v1545 = vadd.f32 0.0, %v1544
    %v1546 = vpop.f32.mrb[0].mxu0
    %1547 = vmatprep.mubr.f32.mxu0 0.0
    %1548 = vmatmul.mubr.f32.gmra.mrb[0].mxu0 %v1470
    %v1549 = vpop.f32.mrb[0].mxu0
    %v1550 = vadd.f32 0.0, %v1549
    %v1551 = vpop.f32.mrb[0].mxu0
    %1552 = vmatprep.mubr.f32.mxu0 0.0
    %1553 = vmatmul.mubr.f32.gmra.mrb[0].mxu0 %v1473
    %v1554 = vpop.f32.mrb[0].mxu0
    %v1555 = vadd.f32 0.0, %v1554
    %v1556 = vpop.f32.mrb[0].mxu0
    %1557 = vmatprep.mubr.f32.mxu0 0.0
    %1558 = vmatmul.mubr.f32.gmra.mrb[0].mxu0 %v1476
    %v1559 = vpop.f32.mrb[0].mxu0
    %v1560 = vadd.f32 0.0, %v1559
    %v1561 = vpop.f32.mrb[0].mxu0
    %1562 = vdwg.mxu0
    %v1563 = vadd.f32 %v1454, %v1545
    %v1564 = vadd.f32 %v1455, %v1550
    %v1565 = vadd.f32 %v1456, %v1555
    %v1566 = vadd.f32 %v1457, %v1560
    %v1567 = vxor.u32 %v1563, 2147483648
    %v1568 = vxor.u32 %v1564, 2147483648
    %v1569 = vxor.u32 %v1565, 2147483648
    %v1570 = vxor.u32 %v1566, 2147483648
    %v1571 = vmul.f32 %v1567, 1.442695
    %v1572 = vpow.pop %v1571
    %v1573 = vmul.f32 %v1568, 1.442695
    %v1574 = vpow.pop %v1573
    %v1575 = vmul.f32 %v1569, 1.442695
    %v1576 = vpow.pop %v1575
    %v1577 = vmul.f32 %v1570, 1.442695
    %v1578 = vpow.pop %v1577
    %v1579 = vadd.f32 %v1572, 1.0
    %v1580 = vadd.f32 %v1574, 1.0
    %v1581 = vadd.f32 %v1576, 1.0
    %v1582 = vadd.f32 %v1578, 1.0
    %v1583 = vrcp.pop %v1579
    %v1584 = vmul.f32 1.0, %v1583
    %v1585 = vrcp.pop %v1580
    %v1586 = vmul.f32 1.0, %v1585
    %v1587 = vrcp.pop %v1581
    %v1588 = vmul.f32 1.0, %v1587
    %v1589 = vrcp.pop %v1582
    %v1590 = vmul.f32 1.0, %v1589
    %v1591 = vtanh.pop %v1563
    %v1592 = vtanh.pop %v1564
    %v1593 = vtanh.pop %v1565
    %v1594 = vtanh.pop %v1566
    %v1595 = vld [vmem:[#allocation4] sm:$0xff]
    %v1596 = vld [vmem:[#allocation4 + $0x8] sm:$0xff]
    %v1597 = vld [vmem:[#allocation4 + $0x10] sm:$0xff]
    %v1598 = vld [vmem:[#allocation4 + $0x18] sm:$0xff]
    %1603 = vrot.lane.b32.xlu0 %v1595, 32
    %v1604 = vpop.permute.xlu0 %1603
    %1605 = vrot.lane.b32.xlu0 %v1596, 32
    %v1606 = vpop.permute.xlu0 %1605
    %1607 = vrot.lane.b32.xlu0 %v1597, 32
    %v1608 = vpop.permute.xlu0 %1607
    %1609 = vrot.lane.b32.xlu0 %v1598, 32
    %v1610 = vpop.permute.xlu0 %1609
    %v1615 = vmul.f32 %v1584, %v1604
    %v1616 = vmul.f32 %v1586, %v1606
    %v1617 = vmul.f32 %v1588, %v1608
    %v1618 = vmul.f32 %v1590, %v1610
    %1623 = vrot.lane.b32.xlu0 %v1591, 32
    %v1624 = vpop.permute.xlu0 %1623
    %1625 = vrot.lane.b32.xlu0 %v1592, 32
    %v1626 = vpop.permute.xlu0 %1625
    %1627 = vrot.lane.b32.xlu0 %v1593, 32
    %v1628 = vpop.permute.xlu0 %1627
    %1629 = vrot.lane.b32.xlu0 %v1594, 32
    %v1630 = vpop.permute.xlu0 %1629
    %v1635 = vmul.f32 %v1584, %v1624
    %v1636 = vmul.f32 %v1586, %v1626
    %v1637 = vmul.f32 %v1588, %v1628
    %v1638 = vmul.f32 %v1590, %v1630
    %1643 = vrot.lane.b32.xlu0 %v1635, 32
    %v1644 = vpop.permute.xlu0 %1643
    %1645 = vrot.lane.b32.xlu0 %v1636, 32
    %v1646 = vpop.permute.xlu0 %1645
    %1647 = vrot.lane.b32.xlu0 %v1637, 32
    %v1648 = vpop.permute.xlu0 %1647
    %1649 = vrot.lane.b32.xlu0 %v1638, 32
    %v1650 = vpop.permute.xlu0 %1649
    %v1655 = vadd.f32 %v1615, %v1644
    %v1656 = vadd.f32 %v1616, %v1646
    %v1657 = vadd.f32 %v1617, %v1648
    %v1658 = vadd.f32 %v1618, %v1650
    %1663 = vrot.lane.b32.xlu0 %v1655, 96
    %v1664 = vpop.permute.xlu0 %1663
    %1665 = vrot.lane.b32.xlu0 %v1656, 96
    %v1666 = vpop.permute.xlu0 %1665
    %1667 = vrot.lane.b32.xlu0 %v1657, 96
    %v1668 = vpop.permute.xlu0 %1667
    %1669 = vrot.lane.b32.xlu0 %v1658, 96
    %v1670 = vpop.permute.xlu0 %1669
    %1675 = vst.msk [vmem:[#allocation4] sm:$0xff] %vm635, %v1664
    %1676 = vst.msk [vmem:[#allocation4 + $0x8] sm:$0xff] %vm635, %v1666
    %1677 = vst.msk [vmem:[#allocation4 + $0x10] sm:$0xff] %vm635, %v1668
    %1678 = vst.msk [vmem:[#allocation4 + $0x18] sm:$0xff] %vm635, %v1670
    %v1679 = vtanh.pop %v1655
    %v1680 = vtanh.pop %v1656
    %v1681 = vtanh.pop %v1657
    %v1682 = vtanh.pop %v1658
    %1687 = vrot.lane.b32.xlu0 %v1679, 32
    %v1688 = vpop.permute.xlu0 %1687
    %1689 = vrot.lane.b32.xlu0 %v1680, 32
    %v1690 = vpop.permute.xlu0 %1689
    %1691 = vrot.lane.b32.xlu0 %v1681, 32
    %v1692 = vpop.permute.xlu0 %1691
    %1693 = vrot.lane.b32.xlu0 %v1682, 32
    %v1694 = vpop.permute.xlu0 %1693
    %v1699 = vmul.f32 %v1584, %v1688
    %v1700 = vmul.f32 %v1586, %v1690
    %v1701 = vmul.f32 %v1588, %v1692
    %v1702 = vmul.f32 %v1590, %v1694
    %1707 = vrot.lane.b32.xlu0 %v1699, 64
    %v1708 = vpop.permute.xlu0 %1707
    %1709 = vrot.lane.b32.xlu0 %v1700, 64
    %v1710 = vpop.permute.xlu0 %1709
    %1711 = vrot.lane.b32.xlu0 %v1701, 64
    %v1712 = vpop.permute.xlu0 %1711
    %1713 = vrot.lane.b32.xlu0 %v1702, 64
    %v1714 = vpop.permute.xlu0 %1713
    %1719 = vst.msk [vmem:[#allocation3] sm:$0xff] %vm635, %v1708
    %1720 = vst.msk [vmem:[#allocation3 + $0x8] sm:$0xff] %vm635, %v1710
    %1721 = vst.msk [vmem:[#allocation3 + $0x10] sm:$0xff] %vm635, %v1712
    %1722 = vst.msk [vmem:[#allocation3 + $0x18] sm:$0xff] %vm635, %v1714
    %s1723 = scalar_lea.vmem [#allocation2], 128
    %v1724 = vld [vmem:[%s1723] sm:$0xff]
    %v1725 = vld [vmem:[%s1723 + $0x8] sm:$0xff]
    %v1726 = vld [vmem:[%s1723 + $0x10] sm:$0xff]
    %v1727 = vld [vmem:[%s1723 + $0x18] sm:$0xff]
    %v1728 = vld [vmem:[#allocation3] sm:$0xff]
    %v1729 = vld [vmem:[#allocation3 + $0x8] sm:$0xff]
    %v1730 = vld [vmem:[#allocation3 + $0x10] sm:$0xff]
    %v1731 = vld [vmem:[#allocation3 + $0x18] sm:$0xff]
    %v1732 = vld [vmem:[%s2] sm:$0xff]
    %v1733 = vld [vmem:[%s2 + $0x8] sm:$0xff]
    %v1734 = vld [vmem:[%s2 + $0x10] sm:$0xff]
    %v1735 = vld [vmem:[%s2 + $0x18] sm:$0xff]
    %v1737 = vsel %vm635, %v1728, 0
    %v1740 = vsel %vm635, %v1729, 0
    %v1743 = vsel %vm635, %v1730, 0
    %v1746 = vsel %vm635, %v1731, 0
    %1748 = vmatprep.subr.mxu0 0.0
    %1749 = vmatpush1.msra.mxu0 %v1732
    %1750 = vmatprep.subr.mxu0 0.0
    %1751 = vmatpush1.msra.mxu0 %v1733
    %1752 = vmatprep.subr.mxu0 0.0
    %1753 = vmatpush1.msra.mxu0 %v1734
    %1754 = vmatprep.subr.mxu0 0.0
    %1755 = vmatpush1.msra.mxu0 %v1735
    %1756 = vmatprep.subr.mxu0 0.0
    %1757 = vmatpush1.msra.mxu0 0.0
    %1758 = vmatprep.subr.mxu0 0.0
    %1759 = vmatpush1.msra.mxu0 0.0
    %1760 = vmatprep.subr.mxu0 0.0
    %1761 = vmatpush1.msra.mxu0 0.0
    %1762 = vmatprep.subr.mxu0 0.0
    %1763 = vmatpush1.msra.mxu0 0.0
    %1764 = vmatprep.subr.mxu0 0.0
    %1765 = vmatpush1.msra.mxu0 0.0
    %1766 = vmatprep.subr.mxu0 0.0
    %1767 = vmatpush1.msra.mxu0 0.0
    %1768 = vmatprep.subr.mxu0 0.0
    %1769 = vmatpush1.msra.mxu0 0.0
    %1770 = vmatprep.subr.mxu0 0.0
    %1771 = vmatpush1.msra.mxu0 0.0
    %1772 = vmatprep.subr.mxu0 0.0
    %1773 = vmatpush1.msra.mxu0 0.0
    %1774 = vmatprep.subr.mxu0 0.0
    %1775 = vmatpush1.msra.mxu0 0.0
    %1776 = vmatprep.subr.mxu0 0.0
    %1777 = vmatpush1.msra.mxu0 0.0
    %1778 = vmatprep.subr.mxu0 0.0
    %1779 = vmatpush1.msra.mxu0 0.0
    %1780 = vmatprep.subr.mxu0 0.0
    %1781 = vmatpush1.msra.mxu0 0.0
    %1782 = vmatprep.subr.mxu0 0.0
    %1783 = vmatpush1.msra.mxu0 0.0
    %1784 = vmatprep.subr.mxu0 0.0
    %1785 = vmatpush1.msra.mxu0 0.0
    %1786 = vmatprep.subr.mxu0 0.0
    %1787 = vmatpush1.msra.mxu0 0.0
    %1788 = vmatprep.subr.mxu0 0.0
    %1789 = vmatpush1.msra.mxu0 0.0
    %1790 = vmatprep.subr.mxu0 0.0
    %1791 = vmatpush1.msra.mxu0 0.0
    %1792 = vmatprep.subr.mxu0 0.0
    %1793 = vmatpush1.msra.mxu0 0.0
    %1794 = vmatprep.subr.mxu0 0.0
    %1795 = vmatpush1.msra.mxu0 0.0
    %1796 = vmatprep.subr.mxu0 0.0
    %1797 = vmatpush1.msra.mxu0 0.0
    %1798 = vmatprep.subr.mxu0 0.0
    %1799 = vmatpush1.msra.mxu0 0.0
    %1800 = vmatprep.subr.mxu0 0.0
    %1801 = vmatpush1.msra.mxu0 0.0
    %1802 = vmatprep.subr.mxu0 0.0
    %1803 = vmatpush1.msra.mxu0 0.0
    %1804 = vmatprep.subr.mxu0 0.0
    %1805 = vmatpush1.msra.mxu0 0.0
    %1806 = vmatprep.subr.mxu0 0.0
    %1807 = vmatpush1.msra.mxu0 0.0
    %1808 = vmatprep.subr.mxu0 0.0
    %1809 = vmatpush1.msra.mxu0 0.0
    %1810 = vmatprep.subr.mxu0 0.0
    %1811 = vmatpush1.msra.mxu0 0.0
    %1812 = vmatprep.mubr.f32.mxu0 0.0
    %1813 = vmatmul.mubr.f32.gmra.mrb[0].mxu0 %v1737
    %v1814 = vpop.f32.mrb[0].mxu0
    %v1815 = vadd.f32 0.0, %v1814
    %v1816 = vpop.f32.mrb[0].mxu0
    %1817 = vmatprep.mubr.f32.mxu0 0.0
    %1818 = vmatmul.mubr.f32.gmra.mrb[0].mxu0 %v1740
    %v1819 = vpop.f32.mrb[0].mxu0
    %v1820 = vadd.f32 0.0, %v1819
    %v1821 = vpop.f32.mrb[0].mxu0
    %1822 = vmatprep.mubr.f32.mxu0 0.0
    %1823 = vmatmul.mubr.f32.gmra.mrb[0].mxu0 %v1743
    %v1824 = vpop.f32.mrb[0].mxu0
    %v1825 = vadd.f32 0.0, %v1824
    %v1826 = vpop.f32.mrb[0].mxu0
    %1827 = vmatprep.mubr.f32.mxu0 0.0
    %1828 = vmatmul.mubr.f32.gmra.mrb[0].mxu0 %v1746
    %v1829 = vpop.f32.mrb[0].mxu0
    %v1830 = vadd.f32 0.0, %v1829
    %v1831 = vpop.f32.mrb[0].mxu0
    %1832 = vdwg.mxu0
    %v1833 = vadd.f32 %v1724, %v1815
    %v1834 = vadd.f32 %v1725, %v1820
    %v1835 = vadd.f32 %v1726, %v1825
    %v1836 = vadd.f32 %v1727, %v1830
    %v1837 = vxor.u32 %v1833, 2147483648
    %v1838 = vxor.u32 %v1834, 2147483648
    %v1839 = vxor.u32 %v1835, 2147483648
    %v1840 = vxor.u32 %v1836, 2147483648
    %v1841 = vmul.f32 %v1837, 1.442695
    %v1842 = vpow.pop %v1841
    %v1843 = vmul.f32 %v1838, 1.442695
    %v1844 = vpow.pop %v1843
    %v1845 = vmul.f32 %v1839, 1.442695
    %v1846 = vpow.pop %v1845
    %v1847 = vmul.f32 %v1840, 1.442695
    %v1848 = vpow.pop %v1847
    %v1849 = vadd.f32 %v1842, 1.0
    %v1850 = vadd.f32 %v1844, 1.0
    %v1851 = vadd.f32 %v1846, 1.0
    %v1852 = vadd.f32 %v1848, 1.0
    %v1853 = vrcp.pop %v1849
    %v1854 = vmul.f32 1.0, %v1853
    %v1855 = vrcp.pop %v1850
    %v1856 = vmul.f32 1.0, %v1855
    %v1857 = vrcp.pop %v1851
    %v1858 = vmul.f32 1.0, %v1857
    %v1859 = vrcp.pop %v1852
    %v1860 = vmul.f32 1.0, %v1859
    %v1861 = vtanh.pop %v1833
    %v1862 = vtanh.pop %v1834
    %v1863 = vtanh.pop %v1835
    %v1864 = vtanh.pop %v1836
    %v1865 = vld [vmem:[#allocation4] sm:$0xff]
    %v1866 = vld [vmem:[#allocation4 + $0x8] sm:$0xff]
    %v1867 = vld [vmem:[#allocation4 + $0x10] sm:$0xff]
    %v1868 = vld [vmem:[#allocation4 + $0x18] sm:$0xff]
    %1873 = vrot.lane.b32.xlu0 %v1865, 32
    %v1874 = vpop.permute.xlu0 %1873
    %1875 = vrot.lane.b32.xlu0 %v1866, 32
    %v1876 = vpop.permute.xlu0 %1875
    %1877 = vrot.lane.b32.xlu0 %v1867, 32
    %v1878 = vpop.permute.xlu0 %1877
    %1879 = vrot.lane.b32.xlu0 %v1868, 32
    %v1880 = vpop.permute.xlu0 %1879
    %v1885 = vmul.f32 %v1854, %v1874
    %v1886 = vmul.f32 %v1856, %v1876
    %v1887 = vmul.f32 %v1858, %v1878
    %v1888 = vmul.f32 %v1860, %v1880
    %1893 = vrot.lane.b32.xlu0 %v1861, 32
    %v1894 = vpop.permute.xlu0 %1893
    %1895 = vrot.lane.b32.xlu0 %v1862, 32
    %v1896 = vpop.permute.xlu0 %1895
    %1897 = vrot.lane.b32.xlu0 %v1863, 32
    %v1898 = vpop.permute.xlu0 %1897
    %1899 = vrot.lane.b32.xlu0 %v1864, 32
    %v1900 = vpop.permute.xlu0 %1899
    %v1905 = vmul.f32 %v1854, %v1894
    %v1906 = vmul.f32 %v1856, %v1896
    %v1907 = vmul.f32 %v1858, %v1898
    %v1908 = vmul.f32 %v1860, %v1900
    %1913 = vrot.lane.b32.xlu0 %v1905, 32
    %v1914 = vpop.permute.xlu0 %1913
    %1915 = vrot.lane.b32.xlu0 %v1906, 32
    %v1916 = vpop.permute.xlu0 %1915
    %1917 = vrot.lane.b32.xlu0 %v1907, 32
    %v1918 = vpop.permute.xlu0 %1917
    %1919 = vrot.lane.b32.xlu0 %v1908, 32
    %v1920 = vpop.permute.xlu0 %1919
    %v1925 = vadd.f32 %v1885, %v1914
    %v1926 = vadd.f32 %v1886, %v1916
    %v1927 = vadd.f32 %v1887, %v1918
    %v1928 = vadd.f32 %v1888, %v1920
    %1933 = vrot.lane.b32.xlu0 %v1925, 96
    %v1934 = vpop.permute.xlu0 %1933
    %1935 = vrot.lane.b32.xlu0 %v1926, 96
    %v1936 = vpop.permute.xlu0 %1935
    %1937 = vrot.lane.b32.xlu0 %v1927, 96
    %v1938 = vpop.permute.xlu0 %1937
    %1939 = vrot.lane.b32.xlu0 %v1928, 96
    %v1940 = vpop.permute.xlu0 %1939
    %1945 = vst.msk [vmem:[#allocation4] sm:$0xff] %vm635, %v1934
    %1946 = vst.msk [vmem:[#allocation4 + $0x8] sm:$0xff] %vm635, %v1936
    %1947 = vst.msk [vmem:[#allocation4 + $0x10] sm:$0xff] %vm635, %v1938
    %1948 = vst.msk [vmem:[#allocation4 + $0x18] sm:$0xff] %vm635, %v1940
    %v1949 = vtanh.pop %v1925
    %v1950 = vtanh.pop %v1926
    %v1951 = vtanh.pop %v1927
    %v1952 = vtanh.pop %v1928
    %1957 = vrot.lane.b32.xlu0 %v1949, 32
    %v1958 = vpop.permute.xlu0 %1957
    %1959 = vrot.lane.b32.xlu0 %v1950, 32
    %v1960 = vpop.permute.xlu0 %1959
    %1961 = vrot.lane.b32.xlu0 %v1951, 32
    %v1962 = vpop.permute.xlu0 %1961
    %1963 = vrot.lane.b32.xlu0 %v1952, 32
    %v1964 = vpop.permute.xlu0 %1963
    %v1969 = vmul.f32 %v1854, %v1958
    %v1970 = vmul.f32 %v1856, %v1960
    %v1971 = vmul.f32 %v1858, %v1962
    %v1972 = vmul.f32 %v1860, %v1964
    %1977 = vrot.lane.b32.xlu0 %v1969, 64
    %v1978 = vpop.permute.xlu0 %1977
    %1979 = vrot.lane.b32.xlu0 %v1970, 64
    %v1980 = vpop.permute.xlu0 %1979
    %1981 = vrot.lane.b32.xlu0 %v1971, 64
    %v1982 = vpop.permute.xlu0 %1981
    %1983 = vrot.lane.b32.xlu0 %v1972, 64
    %v1984 = vpop.permute.xlu0 %1983
    %1989 = vst.msk [vmem:[#allocation3] sm:$0xff] %vm635, %v1978
    %1990 = vst.msk [vmem:[#allocation3 + $0x8] sm:$0xff] %vm635, %v1980
    %1991 = vst.msk [vmem:[#allocation3 + $0x10] sm:$0xff] %vm635, %v1982
    %1992 = vst.msk [vmem:[#allocation3 + $0x18] sm:$0xff] %vm635, %v1984
    %s1993 = scalar_lea.vmem [#allocation2], 160
    %v1994 = vld [vmem:[%s1993] sm:$0xff]
    %v1995 = vld [vmem:[%s1993 + $0x8] sm:$0xff]
    %v1996 = vld [vmem:[%s1993 + $0x10] sm:$0xff]
    %v1997 = vld [vmem:[%s1993 + $0x18] sm:$0xff]
    %v1998 = vld [vmem:[#allocation3] sm:$0xff]
    %v1999 = vld [vmem:[#allocation3 + $0x8] sm:$0xff]
    %v2000 = vld [vmem:[#allocation3 + $0x10] sm:$0xff]
    %v2001 = vld [vmem:[#allocation3 + $0x18] sm:$0xff]
    %v2002 = vld [vmem:[%s2] sm:$0xff]
    %v2003 = vld [vmem:[%s2 + $0x8] sm:$0xff]
    %v2004 = vld [vmem:[%s2 + $0x10] sm:$0xff]
    %v2005 = vld [vmem:[%s2 + $0x18] sm:$0xff]
    %v2007 = vsel %vm635, %v1998, 0
    %v2010 = vsel %vm635, %v1999, 0
    %v2013 = vsel %vm635, %v2000, 0
    %v2016 = vsel %vm635, %v2001, 0
    %2018 = vmatprep.subr.mxu0 0.0
    %2019 = vmatpush1.msra.mxu0 %v2002
    %2020 = vmatprep.subr.mxu0 0.0
    %2021 = vmatpush1.msra.mxu0 %v2003
    %2022 = vmatprep.subr.mxu0 0.0
    %2023 = vmatpush1.msra.mxu0 %v2004
    %2024 = vmatprep.subr.mxu0 0.0
    %2025 = vmatpush1.msra.mxu0 %v2005
    %2026 = vmatprep.subr.mxu0 0.0
    %2027 = vmatpush1.msra.mxu0 0.0
    %2028 = vmatprep.subr.mxu0 0.0
    %2029 = vmatpush1.msra.mxu0 0.0
    %2030 = vmatprep.subr.mxu0 0.0
    %2031 = vmatpush1.msra.mxu0 0.0
    %2032 = vmatprep.subr.mxu0 0.0
    %2033 = vmatpush1.msra.mxu0 0.0
    %2034 = vmatprep.subr.mxu0 0.0
    %2035 = vmatpush1.msra.mxu0 0.0
    %2036 = vmatprep.subr.mxu0 0.0
    %2037 = vmatpush1.msra.mxu0 0.0
    %2038 = vmatprep.subr.mxu0 0.0
    %2039 = vmatpush1.msra.mxu0 0.0
    %2040 = vmatprep.subr.mxu0 0.0
    %2041 = vmatpush1.msra.mxu0 0.0
    %2042 = vmatprep.subr.mxu0 0.0
    %2043 = vmatpush1.msra.mxu0 0.0
    %2044 = vmatprep.subr.mxu0 0.0
    %2045 = vmatpush1.msra.mxu0 0.0
    %2046 = vmatprep.subr.mxu0 0.0
    %2047 = vmatpush1.msra.mxu0 0.0
    %2048 = vmatprep.subr.mxu0 0.0
    %2049 = vmatpush1.msra.mxu0 0.0
    %2050 = vmatprep.subr.mxu0 0.0
    %2051 = vmatpush1.msra.mxu0 0.0
    %2052 = vmatprep.subr.mxu0 0.0
    %2053 = vmatpush1.msra.mxu0 0.0
    %2054 = vmatprep.subr.mxu0 0.0
    %2055 = vmatpush1.msra.mxu0 0.0
    %2056 = vmatprep.subr.mxu0 0.0
    %2057 = vmatpush1.msra.mxu0 0.0
    %2058 = vmatprep.subr.mxu0 0.0
    %2059 = vmatpush1.msra.mxu0 0.0
    %2060 = vmatprep.subr.mxu0 0.0
    %2061 = vmatpush1.msra.mxu0 0.0
    %2062 = vmatprep.subr.mxu0 0.0
    %2063 = vmatpush1.msra.mxu0 0.0
    %2064 = vmatprep.subr.mxu0 0.0
    %2065 = vmatpush1.msra.mxu0 0.0
    %2066 = vmatprep.subr.mxu0 0.0
    %2067 = vmatpush1.msra.mxu0 0.0
    %2068 = vmatprep.subr.mxu0 0.0
    %2069 = vmatpush1.msra.mxu0 0.0
    %2070 = vmatprep.subr.mxu0 0.0
    %2071 = vmatpush1.msra.mxu0 0.0
    %2072 = vmatprep.subr.mxu0 0.0
    %2073 = vmatpush1.msra.mxu0 0.0
    %2074 = vmatprep.subr.mxu0 0.0
    %2075 = vmatpush1.msra.mxu0 0.0
    %2076 = vmatprep.subr.mxu0 0.0
    %2077 = vmatpush1.msra.mxu0 0.0
    %2078 = vmatprep.subr.mxu0 0.0
    %2079 = vmatpush1.msra.mxu0 0.0
    %2080 = vmatprep.subr.mxu0 0.0
    %2081 = vmatpush1.msra.mxu0 0.0
    %2082 = vmatprep.mubr.f32.mxu0 0.0
    %2083 = vmatmul.mubr.f32.gmra.mrb[0].mxu0 %v2007
    %v2084 = vpop.f32.mrb[0].mxu0
    %v2085 = vadd.f32 0.0, %v2084
    %v2086 = vpop.f32.mrb[0].mxu0
    %2087 = vmatprep.mubr.f32.mxu0 0.0
    %2088 = vmatmul.mubr.f32.gmra.mrb[0].mxu0 %v2010
    %v2089 = vpop.f32.mrb[0].mxu0
    %v2090 = vadd.f32 0.0, %v2089
    %v2091 = vpop.f32.mrb[0].mxu0
    %2092 = vmatprep.mubr.f32.mxu0 0.0
    %2093 = vmatmul.mubr.f32.gmra.mrb[0].mxu0 %v2013
    %v2094 = vpop.f32.mrb[0].mxu0
    %v2095 = vadd.f32 0.0, %v2094
    %v2096 = vpop.f32.mrb[0].mxu0
    %2097 = vmatprep.mubr.f32.mxu0 0.0
    %2098 = vmatmul.mubr.f32.gmra.mrb[0].mxu0 %v2016
    %v2099 = vpop.f32.mrb[0].mxu0
    %v2100 = vadd.f32 0.0, %v2099
    %v2101 = vpop.f32.mrb[0].mxu0
    %2102 = vdwg.mxu0
    %v2103 = vadd.f32 %v1994, %v2085
    %v2104 = vadd.f32 %v1995, %v2090
    %v2105 = vadd.f32 %v1996, %v2095
    %v2106 = vadd.f32 %v1997, %v2100
    %v2107 = vxor.u32 %v2103, 2147483648
    %v2108 = vxor.u32 %v2104, 2147483648
    %v2109 = vxor.u32 %v2105, 2147483648
    %v2110 = vxor.u32 %v2106, 2147483648
    %v2111 = vmul.f32 %v2107, 1.442695
    %v2112 = vpow.pop %v2111
    %v2113 = vmul.f32 %v2108, 1.442695
    %v2114 = vpow.pop %v2113
    %v2115 = vmul.f32 %v2109, 1.442695
    %v2116 = vpow.pop %v2115
    %v2117 = vmul.f32 %v2110, 1.442695
    %v2118 = vpow.pop %v2117
    %v2119 = vadd.f32 %v2112, 1.0
    %v2120 = vadd.f32 %v2114, 1.0
    %v2121 = vadd.f32 %v2116, 1.0
    %v2122 = vadd.f32 %v2118, 1.0
    %v2123 = vrcp.pop %v2119
    %v2124 = vmul.f32 1.0, %v2123
    %v2125 = vrcp.pop %v2120
    %v2126 = vmul.f32 1.0, %v2125
    %v2127 = vrcp.pop %v2121
    %v2128 = vmul.f32 1.0, %v2127
    %v2129 = vrcp.pop %v2122
    %v2130 = vmul.f32 1.0, %v2129
    %v2131 = vtanh.pop %v2103
    %v2132 = vtanh.pop %v2104
    %v2133 = vtanh.pop %v2105
    %v2134 = vtanh.pop %v2106
    %v2135 = vld [vmem:[#allocation4] sm:$0xff]
    %v2136 = vld [vmem:[#allocation4 + $0x8] sm:$0xff]
    %v2137 = vld [vmem:[#allocation4 + $0x10] sm:$0xff]
    %v2138 = vld [vmem:[#allocation4 + $0x18] sm:$0xff]
    %2143 = vrot.lane.b32.xlu0 %v2135, 32
    %v2144 = vpop.permute.xlu0 %2143
    %2145 = vrot.lane.b32.xlu0 %v2136, 32
    %v2146 = vpop.permute.xlu0 %2145
    %2147 = vrot.lane.b32.xlu0 %v2137, 32
    %v2148 = vpop.permute.xlu0 %2147
    %2149 = vrot.lane.b32.xlu0 %v2138, 32
    %v2150 = vpop.permute.xlu0 %2149
    %v2155 = vmul.f32 %v2124, %v2144
    %v2156 = vmul.f32 %v2126, %v2146
    %v2157 = vmul.f32 %v2128, %v2148
    %v2158 = vmul.f32 %v2130, %v2150
    %2163 = vrot.lane.b32.xlu0 %v2131, 32
    %v2164 = vpop.permute.xlu0 %2163
    %2165 = vrot.lane.b32.xlu0 %v2132, 32
    %v2166 = vpop.permute.xlu0 %2165
    %2167 = vrot.lane.b32.xlu0 %v2133, 32
    %v2168 = vpop.permute.xlu0 %2167
    %2169 = vrot.lane.b32.xlu0 %v2134, 32
    %v2170 = vpop.permute.xlu0 %2169
    %v2175 = vmul.f32 %v2124, %v2164
    %v2176 = vmul.f32 %v2126, %v2166
    %v2177 = vmul.f32 %v2128, %v2168
    %v2178 = vmul.f32 %v2130, %v2170
    %2183 = vrot.lane.b32.xlu0 %v2175, 32
    %v2184 = vpop.permute.xlu0 %2183
    %2185 = vrot.lane.b32.xlu0 %v2176, 32
    %v2186 = vpop.permute.xlu0 %2185
    %2187 = vrot.lane.b32.xlu0 %v2177, 32
    %v2188 = vpop.permute.xlu0 %2187
    %2189 = vrot.lane.b32.xlu0 %v2178, 32
    %v2190 = vpop.permute.xlu0 %2189
    %v2195 = vadd.f32 %v2155, %v2184
    %v2196 = vadd.f32 %v2156, %v2186
    %v2197 = vadd.f32 %v2157, %v2188
    %v2198 = vadd.f32 %v2158, %v2190
    %2203 = vrot.lane.b32.xlu0 %v2195, 96
    %v2204 = vpop.permute.xlu0 %2203
    %2205 = vrot.lane.b32.xlu0 %v2196, 96
    %v2206 = vpop.permute.xlu0 %2205
    %2207 = vrot.lane.b32.xlu0 %v2197, 96
    %v2208 = vpop.permute.xlu0 %2207
    %2209 = vrot.lane.b32.xlu0 %v2198, 96
    %v2210 = vpop.permute.xlu0 %2209
    %2215 = vst.msk [vmem:[#allocation4] sm:$0xff] %vm635, %v2204
    %2216 = vst.msk [vmem:[#allocation4 + $0x8] sm:$0xff] %vm635, %v2206
    %2217 = vst.msk [vmem:[#allocation4 + $0x10] sm:$0xff] %vm635, %v2208
    %2218 = vst.msk [vmem:[#allocation4 + $0x18] sm:$0xff] %vm635, %v2210
    %v2219 = vtanh.pop %v2195
    %v2220 = vtanh.pop %v2196
    %v2221 = vtanh.pop %v2197
    %v2222 = vtanh.pop %v2198
    %2227 = vrot.lane.b32.xlu0 %v2219, 32
    %v2228 = vpop.permute.xlu0 %2227
    %2229 = vrot.lane.b32.xlu0 %v2220, 32
    %v2230 = vpop.permute.xlu0 %2229
    %2231 = vrot.lane.b32.xlu0 %v2221, 32
    %v2232 = vpop.permute.xlu0 %2231
    %2233 = vrot.lane.b32.xlu0 %v2222, 32
    %v2234 = vpop.permute.xlu0 %2233
    %v2239 = vmul.f32 %v2124, %v2228
    %v2240 = vmul.f32 %v2126, %v2230
    %v2241 = vmul.f32 %v2128, %v2232
    %v2242 = vmul.f32 %v2130, %v2234
    %2247 = vrot.lane.b32.xlu0 %v2239, 64
    %v2248 = vpop.permute.xlu0 %2247
    %2249 = vrot.lane.b32.xlu0 %v2240, 64
    %v2250 = vpop.permute.xlu0 %2249
    %2251 = vrot.lane.b32.xlu0 %v2241, 64
    %v2252 = vpop.permute.xlu0 %2251
    %2253 = vrot.lane.b32.xlu0 %v2242, 64
    %v2254 = vpop.permute.xlu0 %2253
    %2259 = vst.msk [vmem:[#allocation3] sm:$0xff] %vm635, %v2248
    %2260 = vst.msk [vmem:[#allocation3 + $0x8] sm:$0xff] %vm635, %v2250
    %2261 = vst.msk [vmem:[#allocation3 + $0x10] sm:$0xff] %vm635, %v2252
    %2262 = vst.msk [vmem:[#allocation3 + $0x18] sm:$0xff] %vm635, %v2254
    %s2263 = scalar_lea.vmem [#allocation2], 192
    %v2264 = vld [vmem:[%s2263] sm:$0xff]
    %v2265 = vld [vmem:[%s2263 + $0x8] sm:$0xff]
    %v2266 = vld [vmem:[%s2263 + $0x10] sm:$0xff]
    %v2267 = vld [vmem:[%s2263 + $0x18] sm:$0xff]
    %v2268 = vld [vmem:[#allocation3] sm:$0xff]
    %v2269 = vld [vmem:[#allocation3 + $0x8] sm:$0xff]
    %v2270 = vld [vmem:[#allocation3 + $0x10] sm:$0xff]
    %v2271 = vld [vmem:[#allocation3 + $0x18] sm:$0xff]
    %v2272 = vld [vmem:[%s2] sm:$0xff]
    %v2273 = vld [vmem:[%s2 + $0x8] sm:$0xff]
    %v2274 = vld [vmem:[%s2 + $0x10] sm:$0xff]
    %v2275 = vld [vmem:[%s2 + $0x18] sm:$0xff]
    %v2277 = vsel %vm635, %v2268, 0
    %v2280 = vsel %vm635, %v2269, 0
    %v2283 = vsel %vm635, %v2270, 0
    %v2286 = vsel %vm635, %v2271, 0
    %2288 = vmatprep.subr.mxu0 0.0
    %2289 = vmatpush1.msra.mxu0 %v2272
    %2290 = vmatprep.subr.mxu0 0.0
    %2291 = vmatpush1.msra.mxu0 %v2273
    %2292 = vmatprep.subr.mxu0 0.0
    %2293 = vmatpush1.msra.mxu0 %v2274
    %2294 = vmatprep.subr.mxu0 0.0
    %2295 = vmatpush1.msra.mxu0 %v2275
    %2296 = vmatprep.subr.mxu0 0.0
    %2297 = vmatpush1.msra.mxu0 0.0
    %2298 = vmatprep.subr.mxu0 0.0
    %2299 = vmatpush1.msra.mxu0 0.0
    %2300 = vmatprep.subr.mxu0 0.0
    %2301 = vmatpush1.msra.mxu0 0.0
    %2302 = vmatprep.subr.mxu0 0.0
    %2303 = vmatpush1.msra.mxu0 0.0
    %2304 = vmatprep.subr.mxu0 0.0
    %2305 = vmatpush1.msra.mxu0 0.0
    %2306 = vmatprep.subr.mxu0 0.0
    %2307 = vmatpush1.msra.mxu0 0.0
    %2308 = vmatprep.subr.mxu0 0.0
    %2309 = vmatpush1.msra.mxu0 0.0
    %2310 = vmatprep.subr.mxu0 0.0
    %2311 = vmatpush1.msra.mxu0 0.0
    %2312 = vmatprep.subr.mxu0 0.0
    %2313 = vmatpush1.msra.mxu0 0.0
    %2314 = vmatprep.subr.mxu0 0.0
    %2315 = vmatpush1.msra.mxu0 0.0
    %2316 = vmatprep.subr.mxu0 0.0
    %2317 = vmatpush1.msra.mxu0 0.0
    %2318 = vmatprep.subr.mxu0 0.0
    %2319 = vmatpush1.msra.mxu0 0.0
    %2320 = vmatprep.subr.mxu0 0.0
    %2321 = vmatpush1.msra.mxu0 0.0
    %2322 = vmatprep.subr.mxu0 0.0
    %2323 = vmatpush1.msra.mxu0 0.0
    %2324 = vmatprep.subr.mxu0 0.0
    %2325 = vmatpush1.msra.mxu0 0.0
    %2326 = vmatprep.subr.mxu0 0.0
    %2327 = vmatpush1.msra.mxu0 0.0
    %2328 = vmatprep.subr.mxu0 0.0
    %2329 = vmatpush1.msra.mxu0 0.0
    %2330 = vmatprep.subr.mxu0 0.0
    %2331 = vmatpush1.msra.mxu0 0.0
    %2332 = vmatprep.subr.mxu0 0.0
    %2333 = vmatpush1.msra.mxu0 0.0
    %2334 = vmatprep.subr.mxu0 0.0
    %2335 = vmatpush1.msra.mxu0 0.0
    %2336 = vmatprep.subr.mxu0 0.0
    %2337 = vmatpush1.msra.mxu0 0.0
    %2338 = vmatprep.subr.mxu0 0.0
    %2339 = vmatpush1.msra.mxu0 0.0
    %2340 = vmatprep.subr.mxu0 0.0
    %2341 = vmatpush1.msra.mxu0 0.0
    %2342 = vmatprep.subr.mxu0 0.0
    %2343 = vmatpush1.msra.mxu0 0.0
    %2344 = vmatprep.subr.mxu0 0.0
    %2345 = vmatpush1.msra.mxu0 0.0
    %2346 = vmatprep.subr.mxu0 0.0
    %2347 = vmatpush1.msra.mxu0 0.0
    %2348 = vmatprep.subr.mxu0 0.0
    %2349 = vmatpush1.msra.mxu0 0.0
    %2350 = vmatprep.subr.mxu0 0.0
    %2351 = vmatpush1.msra.mxu0 0.0
    %2352 = vmatprep.mubr.f32.mxu0 0.0
    %2353 = vmatmul.mubr.f32.gmra.mrb[0].mxu0 %v2277
    %v2354 = vpop.f32.mrb[0].mxu0
    %v2355 = vadd.f32 0.0, %v2354
    %v2356 = vpop.f32.mrb[0].mxu0
    %2357 = vmatprep.mubr.f32.mxu0 0.0
    %2358 = vmatmul.mubr.f32.gmra.mrb[0].mxu0 %v2280
    %v2359 = vpop.f32.mrb[0].mxu0
    %v2360 = vadd.f32 0.0, %v2359
    %v2361 = vpop.f32.mrb[0].mxu0
    %2362 = vmatprep.mubr.f32.mxu0 0.0
    %2363 = vmatmul.mubr.f32.gmra.mrb[0].mxu0 %v2283
    %v2364 = vpop.f32.mrb[0].mxu0
    %v2365 = vadd.f32 0.0, %v2364
    %v2366 = vpop.f32.mrb[0].mxu0
    %2367 = vmatprep.mubr.f32.mxu0 0.0
    %2368 = vmatmul.mubr.f32.gmra.mrb[0].mxu0 %v2286
    %v2369 = vpop.f32.mrb[0].mxu0
    %v2370 = vadd.f32 0.0, %v2369
    %v2371 = vpop.f32.mrb[0].mxu0
    %2372 = vdwg.mxu0
    %v2373 = vadd.f32 %v2264, %v2355
    %v2374 = vadd.f32 %v2265, %v2360
    %v2375 = vadd.f32 %v2266, %v2365
    %v2376 = vadd.f32 %v2267, %v2370
    %v2377 = vxor.u32 %v2373, 2147483648
    %v2378 = vxor.u32 %v2374, 2147483648
    %v2379 = vxor.u32 %v2375, 2147483648
    %v2380 = vxor.u32 %v2376, 2147483648
    %v2381 = vmul.f32 %v2377, 1.442695
    %v2382 = vpow.pop %v2381
    %v2383 = vmul.f32 %v2378, 1.442695
    %v2384 = vpow.pop %v2383
    %v2385 = vmul.f32 %v2379, 1.442695
    %v2386 = vpow.pop %v2385
    %v2387 = vmul.f32 %v2380, 1.442695
    %v2388 = vpow.pop %v2387
    %v2389 = vadd.f32 %v2382, 1.0
    %v2390 = vadd.f32 %v2384, 1.0
    %v2391 = vadd.f32 %v2386, 1.0
    %v2392 = vadd.f32 %v2388, 1.0
    %v2393 = vrcp.pop %v2389
    %v2394 = vmul.f32 1.0, %v2393
    %v2395 = vrcp.pop %v2390
    %v2396 = vmul.f32 1.0, %v2395
    %v2397 = vrcp.pop %v2391
    %v2398 = vmul.f32 1.0, %v2397
    %v2399 = vrcp.pop %v2392
    %v2400 = vmul.f32 1.0, %v2399
    %v2401 = vtanh.pop %v2373
    %v2402 = vtanh.pop %v2374
    %v2403 = vtanh.pop %v2375
    %v2404 = vtanh.pop %v2376
    %v2405 = vld [vmem:[#allocation4] sm:$0xff]
    %v2406 = vld [vmem:[#allocation4 + $0x8] sm:$0xff]
    %v2407 = vld [vmem:[#allocation4 + $0x10] sm:$0xff]
    %v2408 = vld [vmem:[#allocation4 + $0x18] sm:$0xff]
    %2413 = vrot.lane.b32.xlu0 %v2405, 32
    %v2414 = vpop.permute.xlu0 %2413
    %2415 = vrot.lane.b32.xlu0 %v2406, 32
    %v2416 = vpop.permute.xlu0 %2415
    %2417 = vrot.lane.b32.xlu0 %v2407, 32
    %v2418 = vpop.permute.xlu0 %2417
    %2419 = vrot.lane.b32.xlu0 %v2408, 32
    %v2420 = vpop.permute.xlu0 %2419
    %v2425 = vmul.f32 %v2394, %v2414
    %v2426 = vmul.f32 %v2396, %v2416
    %v2427 = vmul.f32 %v2398, %v2418
    %v2428 = vmul.f32 %v2400, %v2420
    %2433 = vrot.lane.b32.xlu0 %v2401, 32
    %v2434 = vpop.permute.xlu0 %2433
    %2435 = vrot.lane.b32.xlu0 %v2402, 32
    %v2436 = vpop.permute.xlu0 %2435
    %2437 = vrot.lane.b32.xlu0 %v2403, 32
    %v2438 = vpop.permute.xlu0 %2437
    %2439 = vrot.lane.b32.xlu0 %v2404, 32
    %v2440 = vpop.permute.xlu0 %2439
    %v2445 = vmul.f32 %v2394, %v2434
    %v2446 = vmul.f32 %v2396, %v2436
    %v2447 = vmul.f32 %v2398, %v2438
    %v2448 = vmul.f32 %v2400, %v2440
    %2453 = vrot.lane.b32.xlu0 %v2445, 32
    %v2454 = vpop.permute.xlu0 %2453
    %2455 = vrot.lane.b32.xlu0 %v2446, 32
    %v2456 = vpop.permute.xlu0 %2455
    %2457 = vrot.lane.b32.xlu0 %v2447, 32
    %v2458 = vpop.permute.xlu0 %2457
    %2459 = vrot.lane.b32.xlu0 %v2448, 32
    %v2460 = vpop.permute.xlu0 %2459
    %v2465 = vadd.f32 %v2425, %v2454
    %v2466 = vadd.f32 %v2426, %v2456
    %v2467 = vadd.f32 %v2427, %v2458
    %v2468 = vadd.f32 %v2428, %v2460
    %2473 = vrot.lane.b32.xlu0 %v2465, 96
    %v2474 = vpop.permute.xlu0 %2473
    %2475 = vrot.lane.b32.xlu0 %v2466, 96
    %v2476 = vpop.permute.xlu0 %2475
    %2477 = vrot.lane.b32.xlu0 %v2467, 96
    %v2478 = vpop.permute.xlu0 %2477
    %2479 = vrot.lane.b32.xlu0 %v2468, 96
    %v2480 = vpop.permute.xlu0 %2479
    %2485 = vst.msk [vmem:[#allocation4] sm:$0xff] %vm635, %v2474
    %2486 = vst.msk [vmem:[#allocation4 + $0x8] sm:$0xff] %vm635, %v2476
    %2487 = vst.msk [vmem:[#allocation4 + $0x10] sm:$0xff] %vm635, %v2478
    %2488 = vst.msk [vmem:[#allocation4 + $0x18] sm:$0xff] %vm635, %v2480
    %v2489 = vtanh.pop %v2465
    %v2490 = vtanh.pop %v2466
    %v2491 = vtanh.pop %v2467
    %v2492 = vtanh.pop %v2468
    %2497 = vrot.lane.b32.xlu0 %v2489, 32
    %v2498 = vpop.permute.xlu0 %2497
    %2499 = vrot.lane.b32.xlu0 %v2490, 32
    %v2500 = vpop.permute.xlu0 %2499
    %2501 = vrot.lane.b32.xlu0 %v2491, 32
    %v2502 = vpop.permute.xlu0 %2501
    %2503 = vrot.lane.b32.xlu0 %v2492, 32
    %v2504 = vpop.permute.xlu0 %2503
    %v2509 = vmul.f32 %v2394, %v2498
    %v2510 = vmul.f32 %v2396, %v2500
    %v2511 = vmul.f32 %v2398, %v2502
    %v2512 = vmul.f32 %v2400, %v2504
    %2517 = vrot.lane.b32.xlu0 %v2509, 64
    %v2518 = vpop.permute.xlu0 %2517
    %2519 = vrot.lane.b32.xlu0 %v2510, 64
    %v2520 = vpop.permute.xlu0 %2519
    %2521 = vrot.lane.b32.xlu0 %v2511, 64
    %v2522 = vpop.permute.xlu0 %2521
    %2523 = vrot.lane.b32.xlu0 %v2512, 64
    %v2524 = vpop.permute.xlu0 %2523
    %2529 = vst.msk [vmem:[#allocation3] sm:$0xff] %vm635, %v2518
    %2530 = vst.msk [vmem:[#allocation3 + $0x8] sm:$0xff] %vm635, %v2520
    %2531 = vst.msk [vmem:[#allocation3 + $0x10] sm:$0xff] %vm635, %v2522
    %2532 = vst.msk [vmem:[#allocation3 + $0x18] sm:$0xff] %vm635, %v2524
    %s2533 = scalar_lea.vmem [#allocation2], 224
    %v2534 = vld [vmem:[%s2533] sm:$0xff]
    %v2535 = vld [vmem:[%s2533 + $0x8] sm:$0xff]
    %v2536 = vld [vmem:[%s2533 + $0x10] sm:$0xff]
    %v2537 = vld [vmem:[%s2533 + $0x18] sm:$0xff]
    %v2538 = vld [vmem:[#allocation3] sm:$0xff]
    %v2539 = vld [vmem:[#allocation3 + $0x8] sm:$0xff]
    %v2540 = vld [vmem:[#allocation3 + $0x10] sm:$0xff]
    %v2541 = vld [vmem:[#allocation3 + $0x18] sm:$0xff]
    %v2542 = vld [vmem:[%s2] sm:$0xff]
    %v2543 = vld [vmem:[%s2 + $0x8] sm:$0xff]
    %v2544 = vld [vmem:[%s2 + $0x10] sm:$0xff]
    %v2545 = vld [vmem:[%s2 + $0x18] sm:$0xff]
    %v2547 = vsel %vm635, %v2538, 0
    %v2550 = vsel %vm635, %v2539, 0
    %v2553 = vsel %vm635, %v2540, 0
    %v2556 = vsel %vm635, %v2541, 0
    %2558 = vmatprep.subr.mxu0 0.0
    %2559 = vmatpush1.msra.mxu0 %v2542
    %2560 = vmatprep.subr.mxu0 0.0
    %2561 = vmatpush1.msra.mxu0 %v2543
    %2562 = vmatprep.subr.mxu0 0.0
    %2563 = vmatpush1.msra.mxu0 %v2544
    %2564 = vmatprep.subr.mxu0 0.0
    %2565 = vmatpush1.msra.mxu0 %v2545
    %2566 = vmatprep.subr.mxu0 0.0
    %2567 = vmatpush1.msra.mxu0 0.0
    %2568 = vmatprep.subr.mxu0 0.0
    %2569 = vmatpush1.msra.mxu0 0.0
    %2570 = vmatprep.subr.mxu0 0.0
    %2571 = vmatpush1.msra.mxu0 0.0
    %2572 = vmatprep.subr.mxu0 0.0
    %2573 = vmatpush1.msra.mxu0 0.0
    %2574 = vmatprep.subr.mxu0 0.0
    %2575 = vmatpush1.msra.mxu0 0.0
    %2576 = vmatprep.subr.mxu0 0.0
    %2577 = vmatpush1.msra.mxu0 0.0
    %2578 = vmatprep.subr.mxu0 0.0
    %2579 = vmatpush1.msra.mxu0 0.0
    %2580 = vmatprep.subr.mxu0 0.0
    %2581 = vmatpush1.msra.mxu0 0.0
    %2582 = vmatprep.subr.mxu0 0.0
    %2583 = vmatpush1.msra.mxu0 0.0
    %2584 = vmatprep.subr.mxu0 0.0
    %2585 = vmatpush1.msra.mxu0 0.0
    %2586 = vmatprep.subr.mxu0 0.0
    %2587 = vmatpush1.msra.mxu0 0.0
    %2588 = vmatprep.subr.mxu0 0.0
    %2589 = vmatpush1.msra.mxu0 0.0
    %2590 = vmatprep.subr.mxu0 0.0
    %2591 = vmatpush1.msra.mxu0 0.0
    %2592 = vmatprep.subr.mxu0 0.0
    %2593 = vmatpush1.msra.mxu0 0.0
    %2594 = vmatprep.subr.mxu0 0.0
    %2595 = vmatpush1.msra.mxu0 0.0
    %2596 = vmatprep.subr.mxu0 0.0
    %2597 = vmatpush1.msra.mxu0 0.0
    %2598 = vmatprep.subr.mxu0 0.0
    %2599 = vmatpush1.msra.mxu0 0.0
    %2600 = vmatprep.subr.mxu0 0.0
    %2601 = vmatpush1.msra.mxu0 0.0
    %2602 = vmatprep.subr.mxu0 0.0
    %2603 = vmatpush1.msra.mxu0 0.0
    %2604 = vmatprep.subr.mxu0 0.0
    %2605 = vmatpush1.msra.mxu0 0.0
    %2606 = vmatprep.subr.mxu0 0.0
    %2607 = vmatpush1.msra.mxu0 0.0
    %2608 = vmatprep.subr.mxu0 0.0
    %2609 = vmatpush1.msra.mxu0 0.0
    %2610 = vmatprep.subr.mxu0 0.0
    %2611 = vmatpush1.msra.mxu0 0.0
    %2612 = vmatprep.subr.mxu0 0.0
    %2613 = vmatpush1.msra.mxu0 0.0
    %2614 = vmatprep.subr.mxu0 0.0
    %2615 = vmatpush1.msra.mxu0 0.0
    %2616 = vmatprep.subr.mxu0 0.0
    %2617 = vmatpush1.msra.mxu0 0.0
    %2618 = vmatprep.subr.mxu0 0.0
    %2619 = vmatpush1.msra.mxu0 0.0
    %2620 = vmatprep.subr.mxu0 0.0
    %2621 = vmatpush1.msra.mxu0 0.0
    %2622 = vmatprep.mubr.f32.mxu0 0.0
    %2623 = vmatmul.mubr.f32.gmra.mrb[0].mxu0 %v2547
    %v2624 = vpop.f32.mrb[0].mxu0
    %v2625 = vadd.f32 0.0, %v2624
    %v2626 = vpop.f32.mrb[0].mxu0
    %2627 = vmatprep.mubr.f32.mxu0 0.0
    %2628 = vmatmul.mubr.f32.gmra.mrb[0].mxu0 %v2550
    %v2629 = vpop.f32.mrb[0].mxu0
    %v2630 = vadd.f32 0.0, %v2629
    %v2631 = vpop.f32.mrb[0].mxu0
    %2632 = vmatprep.mubr.f32.mxu0 0.0
    %2633 = vmatmul.mubr.f32.gmra.mrb[0].mxu0 %v2553
    %v2634 = vpop.f32.mrb[0].mxu0
    %v2635 = vadd.f32 0.0, %v2634
    %v2636 = vpop.f32.mrb[0].mxu0
    %2637 = vmatprep.mubr.f32.mxu0 0.0
    %2638 = vmatmul.mubr.f32.gmra.mrb[0].mxu0 %v2556
    %v2639 = vpop.f32.mrb[0].mxu0
    %v2640 = vadd.f32 0.0, %v2639
    %v2641 = vpop.f32.mrb[0].mxu0
    %2642 = vdwg.mxu0
    %v2643 = vadd.f32 %v2534, %v2625
    %v2644 = vadd.f32 %v2535, %v2630
    %v2645 = vadd.f32 %v2536, %v2635
    %v2646 = vadd.f32 %v2537, %v2640
    %v2647 = vxor.u32 %v2643, 2147483648
    %v2648 = vxor.u32 %v2644, 2147483648
    %v2649 = vxor.u32 %v2645, 2147483648
    %v2650 = vxor.u32 %v2646, 2147483648
    %v2651 = vmul.f32 %v2647, 1.442695
    %v2652 = vpow.pop %v2651
    %v2653 = vmul.f32 %v2648, 1.442695
    %v2654 = vpow.pop %v2653
    %v2655 = vmul.f32 %v2649, 1.442695
    %v2656 = vpow.pop %v2655
    %v2657 = vmul.f32 %v2650, 1.442695
    %v2658 = vpow.pop %v2657
    %v2659 = vadd.f32 %v2652, 1.0
    %v2660 = vadd.f32 %v2654, 1.0
    %v2661 = vadd.f32 %v2656, 1.0
    %v2662 = vadd.f32 %v2658, 1.0
    %v2663 = vrcp.pop %v2659
    %v2664 = vmul.f32 1.0, %v2663
    %v2665 = vrcp.pop %v2660
    %v2666 = vmul.f32 1.0, %v2665
    %v2667 = vrcp.pop %v2661
    %v2668 = vmul.f32 1.0, %v2667
    %v2669 = vrcp.pop %v2662
    %v2670 = vmul.f32 1.0, %v2669
    %v2671 = vtanh.pop %v2643
    %v2672 = vtanh.pop %v2644
    %v2673 = vtanh.pop %v2645
    %v2674 = vtanh.pop %v2646
    %v2675 = vld [vmem:[#allocation4] sm:$0xff]
    %v2676 = vld [vmem:[#allocation4 + $0x8] sm:$0xff]
    %v2677 = vld [vmem:[#allocation4 + $0x10] sm:$0xff]
    %v2678 = vld [vmem:[#allocation4 + $0x18] sm:$0xff]
    %2683 = vrot.lane.b32.xlu0 %v2675, 32
    %v2684 = vpop.permute.xlu0 %2683
    %2685 = vrot.lane.b32.xlu0 %v2676, 32
    %v2686 = vpop.permute.xlu0 %2685
    %2687 = vrot.lane.b32.xlu0 %v2677, 32
    %v2688 = vpop.permute.xlu0 %2687
    %2689 = vrot.lane.b32.xlu0 %v2678, 32
    %v2690 = vpop.permute.xlu0 %2689
    %v2695 = vmul.f32 %v2664, %v2684
    %v2696 = vmul.f32 %v2666, %v2686
    %v2697 = vmul.f32 %v2668, %v2688
    %v2698 = vmul.f32 %v2670, %v2690
    %2703 = vrot.lane.b32.xlu0 %v2671, 32
    %v2704 = vpop.permute.xlu0 %2703
    %2705 = vrot.lane.b32.xlu0 %v2672, 32
    %v2706 = vpop.permute.xlu0 %2705
    %2707 = vrot.lane.b32.xlu0 %v2673, 32
    %v2708 = vpop.permute.xlu0 %2707
    %2709 = vrot.lane.b32.xlu0 %v2674, 32
    %v2710 = vpop.permute.xlu0 %2709
    %v2715 = vmul.f32 %v2664, %v2704
    %v2716 = vmul.f32 %v2666, %v2706
    %v2717 = vmul.f32 %v2668, %v2708
    %v2718 = vmul.f32 %v2670, %v2710
    %2723 = vrot.lane.b32.xlu0 %v2715, 32
    %v2724 = vpop.permute.xlu0 %2723
    %2725 = vrot.lane.b32.xlu0 %v2716, 32
    %v2726 = vpop.permute.xlu0 %2725
    %2727 = vrot.lane.b32.xlu0 %v2717, 32
    %v2728 = vpop.permute.xlu0 %2727
    %2729 = vrot.lane.b32.xlu0 %v2718, 32
    %v2730 = vpop.permute.xlu0 %2729
    %v2735 = vadd.f32 %v2695, %v2724
    %v2736 = vadd.f32 %v2696, %v2726
    %v2737 = vadd.f32 %v2697, %v2728
    %v2738 = vadd.f32 %v2698, %v2730
    %2743 = vrot.lane.b32.xlu0 %v2735, 96
    %v2744 = vpop.permute.xlu0 %2743
    %2745 = vrot.lane.b32.xlu0 %v2736, 96
    %v2746 = vpop.permute.xlu0 %2745
    %2747 = vrot.lane.b32.xlu0 %v2737, 96
    %v2748 = vpop.permute.xlu0 %2747
    %2749 = vrot.lane.b32.xlu0 %v2738, 96
    %v2750 = vpop.permute.xlu0 %2749
    %2755 = vst.msk [vmem:[#allocation4] sm:$0xff] %vm635, %v2744
    %2756 = vst.msk [vmem:[#allocation4 + $0x8] sm:$0xff] %vm635, %v2746
    %2757 = vst.msk [vmem:[#allocation4 + $0x10] sm:$0xff] %vm635, %v2748
    %2758 = vst.msk [vmem:[#allocation4 + $0x18] sm:$0xff] %vm635, %v2750
    %v2759 = vtanh.pop %v2735
    %v2760 = vtanh.pop %v2736
    %v2761 = vtanh.pop %v2737
    %v2762 = vtanh.pop %v2738
    %2767 = vrot.lane.b32.xlu0 %v2759, 32
    %v2768 = vpop.permute.xlu0 %2767
    %2769 = vrot.lane.b32.xlu0 %v2760, 32
    %v2770 = vpop.permute.xlu0 %2769
    %2771 = vrot.lane.b32.xlu0 %v2761, 32
    %v2772 = vpop.permute.xlu0 %2771
    %2773 = vrot.lane.b32.xlu0 %v2762, 32
    %v2774 = vpop.permute.xlu0 %2773
    %v2779 = vmul.f32 %v2664, %v2768
    %v2780 = vmul.f32 %v2666, %v2770
    %v2781 = vmul.f32 %v2668, %v2772
    %v2782 = vmul.f32 %v2670, %v2774
    %2787 = vrot.lane.b32.xlu0 %v2779, 64
    %v2788 = vpop.permute.xlu0 %2787
    %2789 = vrot.lane.b32.xlu0 %v2780, 64
    %v2790 = vpop.permute.xlu0 %2789
    %2791 = vrot.lane.b32.xlu0 %v2781, 64
    %v2792 = vpop.permute.xlu0 %2791
    %2793 = vrot.lane.b32.xlu0 %v2782, 64
    %v2794 = vpop.permute.xlu0 %2793
    %2799 = vst.msk [vmem:[#allocation3] sm:$0xff] %vm635, %v2788
    %2800 = vst.msk [vmem:[#allocation3 + $0x8] sm:$0xff] %vm635, %v2790
    %2801 = vst.msk [vmem:[#allocation3 + $0x10] sm:$0xff] %vm635, %v2792
    %2802 = vst.msk [vmem:[#allocation3 + $0x18] sm:$0xff] %vm635, %v2794
    %v2803 = vld [vmem:[#allocation3] sm:$0xff]
    %v2804 = vld [vmem:[#allocation3 + $0x8] sm:$0xff]
    %v2805 = vld [vmem:[#allocation3 + $0x10] sm:$0xff]
    %v2806 = vld [vmem:[#allocation3 + $0x18] sm:$0xff]
    %v2807 = vld [vmem:[%s4] sm:$0xff]
    %v2808 = vld [vmem:[%s4 + $0x8] sm:$0xff]
    %v2809 = vld [vmem:[%s4 + $0x10] sm:$0xff]
    %v2810 = vld [vmem:[%s4 + $0x18] sm:$0xff]
    %v2811 = vadd.f32 %v2803, %v2807
    %v2812 = vadd.f32 %v2804, %v2808
    %v2813 = vadd.f32 %v2805, %v2809
    %v2814 = vadd.f32 %v2806, %v2810
    %v2815 = vld [vmem:[%s5] sm:$0xff]
    %v2816 = vld [vmem:[%s5 + $0x8] sm:$0xff]
    %v2817 = vld [vmem:[%s5 + $0x10] sm:$0xff]
    %v2818 = vld [vmem:[%s5 + $0x18] sm:$0xff]
    %v2819 = vld [vmem:[%s6] sm:$0xff]
    %v2820 = vld [vmem:[%s6 + $0x8] sm:$0xff]
    %v2821 = vld [vmem:[%s6 + $0x10] sm:$0xff]
    %v2822 = vld [vmem:[%s6 + $0x18] sm:$0xff]
    %v2823 = vld [vmem:[%s7] sm:$0x1]
    %v2825 = vlaneseq
    %v2826 = vshrl.u32 %v2825, 7
    %v2827 = vsub.s32 0, %v2826
    %v2828 = vrot.slane %v2823, %v2827
    %v2831 = vsel %vm635, %v2811, 0
    %v2834 = vsel %vm635, %v2812, 0
    %v2837 = vsel %vm635, %v2813, 0
    %v2840 = vsel %vm635, %v2814, 0
    %2842 = vmatprep.subr.mxu0 0.0
    %2843 = vmatpush1.msra.mxu0 %v2819
    %2844 = vmatprep.subr.mxu0 0.0
    %2845 = vmatpush1.msra.mxu0 %v2820
    %2846 = vmatprep.subr.mxu0 0.0
    %2847 = vmatpush1.msra.mxu0 %v2821
    %2848 = vmatprep.subr.mxu0 0.0
    %2849 = vmatpush1.msra.mxu0 %v2822
    %2850 = vmatprep.subr.mxu0 0.0
    %2851 = vmatpush1.msra.mxu0 0.0
    %2852 = vmatprep.subr.mxu0 0.0
    %2853 = vmatpush1.msra.mxu0 0.0
    %2854 = vmatprep.subr.mxu0 0.0
    %2855 = vmatpush1.msra.mxu0 0.0
    %2856 = vmatprep.subr.mxu0 0.0
    %2857 = vmatpush1.msra.mxu0 0.0
    %2858 = vmatprep.subr.mxu0 0.0
    %2859 = vmatpush1.msra.mxu0 0.0
    %2860 = vmatprep.subr.mxu0 0.0
    %2861 = vmatpush1.msra.mxu0 0.0
    %2862 = vmatprep.subr.mxu0 0.0
    %2863 = vmatpush1.msra.mxu0 0.0
    %2864 = vmatprep.subr.mxu0 0.0
    %2865 = vmatpush1.msra.mxu0 0.0
    %2866 = vmatprep.subr.mxu0 0.0
    %2867 = vmatpush1.msra.mxu0 0.0
    %2868 = vmatprep.subr.mxu0 0.0
    %2869 = vmatpush1.msra.mxu0 0.0
    %2870 = vmatprep.subr.mxu0 0.0
    %2871 = vmatpush1.msra.mxu0 0.0
    %2872 = vmatprep.subr.mxu0 0.0
    %2873 = vmatpush1.msra.mxu0 0.0
    %2874 = vmatprep.subr.mxu0 0.0
    %2875 = vmatpush1.msra.mxu0 0.0
    %2876 = vmatprep.subr.mxu0 0.0
    %2877 = vmatpush1.msra.mxu0 0.0
    %2878 = vmatprep.subr.mxu0 0.0
    %2879 = vmatpush1.msra.mxu0 0.0
    %2880 = vmatprep.subr.mxu0 0.0
    %2881 = vmatpush1.msra.mxu0 0.0
    %2882 = vmatprep.subr.mxu0 0.0
    %2883 = vmatpush1.msra.mxu0 0.0
    %2884 = vmatprep.subr.mxu0 0.0
    %2885 = vmatpush1.msra.mxu0 0.0
    %2886 = vmatprep.subr.mxu0 0.0
    %2887 = vmatpush1.msra.mxu0 0.0
    %2888 = vmatprep.subr.mxu0 0.0
    %2889 = vmatpush1.msra.mxu0 0.0
    %2890 = vmatprep.subr.mxu0 0.0
    %2891 = vmatpush1.msra.mxu0 0.0
    %2892 = vmatprep.subr.mxu0 0.0
    %2893 = vmatpush1.msra.mxu0 0.0
    %2894 = vmatprep.subr.mxu0 0.0
    %2895 = vmatpush1.msra.mxu0 0.0
    %2896 = vmatprep.subr.mxu0 0.0
    %2897 = vmatpush1.msra.mxu0 0.0
    %2898 = vmatprep.subr.mxu0 0.0
    %2899 = vmatpush1.msra.mxu0 0.0
    %2900 = vmatprep.subr.mxu0 0.0
    %2901 = vmatpush1.msra.mxu0 0.0
    %2902 = vmatprep.subr.mxu0 0.0
    %2903 = vmatpush1.msra.mxu0 0.0
    %2904 = vmatprep.subr.mxu0 0.0
    %2905 = vmatpush1.msra.mxu0 0.0
    %2906 = vmatprep.mubr.f32.mxu0 0.0
    %2907 = vmatmul.mubr.f32.gmra.mrb[0].mxu0 %v2831
    %v2908 = vpop.f32.mrb[0].mxu0
    %v2909 = vadd.f32 %v2828, %v2908
    %v2910 = vpop.f32.mrb[0].mxu0
    %2911 = vmatprep.mubr.f32.mxu0 0.0
    %2912 = vmatmul.mubr.f32.gmra.mrb[0].mxu0 %v2834
    %v2913 = vpop.f32.mrb[0].mxu0
    %v2914 = vadd.f32 %v2828, %v2913
    %v2915 = vpop.f32.mrb[0].mxu0
    %2916 = vmatprep.mubr.f32.mxu0 0.0
    %2917 = vmatmul.mubr.f32.gmra.mrb[0].mxu0 %v2837
    %v2918 = vpop.f32.mrb[0].mxu0
    %v2919 = vadd.f32 %v2828, %v2918
    %v2920 = vpop.f32.mrb[0].mxu0
    %2921 = vmatprep.mubr.f32.mxu0 0.0
    %2922 = vmatmul.mubr.f32.gmra.mrb[0].mxu0 %v2840
    %v2923 = vpop.f32.mrb[0].mxu0
    %v2924 = vadd.f32 %v2828, %v2923
    %v2925 = vpop.f32.mrb[0].mxu0
    %2926 = vdwg.mxu0
    %v2927 = vld [vmem:[%s8] sm:$0xff]
    %v2928 = vld [vmem:[%s8 + $0x8] sm:$0xff]
    %v2929 = vld [vmem:[%s8 + $0x10] sm:$0xff]
    %v2930 = vld [vmem:[%s8 + $0x18] sm:$0xff]
    %2935 = vrot.lane.b32.xlu0 %v2909, 96
    %v2936 = vpop.permute.xlu0 %2935
    %2937 = vrot.lane.b32.xlu0 %v2914, 96
    %v2938 = vpop.permute.xlu0 %2937
    %2939 = vrot.lane.b32.xlu0 %v2919, 96
    %v2940 = vpop.permute.xlu0 %2939
    %2941 = vrot.lane.b32.xlu0 %v2924, 96
    %v2942 = vpop.permute.xlu0 %2941
    %vm2943 = vcmask 64512
    %v2944 = vsel %vm2943, %v2909, 0
    %v2946 = vsel %vm2943, %v2914, 0
    %v2948 = vsel %vm2943, %v2919, 0
    %v2950 = vsel %vm2943, %v2924, 0
    %v2952 = vsel %vm2943, %v2936, 0
    %v2954 = vsel %vm2943, %v2938, 0
    %v2956 = vsel %vm2943, %v2940, 0
    %v2958 = vsel %vm2943, %v2942, 0
    %2960 = vmatprep.subr.mxu0 0.0
    %2961 = vmatpush1.xpose.msra.mxu0 %v2952
    %2962 = vmatprep.subr.mxu0 0.0
    %2963 = vmatpush1.xpose.msra.mxu0 %v2954
    %2964 = vmatprep.subr.mxu0 0.0
    %2965 = vmatpush1.xpose.msra.mxu0 %v2956
    %2966 = vmatprep.subr.mxu0 0.0
    %2967 = vmatpush1.xpose.msra.mxu0 %v2958
    %2968 = vmatprep.subr.mxu0 0.0
    %2969 = vmatpush1.xpose.msra.mxu0 0.0
    %2970 = vmatprep.subr.mxu0 0.0
    %2971 = vmatpush1.xpose.msra.mxu0 0.0
    %2972 = vmatprep.subr.mxu0 0.0
    %2973 = vmatpush1.xpose.msra.mxu0 0.0
    %2974 = vmatprep.subr.mxu0 0.0
    %2975 = vmatpush1.xpose.msra.mxu0 0.0
    %2976 = vmatprep.subr.mxu0 0.0
    %2977 = vmatpush1.xpose.msra.mxu0 0.0
    %2978 = vmatprep.subr.mxu0 0.0
    %2979 = vmatpush1.xpose.msra.mxu0 0.0
    %2980 = vmatprep.subr.mxu0 0.0
    %2981 = vmatpush1.xpose.msra.mxu0 0.0
    %2982 = vmatprep.subr.mxu0 0.0
    %2983 = vmatpush1.xpose.msra.mxu0 0.0
    %2984 = vmatprep.subr.mxu0 0.0
    %2985 = vmatpush1.xpose.msra.mxu0 0.0
    %2986 = vmatprep.subr.mxu0 0.0
    %2987 = vmatpush1.xpose.msra.mxu0 0.0
    %2988 = vmatprep.subr.mxu0 0.0
    %2989 = vmatpush1.xpose.msra.mxu0 0.0
    %2990 = vmatprep.subr.mxu0 0.0
    %2991 = vmatpush1.xpose.msra.mxu0 0.0
    %2992 = vmatprep.subr.mxu0 0.0
    %2993 = vmatpush1.xpose.msra.mxu0 0.0
    %2994 = vmatprep.subr.mxu0 0.0
    %2995 = vmatpush1.xpose.msra.mxu0 0.0
    %2996 = vmatprep.subr.mxu0 0.0
    %2997 = vmatpush1.xpose.msra.mxu0 0.0
    %2998 = vmatprep.subr.mxu0 0.0
    %2999 = vmatpush1.xpose.msra.mxu0 0.0
    %3000 = vmatprep.subr.mxu0 0.0
    %3001 = vmatpush1.xpose.msra.mxu0 0.0
    %3002 = vmatprep.subr.mxu0 0.0
    %3003 = vmatpush1.xpose.msra.mxu0 0.0
    %3004 = vmatprep.subr.mxu0 0.0
    %3005 = vmatpush1.xpose.msra.mxu0 0.0
    %3006 = vmatprep.subr.mxu0 0.0
    %3007 = vmatpush1.xpose.msra.mxu0 0.0
    %3008 = vmatprep.subr.mxu0 0.0
    %3009 = vmatpush1.xpose.msra.mxu0 0.0
    %3010 = vmatprep.subr.mxu0 0.0
    %3011 = vmatpush1.xpose.msra.mxu0 0.0
    %3012 = vmatprep.subr.mxu0 0.0
    %3013 = vmatpush1.xpose.msra.mxu0 0.0
    %3014 = vmatprep.subr.mxu0 0.0
    %3015 = vmatpush1.xpose.msra.mxu0 0.0
    %3016 = vmatprep.subr.mxu0 0.0
    %3017 = vmatpush1.xpose.msra.mxu0 0.0
    %3018 = vmatprep.subr.mxu0 0.0
    %3019 = vmatpush1.xpose.msra.mxu0 0.0
    %3020 = vmatprep.subr.mxu0 0.0
    %3021 = vmatpush1.xpose.msra.mxu0 0.0
    %3022 = vmatprep.subr.mxu0 0.0
    %3023 = vmatpush1.xpose.msra.mxu0 0.0
    %3024 = vmatprep.mubr.f32.mxu0 0.0
    %3025 = vmatmul.mubr.f32.gmra.mrb[0].mxu0 %v2944
    %v3026 = vpop.f32.mrb[0].mxu0
    %v3027 = vadd.f32 0.0, %v3026
    %v3028 = vpop.f32.mrb[0].mxu0
    %3029 = vmatprep.mubr.f32.mxu0 0.0
    %3030 = vmatmul.mubr.f32.gmra.mrb[0].mxu0 %v2946
    %v3031 = vpop.f32.mrb[0].mxu0
    %v3032 = vadd.f32 0.0, %v3031
    %v3033 = vpop.f32.mrb[0].mxu0
    %3034 = vmatprep.mubr.f32.mxu0 0.0
    %3035 = vmatmul.mubr.f32.gmra.mrb[0].mxu0 %v2948
    %v3036 = vpop.f32.mrb[0].mxu0
    %v3037 = vadd.f32 0.0, %v3036
    %v3038 = vpop.f32.mrb[0].mxu0
    %3039 = vmatprep.mubr.f32.mxu0 0.0
    %3040 = vmatmul.mubr.f32.gmra.mrb[0].mxu0 %v2950
    %v3041 = vpop.f32.mrb[0].mxu0
    %v3042 = vadd.f32 0.0, %v3041
    %v3043 = vpop.f32.mrb[0].mxu0
    %3044 = vdwg.mxu0
    %v3045 = vmul.f32 %v3027, 0.35355338
    %v3046 = vmul.f32 %v3032, 0.35355338
    %v3047 = vmul.f32 %v3037, 0.35355338
    %v3048 = vmul.f32 %v3042, 0.35355338
    %v3049 = vadd.f32 %v3045, %v2815
    %v3050 = vadd.f32 %v3046, %v2816
    %v3051 = vadd.f32 %v3047, %v2817
    %v3052 = vadd.f32 %v3048, %v2818
    %v3053 = vsel %vm635, %v3049, -inf
    %3054 = vmax.xlane.f32.xlu0 %v3053
    %v3055 = vpop.xlane.xlu0 %3054
    %v3056 = vsel %vm635, %v3050, -inf
    %3057 = vmax.xlane.f32.xlu0 %v3056
    %v3058 = vpop.xlane.xlu0 %3057
    %v3059 = vsel %vm635, %v3051, -inf
    %3060 = vmax.xlane.f32.xlu0 %v3059
    %v3061 = vpop.xlane.xlu0 %3060
    %v3062 = vsel %vm635, %v3052, -inf
    %3063 = vmax.xlane.f32.xlu0 %v3062
    %v3064 = vpop.xlane.xlu0 %3063
    %v3065 = vsub.f32 %v3049, %v3055
    %v3066 = vsub.f32 %v3050, %v3058
    %v3067 = vsub.f32 %v3051, %v3061
    %v3068 = vsub.f32 %v3052, %v3064
    %v3069 = vmul.f32 %v3065, 1.442695
    %v3070 = vpow.pop %v3069
    %v3071 = vmul.f32 %v3066, 1.442695
    %v3072 = vpow.pop %v3071
    %v3073 = vmul.f32 %v3067, 1.442695
    %v3074 = vpow.pop %v3073
    %v3075 = vmul.f32 %v3068, 1.442695
    %v3076 = vpow.pop %v3075
    %v3077 = vsel %vm635, %v3070, 0.0
    %3078 = vadd.xlane.f32.xlu0 %v3077
    %v3079 = vpop.xlane.xlu0 %3078
    %v3080 = vsel %vm635, %v3072, 0.0
    %3081 = vadd.xlane.f32.xlu0 %v3080
    %v3082 = vpop.xlane.xlu0 %3081
    %v3083 = vsel %vm635, %v3074, 0.0
    %3084 = vadd.xlane.f32.xlu0 %v3083
    %v3085 = vpop.xlane.xlu0 %3084
    %v3086 = vsel %vm635, %v3076, 0.0
    %3087 = vadd.xlane.f32.xlu0 %v3086
    %v3088 = vpop.xlane.xlu0 %3087
    %v3089 = vrcp.pop %v3079
    %v3090 = vmul.f32 %v3070, %v3089
    %v3091 = vrcp.pop %v3082
    %v3092 = vmul.f32 %v3072, %v3091
    %v3093 = vrcp.pop %v3085
    %v3094 = vmul.f32 %v3074, %v3093
    %v3095 = vrcp.pop %v3088
    %v3096 = vmul.f32 %v3076, %v3095
    %3097 = vrot.lane.b32.xlu0 %v2909, 64
    %v3098 = vpop.permute.xlu0 %3097
    %3099 = vrot.lane.b32.xlu0 %v2914, 64
    %v3100 = vpop.permute.xlu0 %3099
    %3101 = vrot.lane.b32.xlu0 %v2919, 64
    %v3102 = vpop.permute.xlu0 %3101
    %3103 = vrot.lane.b32.xlu0 %v2924, 64
    %v3104 = vpop.permute.xlu0 %3103
    %v3110 = vsel %vm635, %v3090, 0
    %v3113 = vsel %vm635, %v3092, 0
    %v3116 = vsel %vm635, %v3094, 0
    %v3119 = vsel %vm635, %v3096, 0
    %3121 = vmatprep.subr.mxu0 0.0
    %3122 = vmatpush1.msra.mxu0 %v3098
    %3123 = vmatprep.subr.mxu0 0.0
    %3124 = vmatpush1.msra.mxu0 %v3100
    %3125 = vmatprep.subr.mxu0 0.0
    %3126 = vmatpush1.msra.mxu0 %v3102
    %3127 = vmatprep.subr.mxu0 0.0
    %3128 = vmatpush1.msra.mxu0 %v3104
    %3129 = vmatprep.subr.mxu0 0.0
    %3130 = vmatpush1.msra.mxu0 0.0
    %3131 = vmatprep.subr.mxu0 0.0
    %3132 = vmatpush1.msra.mxu0 0.0
    %3133 = vmatprep.subr.mxu0 0.0
    %3134 = vmatpush1.msra.mxu0 0.0
    %3135 = vmatprep.subr.mxu0 0.0
    %3136 = vmatpush1.msra.mxu0 0.0
    %3137 = vmatprep.subr.mxu0 0.0
    %3138 = vmatpush1.msra.mxu0 0.0
    %3139 = vmatprep.subr.mxu0 0.0
    %3140 = vmatpush1.msra.mxu0 0.0
    %3141 = vmatprep.subr.mxu0 0.0
    %3142 = vmatpush1.msra.mxu0 0.0
    %3143 = vmatprep.subr.mxu0 0.0
    %3144 = vmatpush1.msra.mxu0 0.0
    %3145 = vmatprep.subr.mxu0 0.0
    %3146 = vmatpush1.msra.mxu0 0.0
    %3147 = vmatprep.subr.mxu0 0.0
    %3148 = vmatpush1.msra.mxu0 0.0
    %3149 = vmatprep.subr.mxu0 0.0
    %3150 = vmatpush1.msra.mxu0 0.0
    %3151 = vmatprep.subr.mxu0 0.0
    %3152 = vmatpush1.msra.mxu0 0.0
    %3153 = vmatprep.subr.mxu0 0.0
    %3154 = vmatpush1.msra.mxu0 0.0
    %3155 = vmatprep.subr.mxu0 0.0
    %3156 = vmatpush1.msra.mxu0 0.0
    %3157 = vmatprep.subr.mxu0 0.0
    %3158 = vmatpush1.msra.mxu0 0.0
    %3159 = vmatprep.subr.mxu0 0.0
    %3160 = vmatpush1.msra.mxu0 0.0
    %3161 = vmatprep.subr.mxu0 0.0
    %3162 = vmatpush1.msra.mxu0 0.0
    %3163 = vmatprep.subr.mxu0 0.0
    %3164 = vmatpush1.msra.mxu0 0.0
    %3165 = vmatprep.subr.mxu0 0.0
    %3166 = vmatpush1.msra.mxu0 0.0
    %3167 = vmatprep.subr.mxu0 0.0
    %3168 = vmatpush1.msra.mxu0 0.0
    %3169 = vmatprep.subr.mxu0 0.0
    %3170 = vmatpush1.msra.mxu0 0.0
    %3171 = vmatprep.subr.mxu0 0.0
    %3172 = vmatpush1.msra.mxu0 0.0
    %3173 = vmatprep.subr.mxu0 0.0
    %3174 = vmatpush1.msra.mxu0 0.0
    %3175 = vmatprep.subr.mxu0 0.0
    %3176 = vmatpush1.msra.mxu0 0.0
    %3177 = vmatprep.subr.mxu0 0.0
    %3178 = vmatpush1.msra.mxu0 0.0
    %3179 = vmatprep.subr.mxu0 0.0
    %3180 = vmatpush1.msra.mxu0 0.0
    %3181 = vmatprep.subr.mxu0 0.0
    %3182 = vmatpush1.msra.mxu0 0.0
    %3183 = vmatprep.subr.mxu0 0.0
    %3184 = vmatpush1.msra.mxu0 0.0
    %3185 = vmatprep.mubr.f32.mxu0 0.0
    %3186 = vmatmul.mubr.f32.gmra.mrb[0].mxu0 %v3110
    %v3187 = vpop.f32.mrb[0].mxu0
    %v3188 = vadd.f32 0.0, %v3187
    %v3189 = vpop.f32.mrb[0].mxu0
    %3190 = vmatprep.mubr.f32.mxu0 0.0
    %3191 = vmatmul.mubr.f32.gmra.mrb[0].mxu0 %v3113
    %v3192 = vpop.f32.mrb[0].mxu0
    %v3193 = vadd.f32 0.0, %v3192
    %v3194 = vpop.f32.mrb[0].mxu0
    %3195 = vmatprep.mubr.f32.mxu0 0.0
    %3196 = vmatmul.mubr.f32.gmra.mrb[0].mxu0 %v3116
    %v3197 = vpop.f32.mrb[0].mxu0
    %v3198 = vadd.f32 0.0, %v3197
    %v3199 = vpop.f32.mrb[0].mxu0
    %3200 = vmatprep.mubr.f32.mxu0 0.0
    %3201 = vmatmul.mubr.f32.gmra.mrb[0].mxu0 %v3119
    %v3202 = vpop.f32.mrb[0].mxu0
    %v3203 = vadd.f32 0.0, %v3202
    %v3204 = vpop.f32.mrb[0].mxu0
    %3205 = vdwg.mxu0
    %3206 = vrot.lane.b32.xlu0 %v2909, 120
    %v3207 = vpop.permute.xlu0 %3206
    %3208 = vrot.lane.b32.xlu0 %v2914, 120
    %v3209 = vpop.permute.xlu0 %3208
    %3210 = vrot.lane.b32.xlu0 %v2919, 120
    %v3211 = vpop.permute.xlu0 %3210
    %3212 = vrot.lane.b32.xlu0 %v2924, 120
    %v3213 = vpop.permute.xlu0 %3212
    %3214 = vrot.lane.b32.xlu0 %v2909, 88
    %v3215 = vpop.permute.xlu0 %3214
    %3216 = vrot.lane.b32.xlu0 %v2914, 88
    %v3217 = vpop.permute.xlu0 %3216
    %3218 = vrot.lane.b32.xlu0 %v2919, 88
    %v3219 = vpop.permute.xlu0 %3218
    %3220 = vrot.lane.b32.xlu0 %v2924, 88
    %v3221 = vpop.permute.xlu0 %3220
    %v3222 = vsel %vm2943, %v3207, 0
    %v3224 = vsel %vm2943, %v3209, 0
    %v3226 = vsel %vm2943, %v3211, 0
    %v3228 = vsel %vm2943, %v3213, 0
    %v3230 = vsel %vm2943, %v3215, 0
    %v3232 = vsel %vm2943, %v3217, 0
    %v3234 = vsel %vm2943, %v3219, 0
    %v3236 = vsel %vm2943, %v3221, 0
    %3238 = vmatprep.subr.mxu0 0.0
    %3239 = vmatpush1.xpose.msra.mxu0 %v3230
    %3240 = vmatprep.subr.mxu0 0.0
    %3241 = vmatpush1.xpose.msra.mxu0 %v3232
    %3242 = vmatprep.subr.mxu0 0.0
    %3243 = vmatpush1.xpose.msra.mxu0 %v3234
    %3244 = vmatprep.subr.mxu0 0.0
    %3245 = vmatpush1.xpose.msra.mxu0 %v3236
    %3246 = vmatprep.subr.mxu0 0.0
    %3247 = vmatpush1.xpose.msra.mxu0 0.0
    %3248 = vmatprep.subr.mxu0 0.0
    %3249 = vmatpush1.xpose.msra.mxu0 0.0
    %3250 = vmatprep.subr.mxu0 0.0
    %3251 = vmatpush1.xpose.msra.mxu0 0.0
    %3252 = vmatprep.subr.mxu0 0.0
    %3253 = vmatpush1.xpose.msra.mxu0 0.0
    %3254 = vmatprep.subr.mxu0 0.0
    %3255 = vmatpush1.xpose.msra.mxu0 0.0
    %3256 = vmatprep.subr.mxu0 0.0
    %3257 = vmatpush1.xpose.msra.mxu0 0.0
    %3258 = vmatprep.subr.mxu0 0.0
    %3259 = vmatpush1.xpose.msra.mxu0 0.0
    %3260 = vmatprep.subr.mxu0 0.0
    %3261 = vmatpush1.xpose.msra.mxu0 0.0
    %3262 = vmatprep.subr.mxu0 0.0
    %3263 = vmatpush1.xpose.msra.mxu0 0.0
    %3264 = vmatprep.subr.mxu0 0.0
    %3265 = vmatpush1.xpose.msra.mxu0 0.0
    %3266 = vmatprep.subr.mxu0 0.0
    %3267 = vmatpush1.xpose.msra.mxu0 0.0
    %3268 = vmatprep.subr.mxu0 0.0
    %3269 = vmatpush1.xpose.msra.mxu0 0.0
    %3270 = vmatprep.subr.mxu0 0.0
    %3271 = vmatpush1.xpose.msra.mxu0 0.0
    %3272 = vmatprep.subr.mxu0 0.0
    %3273 = vmatpush1.xpose.msra.mxu0 0.0
    %3274 = vmatprep.subr.mxu0 0.0
    %3275 = vmatpush1.xpose.msra.mxu0 0.0
    %3276 = vmatprep.subr.mxu0 0.0
    %3277 = vmatpush1.xpose.msra.mxu0 0.0
    %3278 = vmatprep.subr.mxu0 0.0
    %3279 = vmatpush1.xpose.msra.mxu0 0.0
    %3280 = vmatprep.subr.mxu0 0.0
    %3281 = vmatpush1.xpose.msra.mxu0 0.0
    %3282 = vmatprep.subr.mxu0 0.0
    %3283 = vmatpush1.xpose.msra.mxu0 0.0
    %3284 = vmatprep.subr.mxu0 0.0
    %3285 = vmatpush1.xpose.msra.mxu0 0.0
    %3286 = vmatprep.subr.mxu0 0.0
    %3287 = vmatpush1.xpose.msra.mxu0 0.0
    %3288 = vmatprep.subr.mxu0 0.0
    %3289 = vmatpush1.xpose.msra.mxu0 0.0
    %3290 = vmatprep.subr.mxu0 0.0
    %3291 = vmatpush1.xpose.msra.mxu0 0.0
    %3292 = vmatprep.subr.mxu0 0.0
    %3293 = vmatpush1.xpose.msra.mxu0 0.0
    %3294 = vmatprep.subr.mxu0 0.0
    %3295 = vmatpush1.xpose.msra.mxu0 0.0
    %3296 = vmatprep.subr.mxu0 0.0
    %3297 = vmatpush1.xpose.msra.mxu0 0.0
    %3298 = vmatprep.subr.mxu0 0.0
    %3299 = vmatpush1.xpose.msra.mxu0 0.0
    %3300 = vmatprep.subr.mxu0 0.0
    %3301 = vmatpush1.xpose.msra.mxu0 0.0
    %3302 = vmatprep.mubr.f32.mxu0 0.0
    %3303 = vmatmul.mubr.f32.gmra.mrb[0].mxu0 %v3222
    %v3304 = vpop.f32.mrb[0].mxu0
    %v3305 = vadd.f32 0.0, %v3304
    %v3306 = vpop.f32.mrb[0].mxu0
    %3307 = vmatprep.mubr.f32.mxu0 0.0
    %3308 = vmatmul.mubr.f32.gmra.mrb[0].mxu0 %v3224
    %v3309 = vpop.f32.mrb[0].mxu0
    %v3310 = vadd.f32 0.0, %v3309
    %v3311 = vpop.f32.mrb[0].mxu0
    %3312 = vmatprep.mubr.f32.mxu0 0.0
    %3313 = vmatmul.mubr.f32.gmra.mrb[0].mxu0 %v3226
    %v3314 = vpop.f32.mrb[0].mxu0
    %v3315 = vadd.f32 0.0, %v3314
    %v3316 = vpop.f32.mrb[0].mxu0
    %3317 = vmatprep.mubr.f32.mxu0 0.0
    %3318 = vmatmul.mubr.f32.gmra.mrb[0].mxu0 %v3228
    %v3319 = vpop.f32.mrb[0].mxu0
    %v3320 = vadd.f32 0.0, %v3319
    %v3321 = vpop.f32.mrb[0].mxu0
    %3322 = vdwg.mxu0
    %v3323 = vmul.f32 %v3305, 0.35355338
    %v3324 = vmul.f32 %v3310, 0.35355338
    %v3325 = vmul.f32 %v3315, 0.35355338
    %v3326 = vmul.f32 %v3320, 0.35355338
    %v3327 = vadd.f32 %v3323, %v2815
    %v3328 = vadd.f32 %v3324, %v2816
    %v3329 = vadd.f32 %v3325, %v2817
    %v3330 = vadd.f32 %v3326, %v2818
    %v3331 = vsel %vm635, %v3327, -inf
    %3332 = vmax.xlane.f32.xlu0 %v3331
    %v3333 = vpop.xlane.xlu0 %3332
    %v3334 = vsel %vm635, %v3328, -inf
    %3335 = vmax.xlane.f32.xlu0 %v3334
    %v3336 = vpop.xlane.xlu0 %3335
    %v3337 = vsel %vm635, %v3329, -inf
    %3338 = vmax.xlane.f32.xlu0 %v3337
    %v3339 = vpop.xlane.xlu0 %3338
    %v3340 = vsel %vm635, %v3330, -inf
    %3341 = vmax.xlane.f32.xlu0 %v3340
    %v3342 = vpop.xlane.xlu0 %3341
    %v3343 = vsub.f32 %v3327, %v3333
    %v3344 = vsub.f32 %v3328, %v3336
    %v3345 = vsub.f32 %v3329, %v3339
    %v3346 = vsub.f32 %v3330, %v3342
    %v3347 = vmul.f32 %v3343, 1.442695
    %v3348 = vpow.pop %v3347
    %v3349 = vmul.f32 %v3344, 1.442695
    %v3350 = vpow.pop %v3349
    %v3351 = vmul.f32 %v3345, 1.442695
    %v3352 = vpow.pop %v3351
    %v3353 = vmul.f32 %v3346, 1.442695
    %v3354 = vpow.pop %v3353
    %v3355 = vsel %vm635, %v3348, 0.0
    %3356 = vadd.xlane.f32.xlu0 %v3355
    %v3357 = vpop.xlane.xlu0 %3356
    %v3358 = vsel %vm635, %v3350, 0.0
    %3359 = vadd.xlane.f32.xlu0 %v3358
    %v3360 = vpop.xlane.xlu0 %3359
    %v3361 = vsel %vm635, %v3352, 0.0
    %3362 = vadd.xlane.f32.xlu0 %v3361
    %v3363 = vpop.xlane.xlu0 %3362
    %v3364 = vsel %vm635, %v3354, 0.0
    %3365 = vadd.xlane.f32.xlu0 %v3364
    %v3366 = vpop.xlane.xlu0 %3365
    %v3367 = vrcp.pop %v3357
    %v3368 = vmul.f32 %v3348, %v3367
    %v3369 = vrcp.pop %v3360
    %v3370 = vmul.f32 %v3350, %v3369
    %v3371 = vrcp.pop %v3363
    %v3372 = vmul.f32 %v3352, %v3371
    %v3373 = vrcp.pop %v3366
    %v3374 = vmul.f32 %v3354, %v3373
    %3375 = vrot.lane.b32.xlu0 %v2909, 56
    %v3376 = vpop.permute.xlu0 %3375
    %3377 = vrot.lane.b32.xlu0 %v2914, 56
    %v3378 = vpop.permute.xlu0 %3377
    %3379 = vrot.lane.b32.xlu0 %v2919, 56
    %v3380 = vpop.permute.xlu0 %3379
    %3381 = vrot.lane.b32.xlu0 %v2924, 56
    %v3382 = vpop.permute.xlu0 %3381
    %v3388 = vsel %vm635, %v3368, 0
    %v3391 = vsel %vm635, %v3370, 0
    %v3394 = vsel %vm635, %v3372, 0
    %v3397 = vsel %vm635, %v3374, 0
    %3399 = vmatprep.subr.mxu0 0.0
    %3400 = vmatpush1.msra.mxu0 %v3376
    %3401 = vmatprep.subr.mxu0 0.0
    %3402 = vmatpush1.msra.mxu0 %v3378
    %3403 = vmatprep.subr.mxu0 0.0
    %3404 = vmatpush1.msra.mxu0 %v3380
    %3405 = vmatprep.subr.mxu0 0.0
    %3406 = vmatpush1.msra.mxu0 %v3382
    %3407 = vmatprep.subr.mxu0 0.0
    %3408 = vmatpush1.msra.mxu0 0.0
    %3409 = vmatprep.subr.mxu0 0.0
    %3410 = vmatpush1.msra.mxu0 0.0
    %3411 = vmatprep.subr.mxu0 0.0
    %3412 = vmatpush1.msra.mxu0 0.0
    %3413 = vmatprep.subr.mxu0 0.0
    %3414 = vmatpush1.msra.mxu0 0.0
    %3415 = vmatprep.subr.mxu0 0.0
    %3416 = vmatpush1.msra.mxu0 0.0
    %3417 = vmatprep.subr.mxu0 0.0
    %3418 = vmatpush1.msra.mxu0 0.0
    %3419 = vmatprep.subr.mxu0 0.0
    %3420 = vmatpush1.msra.mxu0 0.0
    %3421 = vmatprep.subr.mxu0 0.0
    %3422 = vmatpush1.msra.mxu0 0.0
    %3423 = vmatprep.subr.mxu0 0.0
    %3424 = vmatpush1.msra.mxu0 0.0
    %3425 = vmatprep.subr.mxu0 0.0
    %3426 = vmatpush1.msra.mxu0 0.0
    %3427 = vmatprep.subr.mxu0 0.0
    %3428 = vmatpush1.msra.mxu0 0.0
    %3429 = vmatprep.subr.mxu0 0.0
    %3430 = vmatpush1.msra.mxu0 0.0
    %3431 = vmatprep.subr.mxu0 0.0
    %3432 = vmatpush1.msra.mxu0 0.0
    %3433 = vmatprep.subr.mxu0 0.0
    %3434 = vmatpush1.msra.mxu0 0.0
    %3435 = vmatprep.subr.mxu0 0.0
    %3436 = vmatpush1.msra.mxu0 0.0
    %3437 = vmatprep.subr.mxu0 0.0
    %3438 = vmatpush1.msra.mxu0 0.0
    %3439 = vmatprep.subr.mxu0 0.0
    %3440 = vmatpush1.msra.mxu0 0.0
    %3441 = vmatprep.subr.mxu0 0.0
    %3442 = vmatpush1.msra.mxu0 0.0
    %3443 = vmatprep.subr.mxu0 0.0
    %3444 = vmatpush1.msra.mxu0 0.0
    %3445 = vmatprep.subr.mxu0 0.0
    %3446 = vmatpush1.msra.mxu0 0.0
    %3447 = vmatprep.subr.mxu0 0.0
    %3448 = vmatpush1.msra.mxu0 0.0
    %3449 = vmatprep.subr.mxu0 0.0
    %3450 = vmatpush1.msra.mxu0 0.0
    %3451 = vmatprep.subr.mxu0 0.0
    %3452 = vmatpush1.msra.mxu0 0.0
    %3453 = vmatprep.subr.mxu0 0.0
    %3454 = vmatpush1.msra.mxu0 0.0
    %3455 = vmatprep.subr.mxu0 0.0
    %3456 = vmatpush1.msra.mxu0 0.0
    %3457 = vmatprep.subr.mxu0 0.0
    %3458 = vmatpush1.msra.mxu0 0.0
    %3459 = vmatprep.subr.mxu0 0.0
    %3460 = vmatpush1.msra.mxu0 0.0
    %3461 = vmatprep.subr.mxu0 0.0
    %3462 = vmatpush1.msra.mxu0 0.0
    %3463 = vmatprep.mubr.f32.mxu0 0.0
    %3464 = vmatmul.mubr.f32.gmra.mrb[0].mxu0 %v3388
    %v3465 = vpop.f32.mrb[0].mxu0
    %v3466 = vadd.f32 0.0, %v3465
    %v3467 = vpop.f32.mrb[0].mxu0
    %3468 = vmatprep.mubr.f32.mxu0 0.0
    %3469 = vmatmul.mubr.f32.gmra.mrb[0].mxu0 %v3391
    %v3470 = vpop.f32.mrb[0].mxu0
    %v3471 = vadd.f32 0.0, %v3470
    %v3472 = vpop.f32.mrb[0].mxu0
    %3473 = vmatprep.mubr.f32.mxu0 0.0
    %3474 = vmatmul.mubr.f32.gmra.mrb[0].mxu0 %v3394
    %v3475 = vpop.f32.mrb[0].mxu0
    %v3476 = vadd.f32 0.0, %v3475
    %v3477 = vpop.f32.mrb[0].mxu0
    %3478 = vmatprep.mubr.f32.mxu0 0.0
    %3479 = vmatmul.mubr.f32.gmra.mrb[0].mxu0 %v3397
    %v3480 = vpop.f32.mrb[0].mxu0
    %v3481 = vadd.f32 0.0, %v3480
    %v3482 = vpop.f32.mrb[0].mxu0
    %3483 = vdwg.mxu0
    %v3485 = vsel %vm2943, %v3466, 0
    %v3488 = vsel %vm2943, %v3471, 0
    %v3491 = vsel %vm2943, %v3476, 0
    %v3494 = vsel %vm2943, %v3481, 0
    %3496 = vmatprep.subr.mxu0 0.0
    %3497 = vmatpush1.msra.mxu0 %v2928
    %3498 = vmatprep.subr.mxu0 0.0
    %3499 = vmatpush1.msra.mxu0 0.0
    %3500 = vmatprep.subr.mxu0 0.0
    %3501 = vmatpush1.msra.mxu0 0.0
    %3502 = vmatprep.subr.mxu0 0.0
    %3503 = vmatpush1.msra.mxu0 0.0
    %3504 = vmatprep.subr.mxu0 0.0
    %3505 = vmatpush1.msra.mxu0 0.0
    %3506 = vmatprep.subr.mxu0 0.0
    %3507 = vmatpush1.msra.mxu0 0.0
    %3508 = vmatprep.subr.mxu0 0.0
    %3509 = vmatpush1.msra.mxu0 0.0
    %3510 = vmatprep.subr.mxu0 0.0
    %3511 = vmatpush1.msra.mxu0 0.0
    %3512 = vmatprep.subr.mxu0 0.0
    %3513 = vmatpush1.msra.mxu0 0.0
    %3514 = vmatprep.subr.mxu0 0.0
    %3515 = vmatpush1.msra.mxu0 0.0
    %3516 = vmatprep.subr.mxu0 0.0
    %3517 = vmatpush1.msra.mxu0 0.0
    %3518 = vmatprep.subr.mxu0 0.0
    %3519 = vmatpush1.msra.mxu0 0.0
    %3520 = vmatprep.subr.mxu0 0.0
    %3521 = vmatpush1.msra.mxu0 0.0
    %3522 = vmatprep.subr.mxu0 0.0
    %3523 = vmatpush1.msra.mxu0 0.0
    %3524 = vmatprep.subr.mxu0 0.0
    %3525 = vmatpush1.msra.mxu0 0.0
    %3526 = vmatprep.subr.mxu0 0.0
    %3527 = vmatpush1.msra.mxu0 0.0
    %3528 = vmatprep.subr.mxu0 0.0
    %3529 = vmatpush1.msra.mxu0 0.0
    %3530 = vmatprep.subr.mxu0 0.0
    %3531 = vmatpush1.msra.mxu0 0.0
    %3532 = vmatprep.subr.mxu0 0.0
    %3533 = vmatpush1.msra.mxu0 0.0
    %3534 = vmatprep.subr.mxu0 0.0
    %3535 = vmatpush1.msra.mxu0 0.0
    %3536 = vmatprep.subr.mxu0 0.0
    %3537 = vmatpush1.msra.mxu0 0.0
    %3538 = vmatprep.subr.mxu0 0.0
    %3539 = vmatpush1.msra.mxu0 0.0
    %3540 = vmatprep.subr.mxu0 0.0
    %3541 = vmatpush1.msra.mxu0 0.0
    %3542 = vmatprep.subr.mxu0 0.0
    %3543 = vmatpush1.msra.mxu0 0.0
    %3544 = vmatprep.subr.mxu0 0.0
    %3545 = vmatpush1.msra.mxu0 0.0
    %3546 = vmatprep.subr.mxu0 0.0
    %3547 = vmatpush1.msra.mxu0 0.0
    %3548 = vmatprep.subr.mxu0 0.0
    %3549 = vmatpush1.msra.mxu0 0.0
    %3550 = vmatprep.subr.mxu0 0.0
    %3551 = vmatpush1.msra.mxu0 0.0
    %3552 = vmatprep.subr.mxu0 0.0
    %3553 = vmatpush1.msra.mxu0 0.0
    %3554 = vmatprep.subr.mxu0 0.0
    %3555 = vmatpush1.msra.mxu0 0.0
    %3556 = vmatprep.subr.mxu0 0.0
    %3557 = vmatpush1.msra.mxu0 0.0
    %3558 = vmatprep.subr.mxu0 0.0
    %3559 = vmatpush1.msra.mxu0 0.0
    %3560 = vmatprep.mubr.f32.mxu0 0.0
    %3561 = vmatmul.mubr.f32.gmra.mrb[0].mxu0 %v3485
    %v3562 = vpop.f32.mrb[0].mxu0
    %v3563 = vadd.f32 0.0, %v3562
    %v3564 = vpop.f32.mrb[0].mxu0
    %3565 = vmatprep.mubr.f32.mxu0 0.0
    %3566 = vmatmul.mubr.f32.gmra.mrb[0].mxu0 %v3488
    %v3567 = vpop.f32.mrb[0].mxu0
    %v3568 = vadd.f32 0.0, %v3567
    %v3569 = vpop.f32.mrb[0].mxu0
    %3570 = vmatprep.mubr.f32.mxu0 0.0
    %3571 = vmatmul.mubr.f32.gmra.mrb[0].mxu0 %v3491
    %v3572 = vpop.f32.mrb[0].mxu0
    %v3573 = vadd.f32 0.0, %v3572
    %v3574 = vpop.f32.mrb[0].mxu0
    %3575 = vmatprep.mubr.f32.mxu0 0.0
    %3576 = vmatmul.mubr.f32.gmra.mrb[0].mxu0 %v3494
    %v3577 = vpop.f32.mrb[0].mxu0
    %v3578 = vadd.f32 0.0, %v3577
    %v3579 = vpop.f32.mrb[0].mxu0
    %3580 = vdwg.mxu0
    %v3582 = vsel %vm2943, %v3188, 0
    %v3585 = vsel %vm2943, %v3193, 0
    %v3588 = vsel %vm2943, %v3198, 0
    %v3591 = vsel %vm2943, %v3203, 0
    %3593 = vmatprep.subr.mxu0 0.0
    %3594 = vmatpush1.msra.mxu0 %v2927
    %3595 = vmatprep.subr.mxu0 0.0
    %3596 = vmatpush1.msra.mxu0 0.0
    %3597 = vmatprep.subr.mxu0 0.0
    %3598 = vmatpush1.msra.mxu0 0.0
    %3599 = vmatprep.subr.mxu0 0.0
    %3600 = vmatpush1.msra.mxu0 0.0
    %3601 = vmatprep.subr.mxu0 0.0
    %3602 = vmatpush1.msra.mxu0 0.0
    %3603 = vmatprep.subr.mxu0 0.0
    %3604 = vmatpush1.msra.mxu0 0.0
    %3605 = vmatprep.subr.mxu0 0.0
    %3606 = vmatpush1.msra.mxu0 0.0
    %3607 = vmatprep.subr.mxu0 0.0
    %3608 = vmatpush1.msra.mxu0 0.0
    %3609 = vmatprep.subr.mxu0 0.0
    %3610 = vmatpush1.msra.mxu0 0.0
    %3611 = vmatprep.subr.mxu0 0.0
    %3612 = vmatpush1.msra.mxu0 0.0
    %3613 = vmatprep.subr.mxu0 0.0
    %3614 = vmatpush1.msra.mxu0 0.0
    %3615 = vmatprep.subr.mxu0 0.0
    %3616 = vmatpush1.msra.mxu0 0.0
    %3617 = vmatprep.subr.mxu0 0.0
    %3618 = vmatpush1.msra.mxu0 0.0
    %3619 = vmatprep.subr.mxu0 0.0
    %3620 = vmatpush1.msra.mxu0 0.0
    %3621 = vmatprep.subr.mxu0 0.0
    %3622 = vmatpush1.msra.mxu0 0.0
    %3623 = vmatprep.subr.mxu0 0.0
    %3624 = vmatpush1.msra.mxu0 0.0
    %3625 = vmatprep.subr.mxu0 0.0
    %3626 = vmatpush1.msra.mxu0 0.0
    %3627 = vmatprep.subr.mxu0 0.0
    %3628 = vmatpush1.msra.mxu0 0.0
    %3629 = vmatprep.subr.mxu0 0.0
    %3630 = vmatpush1.msra.mxu0 0.0
    %3631 = vmatprep.subr.mxu0 0.0
    %3632 = vmatpush1.msra.mxu0 0.0
    %3633 = vmatprep.subr.mxu0 0.0
    %3634 = vmatpush1.msra.mxu0 0.0
    %3635 = vmatprep.subr.mxu0 0.0
    %3636 = vmatpush1.msra.mxu0 0.0
    %3637 = vmatprep.subr.mxu0 0.0
    %3638 = vmatpush1.msra.mxu0 0.0
    %3639 = vmatprep.subr.mxu0 0.0
    %3640 = vmatpush1.msra.mxu0 0.0
    %3641 = vmatprep.subr.mxu0 0.0
    %3642 = vmatpush1.msra.mxu0 0.0
    %3643 = vmatprep.subr.mxu0 0.0
    %3644 = vmatpush1.msra.mxu0 0.0
    %3645 = vmatprep.subr.mxu0 0.0
    %3646 = vmatpush1.msra.mxu0 0.0
    %3647 = vmatprep.subr.mxu0 0.0
    %3648 = vmatpush1.msra.mxu0 0.0
    %3649 = vmatprep.subr.mxu0 0.0
    %3650 = vmatpush1.msra.mxu0 0.0
    %3651 = vmatprep.subr.mxu0 0.0
    %3652 = vmatpush1.msra.mxu0 0.0
    %3653 = vmatprep.subr.mxu0 0.0
    %3654 = vmatpush1.msra.mxu0 0.0
    %3655 = vmatprep.subr.mxu0 0.0
    %3656 = vmatpush1.msra.mxu0 0.0
    %3657 = vmatprep.mubr.f32.mxu0 0.0
    %3658 = vmatmul.mubr.f32.gmra.mrb[0].mxu0 %v3582
    %v3659 = vpop.f32.mrb[0].mxu0
    %v3660 = vadd.f32 %v3563, %v3659
    %v3661 = vpop.f32.mrb[0].mxu0
    %3662 = vmatprep.mubr.f32.mxu0 0.0
    %3663 = vmatmul.mubr.f32.gmra.mrb[0].mxu0 %v3585
    %v3664 = vpop.f32.mrb[0].mxu0
    %v3665 = vadd.f32 %v3568, %v3664
    %v3666 = vpop.f32.mrb[0].mxu0
    %3667 = vmatprep.mubr.f32.mxu0 0.0
    %3668 = vmatmul.mubr.f32.gmra.mrb[0].mxu0 %v3588
    %v3669 = vpop.f32.mrb[0].mxu0
    %v3670 = vadd.f32 %v3573, %v3669
    %v3671 = vpop.f32.mrb[0].mxu0
    %3672 = vmatprep.mubr.f32.mxu0 0.0
    %3673 = vmatmul.mubr.f32.gmra.mrb[0].mxu0 %v3591
    %v3674 = vpop.f32.mrb[0].mxu0
    %v3675 = vadd.f32 %v3578, %v3674
    %v3676 = vpop.f32.mrb[0].mxu0
    %3677 = vdwg.mxu0
    %3678 = vrot.lane.b32.xlu0 %v2909, 112
    %v3679 = vpop.permute.xlu0 %3678
    %3680 = vrot.lane.b32.xlu0 %v2914, 112
    %v3681 = vpop.permute.xlu0 %3680
    %3682 = vrot.lane.b32.xlu0 %v2919, 112
    %v3683 = vpop.permute.xlu0 %3682
    %3684 = vrot.lane.b32.xlu0 %v2924, 112
    %v3685 = vpop.permute.xlu0 %3684
    %3686 = vrot.lane.b32.xlu0 %v2909, 80
    %v3687 = vpop.permute.xlu0 %3686
    %3688 = vrot.lane.b32.xlu0 %v2914, 80
    %v3689 = vpop.permute.xlu0 %3688
    %3690 = vrot.lane.b32.xlu0 %v2919, 80
    %v3691 = vpop.permute.xlu0 %3690
    %3692 = vrot.lane.b32.xlu0 %v2924, 80
    %v3693 = vpop.permute.xlu0 %3692
    %v3694 = vsel %vm2943, %v3679, 0
    %v3696 = vsel %vm2943, %v3681, 0
    %v3698 = vsel %vm2943, %v3683, 0
    %v3700 = vsel %vm2943, %v3685, 0
    %v3702 = vsel %vm2943, %v3687, 0
    %v3704 = vsel %vm2943, %v3689, 0
    %v3706 = vsel %vm2943, %v3691, 0
    %v3708 = vsel %vm2943, %v3693, 0
    %3710 = vmatprep.subr.mxu0 0.0
    %3711 = vmatpush1.xpose.msra.mxu0 %v3702
    %3712 = vmatprep.subr.mxu0 0.0
    %3713 = vmatpush1.xpose.msra.mxu0 %v3704
    %3714 = vmatprep.subr.mxu0 0.0
    %3715 = vmatpush1.xpose.msra.mxu0 %v3706
    %3716 = vmatprep.subr.mxu0 0.0
    %3717 = vmatpush1.xpose.msra.mxu0 %v3708
    %3718 = vmatprep.subr.mxu0 0.0
    %3719 = vmatpush1.xpose.msra.mxu0 0.0
    %3720 = vmatprep.subr.mxu0 0.0
    %3721 = vmatpush1.xpose.msra.mxu0 0.0
    %3722 = vmatprep.subr.mxu0 0.0
    %3723 = vmatpush1.xpose.msra.mxu0 0.0
    %3724 = vmatprep.subr.mxu0 0.0
    %3725 = vmatpush1.xpose.msra.mxu0 0.0
    %3726 = vmatprep.subr.mxu0 0.0
    %3727 = vmatpush1.xpose.msra.mxu0 0.0
    %3728 = vmatprep.subr.mxu0 0.0
    %3729 = vmatpush1.xpose.msra.mxu0 0.0
    %3730 = vmatprep.subr.mxu0 0.0
    %3731 = vmatpush1.xpose.msra.mxu0 0.0
    %3732 = vmatprep.subr.mxu0 0.0
    %3733 = vmatpush1.xpose.msra.mxu0 0.0
    %3734 = vmatprep.subr.mxu0 0.0
    %3735 = vmatpush1.xpose.msra.mxu0 0.0
    %3736 = vmatprep.subr.mxu0 0.0
    %3737 = vmatpush1.xpose.msra.mxu0 0.0
    %3738 = vmatprep.subr.mxu0 0.0
    %3739 = vmatpush1.xpose.msra.mxu0 0.0
    %3740 = vmatprep.subr.mxu0 0.0
    %3741 = vmatpush1.xpose.msra.mxu0 0.0
    %3742 = vmatprep.subr.mxu0 0.0
    %3743 = vmatpush1.xpose.msra.mxu0 0.0
    %3744 = vmatprep.subr.mxu0 0.0
    %3745 = vmatpush1.xpose.msra.mxu0 0.0
    %3746 = vmatprep.subr.mxu0 0.0
    %3747 = vmatpush1.xpose.msra.mxu0 0.0
    %3748 = vmatprep.subr.mxu0 0.0
    %3749 = vmatpush1.xpose.msra.mxu0 0.0
    %3750 = vmatprep.subr.mxu0 0.0
    %3751 = vmatpush1.xpose.msra.mxu0 0.0
    %3752 = vmatprep.subr.mxu0 0.0
    %3753 = vmatpush1.xpose.msra.mxu0 0.0
    %3754 = vmatprep.subr.mxu0 0.0
    %3755 = vmatpush1.xpose.msra.mxu0 0.0
    %3756 = vmatprep.subr.mxu0 0.0
    %3757 = vmatpush1.xpose.msra.mxu0 0.0
    %3758 = vmatprep.subr.mxu0 0.0
    %3759 = vmatpush1.xpose.msra.mxu0 0.0
    %3760 = vmatprep.subr.mxu0 0.0
    %3761 = vmatpush1.xpose.msra.mxu0 0.0
    %3762 = vmatprep.subr.mxu0 0.0
    %3763 = vmatpush1.xpose.msra.mxu0 0.0
    %3764 = vmatprep.subr.mxu0 0.0
    %3765 = vmatpush1.xpose.msra.mxu0 0.0
    %3766 = vmatprep.subr.mxu0 0.0
    %3767 = vmatpush1.xpose.msra.mxu0 0.0
    %3768 = vmatprep.subr.mxu0 0.0
    %3769 = vmatpush1.xpose.msra.mxu0 0.0
    %3770 = vmatprep.subr.mxu0 0.0
    %3771 = vmatpush1.xpose.msra.mxu0 0.0
    %3772 = vmatprep.subr.mxu0 0.0
    %3773 = vmatpush1.xpose.msra.mxu0 0.0
    %3774 = vmatprep.mubr.f32.mxu0 0.0
    %3775 = vmatmul.mubr.f32.gmra.mrb[0].mxu0 %v3694
    %v3776 = vpop.f32.mrb[0].mxu0
    %v3777 = vadd.f32 0.0, %v3776
    %v3778 = vpop.f32.mrb[0].mxu0
    %3779 = vmatprep.mubr.f32.mxu0 0.0
    %3780 = vmatmul.mubr.f32.gmra.mrb[0].mxu0 %v3696
    %v3781 = vpop.f32.mrb[0].mxu0
    %v3782 = vadd.f32 0.0, %v3781
    %v3783 = vpop.f32.mrb[0].mxu0
    %3784 = vmatprep.mubr.f32.mxu0 0.0
    %3785 = vmatmul.mubr.f32.gmra.mrb[0].mxu0 %v3698
    %v3786 = vpop.f32.mrb[0].mxu0
    %v3787 = vadd.f32 0.0, %v3786
    %v3788 = vpop.f32.mrb[0].mxu0
    %3789 = vmatprep.mubr.f32.mxu0 0.0
    %3790 = vmatmul.mubr.f32.gmra.mrb[0].mxu0 %v3700
    %v3791 = vpop.f32.mrb[0].mxu0
    %v3792 = vadd.f32 0.0, %v3791
    %v3793 = vpop.f32.mrb[0].mxu0
    %3794 = vdwg.mxu0
    %v3795 = vmul.f32 %v3777, 0.35355338
    %v3796 = vmul.f32 %v3782, 0.35355338
    %v3797 = vmul.f32 %v3787, 0.35355338
    %v3798 = vmul.f32 %v3792, 0.35355338
    %v3799 = vadd.f32 %v3795, %v2815
    %v3800 = vadd.f32 %v3796, %v2816
    %v3801 = vadd.f32 %v3797, %v2817
    %v3802 = vadd.f32 %v3798, %v2818
    %v3803 = vsel %vm635, %v3799, -inf
    %3804 = vmax.xlane.f32.xlu0 %v3803
    %v3805 = vpop.xlane.xlu0 %3804
    %v3806 = vsel %vm635, %v3800, -inf
    %3807 = vmax.xlane.f32.xlu0 %v3806
    %v3808 = vpop.xlane.xlu0 %3807
    %v3809 = vsel %vm635, %v3801, -inf
    %3810 = vmax.xlane.f32.xlu0 %v3809
    %v3811 = vpop.xlane.xlu0 %3810
    %v3812 = vsel %vm635, %v3802, -inf
    %3813 = vmax.xlane.f32.xlu0 %v3812
    %v3814 = vpop.xlane.xlu0 %3813
    %v3815 = vsub.f32 %v3799, %v3805
    %v3816 = vsub.f32 %v3800, %v3808
    %v3817 = vsub.f32 %v3801, %v3811
    %v3818 = vsub.f32 %v3802, %v3814
    %v3819 = vmul.f32 %v3815, 1.442695
    %v3820 = vpow.pop %v3819
    %v3821 = vmul.f32 %v3816, 1.442695
    %v3822 = vpow.pop %v3821
    %v3823 = vmul.f32 %v3817, 1.442695
    %v3824 = vpow.pop %v3823
    %v3825 = vmul.f32 %v3818, 1.442695
    %v3826 = vpow.pop %v3825
    %v3827 = vsel %vm635, %v3820, 0.0
    %3828 = vadd.xlane.f32.xlu0 %v3827
    %v3829 = vpop.xlane.xlu0 %3828
    %v3830 = vsel %vm635, %v3822, 0.0
    %3831 = vadd.xlane.f32.xlu0 %v3830
    %v3832 = vpop.xlane.xlu0 %3831
    %v3833 = vsel %vm635, %v3824, 0.0
    %3834 = vadd.xlane.f32.xlu0 %v3833
    %v3835 = vpop.xlane.xlu0 %3834
    %v3836 = vsel %vm635, %v3826, 0.0
    %3837 = vadd.xlane.f32.xlu0 %v3836
    %v3838 = vpop.xlane.xlu0 %3837
    %v3839 = vrcp.pop %v3829
    %v3840 = vmul.f32 %v3820, %v3839
    %v3841 = vrcp.pop %v3832
    %v3842 = vmul.f32 %v3822, %v3841
    %v3843 = vrcp.pop %v3835
    %v3844 = vmul.f32 %v3824, %v3843
    %v3845 = vrcp.pop %v3838
    %v3846 = vmul.f32 %v3826, %v3845
    %3847 = vrot.lane.b32.xlu0 %v2909, 48
    %v3848 = vpop.permute.xlu0 %3847
    %3849 = vrot.lane.b32.xlu0 %v2914, 48
    %v3850 = vpop.permute.xlu0 %3849
    %3851 = vrot.lane.b32.xlu0 %v2919, 48
    %v3852 = vpop.permute.xlu0 %3851
    %3853 = vrot.lane.b32.xlu0 %v2924, 48
    %v3854 = vpop.permute.xlu0 %3853
    %v3860 = vsel %vm635, %v3840, 0
    %v3863 = vsel %vm635, %v3842, 0
    %v3866 = vsel %vm635, %v3844, 0
    %v3869 = vsel %vm635, %v3846, 0
    %3871 = vmatprep.subr.mxu0 0.0
    %3872 = vmatpush1.msra.mxu0 %v3848
    %3873 = vmatprep.subr.mxu0 0.0
    %3874 = vmatpush1.msra.mxu0 %v3850
    %3875 = vmatprep.subr.mxu0 0.0
    %3876 = vmatpush1.msra.mxu0 %v3852
    %3877 = vmatprep.subr.mxu0 0.0
    %3878 = vmatpush1.msra.mxu0 %v3854
    %3879 = vmatprep.subr.mxu0 0.0
    %3880 = vmatpush1.msra.mxu0 0.0
    %3881 = vmatprep.subr.mxu0 0.0
    %3882 = vmatpush1.msra.mxu0 0.0
    %3883 = vmatprep.subr.mxu0 0.0
    %3884 = vmatpush1.msra.mxu0 0.0
    %3885 = vmatprep.subr.mxu0 0.0
    %3886 = vmatpush1.msra.mxu0 0.0
    %3887 = vmatprep.subr.mxu0 0.0
    %3888 = vmatpush1.msra.mxu0 0.0
    %3889 = vmatprep.subr.mxu0 0.0
    %3890 = vmatpush1.msra.mxu0 0.0
    %3891 = vmatprep.subr.mxu0 0.0
    %3892 = vmatpush1.msra.mxu0 0.0
    %3893 = vmatprep.subr.mxu0 0.0
    %3894 = vmatpush1.msra.mxu0 0.0
    %3895 = vmatprep.subr.mxu0 0.0
    %3896 = vmatpush1.msra.mxu0 0.0
    %3897 = vmatprep.subr.mxu0 0.0
    %3898 = vmatpush1.msra.mxu0 0.0
    %3899 = vmatprep.subr.mxu0 0.0
    %3900 = vmatpush1.msra.mxu0 0.0
    %3901 = vmatprep.subr.mxu0 0.0
    %3902 = vmatpush1.msra.mxu0 0.0
    %3903 = vmatprep.subr.mxu0 0.0
    %3904 = vmatpush1.msra.mxu0 0.0
    %3905 = vmatprep.subr.mxu0 0.0
    %3906 = vmatpush1.msra.mxu0 0.0
    %3907 = vmatprep.subr.mxu0 0.0
    %3908 = vmatpush1.msra.mxu0 0.0
    %3909 = vmatprep.subr.mxu0 0.0
    %3910 = vmatpush1.msra.mxu0 0.0
    %3911 = vmatprep.subr.mxu0 0.0
    %3912 = vmatpush1.msra.mxu0 0.0
    %3913 = vmatprep.subr.mxu0 0.0
    %3914 = vmatpush1.msra.mxu0 0.0
    %3915 = vmatprep.subr.mxu0 0.0
    %3916 = vmatpush1.msra.mxu0 0.0
    %3917 = vmatprep.subr.mxu0 0.0
    %3918 = vmatpush1.msra.mxu0 0.0
    %3919 = vmatprep.subr.mxu0 0.0
    %3920 = vmatpush1.msra.mxu0 0.0
    %3921 = vmatprep.subr.mxu0 0.0
    %3922 = vmatpush1.msra.mxu0 0.0
    %3923 = vmatprep.subr.mxu0 0.0
    %3924 = vmatpush1.msra.mxu0 0.0
    %3925 = vmatprep.subr.mxu0 0.0
    %3926 = vmatpush1.msra.mxu0 0.0
    %3927 = vmatprep.subr.mxu0 0.0
    %3928 = vmatpush1.msra.mxu0 0.0
    %3929 = vmatprep.subr.mxu0 0.0
    %3930 = vmatpush1.msra.mxu0 0.0
    %3931 = vmatprep.subr.mxu0 0.0
    %3932 = vmatpush1.msra.mxu0 0.0
    %3933 = vmatprep.subr.mxu0 0.0
    %3934 = vmatpush1.msra.mxu0 0.0
    %3935 = vmatprep.mubr.f32.mxu0 0.0
    %3936 = vmatmul.mubr.f32.gmra.mrb[0].mxu0 %v3860
    %v3937 = vpop.f32.mrb[0].mxu0
    %v3938 = vadd.f32 0.0, %v3937
    %v3939 = vpop.f32.mrb[0].mxu0
    %3940 = vmatprep.mubr.f32.mxu0 0.0
    %3941 = vmatmul.mubr.f32.gmra.mrb[0].mxu0 %v3863
    %v3942 = vpop.f32.mrb[0].mxu0
    %v3943 = vadd.f32 0.0, %v3942
    %v3944 = vpop.f32.mrb[0].mxu0
    %3945 = vmatprep.mubr.f32.mxu0 0.0
    %3946 = vmatmul.mubr.f32.gmra.mrb[0].mxu0 %v3866
    %v3947 = vpop.f32.mrb[0].mxu0
    %v3948 = vadd.f32 0.0, %v3947
    %v3949 = vpop.f32.mrb[0].mxu0
    %3950 = vmatprep.mubr.f32.mxu0 0.0
    %3951 = vmatmul.mubr.f32.gmra.mrb[0].mxu0 %v3869
    %v3952 = vpop.f32.mrb[0].mxu0
    %v3953 = vadd.f32 0.0, %v3952
    %v3954 = vpop.f32.mrb[0].mxu0
    %3955 = vdwg.mxu0
    %v3957 = vsel %vm2943, %v3938, 0
    %v3960 = vsel %vm2943, %v3943, 0
    %v3963 = vsel %vm2943, %v3948, 0
    %v3966 = vsel %vm2943, %v3953, 0
    %3968 = vmatprep.subr.mxu0 0.0
    %3969 = vmatpush1.msra.mxu0 %v2929
    %3970 = vmatprep.subr.mxu0 0.0
    %3971 = vmatpush1.msra.mxu0 0.0
    %3972 = vmatprep.subr.mxu0 0.0
    %3973 = vmatpush1.msra.mxu0 0.0
    %3974 = vmatprep.subr.mxu0 0.0
    %3975 = vmatpush1.msra.mxu0 0.0
    %3976 = vmatprep.subr.mxu0 0.0
    %3977 = vmatpush1.msra.mxu0 0.0
    %3978 = vmatprep.subr.mxu0 0.0
    %3979 = vmatpush1.msra.mxu0 0.0
    %3980 = vmatprep.subr.mxu0 0.0
    %3981 = vmatpush1.msra.mxu0 0.0
    %3982 = vmatprep.subr.mxu0 0.0
    %3983 = vmatpush1.msra.mxu0 0.0
    %3984 = vmatprep.subr.mxu0 0.0
    %3985 = vmatpush1.msra.mxu0 0.0
    %3986 = vmatprep.subr.mxu0 0.0
    %3987 = vmatpush1.msra.mxu0 0.0
    %3988 = vmatprep.subr.mxu0 0.0
    %3989 = vmatpush1.msra.mxu0 0.0
    %3990 = vmatprep.subr.mxu0 0.0
    %3991 = vmatpush1.msra.mxu0 0.0
    %3992 = vmatprep.subr.mxu0 0.0
    %3993 = vmatpush1.msra.mxu0 0.0
    %3994 = vmatprep.subr.mxu0 0.0
    %3995 = vmatpush1.msra.mxu0 0.0
    %3996 = vmatprep.subr.mxu0 0.0
    %3997 = vmatpush1.msra.mxu0 0.0
    %3998 = vmatprep.subr.mxu0 0.0
    %3999 = vmatpush1.msra.mxu0 0.0
    %4000 = vmatprep.subr.mxu0 0.0
    %4001 = vmatpush1.msra.mxu0 0.0
    %4002 = vmatprep.subr.mxu0 0.0
    %4003 = vmatpush1.msra.mxu0 0.0
    %4004 = vmatprep.subr.mxu0 0.0
    %4005 = vmatpush1.msra.mxu0 0.0
    %4006 = vmatprep.subr.mxu0 0.0
    %4007 = vmatpush1.msra.mxu0 0.0
    %4008 = vmatprep.subr.mxu0 0.0
    %4009 = vmatpush1.msra.mxu0 0.0
    %4010 = vmatprep.subr.mxu0 0.0
    %4011 = vmatpush1.msra.mxu0 0.0
    %4012 = vmatprep.subr.mxu0 0.0
    %4013 = vmatpush1.msra.mxu0 0.0
    %4014 = vmatprep.subr.mxu0 0.0
    %4015 = vmatpush1.msra.mxu0 0.0
    %4016 = vmatprep.subr.mxu0 0.0
    %4017 = vmatpush1.msra.mxu0 0.0
    %4018 = vmatprep.subr.mxu0 0.0
    %4019 = vmatpush1.msra.mxu0 0.0
    %4020 = vmatprep.subr.mxu0 0.0
    %4021 = vmatpush1.msra.mxu0 0.0
    %4022 = vmatprep.subr.mxu0 0.0
    %4023 = vmatpush1.msra.mxu0 0.0
    %4024 = vmatprep.subr.mxu0 0.0
    %4025 = vmatpush1.msra.mxu0 0.0
    %4026 = vmatprep.subr.mxu0 0.0
    %4027 = vmatpush1.msra.mxu0 0.0
    %4028 = vmatprep.subr.mxu0 0.0
    %4029 = vmatpush1.msra.mxu0 0.0
    %4030 = vmatprep.subr.mxu0 0.0
    %4031 = vmatpush1.msra.mxu0 0.0
    %4032 = vmatprep.mubr.f32.mxu0 0.0
    %4033 = vmatmul.mubr.f32.gmra.mrb[0].mxu0 %v3957
    %v4034 = vpop.f32.mrb[0].mxu0
    %v4035 = vadd.f32 0.0, %v4034
    %v4036 = vpop.f32.mrb[0].mxu0
    %4037 = vmatprep.mubr.f32.mxu0 0.0
    %4038 = vmatmul.mubr.f32.gmra.mrb[0].mxu0 %v3960
    %v4039 = vpop.f32.mrb[0].mxu0
    %v4040 = vadd.f32 0.0, %v4039
    %v4041 = vpop.f32.mrb[0].mxu0
    %4042 = vmatprep.mubr.f32.mxu0 0.0
    %4043 = vmatmul.mubr.f32.gmra.mrb[0].mxu0 %v3963
    %v4044 = vpop.f32.mrb[0].mxu0
    %v4045 = vadd.f32 0.0, %v4044
    %v4046 = vpop.f32.mrb[0].mxu0
    %4047 = vmatprep.mubr.f32.mxu0 0.0
    %4048 = vmatmul.mubr.f32.gmra.mrb[0].mxu0 %v3966
    %v4049 = vpop.f32.mrb[0].mxu0
    %v4050 = vadd.f32 0.0, %v4049
    %v4051 = vpop.f32.mrb[0].mxu0
    %4052 = vdwg.mxu0
    %v4053 = vadd.f32 %v3660, %v4035
    %v4054 = vadd.f32 %v3665, %v4040
    %v4055 = vadd.f32 %v3670, %v4045
    %v4056 = vadd.f32 %v3675, %v4050
    %4057 = vrot.lane.b32.xlu0 %v2909, 104
    %v4058 = vpop.permute.xlu0 %4057
    %4059 = vrot.lane.b32.xlu0 %v2914, 104
    %v4060 = vpop.permute.xlu0 %4059
    %4061 = vrot.lane.b32.xlu0 %v2919, 104
    %v4062 = vpop.permute.xlu0 %4061
    %4063 = vrot.lane.b32.xlu0 %v2924, 104
    %v4064 = vpop.permute.xlu0 %4063
    %4065 = vrot.lane.b32.xlu0 %v2909, 72
    %v4066 = vpop.permute.xlu0 %4065
    %4067 = vrot.lane.b32.xlu0 %v2914, 72
    %v4068 = vpop.permute.xlu0 %4067
    %4069 = vrot.lane.b32.xlu0 %v2919, 72
    %v4070 = vpop.permute.xlu0 %4069
    %4071 = vrot.lane.b32.xlu0 %v2924, 72
    %v4072 = vpop.permute.xlu0 %4071
    %v4073 = vsel %vm2943, %v4058, 0
    %v4075 = vsel %vm2943, %v4060, 0
    %v4077 = vsel %vm2943, %v4062, 0
    %v4079 = vsel %vm2943, %v4064, 0
    %v4081 = vsel %vm2943, %v4066, 0
    %v4083 = vsel %vm2943, %v4068, 0
    %v4085 = vsel %vm2943, %v4070, 0
    %v4087 = vsel %vm2943, %v4072, 0
    %4089 = vmatprep.subr.mxu0 0.0
    %4090 = vmatpush1.xpose.msra.mxu0 %v4081
    %4091 = vmatprep.subr.mxu0 0.0
    %4092 = vmatpush1.xpose.msra.mxu0 %v4083
    %4093 = vmatprep.subr.mxu0 0.0
    %4094 = vmatpush1.xpose.msra.mxu0 %v4085
    %4095 = vmatprep.subr.mxu0 0.0
    %4096 = vmatpush1.xpose.msra.mxu0 %v4087
    %4097 = vmatprep.subr.mxu0 0.0
    %4098 = vmatpush1.xpose.msra.mxu0 0.0
    %4099 = vmatprep.subr.mxu0 0.0
    %4100 = vmatpush1.xpose.msra.mxu0 0.0
    %4101 = vmatprep.subr.mxu0 0.0
    %4102 = vmatpush1.xpose.msra.mxu0 0.0
    %4103 = vmatprep.subr.mxu0 0.0
    %4104 = vmatpush1.xpose.msra.mxu0 0.0
    %4105 = vmatprep.subr.mxu0 0.0
    %4106 = vmatpush1.xpose.msra.mxu0 0.0
    %4107 = vmatprep.subr.mxu0 0.0
    %4108 = vmatpush1.xpose.msra.mxu0 0.0
    %4109 = vmatprep.subr.mxu0 0.0
    %4110 = vmatpush1.xpose.msra.mxu0 0.0
    %4111 = vmatprep.subr.mxu0 0.0
    %4112 = vmatpush1.xpose.msra.mxu0 0.0
    %4113 = vmatprep.subr.mxu0 0.0
    %4114 = vmatpush1.xpose.msra.mxu0 0.0
    %4115 = vmatprep.subr.mxu0 0.0
    %4116 = vmatpush1.xpose.msra.mxu0 0.0
    %4117 = vmatprep.subr.mxu0 0.0
    %4118 = vmatpush1.xpose.msra.mxu0 0.0
    %4119 = vmatprep.subr.mxu0 0.0
    %4120 = vmatpush1.xpose.msra.mxu0 0.0
    %4121 = vmatprep.subr.mxu0 0.0
    %4122 = vmatpush1.xpose.msra.mxu0 0.0
    %4123 = vmatprep.subr.mxu0 0.0
    %4124 = vmatpush1.xpose.msra.mxu0 0.0
    %4125 = vmatprep.subr.mxu0 0.0
    %4126 = vmatpush1.xpose.msra.mxu0 0.0
    %4127 = vmatprep.subr.mxu0 0.0
    %4128 = vmatpush1.xpose.msra.mxu0 0.0
    %4129 = vmatprep.subr.mxu0 0.0
    %4130 = vmatpush1.xpose.msra.mxu0 0.0
    %4131 = vmatprep.subr.mxu0 0.0
    %4132 = vmatpush1.xpose.msra.mxu0 0.0
    %4133 = vmatprep.subr.mxu0 0.0
    %4134 = vmatpush1.xpose.msra.mxu0 0.0
    %4135 = vmatprep.subr.mxu0 0.0
    %4136 = vmatpush1.xpose.msra.mxu0 0.0
    %4137 = vmatprep.subr.mxu0 0.0
    %4138 = vmatpush1.xpose.msra.mxu0 0.0
    %4139 = vmatprep.subr.mxu0 0.0
    %4140 = vmatpush1.xpose.msra.mxu0 0.0
    %4141 = vmatprep.subr.mxu0 0.0
    %4142 = vmatpush1.xpose.msra.mxu0 0.0
    %4143 = vmatprep.subr.mxu0 0.0
    %4144 = vmatpush1.xpose.msra.mxu0 0.0
    %4145 = vmatprep.subr.mxu0 0.0
    %4146 = vmatpush1.xpose.msra.mxu0 0.0
    %4147 = vmatprep.subr.mxu0 0.0
    %4148 = vmatpush1.xpose.msra.mxu0 0.0
    %4149 = vmatprep.subr.mxu0 0.0
    %4150 = vmatpush1.xpose.msra.mxu0 0.0
    %4151 = vmatprep.subr.mxu0 0.0
    %4152 = vmatpush1.xpose.msra.mxu0 0.0
    %4153 = vmatprep.mubr.f32.mxu0 0.0
    %4154 = vmatmul.mubr.f32.gmra.mrb[0].mxu0 %v4073
    %v4155 = vpop.f32.mrb[0].mxu0
    %v4156 = vadd.f32 0.0, %v4155
    %v4157 = vpop.f32.mrb[0].mxu0
    %4158 = vmatprep.mubr.f32.mxu0 0.0
    %4159 = vmatmul.mubr.f32.gmra.mrb[0].mxu0 %v4075
    %v4160 = vpop.f32.mrb[0].mxu0
    %v4161 = vadd.f32 0.0, %v4160
    %v4162 = vpop.f32.mrb[0].mxu0
    %4163 = vmatprep.mubr.f32.mxu0 0.0
    %4164 = vmatmul.mubr.f32.gmra.mrb[0].mxu0 %v4077
    %v4165 = vpop.f32.mrb[0].mxu0
    %v4166 = vadd.f32 0.0, %v4165
    %v4167 = vpop.f32.mrb[0].mxu0
    %4168 = vmatprep.mubr.f32.mxu0 0.0
    %4169 = vmatmul.mubr.f32.gmra.mrb[0].mxu0 %v4079
    %v4170 = vpop.f32.mrb[0].mxu0
    %v4171 = vadd.f32 0.0, %v4170
    %v4172 = vpop.f32.mrb[0].mxu0
    %4173 = vdwg.mxu0
    %v4174 = vmul.f32 %v4156, 0.35355338
    %v4175 = vmul.f32 %v4161, 0.35355338
    %v4176 = vmul.f32 %v4166, 0.35355338
    %v4177 = vmul.f32 %v4171, 0.35355338
    %v4178 = vadd.f32 %v4174, %v2815
    %v4179 = vadd.f32 %v4175, %v2816
    %v4180 = vadd.f32 %v4176, %v2817
    %v4181 = vadd.f32 %v4177, %v2818
    %v4182 = vsel %vm635, %v4178, -inf
    %4183 = vmax.xlane.f32.xlu0 %v4182
    %v4184 = vpop.xlane.xlu0 %4183
    %v4185 = vsel %vm635, %v4179, -inf
    %4186 = vmax.xlane.f32.xlu0 %v4185
    %v4187 = vpop.xlane.xlu0 %4186
    %v4188 = vsel %vm635, %v4180, -inf
    %4189 = vmax.xlane.f32.xlu0 %v4188
    %v4190 = vpop.xlane.xlu0 %4189
    %v4191 = vsel %vm635, %v4181, -inf
    %4192 = vmax.xlane.f32.xlu0 %v4191
    %v4193 = vpop.xlane.xlu0 %4192
    %v4194 = vsub.f32 %v4178, %v4184
    %v4195 = vsub.f32 %v4179, %v4187
    %v4196 = vsub.f32 %v4180, %v4190
    %v4197 = vsub.f32 %v4181, %v4193
    %v4198 = vmul.f32 %v4194, 1.442695
    %v4199 = vpow.pop %v4198
    %v4200 = vmul.f32 %v4195, 1.442695
    %v4201 = vpow.pop %v4200
    %v4202 = vmul.f32 %v4196, 1.442695
    %v4203 = vpow.pop %v4202
    %v4204 = vmul.f32 %v4197, 1.442695
    %v4205 = vpow.pop %v4204
    %v4206 = vsel %vm635, %v4199, 0.0
    %4207 = vadd.xlane.f32.xlu0 %v4206
    %v4208 = vpop.xlane.xlu0 %4207
    %v4209 = vsel %vm635, %v4201, 0.0
    %4210 = vadd.xlane.f32.xlu0 %v4209
    %v4211 = vpop.xlane.xlu0 %4210
    %v4212 = vsel %vm635, %v4203, 0.0
    %4213 = vadd.xlane.f32.xlu0 %v4212
    %v4214 = vpop.xlane.xlu0 %4213
    %v4215 = vsel %vm635, %v4205, 0.0
    %4216 = vadd.xlane.f32.xlu0 %v4215
    %v4217 = vpop.xlane.xlu0 %4216
    %v4218 = vrcp.pop %v4208
    %v4219 = vmul.f32 %v4199, %v4218
    %v4220 = vrcp.pop %v4211
    %v4221 = vmul.f32 %v4201, %v4220
    %v4222 = vrcp.pop %v4214
    %v4223 = vmul.f32 %v4203, %v4222
    %v4224 = vrcp.pop %v4217
    %v4225 = vmul.f32 %v4205, %v4224
    %4226 = vrot.lane.b32.xlu0 %v2909, 40
    %v4227 = vpop.permute.xlu0 %4226
    %4228 = vrot.lane.b32.xlu0 %v2914, 40
    %v4229 = vpop.permute.xlu0 %4228
    %4230 = vrot.lane.b32.xlu0 %v2919, 40
    %v4231 = vpop.permute.xlu0 %4230
    %4232 = vrot.lane.b32.xlu0 %v2924, 40
    %v4233 = vpop.permute.xlu0 %4232
    %v4239 = vsel %vm635, %v4219, 0
    %v4242 = vsel %vm635, %v4221, 0
    %v4245 = vsel %vm635, %v4223, 0
    %v4248 = vsel %vm635, %v4225, 0
    %4250 = vmatprep.subr.mxu0 0.0
    %4251 = vmatpush1.msra.mxu0 %v4227
    %4252 = vmatprep.subr.mxu0 0.0
    %4253 = vmatpush1.msra.mxu0 %v4229
    %4254 = vmatprep.subr.mxu0 0.0
    %4255 = vmatpush1.msra.mxu0 %v4231
    %4256 = vmatprep.subr.mxu0 0.0
    %4257 = vmatpush1.msra.mxu0 %v4233
    %4258 = vmatprep.subr.mxu0 0.0
    %4259 = vmatpush1.msra.mxu0 0.0
    %4260 = vmatprep.subr.mxu0 0.0
    %4261 = vmatpush1.msra.mxu0 0.0
    %4262 = vmatprep.subr.mxu0 0.0
    %4263 = vmatpush1.msra.mxu0 0.0
    %4264 = vmatprep.subr.mxu0 0.0
    %4265 = vmatpush1.msra.mxu0 0.0
    %4266 = vmatprep.subr.mxu0 0.0
    %4267 = vmatpush1.msra.mxu0 0.0
    %4268 = vmatprep.subr.mxu0 0.0
    %4269 = vmatpush1.msra.mxu0 0.0
    %4270 = vmatprep.subr.mxu0 0.0
    %4271 = vmatpush1.msra.mxu0 0.0
    %4272 = vmatprep.subr.mxu0 0.0
    %4273 = vmatpush1.msra.mxu0 0.0
    %4274 = vmatprep.subr.mxu0 0.0
    %4275 = vmatpush1.msra.mxu0 0.0
    %4276 = vmatprep.subr.mxu0 0.0
    %4277 = vmatpush1.msra.mxu0 0.0
    %4278 = vmatprep.subr.mxu0 0.0
    %4279 = vmatpush1.msra.mxu0 0.0
    %4280 = vmatprep.subr.mxu0 0.0
    %4281 = vmatpush1.msra.mxu0 0.0
    %4282 = vmatprep.subr.mxu0 0.0
    %4283 = vmatpush1.msra.mxu0 0.0
    %4284 = vmatprep.subr.mxu0 0.0
    %4285 = vmatpush1.msra.mxu0 0.0
    %4286 = vmatprep.subr.mxu0 0.0
    %4287 = vmatpush1.msra.mxu0 0.0
    %4288 = vmatprep.subr.mxu0 0.0
    %4289 = vmatpush1.msra.mxu0 0.0
    %4290 = vmatprep.subr.mxu0 0.0
    %4291 = vmatpush1.msra.mxu0 0.0
    %4292 = vmatprep.subr.mxu0 0.0
    %4293 = vmatpush1.msra.mxu0 0.0
    %4294 = vmatprep.subr.mxu0 0.0
    %4295 = vmatpush1.msra.mxu0 0.0
    %4296 = vmatprep.subr.mxu0 0.0
    %4297 = vmatpush1.msra.mxu0 0.0
    %4298 = vmatprep.subr.mxu0 0.0
    %4299 = vmatpush1.msra.mxu0 0.0
    %4300 = vmatprep.subr.mxu0 0.0
    %4301 = vmatpush1.msra.mxu0 0.0
    %4302 = vmatprep.subr.mxu0 0.0
    %4303 = vmatpush1.msra.mxu0 0.0
    %4304 = vmatprep.subr.mxu0 0.0
    %4305 = vmatpush1.msra.mxu0 0.0
    %4306 = vmatprep.subr.mxu0 0.0
    %4307 = vmatpush1.msra.mxu0 0.0
    %4308 = vmatprep.subr.mxu0 0.0
    %4309 = vmatpush1.msra.mxu0 0.0
    %4310 = vmatprep.subr.mxu0 0.0
    %4311 = vmatpush1.msra.mxu0 0.0
    %4312 = vmatprep.subr.mxu0 0.0
    %4313 = vmatpush1.msra.mxu0 0.0
    %4314 = vmatprep.mubr.f32.mxu0 0.0
    %4315 = vmatmul.mubr.f32.gmra.mrb[0].mxu0 %v4239
    %v4316 = vpop.f32.mrb[0].mxu0
    %v4317 = vadd.f32 0.0, %v4316
    %v4318 = vpop.f32.mrb[0].mxu0
    %4319 = vmatprep.mubr.f32.mxu0 0.0
    %4320 = vmatmul.mubr.f32.gmra.mrb[0].mxu0 %v4242
    %v4321 = vpop.f32.mrb[0].mxu0
    %v4322 = vadd.f32 0.0, %v4321
    %v4323 = vpop.f32.mrb[0].mxu0
    %4324 = vmatprep.mubr.f32.mxu0 0.0
    %4325 = vmatmul.mubr.f32.gmra.mrb[0].mxu0 %v4245
    %v4326 = vpop.f32.mrb[0].mxu0
    %v4327 = vadd.f32 0.0, %v4326
    %v4328 = vpop.f32.mrb[0].mxu0
    %4329 = vmatprep.mubr.f32.mxu0 0.0
    %4330 = vmatmul.mubr.f32.gmra.mrb[0].mxu0 %v4248
    %v4331 = vpop.f32.mrb[0].mxu0
    %v4332 = vadd.f32 0.0, %v4331
    %v4333 = vpop.f32.mrb[0].mxu0
    %4334 = vdwg.mxu0
    %v4336 = vsel %vm2943, %v4317, 0
    %v4339 = vsel %vm2943, %v4322, 0
    %v4342 = vsel %vm2943, %v4327, 0
    %v4345 = vsel %vm2943, %v4332, 0
    %4347 = vmatprep.subr.mxu0 0.0
    %4348 = vmatpush1.msra.mxu0 %v2930
    %4349 = vmatprep.subr.mxu0 0.0
    %4350 = vmatpush1.msra.mxu0 0.0
    %4351 = vmatprep.subr.mxu0 0.0
    %4352 = vmatpush1.msra.mxu0 0.0
    %4353 = vmatprep.subr.mxu0 0.0
    %4354 = vmatpush1.msra.mxu0 0.0
    %4355 = vmatprep.subr.mxu0 0.0
    %4356 = vmatpush1.msra.mxu0 0.0
    %4357 = vmatprep.subr.mxu0 0.0
    %4358 = vmatpush1.msra.mxu0 0.0
    %4359 = vmatprep.subr.mxu0 0.0
    %4360 = vmatpush1.msra.mxu0 0.0
    %4361 = vmatprep.subr.mxu0 0.0
    %4362 = vmatpush1.msra.mxu0 0.0
    %4363 = vmatprep.subr.mxu0 0.0
    %4364 = vmatpush1.msra.mxu0 0.0
    %4365 = vmatprep.subr.mxu0 0.0
    %4366 = vmatpush1.msra.mxu0 0.0
    %4367 = vmatprep.subr.mxu0 0.0
    %4368 = vmatpush1.msra.mxu0 0.0
    %4369 = vmatprep.subr.mxu0 0.0
    %4370 = vmatpush1.msra.mxu0 0.0
    %4371 = vmatprep.subr.mxu0 0.0
    %4372 = vmatpush1.msra.mxu0 0.0
    %4373 = vmatprep.subr.mxu0 0.0
    %4374 = vmatpush1.msra.mxu0 0.0
    %4375 = vmatprep.subr.mxu0 0.0
    %4376 = vmatpush1.msra.mxu0 0.0
    %4377 = vmatprep.subr.mxu0 0.0
    %4378 = vmatpush1.msra.mxu0 0.0
    %4379 = vmatprep.subr.mxu0 0.0
    %4380 = vmatpush1.msra.mxu0 0.0
    %4381 = vmatprep.subr.mxu0 0.0
    %4382 = vmatpush1.msra.mxu0 0.0
    %4383 = vmatprep.subr.mxu0 0.0
    %4384 = vmatpush1.msra.mxu0 0.0
    %4385 = vmatprep.subr.mxu0 0.0
    %4386 = vmatpush1.msra.mxu0 0.0
    %4387 = vmatprep.subr.mxu0 0.0
    %4388 = vmatpush1.msra.mxu0 0.0
    %4389 = vmatprep.subr.mxu0 0.0
    %4390 = vmatpush1.msra.mxu0 0.0
    %4391 = vmatprep.subr.mxu0 0.0
    %4392 = vmatpush1.msra.mxu0 0.0
    %4393 = vmatprep.subr.mxu0 0.0
    %4394 = vmatpush1.msra.mxu0 0.0
    %4395 = vmatprep.subr.mxu0 0.0
    %4396 = vmatpush1.msra.mxu0 0.0
    %4397 = vmatprep.subr.mxu0 0.0
    %4398 = vmatpush1.msra.mxu0 0.0
    %4399 = vmatprep.subr.mxu0 0.0
    %4400 = vmatpush1.msra.mxu0 0.0
    %4401 = vmatprep.subr.mxu0 0.0
    %4402 = vmatpush1.msra.mxu0 0.0
    %4403 = vmatprep.subr.mxu0 0.0
    %4404 = vmatpush1.msra.mxu0 0.0
    %4405 = vmatprep.subr.mxu0 0.0
    %4406 = vmatpush1.msra.mxu0 0.0
    %4407 = vmatprep.subr.mxu0 0.0
    %4408 = vmatpush1.msra.mxu0 0.0
    %4409 = vmatprep.subr.mxu0 0.0
    %4410 = vmatpush1.msra.mxu0 0.0
    %4411 = vmatprep.mubr.f32.mxu0 0.0
    %4412 = vmatmul.mubr.f32.gmra.mrb[0].mxu0 %v4336
    %v4413 = vpop.f32.mrb[0].mxu0
    %v4414 = vadd.f32 0.0, %v4413
    %v4415 = vpop.f32.mrb[0].mxu0
    %4416 = vmatprep.mubr.f32.mxu0 0.0
    %4417 = vmatmul.mubr.f32.gmra.mrb[0].mxu0 %v4339
    %v4418 = vpop.f32.mrb[0].mxu0
    %v4419 = vadd.f32 0.0, %v4418
    %v4420 = vpop.f32.mrb[0].mxu0
    %4421 = vmatprep.mubr.f32.mxu0 0.0
    %4422 = vmatmul.mubr.f32.gmra.mrb[0].mxu0 %v4342
    %v4423 = vpop.f32.mrb[0].mxu0
    %v4424 = vadd.f32 0.0, %v4423
    %v4425 = vpop.f32.mrb[0].mxu0
    %4426 = vmatprep.mubr.f32.mxu0 0.0
    %4427 = vmatmul.mubr.f32.gmra.mrb[0].mxu0 %v4345
    %v4428 = vpop.f32.mrb[0].mxu0
    %v4429 = vadd.f32 0.0, %v4428
    %v4430 = vpop.f32.mrb[0].mxu0
    %4431 = vdwg.mxu0
    %v4432 = vadd.f32 %v4053, %v4414
    %v4433 = vadd.f32 %v4054, %v4419
    %v4434 = vadd.f32 %v4055, %v4424
    %v4435 = vadd.f32 %v4056, %v4429
    %v4436 = vld [vmem:[%s9] sm:$0x1]
    %v4438 = vlaneseq
    %v4439 = vshrl.u32 %v4438, 7
    %v4440 = vsub.s32 0, %v4439
    %v4441 = vrot.slane %v4436, %v4440
    %v4443 = vadd.f32 %v4432, %v4441
    %v4444 = vadd.f32 %v4433, %v4441
    %v4445 = vadd.f32 %v4434, %v4441
    %v4446 = vadd.f32 %v4435, %v4441
    %v4447 = vadd.f32 %v2811, %v4443
    %v4448 = vadd.f32 %v2812, %v4444
    %v4449 = vadd.f32 %v2813, %v4445
    %v4450 = vadd.f32 %v2814, %v4446
    %v4451 = vld [vmem:[%s10] sm:$0x1]
    %v4452 = vld [vmem:[%s11] sm:$0x1]
    %v4453 = vsel %vm635, %v4447, 0.0
    %4454 = vadd.xlane.f32.xlu0 %v4453
    %v4455 = vpop.xlane.xlu0 %4454
    %v4456 = vsel %vm635, %v4448, 0.0
    %4457 = vadd.xlane.f32.xlu0 %v4456
    %v4458 = vpop.xlane.xlu0 %4457
    %v4459 = vsel %vm635, %v4449, 0.0
    %4460 = vadd.xlane.f32.xlu0 %v4459
    %v4461 = vpop.xlane.xlu0 %4460
    %v4462 = vsel %vm635, %v4450, 0.0
    %4463 = vadd.xlane.f32.xlu0 %v4462
    %v4464 = vpop.xlane.xlu0 %4463
    %v4465 = vrcp.pop 32.0
    %v4466 = vmul.f32 %v4455, %v4465
    %v4467 = vmul.f32 %v4458, %v4465
    %v4468 = vmul.f32 %v4461, %v4465
    %v4469 = vmul.f32 %v4464, %v4465
    %v4470 = vsub.f32 %v4447, %v4466
    %v4471 = vsub.f32 %v4448, %v4467
    %v4472 = vsub.f32 %v4449, %v4468
    %v4473 = vsub.f32 %v4450, %v4469
    %v4474 = vmul.f32 %v4470, %v4470
    %v4475 = vmul.f32 %v4471, %v4471
    %v4476 = vmul.f32 %v4472, %v4472
    %v4477 = vmul.f32 %v4473, %v4473
    %v4478 = vsel %vm635, %v4474, 0.0
    %4479 = vadd.xlane.f32.xlu0 %v4478
    %v4480 = vpop.xlane.xlu0 %4479
    %v4481 = vsel %vm635, %v4475, 0.0
    %4482 = vadd.xlane.f32.xlu0 %v4481
    %v4483 = vpop.xlane.xlu0 %4482
    %v4484 = vsel %vm635, %v4476, 0.0
    %4485 = vadd.xlane.f32.xlu0 %v4484
    %v4486 = vpop.xlane.xlu0 %4485
    %v4487 = vsel %vm635, %v4477, 0.0
    %4488 = vadd.xlane.f32.xlu0 %v4487
    %v4489 = vpop.xlane.xlu0 %4488
    %v4490 = vmul.f32 %v4480, %v4465
    %v4491 = vmul.f32 %v4483, %v4465
    %v4492 = vmul.f32 %v4486, %v4465
    %v4493 = vmul.f32 %v4489, %v4465
    %v4494 = vadd.f32 %v4490, 1e-05
    %v4495 = vadd.f32 %v4491, 1e-05
    %v4496 = vadd.f32 %v4492, 1e-05
    %v4497 = vadd.f32 %v4493, 1e-05
    %v4498 = vrsqrt.pop %v4494
    %v4499 = vrsqrt.pop %v4495
    %v4500 = vrsqrt.pop %v4496
    %v4501 = vrsqrt.pop %v4497
    %v4502 = vmul.f32 %v4470, %v4498
    %v4503 = vmul.f32 %v4471, %v4499
    %v4504 = vmul.f32 %v4472, %v4500
    %v4505 = vmul.f32 %v4473, %v4501
    %v4507 = vlaneseq
    %v4508 = vshrl.u32 %v4507, 7
    %v4509 = vsub.s32 0, %v4508
    %v4510 = vrot.slane %v4451, %v4509
    %v4512 = vmul.f32 %v4502, %v4510
    %v4513 = vmul.f32 %v4503, %v4510
    %v4514 = vmul.f32 %v4504, %v4510
    %v4515 = vmul.f32 %v4505, %v4510
    %v4517 = vlaneseq
    %v4518 = vshrl.u32 %v4517, 7
    %v4519 = vsub.s32 0, %v4518
    %v4520 = vrot.slane %v4452, %v4519
    %v4522 = vadd.f32 %v4512, %v4520
    %v4523 = vadd.f32 %v4513, %v4520
    %v4524 = vadd.f32 %v4514, %v4520
    %v4525 = vadd.f32 %v4515, %v4520
    %v4526 = vld [vmem:[%s12] sm:$0xff]
    %v4527 = vld [vmem:[%s12 + $0x8] sm:$0xff]
    %v4528 = vld [vmem:[%s12 + $0x10] sm:$0xff]
    %v4529 = vld [vmem:[%s12 + $0x18] sm:$0xff]
    %v4530 = vld [vmem:[%s13] sm:$0x1]
    %v4532 = vlaneseq
    %v4533 = vshrl.u32 %v4532, 7
    %v4534 = vsub.s32 0, %v4533
    %v4535 = vrot.slane %v4530, %v4534
    %v4538 = vsel %vm635, %v4522, 0
    %v4541 = vsel %vm635, %v4523, 0
    %v4544 = vsel %vm635, %v4524, 0
    %v4547 = vsel %vm635, %v4525, 0
    %4549 = vmatprep.subr.mxu0 0.0
    %4550 = vmatpush1.msra.mxu0 %v4526
    %4551 = vmatprep.subr.mxu0 0.0
    %4552 = vmatpush1.msra.mxu0 %v4527
    %4553 = vmatprep.subr.mxu0 0.0
    %4554 = vmatpush1.msra.mxu0 %v4528
    %4555 = vmatprep.subr.mxu0 0.0
    %4556 = vmatpush1.msra.mxu0 %v4529
    %4557 = vmatprep.subr.mxu0 0.0
    %4558 = vmatpush1.msra.mxu0 0.0
    %4559 = vmatprep.subr.mxu0 0.0
    %4560 = vmatpush1.msra.mxu0 0.0
    %4561 = vmatprep.subr.mxu0 0.0
    %4562 = vmatpush1.msra.mxu0 0.0
    %4563 = vmatprep.subr.mxu0 0.0
    %4564 = vmatpush1.msra.mxu0 0.0
    %4565 = vmatprep.subr.mxu0 0.0
    %4566 = vmatpush1.msra.mxu0 0.0
    %4567 = vmatprep.subr.mxu0 0.0
    %4568 = vmatpush1.msra.mxu0 0.0
    %4569 = vmatprep.subr.mxu0 0.0
    %4570 = vmatpush1.msra.mxu0 0.0
    %4571 = vmatprep.subr.mxu0 0.0
    %4572 = vmatpush1.msra.mxu0 0.0
    %4573 = vmatprep.subr.mxu0 0.0
    %4574 = vmatpush1.msra.mxu0 0.0
    %4575 = vmatprep.subr.mxu0 0.0
    %4576 = vmatpush1.msra.mxu0 0.0
    %4577 = vmatprep.subr.mxu0 0.0
    %4578 = vmatpush1.msra.mxu0 0.0
    %4579 = vmatprep.subr.mxu0 0.0
    %4580 = vmatpush1.msra.mxu0 0.0
    %4581 = vmatprep.subr.mxu0 0.0
    %4582 = vmatpush1.msra.mxu0 0.0
    %4583 = vmatprep.subr.mxu0 0.0
    %4584 = vmatpush1.msra.mxu0 0.0
    %4585 = vmatprep.subr.mxu0 0.0
    %4586 = vmatpush1.msra.mxu0 0.0
    %4587 = vmatprep.subr.mxu0 0.0
    %4588 = vmatpush1.msra.mxu0 0.0
    %4589 = vmatprep.subr.mxu0 0.0
    %4590 = vmatpush1.msra.mxu0 0.0
    %4591 = vmatprep.subr.mxu0 0.0
    %4592 = vmatpush1.msra.mxu0 0.0
    %4593 = vmatprep.subr.mxu0 0.0
    %4594 = vmatpush1.msra.mxu0 0.0
    %4595 = vmatprep.subr.mxu0 0.0
    %4596 = vmatpush1.msra.mxu0 0.0
    %4597 = vmatprep.subr.mxu0 0.0
    %4598 = vmatpush1.msra.mxu0 0.0
    %4599 = vmatprep.subr.mxu0 0.0
    %4600 = vmatpush1.msra.mxu0 0.0
    %4601 = vmatprep.subr.mxu0 0.0
    %4602 = vmatpush1.msra.mxu0 0.0
    %4603 = vmatprep.subr.mxu0 0.0
    %4604 = vmatpush1.msra.mxu0 0.0
    %4605 = vmatprep.subr.mxu0 0.0
    %4606 = vmatpush1.msra.mxu0 0.0
    %4607 = vmatprep.subr.mxu0 0.0
    %4608 = vmatpush1.msra.mxu0 0.0
    %4609 = vmatprep.subr.mxu0 0.0
    %4610 = vmatpush1.msra.mxu0 0.0
    %4611 = vmatprep.subr.mxu0 0.0
    %4612 = vmatpush1.msra.mxu0 0.0
    %4613 = vmatprep.mubr.f32.mxu0 0.0
    %4614 = vmatmul.mubr.f32.gmra.mrb[0].mxu0 %v4538
    %v4615 = vpop.f32.mrb[0].mxu0
    %v4616 = vadd.f32 %v4535, %v4615
    %v4617 = vpop.f32.mrb[0].mxu0
    %4618 = vmatprep.mubr.f32.mxu0 0.0
    %4619 = vmatmul.mubr.f32.gmra.mrb[0].mxu0 %v4541
    %v4620 = vpop.f32.mrb[0].mxu0
    %v4621 = vadd.f32 %v4535, %v4620
    %v4622 = vpop.f32.mrb[0].mxu0
    %4623 = vmatprep.mubr.f32.mxu0 0.0
    %4624 = vmatmul.mubr.f32.gmra.mrb[0].mxu0 %v4544
    %v4625 = vpop.f32.mrb[0].mxu0
    %v4626 = vadd.f32 %v4535, %v4625
    %v4627 = vpop.f32.mrb[0].mxu0
    %4628 = vmatprep.mubr.f32.mxu0 0.0
    %4629 = vmatmul.mubr.f32.gmra.mrb[0].mxu0 %v4547
    %v4630 = vpop.f32.mrb[0].mxu0
    %v4631 = vadd.f32 %v4535, %v4630
    %v4632 = vpop.f32.mrb[0].mxu0
    %4633 = vdwg.mxu0
    %v4634 = vmax.f32 %v4616, 0.0
    %v4635 = vmax.f32 %v4621, 0.0
    %v4636 = vmax.f32 %v4626, 0.0
    %v4637 = vmax.f32 %v4631, 0.0
    %v4638 = vld [vmem:[%s14] sm:$0xff]
    %v4639 = vld [vmem:[%s14 + $0x8] sm:$0xff]
    %v4640 = vld [vmem:[%s14 + $0x10] sm:$0xff]
    %v4641 = vld [vmem:[%s14 + $0x18] sm:$0xff]
    %v4642 = vld [vmem:[%s15] sm:$0x1]
    %v4644 = vlaneseq
    %v4645 = vshrl.u32 %v4644, 7
    %v4646 = vsub.s32 0, %v4645
    %v4647 = vrot.slane %v4642, %v4646
    %v4650 = vsel %vm635, %v4634, 0
    %v4653 = vsel %vm635, %v4635, 0
    %v4656 = vsel %vm635, %v4636, 0
    %v4659 = vsel %vm635, %v4637, 0
    %4661 = vmatprep.subr.mxu0 0.0
    %4662 = vmatpush1.msra.mxu0 %v4638
    %4663 = vmatprep.subr.mxu0 0.0
    %4664 = vmatpush1.msra.mxu0 %v4639
    %4665 = vmatprep.subr.mxu0 0.0
    %4666 = vmatpush1.msra.mxu0 %v4640
    %4667 = vmatprep.subr.mxu0 0.0
    %4668 = vmatpush1.msra.mxu0 %v4641
    %4669 = vmatprep.subr.mxu0 0.0
    %4670 = vmatpush1.msra.mxu0 0.0
    %4671 = vmatprep.subr.mxu0 0.0
    %4672 = vmatpush1.msra.mxu0 0.0
    %4673 = vmatprep.subr.mxu0 0.0
    %4674 = vmatpush1.msra.mxu0 0.0
    %4675 = vmatprep.subr.mxu0 0.0
    %4676 = vmatpush1.msra.mxu0 0.0
    %4677 = vmatprep.subr.mxu0 0.0
    %4678 = vmatpush1.msra.mxu0 0.0
    %4679 = vmatprep.subr.mxu0 0.0
    %4680 = vmatpush1.msra.mxu0 0.0
    %4681 = vmatprep.subr.mxu0 0.0
    %4682 = vmatpush1.msra.mxu0 0.0
    %4683 = vmatprep.subr.mxu0 0.0
    %4684 = vmatpush1.msra.mxu0 0.0
    %4685 = vmatprep.subr.mxu0 0.0
    %4686 = vmatpush1.msra.mxu0 0.0
    %4687 = vmatprep.subr.mxu0 0.0
    %4688 = vmatpush1.msra.mxu0 0.0
    %4689 = vmatprep.subr.mxu0 0.0
    %4690 = vmatpush1.msra.mxu0 0.0
    %4691 = vmatprep.subr.mxu0 0.0
    %4692 = vmatpush1.msra.mxu0 0.0
    %4693 = vmatprep.subr.mxu0 0.0
    %4694 = vmatpush1.msra.mxu0 0.0
    %4695 = vmatprep.subr.mxu0 0.0
    %4696 = vmatpush1.msra.mxu0 0.0
    %4697 = vmatprep.subr.mxu0 0.0
    %4698 = vmatpush1.msra.mxu0 0.0
    %4699 = vmatprep.subr.mxu0 0.0
    %4700 = vmatpush1.msra.mxu0 0.0
    %4701 = vmatprep.subr.mxu0 0.0
    %4702 = vmatpush1.msra.mxu0 0.0
    %4703 = vmatprep.subr.mxu0 0.0
    %4704 = vmatpush1.msra.mxu0 0.0
    %4705 = vmatprep.subr.mxu0 0.0
    %4706 = vmatpush1.msra.mxu0 0.0
    %4707 = vmatprep.subr.mxu0 0.0
    %4708 = vmatpush1.msra.mxu0 0.0
    %4709 = vmatprep.subr.mxu0 0.0
    %4710 = vmatpush1.msra.mxu0 0.0
    %4711 = vmatprep.subr.mxu0 0.0
    %4712 = vmatpush1.msra.mxu0 0.0
    %4713 = vmatprep.subr.mxu0 0.0
    %4714 = vmatpush1.msra.mxu0 0.0
    %4715 = vmatprep.subr.mxu0 0.0
    %4716 = vmatpush1.msra.mxu0 0.0
    %4717 = vmatprep.subr.mxu0 0.0
    %4718 = vmatpush1.msra.mxu0 0.0
    %4719 = vmatprep.subr.mxu0 0.0
    %4720 = vmatpush1.msra.mxu0 0.0
    %4721 = vmatprep.subr.mxu0 0.0
    %4722 = vmatpush1.msra.mxu0 0.0
    %4723 = vmatprep.subr.mxu0 0.0
    %4724 = vmatpush1.msra.mxu0 0.0
    %4725 = vmatprep.mubr.f32.mxu0 0.0
    %4726 = vmatmul.mubr.f32.gmra.mrb[0].mxu0 %v4650
    %v4727 = vpop.f32.mrb[0].mxu0
    %v4728 = vadd.f32 %v4647, %v4727
    %v4729 = vpop.f32.mrb[0].mxu0
    %4730 = vmatprep.mubr.f32.mxu0 0.0
    %4731 = vmatmul.mubr.f32.gmra.mrb[0].mxu0 %v4653
    %v4732 = vpop.f32.mrb[0].mxu0
    %v4733 = vadd.f32 %v4647, %v4732
    %v4734 = vpop.f32.mrb[0].mxu0
    %4735 = vmatprep.mubr.f32.mxu0 0.0
    %4736 = vmatmul.mubr.f32.gmra.mrb[0].mxu0 %v4656
    %v4737 = vpop.f32.mrb[0].mxu0
    %v4738 = vadd.f32 %v4647, %v4737
    %v4739 = vpop.f32.mrb[0].mxu0
    %4740 = vmatprep.mubr.f32.mxu0 0.0
    %4741 = vmatmul.mubr.f32.gmra.mrb[0].mxu0 %v4659
    %v4742 = vpop.f32.mrb[0].mxu0
    %v4743 = vadd.f32 %v4647, %v4742
    %v4744 = vpop.f32.mrb[0].mxu0
    %4745 = vdwg.mxu0
    %v4746 = vadd.f32 %v4522, %v4728
    %v4747 = vadd.f32 %v4523, %v4733
    %v4748 = vadd.f32 %v4524, %v4738
    %v4749 = vadd.f32 %v4525, %v4743
    %v4750 = vld [vmem:[#allocation8] sm:$0x1]
    %v4751 = vld [vmem:[%s17] sm:$0x1]
    %v4752 = vsel %vm635, %v4746, 0.0
    %4753 = vadd.xlane.f32.xlu0 %v4752
    %v4754 = vpop.xlane.xlu0 %4753
    %v4755 = vsel %vm635, %v4747, 0.0
    %4756 = vadd.xlane.f32.xlu0 %v4755
    %v4757 = vpop.xlane.xlu0 %4756
    %v4758 = vsel %vm635, %v4748, 0.0
    %4759 = vadd.xlane.f32.xlu0 %v4758
    %v4760 = vpop.xlane.xlu0 %4759
    %v4761 = vsel %vm635, %v4749, 0.0
    %4762 = vadd.xlane.f32.xlu0 %v4761
    %v4763 = vpop.xlane.xlu0 %4762
    %v4764 = vmul.f32 %v4754, %v4465
    %v4765 = vmul.f32 %v4757, %v4465
    %v4766 = vmul.f32 %v4760, %v4465
    %v4767 = vmul.f32 %v4763, %v4465
    %v4768 = vsub.f32 %v4746, %v4764
    %v4769 = vsub.f32 %v4747, %v4765
    %v4770 = vsub.f32 %v4748, %v4766
    %v4771 = vsub.f32 %v4749, %v4767
    %v4772 = vmul.f32 %v4768, %v4768
    %v4773 = vmul.f32 %v4769, %v4769
    %v4774 = vmul.f32 %v4770, %v4770
    %v4775 = vmul.f32 %v4771, %v4771
    %v4776 = vsel %vm635, %v4772, 0.0
    %4777 = vadd.xlane.f32.xlu0 %v4776
    %v4778 = vpop.xlane.xlu0 %4777
    %v4779 = vsel %vm635, %v4773, 0.0
    %4780 = vadd.xlane.f32.xlu0 %v4779
    %v4781 = vpop.xlane.xlu0 %4780
    %v4782 = vsel %vm635, %v4774, 0.0
    %4783 = vadd.xlane.f32.xlu0 %v4782
    %v4784 = vpop.xlane.xlu0 %4783
    %v4785 = vsel %vm635, %v4775, 0.0
    %4786 = vadd.xlane.f32.xlu0 %v4785
    %v4787 = vpop.xlane.xlu0 %4786
    %v4788 = vmul.f32 %v4778, %v4465
    %v4789 = vmul.f32 %v4781, %v4465
    %v4790 = vmul.f32 %v4784, %v4465
    %v4791 = vmul.f32 %v4787, %v4465
    %v4792 = vadd.f32 %v4788, 1e-05
    %v4793 = vadd.f32 %v4789, 1e-05
    %v4794 = vadd.f32 %v4790, 1e-05
    %v4795 = vadd.f32 %v4791, 1e-05
    %v4796 = vrsqrt.pop %v4792
    %v4797 = vrsqrt.pop %v4793
    %v4798 = vrsqrt.pop %v4794
    %v4799 = vrsqrt.pop %v4795
    %v4800 = vmul.f32 %v4768, %v4796
    %v4801 = vmul.f32 %v4769, %v4797
    %v4802 = vmul.f32 %v4770, %v4798
    %v4803 = vmul.f32 %v4771, %v4799
    %v4805 = vlaneseq
    %v4806 = vshrl.u32 %v4805, 7
    %v4807 = vsub.s32 0, %v4806
    %v4808 = vrot.slane %v4750, %v4807
    %v4810 = vmul.f32 %v4800, %v4808
    %v4811 = vmul.f32 %v4801, %v4808
    %v4812 = vmul.f32 %v4802, %v4808
    %v4813 = vmul.f32 %v4803, %v4808
    %v4815 = vlaneseq
    %v4816 = vshrl.u32 %v4815, 7
    %v4817 = vsub.s32 0, %v4816
    %v4818 = vrot.slane %v4751, %v4817
    %v4820 = vadd.f32 %v4810, %v4818
    %v4821 = vadd.f32 %v4811, %v4818
    %v4822 = vadd.f32 %v4812, %v4818
    %v4823 = vadd.f32 %v4813, %v4818
    %s4824 = scalar_lea.vmem %s6, 32
    %v4825 = vld [vmem:[%s4824] sm:$0xff]
    %v4826 = vld [vmem:[%s4824 + $0x8] sm:$0xff]
    %v4827 = vld [vmem:[%s4824 + $0x10] sm:$0xff]
    %v4828 = vld [vmem:[%s4824 + $0x18] sm:$0xff]
    %s4829 = scalar_lea.vmem %s7, 1
    %v4830 = vld [vmem:[%s4829] sm:$0x1]
    %v4832 = vlaneseq
    %v4833 = vshrl.u32 %v4832, 7
    %v4834 = vsub.s32 0, %v4833
    %v4835 = vrot.slane %v4830, %v4834
    %v4838 = vsel %vm635, %v4820, 0
    %v4841 = vsel %vm635, %v4821, 0
    %v4844 = vsel %vm635, %v4822, 0
    %v4847 = vsel %vm635, %v4823, 0
    %4849 = vmatprep.subr.mxu0 0.0
    %4850 = vmatpush1.msra.mxu0 %v4825
    %4851 = vmatprep.subr.mxu0 0.0
    %4852 = vmatpush1.msra.mxu0 %v4826
    %4853 = vmatprep.subr.mxu0 0.0
    %4854 = vmatpush1.msra.mxu0 %v4827
    %4855 = vmatprep.subr.mxu0 0.0
    %4856 = vmatpush1.msra.mxu0 %v4828
    %4857 = vmatprep.subr.mxu0 0.0
    %4858 = vmatpush1.msra.mxu0 0.0
    %4859 = vmatprep.subr.mxu0 0.0
    %4860 = vmatpush1.msra.mxu0 0.0
    %4861 = vmatprep.subr.mxu0 0.0
    %4862 = vmatpush1.msra.mxu0 0.0
    %4863 = vmatprep.subr.mxu0 0.0
    %4864 = vmatpush1.msra.mxu0 0.0
    %4865 = vmatprep.subr.mxu0 0.0
    %4866 = vmatpush1.msra.mxu0 0.0
    %4867 = vmatprep.subr.mxu0 0.0
    %4868 = vmatpush1.msra.mxu0 0.0
    %4869 = vmatprep.subr.mxu0 0.0
    %4870 = vmatpush1.msra.mxu0 0.0
    %4871 = vmatprep.subr.mxu0 0.0
    %4872 = vmatpush1.msra.mxu0 0.0
    %4873 = vmatprep.subr.mxu0 0.0
    %4874 = vmatpush1.msra.mxu0 0.0
    %4875 = vmatprep.subr.mxu0 0.0
    %4876 = vmatpush1.msra.mxu0 0.0
    %4877 = vmatprep.subr.mxu0 0.0
    %4878 = vmatpush1.msra.mxu0 0.0
    %4879 = vmatprep.subr.mxu0 0.0
    %4880 = vmatpush1.msra.mxu0 0.0
    %4881 = vmatprep.subr.mxu0 0.0
    %4882 = vmatpush1.msra.mxu0 0.0
    %4883 = vmatprep.subr.mxu0 0.0
    %4884 = vmatpush1.msra.mxu0 0.0
    %4885 = vmatprep.subr.mxu0 0.0
    %4886 = vmatpush1.msra.mxu0 0.0
    %4887 = vmatprep.subr.mxu0 0.0
    %4888 = vmatpush1.msra.mxu0 0.0
    %4889 = vmatprep.subr.mxu0 0.0
    %4890 = vmatpush1.msra.mxu0 0.0
    %4891 = vmatprep.subr.mxu0 0.0
    %4892 = vmatpush1.msra.mxu0 0.0
    %4893 = vmatprep.subr.mxu0 0.0
    %4894 = vmatpush1.msra.mxu0 0.0
    %4895 = vmatprep.subr.mxu0 0.0
    %4896 = vmatpush1.msra.mxu0 0.0
    %4897 = vmatprep.subr.mxu0 0.0
    %4898 = vmatpush1.msra.mxu0 0.0
    %4899 = vmatprep.subr.mxu0 0.0
    %4900 = vmatpush1.msra.mxu0 0.0
    %4901 = vmatprep.subr.mxu0 0.0
    %4902 = vmatpush1.msra.mxu0 0.0
    %4903 = vmatprep.subr.mxu0 0.0
    %4904 = vmatpush1.msra.mxu0 0.0
    %4905 = vmatprep.subr.mxu0 0.0
    %4906 = vmatpush1.msra.mxu0 0.0
    %4907 = vmatprep.subr.mxu0 0.0
    %4908 = vmatpush1.msra.mxu0 0.0
    %4909 = vmatprep.subr.mxu0 0.0
    %4910 = vmatpush1.msra.mxu0 0.0
    %4911 = vmatprep.subr.mxu0 0.0
    %4912 = vmatpush1.msra.mxu0 0.0
    %4913 = vmatprep.mubr.f32.mxu0 0.0
    %4914 = vmatmul.mubr.f32.gmra.mrb[0].mxu0 %v4838
    %v4915 = vpop.f32.mrb[0].mxu0
    %v4916 = vadd.f32 %v4835, %v4915
    %v4917 = vpop.f32.mrb[0].mxu0
    %4918 = vmatprep.mubr.f32.mxu0 0.0
    %4919 = vmatmul.mubr.f32.gmra.mrb[0].mxu0 %v4841
    %v4920 = vpop.f32.mrb[0].mxu0
    %v4921 = vadd.f32 %v4835, %v4920
    %v4922 = vpop.f32.mrb[0].mxu0
    %4923 = vmatprep.mubr.f32.mxu0 0.0
    %4924 = vmatmul.mubr.f32.gmra.mrb[0].mxu0 %v4844
    %v4925 = vpop.f32.mrb[0].mxu0
    %v4926 = vadd.f32 %v4835, %v4925
    %v4927 = vpop.f32.mrb[0].mxu0
    %4928 = vmatprep.mubr.f32.mxu0 0.0
    %4929 = vmatmul.mubr.f32.gmra.mrb[0].mxu0 %v4847
    %v4930 = vpop.f32.mrb[0].mxu0
    %v4931 = vadd.f32 %v4835, %v4930
    %v4932 = vpop.f32.mrb[0].mxu0
    %4933 = vdwg.mxu0
    %s4934 = scalar_lea.vmem %s8, 32
    %v4935 = vld [vmem:[%s4934] sm:$0xff]
    %v4936 = vld [vmem:[%s4934 + $0x8] sm:$0xff]
    %v4937 = vld [vmem:[%s4934 + $0x10] sm:$0xff]
    %v4938 = vld [vmem:[%s4934 + $0x18] sm:$0xff]
    %4943 = vrot.lane.b32.xlu0 %v4916, 96
    %v4944 = vpop.permute.xlu0 %4943
    %4945 = vrot.lane.b32.xlu0 %v4921, 96
    %v4946 = vpop.permute.xlu0 %4945
    %4947 = vrot.lane.b32.xlu0 %v4926, 96
    %v4948 = vpop.permute.xlu0 %4947
    %4949 = vrot.lane.b32.xlu0 %v4931, 96
    %v4950 = vpop.permute.xlu0 %4949
    %v4951 = vsel %vm2943, %v4916, 0
    %v4953 = vsel %vm2943, %v4921, 0
    %v4955 = vsel %vm2943, %v4926, 0
    %v4957 = vsel %vm2943, %v4931, 0
    %v4959 = vsel %vm2943, %v4944, 0
    %v4961 = vsel %vm2943, %v4946, 0
    %v4963 = vsel %vm2943, %v4948, 0
    %v4965 = vsel %vm2943, %v4950, 0
    %4967 = vmatprep.subr.mxu0 0.0
    %4968 = vmatpush1.xpose.msra.mxu0 %v4959
    %4969 = vmatprep.subr.mxu0 0.0
    %4970 = vmatpush1.xpose.msra.mxu0 %v4961
    %4971 = vmatprep.subr.mxu0 0.0
    %4972 = vmatpush1.xpose.msra.mxu0 %v4963
    %4973 = vmatprep.subr.mxu0 0.0
    %4974 = vmatpush1.xpose.msra.mxu0 %v4965
    %4975 = vmatprep.subr.mxu0 0.0
    %4976 = vmatpush1.xpose.msra.mxu0 0.0
    %4977 = vmatprep.subr.mxu0 0.0
    %4978 = vmatpush1.xpose.msra.mxu0 0.0
    %4979 = vmatprep.subr.mxu0 0.0
    %4980 = vmatpush1.xpose.msra.mxu0 0.0
    %4981 = vmatprep.subr.mxu0 0.0
    %4982 = vmatpush1.xpose.msra.mxu0 0.0
    %4983 = vmatprep.subr.mxu0 0.0
    %4984 = vmatpush1.xpose.msra.mxu0 0.0
    %4985 = vmatprep.subr.mxu0 0.0
    %4986 = vmatpush1.xpose.msra.mxu0 0.0
    %4987 = vmatprep.subr.mxu0 0.0
    %4988 = vmatpush1.xpose.msra.mxu0 0.0
    %4989 = vmatprep.subr.mxu0 0.0
    %4990 = vmatpush1.xpose.msra.mxu0 0.0
    %4991 = vmatprep.subr.mxu0 0.0
    %4992 = vmatpush1.xpose.msra.mxu0 0.0
    %4993 = vmatprep.subr.mxu0 0.0
    %4994 = vmatpush1.xpose.msra.mxu0 0.0
    %4995 = vmatprep.subr.mxu0 0.0
    %4996 = vmatpush1.xpose.msra.mxu0 0.0
    %4997 = vmatprep.subr.mxu0 0.0
    %4998 = vmatpush1.xpose.msra.mxu0 0.0
    %4999 = vmatprep.subr.mxu0 0.0
    %5000 = vmatpush1.xpose.msra.mxu0 0.0
    %5001 = vmatprep.subr.mxu0 0.0
    %5002 = vmatpush1.xpose.msra.mxu0 0.0
    %5003 = vmatprep.subr.mxu0 0.0
    %5004 = vmatpush1.xpose.msra.mxu0 0.0
    %5005 = vmatprep.subr.mxu0 0.0
    %5006 = vmatpush1.xpose.msra.mxu0 0.0
    %5007 = vmatprep.subr.mxu0 0.0
    %5008 = vmatpush1.xpose.msra.mxu0 0.0
    %5009 = vmatprep.subr.mxu0 0.0
    %5010 = vmatpush1.xpose.msra.mxu0 0.0
    %5011 = vmatprep.subr.mxu0 0.0
    %5012 = vmatpush1.xpose.msra.mxu0 0.0
    %5013 = vmatprep.subr.mxu0 0.0
    %5014 = vmatpush1.xpose.msra.mxu0 0.0
    %5015 = vmatprep.subr.mxu0 0.0
    %5016 = vmatpush1.xpose.msra.mxu0 0.0
    %5017 = vmatprep.subr.mxu0 0.0
    %5018 = vmatpush1.xpose.msra.mxu0 0.0
    %5019 = vmatprep.subr.mxu0 0.0
    %5020 = vmatpush1.xpose.msra.mxu0 0.0
    %5021 = vmatprep.subr.mxu0 0.0
    %5022 = vmatpush1.xpose.msra.mxu0 0.0
    %5023 = vmatprep.subr.mxu0 0.0
    %5024 = vmatpush1.xpose.msra.mxu0 0.0
    %5025 = vmatprep.subr.mxu0 0.0
    %5026 = vmatpush1.xpose.msra.mxu0 0.0
    %5027 = vmatprep.subr.mxu0 0.0
    %5028 = vmatpush1.xpose.msra.mxu0 0.0
    %5029 = vmatprep.subr.mxu0 0.0
    %5030 = vmatpush1.xpose.msra.mxu0 0.0
    %5031 = vmatprep.mubr.f32.mxu0 0.0
    %5032 = vmatmul.mubr.f32.gmra.mrb[0].mxu0 %v4951
    %v5033 = vpop.f32.mrb[0].mxu0
    %v5034 = vadd.f32 0.0, %v5033
    %v5035 = vpop.f32.mrb[0].mxu0
    %5036 = vmatprep.mubr.f32.mxu0 0.0
    %5037 = vmatmul.mubr.f32.gmra.mrb[0].mxu0 %v4953
    %v5038 = vpop.f32.mrb[0].mxu0
    %v5039 = vadd.f32 0.0, %v5038
    %v5040 = vpop.f32.mrb[0].mxu0
    %5041 = vmatprep.mubr.f32.mxu0 0.0
    %5042 = vmatmul.mubr.f32.gmra.mrb[0].mxu0 %v4955
    %v5043 = vpop.f32.mrb[0].mxu0
    %v5044 = vadd.f32 0.0, %v5043
    %v5045 = vpop.f32.mrb[0].mxu0
    %5046 = vmatprep.mubr.f32.mxu0 0.0
    %5047 = vmatmul.mubr.f32.gmra.mrb[0].mxu0 %v4957
    %v5048 = vpop.f32.mrb[0].mxu0
    %v5049 = vadd.f32 0.0, %v5048
    %v5050 = vpop.f32.mrb[0].mxu0
    %5051 = vdwg.mxu0
    %v5052 = vmul.f32 %v5034, 0.35355338
    %v5053 = vmul.f32 %v5039, 0.35355338
    %v5054 = vmul.f32 %v5044, 0.35355338
    %v5055 = vmul.f32 %v5049, 0.35355338
    %v5056 = vadd.f32 %v5052, %v2815
    %v5057 = vadd.f32 %v5053, %v2816
    %v5058 = vadd.f32 %v5054, %v2817
    %v5059 = vadd.f32 %v5055, %v2818
    %v5060 = vsel %vm635, %v5056, -inf
    %5061 = vmax.xlane.f32.xlu0 %v5060
    %v5062 = vpop.xlane.xlu0 %5061
    %v5063 = vsel %vm635, %v5057, -inf
    %5064 = vmax.xlane.f32.xlu0 %v5063
    %v5065 = vpop.xlane.xlu0 %5064
    %v5066 = vsel %vm635, %v5058, -inf
    %5067 = vmax.xlane.f32.xlu0 %v5066
    %v5068 = vpop.xlane.xlu0 %5067
    %v5069 = vsel %vm635, %v5059, -inf
    %5070 = vmax.xlane.f32.xlu0 %v5069
    %v5071 = vpop.xlane.xlu0 %5070
    %v5072 = vsub.f32 %v5056, %v5062
    %v5073 = vsub.f32 %v5057, %v5065
    %v5074 = vsub.f32 %v5058, %v5068
    %v5075 = vsub.f32 %v5059, %v5071
    %v5076 = vmul.f32 %v5072, 1.442695
    %v5077 = vpow.pop %v5076
    %v5078 = vmul.f32 %v5073, 1.442695
    %v5079 = vpow.pop %v5078
    %v5080 = vmul.f32 %v5074, 1.442695
    %v5081 = vpow.pop %v5080
    %v5082 = vmul.f32 %v5075, 1.442695
    %v5083 = vpow.pop %v5082
    %v5084 = vsel %vm635, %v5077, 0.0
    %5085 = vadd.xlane.f32.xlu0 %v5084
    %v5086 = vpop.xlane.xlu0 %5085
    %v5087 = vsel %vm635, %v5079, 0.0
    %5088 = vadd.xlane.f32.xlu0 %v5087
    %v5089 = vpop.xlane.xlu0 %5088
    %v5090 = vsel %vm635, %v5081, 0.0
    %5091 = vadd.xlane.f32.xlu0 %v5090
    %v5092 = vpop.xlane.xlu0 %5091
    %v5093 = vsel %vm635, %v5083, 0.0
    %5094 = vadd.xlane.f32.xlu0 %v5093
    %v5095 = vpop.xlane.xlu0 %5094
    %v5096 = vrcp.pop %v5086
    %v5097 = vmul.f32 %v5077, %v5096
    %v5098 = vrcp.pop %v5089
    %v5099 = vmul.f32 %v5079, %v5098
    %v5100 = vrcp.pop %v5092
    %v5101 = vmul.f32 %v5081, %v5100
    %v5102 = vrcp.pop %v5095
    %v5103 = vmul.f32 %v5083, %v5102
    %5104 = vrot.lane.b32.xlu0 %v4916, 64
    %v5105 = vpop.permute.xlu0 %5104
    %5106 = vrot.lane.b32.xlu0 %v4921, 64
    %v5107 = vpop.permute.xlu0 %5106
    %5108 = vrot.lane.b32.xlu0 %v4926, 64
    %v5109 = vpop.permute.xlu0 %5108
    %5110 = vrot.lane.b32.xlu0 %v4931, 64
    %v5111 = vpop.permute.xlu0 %5110
    %v5117 = vsel %vm635, %v5097, 0
    %v5120 = vsel %vm635, %v5099, 0
    %v5123 = vsel %vm635, %v5101, 0
    %v5126 = vsel %vm635, %v5103, 0
    %5128 = vmatprep.subr.mxu0 0.0
    %5129 = vmatpush1.msra.mxu0 %v5105
    %5130 = vmatprep.subr.mxu0 0.0
    %5131 = vmatpush1.msra.mxu0 %v5107
    %5132 = vmatprep.subr.mxu0 0.0
    %5133 = vmatpush1.msra.mxu0 %v5109
    %5134 = vmatprep.subr.mxu0 0.0
    %5135 = vmatpush1.msra.mxu0 %v5111
    %5136 = vmatprep.subr.mxu0 0.0
    %5137 = vmatpush1.msra.mxu0 0.0
    %5138 = vmatprep.subr.mxu0 0.0
    %5139 = vmatpush1.msra.mxu0 0.0
    %5140 = vmatprep.subr.mxu0 0.0
    %5141 = vmatpush1.msra.mxu0 0.0
    %5142 = vmatprep.subr.mxu0 0.0
    %5143 = vmatpush1.msra.mxu0 0.0
    %5144 = vmatprep.subr.mxu0 0.0
    %5145 = vmatpush1.msra.mxu0 0.0
    %5146 = vmatprep.subr.mxu0 0.0
    %5147 = vmatpush1.msra.mxu0 0.0
    %5148 = vmatprep.subr.mxu0 0.0
    %5149 = vmatpush1.msra.mxu0 0.0
    %5150 = vmatprep.subr.mxu0 0.0
    %5151 = vmatpush1.msra.mxu0 0.0
    %5152 = vmatprep.subr.mxu0 0.0
    %5153 = vmatpush1.msra.mxu0 0.0
    %5154 = vmatprep.subr.mxu0 0.0
    %5155 = vmatpush1.msra.mxu0 0.0
    %5156 = vmatprep.subr.mxu0 0.0
    %5157 = vmatpush1.msra.mxu0 0.0
    %5158 = vmatprep.subr.mxu0 0.0
    %5159 = vmatpush1.msra.mxu0 0.0
    %5160 = vmatprep.subr.mxu0 0.0
    %5161 = vmatpush1.msra.mxu0 0.0
    %5162 = vmatprep.subr.mxu0 0.0
    %5163 = vmatpush1.msra.mxu0 0.0
    %5164 = vmatprep.subr.mxu0 0.0
    %5165 = vmatpush1.msra.mxu0 0.0
    %5166 = vmatprep.subr.mxu0 0.0
    %5167 = vmatpush1.msra.mxu0 0.0
    %5168 = vmatprep.subr.mxu0 0.0
    %5169 = vmatpush1.msra.mxu0 0.0
    %5170 = vmatprep.subr.mxu0 0.0
    %5171 = vmatpush1.msra.mxu0 0.0
    %5172 = vmatprep.subr.mxu0 0.0
    %5173 = vmatpush1.msra.mxu0 0.0
    %5174 = vmatprep.subr.mxu0 0.0
    %5175 = vmatpush1.msra.mxu0 0.0
    %5176 = vmatprep.subr.mxu0 0.0
    %5177 = vmatpush1.msra.mxu0 0.0
    %5178 = vmatprep.subr.mxu0 0.0
    %5179 = vmatpush1.msra.mxu0 0.0
    %5180 = vmatprep.subr.mxu0 0.0
    %5181 = vmatpush1.msra.mxu0 0.0
    %5182 = vmatprep.subr.mxu0 0.0
    %5183 = vmatpush1.msra.mxu0 0.0
    %5184 = vmatprep.subr.mxu0 0.0
    %5185 = vmatpush1.msra.mxu0 0.0
    %5186 = vmatprep.subr.mxu0 0.0
    %5187 = vmatpush1.msra.mxu0 0.0
    %5188 = vmatprep.subr.mxu0 0.0
    %5189 = vmatpush1.msra.mxu0 0.0
    %5190 = vmatprep.subr.mxu0 0.0
    %5191 = vmatpush1.msra.mxu0 0.0
    %5192 = vmatprep.mubr.f32.mxu0 0.0
    %5193 = vmatmul.mubr.f32.gmra.mrb[0].mxu0 %v5117
    %v5194 = vpop.f32.mrb[0].mxu0
    %v5195 = vadd.f32 0.0, %v5194
    %v5196 = vpop.f32.mrb[0].mxu0
    %5197 = vmatprep.mubr.f32.mxu0 0.0
    %5198 = vmatmul.mubr.f32.gmra.mrb[0].mxu0 %v5120
    %v5199 = vpop.f32.mrb[0].mxu0
    %v5200 = vadd.f32 0.0, %v5199
    %v5201 = vpop.f32.mrb[0].mxu0
    %5202 = vmatprep.mubr.f32.mxu0 0.0
    %5203 = vmatmul.mubr.f32.gmra.mrb[0].mxu0 %v5123
    %v5204 = vpop.f32.mrb[0].mxu0
    %v5205 = vadd.f32 0.0, %v5204
    %v5206 = vpop.f32.mrb[0].mxu0
    %5207 = vmatprep.mubr.f32.mxu0 0.0
    %5208 = vmatmul.mubr.f32.gmra.mrb[0].mxu0 %v5126
    %v5209 = vpop.f32.mrb[0].mxu0
    %v5210 = vadd.f32 0.0, %v5209
    %v5211 = vpop.f32.mrb[0].mxu0
    %5212 = vdwg.mxu0
    %5213 = vrot.lane.b32.xlu0 %v4916, 120
    %v5214 = vpop.permute.xlu0 %5213
    %5215 = vrot.lane.b32.xlu0 %v4921, 120
    %v5216 = vpop.permute.xlu0 %5215
    %5217 = vrot.lane.b32.xlu0 %v4926, 120
    %v5218 = vpop.permute.xlu0 %5217
    %5219 = vrot.lane.b32.xlu0 %v4931, 120
    %v5220 = vpop.permute.xlu0 %5219
    %5221 = vrot.lane.b32.xlu0 %v4916, 88
    %v5222 = vpop.permute.xlu0 %5221
    %5223 = vrot.lane.b32.xlu0 %v4921, 88
    %v5224 = vpop.permute.xlu0 %5223
    %5225 = vrot.lane.b32.xlu0 %v4926, 88
    %v5226 = vpop.permute.xlu0 %5225
    %5227 = vrot.lane.b32.xlu0 %v4931, 88
    %v5228 = vpop.permute.xlu0 %5227
    %v5229 = vsel %vm2943, %v5214, 0
    %v5231 = vsel %vm2943, %v5216, 0
    %v5233 = vsel %vm2943, %v5218, 0
    %v5235 = vsel %vm2943, %v5220, 0
    %v5237 = vsel %vm2943, %v5222, 0
    %v5239 = vsel %vm2943, %v5224, 0
    %v5241 = vsel %vm2943, %v5226, 0
    %v5243 = vsel %vm2943, %v5228, 0
    %5245 = vmatprep.subr.mxu0 0.0
    %5246 = vmatpush1.xpose.msra.mxu0 %v5237
    %5247 = vmatprep.subr.mxu0 0.0
    %5248 = vmatpush1.xpose.msra.mxu0 %v5239
    %5249 = vmatprep.subr.mxu0 0.0
    %5250 = vmatpush1.xpose.msra.mxu0 %v5241
    %5251 = vmatprep.subr.mxu0 0.0
    %5252 = vmatpush1.xpose.msra.mxu0 %v5243
    %5253 = vmatprep.subr.mxu0 0.0
    %5254 = vmatpush1.xpose.msra.mxu0 0.0
    %5255 = vmatprep.subr.mxu0 0.0
    %5256 = vmatpush1.xpose.msra.mxu0 0.0
    %5257 = vmatprep.subr.mxu0 0.0
    %5258 = vmatpush1.xpose.msra.mxu0 0.0
    %5259 = vmatprep.subr.mxu0 0.0
    %5260 = vmatpush1.xpose.msra.mxu0 0.0
    %5261 = vmatprep.subr.mxu0 0.0
    %5262 = vmatpush1.xpose.msra.mxu0 0.0
    %5263 = vmatprep.subr.mxu0 0.0
    %5264 = vmatpush1.xpose.msra.mxu0 0.0
    %5265 = vmatprep.subr.mxu0 0.0
    %5266 = vmatpush1.xpose.msra.mxu0 0.0
    %5267 = vmatprep.subr.mxu0 0.0
    %5268 = vmatpush1.xpose.msra.mxu0 0.0
    %5269 = vmatprep.subr.mxu0 0.0
    %5270 = vmatpush1.xpose.msra.mxu0 0.0
    %5271 = vmatprep.subr.mxu0 0.0
    %5272 = vmatpush1.xpose.msra.mxu0 0.0
    %5273 = vmatprep.subr.mxu0 0.0
    %5274 = vmatpush1.xpose.msra.mxu0 0.0
    %5275 = vmatprep.subr.mxu0 0.0
    %5276 = vmatpush1.xpose.msra.mxu0 0.0
    %5277 = vmatprep.subr.mxu0 0.0
    %5278 = vmatpush1.xpose.msra.mxu0 0.0
    %5279 = vmatprep.subr.mxu0 0.0
    %5280 = vmatpush1.xpose.msra.mxu0 0.0
    %5281 = vmatprep.subr.mxu0 0.0
    %5282 = vmatpush1.xpose.msra.mxu0 0.0
    %5283 = vmatprep.subr.mxu0 0.0
    %5284 = vmatpush1.xpose.msra.mxu0 0.0
    %5285 = vmatprep.subr.mxu0 0.0
    %5286 = vmatpush1.xpose.msra.mxu0 0.0
    %5287 = vmatprep.subr.mxu0 0.0
    %5288 = vmatpush1.xpose.msra.mxu0 0.0
    %5289 = vmatprep.subr.mxu0 0.0
    %5290 = vmatpush1.xpose.msra.mxu0 0.0
    %5291 = vmatprep.subr.mxu0 0.0
    %5292 = vmatpush1.xpose.msra.mxu0 0.0
    %5293 = vmatprep.subr.mxu0 0.0
    %5294 = vmatpush1.xpose.msra.mxu0 0.0
    %5295 = vmatprep.subr.mxu0 0.0
    %5296 = vmatpush1.xpose.msra.mxu0 0.0
    %5297 = vmatprep.subr.mxu0 0.0
    %5298 = vmatpush1.xpose.msra.mxu0 0.0
    %5299 = vmatprep.subr.mxu0 0.0
    %5300 = vmatpush1.xpose.msra.mxu0 0.0
    %5301 = vmatprep.subr.mxu0 0.0
    %5302 = vmatpush1.xpose.msra.mxu0 0.0
    %5303 = vmatprep.subr.mxu0 0.0
    %5304 = vmatpush1.xpose.msra.mxu0 0.0
    %5305 = vmatprep.subr.mxu0 0.0
    %5306 = vmatpush1.xpose.msra.mxu0 0.0
    %5307 = vmatprep.subr.mxu0 0.0
    %5308 = vmatpush1.xpose.msra.mxu0 0.0
    %5309 = vmatprep.mubr.f32.mxu0 0.0
    %5310 = vmatmul.mubr.f32.gmra.mrb[0].mxu0 %v5229
    %v5311 = vpop.f32.mrb[0].mxu0
    %v5312 = vadd.f32 0.0, %v5311
    %v5313 = vpop.f32.mrb[0].mxu0
    %5314 = vmatprep.mubr.f32.mxu0 0.0
    %5315 = vmatmul.mubr.f32.gmra.mrb[0].mxu0 %v5231
    %v5316 = vpop.f32.mrb[0].mxu0
    %v5317 = vadd.f32 0.0, %v5316
    %v5318 = vpop.f32.mrb[0].mxu0
    %5319 = vmatprep.mubr.f32.mxu0 0.0
    %5320 = vmatmul.mubr.f32.gmra.mrb[0].mxu0 %v5233
    %v5321 = vpop.f32.mrb[0].mxu0
    %v5322 = vadd.f32 0.0, %v5321
    %v5323 = vpop.f32.mrb[0].mxu0
    %5324 = vmatprep.mubr.f32.mxu0 0.0
    %5325 = vmatmul.mubr.f32.gmra.mrb[0].mxu0 %v5235
    %v5326 = vpop.f32.mrb[0].mxu0
    %v5327 = vadd.f32 0.0, %v5326
    %v5328 = vpop.f32.mrb[0].mxu0
    %5329 = vdwg.mxu0
    %v5330 = vmul.f32 %v5312, 0.35355338
    %v5331 = vmul.f32 %v5317, 0.35355338
    %v5332 = vmul.f32 %v5322, 0.35355338
    %v5333 = vmul.f32 %v5327, 0.35355338
    %v5334 = vadd.f32 %v5330, %v2815
    %v5335 = vadd.f32 %v5331, %v2816
    %v5336 = vadd.f32 %v5332, %v2817
    %v5337 = vadd.f32 %v5333, %v2818
    %v5338 = vsel %vm635, %v5334, -inf
    %5339 = vmax.xlane.f32.xlu0 %v5338
    %v5340 = vpop.xlane.xlu0 %5339
    %v5341 = vsel %vm635, %v5335, -inf
    %5342 = vmax.xlane.f32.xlu0 %v5341
    %v5343 = vpop.xlane.xlu0 %5342
    %v5344 = vsel %vm635, %v5336, -inf
    %5345 = vmax.xlane.f32.xlu0 %v5344
    %v5346 = vpop.xlane.xlu0 %5345
    %v5347 = vsel %vm635, %v5337, -inf
    %5348 = vmax.xlane.f32.xlu0 %v5347
    %v5349 = vpop.xlane.xlu0 %5348
    %v5350 = vsub.f32 %v5334, %v5340
    %v5351 = vsub.f32 %v5335, %v5343
    %v5352 = vsub.f32 %v5336, %v5346
    %v5353 = vsub.f32 %v5337, %v5349
    %v5354 = vmul.f32 %v5350, 1.442695
    %v5355 = vpow.pop %v5354
    %v5356 = vmul.f32 %v5351, 1.442695
    %v5357 = vpow.pop %v5356
    %v5358 = vmul.f32 %v5352, 1.442695
    %v5359 = vpow.pop %v5358
    %v5360 = vmul.f32 %v5353, 1.442695
    %v5361 = vpow.pop %v5360
    %v5362 = vsel %vm635, %v5355, 0.0
    %5363 = vadd.xlane.f32.xlu0 %v5362
    %v5364 = vpop.xlane.xlu0 %5363
    %v5365 = vsel %vm635, %v5357, 0.0
    %5366 = vadd.xlane.f32.xlu0 %v5365
    %v5367 = vpop.xlane.xlu0 %5366
    %v5368 = vsel %vm635, %v5359, 0.0
    %5369 = vadd.xlane.f32.xlu0 %v5368
    %v5370 = vpop.xlane.xlu0 %5369
    %v5371 = vsel %vm635, %v5361, 0.0
    %5372 = vadd.xlane.f32.xlu0 %v5371
    %v5373 = vpop.xlane.xlu0 %5372
    %v5374 = vrcp.pop %v5364
    %v5375 = vmul.f32 %v5355, %v5374
    %v5376 = vrcp.pop %v5367
    %v5377 = vmul.f32 %v5357, %v5376
    %v5378 = vrcp.pop %v5370
    %v5379 = vmul.f32 %v5359, %v5378
    %v5380 = vrcp.pop %v5373
    %v5381 = vmul.f32 %v5361, %v5380
    %5382 = vrot.lane.b32.xlu0 %v4916, 56
    %v5383 = vpop.permute.xlu0 %5382
    %5384 = vrot.lane.b32.xlu0 %v4921, 56
    %v5385 = vpop.permute.xlu0 %5384
    %5386 = vrot.lane.b32.xlu0 %v4926, 56
    %v5387 = vpop.permute.xlu0 %5386
    %5388 = vrot.lane.b32.xlu0 %v4931, 56
    %v5389 = vpop.permute.xlu0 %5388
    %v5395 = vsel %vm635, %v5375, 0
    %v5398 = vsel %vm635, %v5377, 0
    %v5401 = vsel %vm635, %v5379, 0
    %v5404 = vsel %vm635, %v5381, 0
    %5406 = vmatprep.subr.mxu0 0.0
    %5407 = vmatpush1.msra.mxu0 %v5383
    %5408 = vmatprep.subr.mxu0 0.0
    %5409 = vmatpush1.msra.mxu0 %v5385
    %5410 = vmatprep.subr.mxu0 0.0
    %5411 = vmatpush1.msra.mxu0 %v5387
    %5412 = vmatprep.subr.mxu0 0.0
    %5413 = vmatpush1.msra.mxu0 %v5389
    %5414 = vmatprep.subr.mxu0 0.0
    %5415 = vmatpush1.msra.mxu0 0.0
    %5416 = vmatprep.subr.mxu0 0.0
    %5417 = vmatpush1.msra.mxu0 0.0
    %5418 = vmatprep.subr.mxu0 0.0
    %5419 = vmatpush1.msra.mxu0 0.0
    %5420 = vmatprep.subr.mxu0 0.0
    %5421 = vmatpush1.msra.mxu0 0.0
    %5422 = vmatprep.subr.mxu0 0.0
    %5423 = vmatpush1.msra.mxu0 0.0
    %5424 = vmatprep.subr.mxu0 0.0
    %5425 = vmatpush1.msra.mxu0 0.0
    %5426 = vmatprep.subr.mxu0 0.0
    %5427 = vmatpush1.msra.mxu0 0.0
    %5428 = vmatprep.subr.mxu0 0.0
    %5429 = vmatpush1.msra.mxu0 0.0
    %5430 = vmatprep.subr.mxu0 0.0
    %5431 = vmatpush1.msra.mxu0 0.0
    %5432 = vmatprep.subr.mxu0 0.0
    %5433 = vmatpush1.msra.mxu0 0.0
    %5434 = vmatprep.subr.mxu0 0.0
    %5435 = vmatpush1.msra.mxu0 0.0
    %5436 = vmatprep.subr.mxu0 0.0
    %5437 = vmatpush1.msra.mxu0 0.0
    %5438 = vmatprep.subr.mxu0 0.0
    %5439 = vmatpush1.msra.mxu0 0.0
    %5440 = vmatprep.subr.mxu0 0.0
    %5441 = vmatpush1.msra.mxu0 0.0
    %5442 = vmatprep.subr.mxu0 0.0
    %5443 = vmatpush1.msra.mxu0 0.0
    %5444 = vmatprep.subr.mxu0 0.0
    %5445 = vmatpush1.msra.mxu0 0.0
    %5446 = vmatprep.subr.mxu0 0.0
    %5447 = vmatpush1.msra.mxu0 0.0
    %5448 = vmatprep.subr.mxu0 0.0
    %5449 = vmatpush1.msra.mxu0 0.0
    %5450 = vmatprep.subr.mxu0 0.0
    %5451 = vmatpush1.msra.mxu0 0.0
    %5452 = vmatprep.subr.mxu0 0.0
    %5453 = vmatpush1.msra.mxu0 0.0
    %5454 = vmatprep.subr.mxu0 0.0
    %5455 = vmatpush1.msra.mxu0 0.0
    %5456 = vmatprep.subr.mxu0 0.0
    %5457 = vmatpush1.msra.mxu0 0.0
    %5458 = vmatprep.subr.mxu0 0.0
    %5459 = vmatpush1.msra.mxu0 0.0
    %5460 = vmatprep.subr.mxu0 0.0
    %5461 = vmatpush1.msra.mxu0 0.0
    %5462 = vmatprep.subr.mxu0 0.0
    %5463 = vmatpush1.msra.mxu0 0.0
    %5464 = vmatprep.subr.mxu0 0.0
    %5465 = vmatpush1.msra.mxu0 0.0
    %5466 = vmatprep.subr.mxu0 0.0
    %5467 = vmatpush1.msra.mxu0 0.0
    %5468 = vmatprep.subr.mxu0 0.0
    %5469 = vmatpush1.msra.mxu0 0.0
    %5470 = vmatprep.mubr.f32.mxu0 0.0
    %5471 = vmatmul.mubr.f32.gmra.mrb[0].mxu0 %v5395
    %v5472 = vpop.f32.mrb[0].mxu0
    %v5473 = vadd.f32 0.0, %v5472
    %v5474 = vpop.f32.mrb[0].mxu0
    %5475 = vmatprep.mubr.f32.mxu0 0.0
    %5476 = vmatmul.mubr.f32.gmra.mrb[0].mxu0 %v5398
    %v5477 = vpop.f32.mrb[0].mxu0
    %v5478 = vadd.f32 0.0, %v5477
    %v5479 = vpop.f32.mrb[0].mxu0
    %5480 = vmatprep.mubr.f32.mxu0 0.0
    %5481 = vmatmul.mubr.f32.gmra.mrb[0].mxu0 %v5401
    %v5482 = vpop.f32.mrb[0].mxu0
    %v5483 = vadd.f32 0.0, %v5482
    %v5484 = vpop.f32.mrb[0].mxu0
    %5485 = vmatprep.mubr.f32.mxu0 0.0
    %5486 = vmatmul.mubr.f32.gmra.mrb[0].mxu0 %v5404
    %v5487 = vpop.f32.mrb[0].mxu0
    %v5488 = vadd.f32 0.0, %v5487
    %v5489 = vpop.f32.mrb[0].mxu0
    %5490 = vdwg.mxu0
    %v5492 = vsel %vm2943, %v5473, 0
    %v5495 = vsel %vm2943, %v5478, 0
    %v5498 = vsel %vm2943, %v5483, 0
    %v5501 = vsel %vm2943, %v5488, 0
    %5503 = vmatprep.subr.mxu0 0.0
    %5504 = vmatpush1.msra.mxu0 %v4936
    %5505 = vmatprep.subr.mxu0 0.0
    %5506 = vmatpush1.msra.mxu0 0.0
    %5507 = vmatprep.subr.mxu0 0.0
    %5508 = vmatpush1.msra.mxu0 0.0
    %5509 = vmatprep.subr.mxu0 0.0
    %5510 = vmatpush1.msra.mxu0 0.0
    %5511 = vmatprep.subr.mxu0 0.0
    %5512 = vmatpush1.msra.mxu0 0.0
    %5513 = vmatprep.subr.mxu0 0.0
    %5514 = vmatpush1.msra.mxu0 0.0
    %5515 = vmatprep.subr.mxu0 0.0
    %5516 = vmatpush1.msra.mxu0 0.0
    %5517 = vmatprep.subr.mxu0 0.0
    %5518 = vmatpush1.msra.mxu0 0.0
    %5519 = vmatprep.subr.mxu0 0.0
    %5520 = vmatpush1.msra.mxu0 0.0
    %5521 = vmatprep.subr.mxu0 0.0
    %5522 = vmatpush1.msra.mxu0 0.0
    %5523 = vmatprep.subr.mxu0 0.0
    %5524 = vmatpush1.msra.mxu0 0.0
    %5525 = vmatprep.subr.mxu0 0.0
    %5526 = vmatpush1.msra.mxu0 0.0
    %5527 = vmatprep.subr.mxu0 0.0
    %5528 = vmatpush1.msra.mxu0 0.0
    %5529 = vmatprep.subr.mxu0 0.0
    %5530 = vmatpush1.msra.mxu0 0.0
    %5531 = vmatprep.subr.mxu0 0.0
    %5532 = vmatpush1.msra.mxu0 0.0
    %5533 = vmatprep.subr.mxu0 0.0
    %5534 = vmatpush1.msra.mxu0 0.0
    %5535 = vmatprep.subr.mxu0 0.0
    %5536 = vmatpush1.msra.mxu0 0.0
    %5537 = vmatprep.subr.mxu0 0.0
    %5538 = vmatpush1.msra.mxu0 0.0
    %5539 = vmatprep.subr.mxu0 0.0
    %5540 = vmatpush1.msra.mxu0 0.0
    %5541 = vmatprep.subr.mxu0 0.0
    %5542 = vmatpush1.msra.mxu0 0.0
    %5543 = vmatprep.subr.mxu0 0.0
    %5544 = vmatpush1.msra.mxu0 0.0
    %5545 = vmatprep.subr.mxu0 0.0
    %5546 = vmatpush1.msra.mxu0 0.0
    %5547 = vmatprep.subr.mxu0 0.0
    %5548 = vmatpush1.msra.mxu0 0.0
    %5549 = vmatprep.subr.mxu0 0.0
    %5550 = vmatpush1.msra.mxu0 0.0
    %5551 = vmatprep.subr.mxu0 0.0
    %5552 = vmatpush1.msra.mxu0 0.0
    %5553 = vmatprep.subr.mxu0 0.0
    %5554 = vmatpush1.msra.mxu0 0.0
    %5555 = vmatprep.subr.mxu0 0.0
    %5556 = vmatpush1.msra.mxu0 0.0
    %5557 = vmatprep.subr.mxu0 0.0
    %5558 = vmatpush1.msra.mxu0 0.0
    %5559 = vmatprep.subr.mxu0 0.0
    %5560 = vmatpush1.msra.mxu0 0.0
    %5561 = vmatprep.subr.mxu0 0.0
    %5562 = vmatpush1.msra.mxu0 0.0
    %5563 = vmatprep.subr.mxu0 0.0
    %5564 = vmatpush1.msra.mxu0 0.0
    %5565 = vmatprep.subr.mxu0 0.0
    %5566 = vmatpush1.msra.mxu0 0.0
    %5567 = vmatprep.mubr.f32.mxu0 0.0
    %5568 = vmatmul.mubr.f32.gmra.mrb[0].mxu0 %v5492
    %v5569 = vpop.f32.mrb[0].mxu0
    %v5570 = vadd.f32 0.0, %v5569
    %v5571 = vpop.f32.mrb[0].mxu0
    %5572 = vmatprep.mubr.f32.mxu0 0.0
    %5573 = vmatmul.mubr.f32.gmra.mrb[0].mxu0 %v5495
    %v5574 = vpop.f32.mrb[0].mxu0
    %v5575 = vadd.f32 0.0, %v5574
    %v5576 = vpop.f32.mrb[0].mxu0
    %5577 = vmatprep.mubr.f32.mxu0 0.0
    %5578 = vmatmul.mubr.f32.gmra.mrb[0].mxu0 %v5498
    %v5579 = vpop.f32.mrb[0].mxu0
    %v5580 = vadd.f32 0.0, %v5579
    %v5581 = vpop.f32.mrb[0].mxu0
    %5582 = vmatprep.mubr.f32.mxu0 0.0
    %5583 = vmatmul.mubr.f32.gmra.mrb[0].mxu0 %v5501
    %v5584 = vpop.f32.mrb[0].mxu0
    %v5585 = vadd.f32 0.0, %v5584
    %v5586 = vpop.f32.mrb[0].mxu0
    %5587 = vdwg.mxu0
    %v5589 = vsel %vm2943, %v5195, 0
    %v5592 = vsel %vm2943, %v5200, 0
    %v5595 = vsel %vm2943, %v5205, 0
    %v5598 = vsel %vm2943, %v5210, 0
    %5600 = vmatprep.subr.mxu0 0.0
    %5601 = vmatpush1.msra.mxu0 %v4935
    %5602 = vmatprep.subr.mxu0 0.0
    %5603 = vmatpush1.msra.mxu0 0.0
    %5604 = vmatprep.subr.mxu0 0.0
    %5605 = vmatpush1.msra.mxu0 0.0
    %5606 = vmatprep.subr.mxu0 0.0
    %5607 = vmatpush1.msra.mxu0 0.0
    %5608 = vmatprep.subr.mxu0 0.0
    %5609 = vmatpush1.msra.mxu0 0.0
    %5610 = vmatprep.subr.mxu0 0.0
    %5611 = vmatpush1.msra.mxu0 0.0
    %5612 = vmatprep.subr.mxu0 0.0
    %5613 = vmatpush1.msra.mxu0 0.0
    %5614 = vmatprep.subr.mxu0 0.0
    %5615 = vmatpush1.msra.mxu0 0.0
    %5616 = vmatprep.subr.mxu0 0.0
    %5617 = vmatpush1.msra.mxu0 0.0
    %5618 = vmatprep.subr.mxu0 0.0
    %5619 = vmatpush1.msra.mxu0 0.0
    %5620 = vmatprep.subr.mxu0 0.0
    %5621 = vmatpush1.msra.mxu0 0.0
    %5622 = vmatprep.subr.mxu0 0.0
    %5623 = vmatpush1.msra.mxu0 0.0
    %5624 = vmatprep.subr.mxu0 0.0
    %5625 = vmatpush1.msra.mxu0 0.0
    %5626 = vmatprep.subr.mxu0 0.0
    %5627 = vmatpush1.msra.mxu0 0.0
    %5628 = vmatprep.subr.mxu0 0.0
    %5629 = vmatpush1.msra.mxu0 0.0
    %5630 = vmatprep.subr.mxu0 0.0
    %5631 = vmatpush1.msra.mxu0 0.0
    %5632 = vmatprep.subr.mxu0 0.0
    %5633 = vmatpush1.msra.mxu0 0.0
    %5634 = vmatprep.subr.mxu0 0.0
    %5635 = vmatpush1.msra.mxu0 0.0
    %5636 = vmatprep.subr.mxu0 0.0
    %5637 = vmatpush1.msra.mxu0 0.0
    %5638 = vmatprep.subr.mxu0 0.0
    %5639 = vmatpush1.msra.mxu0 0.0
    %5640 = vmatprep.subr.mxu0 0.0
    %5641 = vmatpush1.msra.mxu0 0.0
    %5642 = vmatprep.subr.mxu0 0.0
    %5643 = vmatpush1.msra.mxu0 0.0
    %5644 = vmatprep.subr.mxu0 0.0
    %5645 = vmatpush1.msra.mxu0 0.0
    %5646 = vmatprep.subr.mxu0 0.0
    %5647 = vmatpush1.msra.mxu0 0.0
    %5648 = vmatprep.subr.mxu0 0.0
    %5649 = vmatpush1.msra.mxu0 0.0
    %5650 = vmatprep.subr.mxu0 0.0
    %5651 = vmatpush1.msra.mxu0 0.0
    %5652 = vmatprep.subr.mxu0 0.0
    %5653 = vmatpush1.msra.mxu0 0.0
    %5654 = vmatprep.subr.mxu0 0.0
    %5655 = vmatpush1.msra.mxu0 0.0
    %5656 = vmatprep.subr.mxu0 0.0
    %5657 = vmatpush1.msra.mxu0 0.0
    %5658 = vmatprep.subr.mxu0 0.0
    %5659 = vmatpush1.msra.mxu0 0.0
    %5660 = vmatprep.subr.mxu0 0.0
    %5661 = vmatpush1.msra.mxu0 0.0
    %5662 = vmatprep.subr.mxu0 0.0
    %5663 = vmatpush1.msra.mxu0 0.0
    %5664 = vmatprep.mubr.f32.mxu0 0.0
    %5665 = vmatmul.mubr.f32.gmra.mrb[0].mxu0 %v5589
    %v5666 = vpop.f32.mrb[0].mxu0
    %v5667 = vadd.f32 %v5570, %v5666
    %v5668 = vpop.f32.mrb[0].mxu0
    %5669 = vmatprep.mubr.f32.mxu0 0.0
    %5670 = vmatmul.mubr.f32.gmra.mrb[0].mxu0 %v5592
    %v5671 = vpop.f32.mrb[0].mxu0
    %v5672 = vadd.f32 %v5575, %v5671
    %v5673 = vpop.f32.mrb[0].mxu0
    %5674 = vmatprep.mubr.f32.mxu0 0.0
    %5675 = vmatmul.mubr.f32.gmra.mrb[0].mxu0 %v5595
    %v5676 = vpop.f32.mrb[0].mxu0
    %v5677 = vadd.f32 %v5580, %v5676
    %v5678 = vpop.f32.mrb[0].mxu0
    %5679 = vmatprep.mubr.f32.mxu0 0.0
    %5680 = vmatmul.mubr.f32.gmra.mrb[0].mxu0 %v5598
    %v5681 = vpop.f32.mrb[0].mxu0
    %v5682 = vadd.f32 %v5585, %v5681
    %v5683 = vpop.f32.mrb[0].mxu0
    %5684 = vdwg.mxu0
    %5685 = vrot.lane.b32.xlu0 %v4916, 112
    %v5686 = vpop.permute.xlu0 %5685
    %5687 = vrot.lane.b32.xlu0 %v4921, 112
    %v5688 = vpop.permute.xlu0 %5687
    %5689 = vrot.lane.b32.xlu0 %v4926, 112
    %v5690 = vpop.permute.xlu0 %5689
    %5691 = vrot.lane.b32.xlu0 %v4931, 112
    %v5692 = vpop.permute.xlu0 %5691
    %5693 = vrot.lane.b32.xlu0 %v4916, 80
    %v5694 = vpop.permute.xlu0 %5693
    %5695 = vrot.lane.b32.xlu0 %v4921, 80
    %v5696 = vpop.permute.xlu0 %5695
    %5697 = vrot.lane.b32.xlu0 %v4926, 80
    %v5698 = vpop.permute.xlu0 %5697
    %5699 = vrot.lane.b32.xlu0 %v4931, 80
    %v5700 = vpop.permute.xlu0 %5699
    %v5701 = vsel %vm2943, %v5686, 0
    %v5703 = vsel %vm2943, %v5688, 0
    %v5705 = vsel %vm2943, %v5690, 0
    %v5707 = vsel %vm2943, %v5692, 0
    %v5709 = vsel %vm2943, %v5694, 0
    %v5711 = vsel %vm2943, %v5696, 0
    %v5713 = vsel %vm2943, %v5698, 0
    %v5715 = vsel %vm2943, %v5700, 0
    %5717 = vmatprep.subr.mxu0 0.0
    %5718 = vmatpush1.xpose.msra.mxu0 %v5709
    %5719 = vmatprep.subr.mxu0 0.0
    %5720 = vmatpush1.xpose.msra.mxu0 %v5711
    %5721 = vmatprep.subr.mxu0 0.0
    %5722 = vmatpush1.xpose.msra.mxu0 %v5713
    %5723 = vmatprep.subr.mxu0 0.0
    %5724 = vmatpush1.xpose.msra.mxu0 %v5715
    %5725 = vmatprep.subr.mxu0 0.0
    %5726 = vmatpush1.xpose.msra.mxu0 0.0
    %5727 = vmatprep.subr.mxu0 0.0
    %5728 = vmatpush1.xpose.msra.mxu0 0.0
    %5729 = vmatprep.subr.mxu0 0.0
    %5730 = vmatpush1.xpose.msra.mxu0 0.0
    %5731 = vmatprep.subr.mxu0 0.0
    %5732 = vmatpush1.xpose.msra.mxu0 0.0
    %5733 = vmatprep.subr.mxu0 0.0
    %5734 = vmatpush1.xpose.msra.mxu0 0.0
    %5735 = vmatprep.subr.mxu0 0.0
    %5736 = vmatpush1.xpose.msra.mxu0 0.0
    %5737 = vmatprep.subr.mxu0 0.0
    %5738 = vmatpush1.xpose.msra.mxu0 0.0
    %5739 = vmatprep.subr.mxu0 0.0
    %5740 = vmatpush1.xpose.msra.mxu0 0.0
    %5741 = vmatprep.subr.mxu0 0.0
    %5742 = vmatpush1.xpose.msra.mxu0 0.0
    %5743 = vmatprep.subr.mxu0 0.0
    %5744 = vmatpush1.xpose.msra.mxu0 0.0
    %5745 = vmatprep.subr.mxu0 0.0
    %5746 = vmatpush1.xpose.msra.mxu0 0.0
    %5747 = vmatprep.subr.mxu0 0.0
    %5748 = vmatpush1.xpose.msra.mxu0 0.0
    %5749 = vmatprep.subr.mxu0 0.0
    %5750 = vmatpush1.xpose.msra.mxu0 0.0
    %5751 = vmatprep.subr.mxu0 0.0
    %5752 = vmatpush1.xpose.msra.mxu0 0.0
    %5753 = vmatprep.subr.mxu0 0.0
    %5754 = vmatpush1.xpose.msra.mxu0 0.0
    %5755 = vmatprep.subr.mxu0 0.0
    %5756 = vmatpush1.xpose.msra.mxu0 0.0
    %5757 = vmatprep.subr.mxu0 0.0
    %5758 = vmatpush1.xpose.msra.mxu0 0.0
    %5759 = vmatprep.subr.mxu0 0.0
    %5760 = vmatpush1.xpose.msra.mxu0 0.0
    %5761 = vmatprep.subr.mxu0 0.0
    %5762 = vmatpush1.xpose.msra.mxu0 0.0
    %5763 = vmatprep.subr.mxu0 0.0
    %5764 = vmatpush1.xpose.msra.mxu0 0.0
    %5765 = vmatprep.subr.mxu0 0.0
    %5766 = vmatpush1.xpose.msra.mxu0 0.0
    %5767 = vmatprep.subr.mxu0 0.0
    %5768 = vmatpush1.xpose.msra.mxu0 0.0
    %5769 = vmatprep.subr.mxu0 0.0
    %5770 = vmatpush1.xpose.msra.mxu0 0.0
    %5771 = vmatprep.subr.mxu0 0.0
    %5772 = vmatpush1.xpose.msra.mxu0 0.0
    %5773 = vmatprep.subr.mxu0 0.0
    %5774 = vmatpush1.xpose.msra.mxu0 0.0
    %5775 = vmatprep.subr.mxu0 0.0
    %5776 = vmatpush1.xpose.msra.mxu0 0.0
    %5777 = vmatprep.subr.mxu0 0.0
    %5778 = vmatpush1.xpose.msra.mxu0 0.0
    %5779 = vmatprep.subr.mxu0 0.0
    %5780 = vmatpush1.xpose.msra.mxu0 0.0
    %5781 = vmatprep.mubr.f32.mxu0 0.0
    %5782 = vmatmul.mubr.f32.gmra.mrb[0].mxu0 %v5701
    %v5783 = vpop.f32.mrb[0].mxu0
    %v5784 = vadd.f32 0.0, %v5783
    %v5785 = vpop.f32.mrb[0].mxu0
    %5786 = vmatprep.mubr.f32.mxu0 0.0
    %5787 = vmatmul.mubr.f32.gmra.mrb[0].mxu0 %v5703
    %v5788 = vpop.f32.mrb[0].mxu0
    %v5789 = vadd.f32 0.0, %v5788
    %v5790 = vpop.f32.mrb[0].mxu0
    %5791 = vmatprep.mubr.f32.mxu0 0.0
    %5792 = vmatmul.mubr.f32.gmra.mrb[0].mxu0 %v5705
    %v5793 = vpop.f32.mrb[0].mxu0
    %v5794 = vadd.f32 0.0, %v5793
    %v5795 = vpop.f32.mrb[0].mxu0
    %5796 = vmatprep.mubr.f32.mxu0 0.0
    %5797 = vmatmul.mubr.f32.gmra.mrb[0].mxu0 %v5707
    %v5798 = vpop.f32.mrb[0].mxu0
    %v5799 = vadd.f32 0.0, %v5798
    %v5800 = vpop.f32.mrb[0].mxu0
    %5801 = vdwg.mxu0
    %v5802 = vmul.f32 %v5784, 0.35355338
    %v5803 = vmul.f32 %v5789, 0.35355338
    %v5804 = vmul.f32 %v5794, 0.35355338
    %v5805 = vmul.f32 %v5799, 0.35355338
    %v5806 = vadd.f32 %v5802, %v2815
    %v5807 = vadd.f32 %v5803, %v2816
    %v5808 = vadd.f32 %v5804, %v2817
    %v5809 = vadd.f32 %v5805, %v2818
    %v5810 = vsel %vm635, %v5806, -inf
    %5811 = vmax.xlane.f32.xlu0 %v5810
    %v5812 = vpop.xlane.xlu0 %5811
    %v5813 = vsel %vm635, %v5807, -inf
    %5814 = vmax.xlane.f32.xlu0 %v5813
    %v5815 = vpop.xlane.xlu0 %5814
    %v5816 = vsel %vm635, %v5808, -inf
    %5817 = vmax.xlane.f32.xlu0 %v5816
    %v5818 = vpop.xlane.xlu0 %5817
    %v5819 = vsel %vm635, %v5809, -inf
    %5820 = vmax.xlane.f32.xlu0 %v5819
    %v5821 = vpop.xlane.xlu0 %5820
    %v5822 = vsub.f32 %v5806, %v5812
    %v5823 = vsub.f32 %v5807, %v5815
    %v5824 = vsub.f32 %v5808, %v5818
    %v5825 = vsub.f32 %v5809, %v5821
    %v5826 = vmul.f32 %v5822, 1.442695
    %v5827 = vpow.pop %v5826
    %v5828 = vmul.f32 %v5823, 1.442695
    %v5829 = vpow.pop %v5828
    %v5830 = vmul.f32 %v5824, 1.442695
    %v5831 = vpow.pop %v5830
    %v5832 = vmul.f32 %v5825, 1.442695
    %v5833 = vpow.pop %v5832
    %v5834 = vsel %vm635, %v5827, 0.0
    %5835 = vadd.xlane.f32.xlu0 %v5834
    %v5836 = vpop.xlane.xlu0 %5835
    %v5837 = vsel %vm635, %v5829, 0.0
    %5838 = vadd.xlane.f32.xlu0 %v5837
    %v5839 = vpop.xlane.xlu0 %5838
    %v5840 = vsel %vm635, %v5831, 0.0
    %5841 = vadd.xlane.f32.xlu0 %v5840
    %v5842 = vpop.xlane.xlu0 %5841
    %v5843 = vsel %vm635, %v5833, 0.0
    %5844 = vadd.xlane.f32.xlu0 %v5843
    %v5845 = vpop.xlane.xlu0 %5844
    %v5846 = vrcp.pop %v5836
    %v5847 = vmul.f32 %v5827, %v5846
    %v5848 = vrcp.pop %v5839
    %v5849 = vmul.f32 %v5829, %v5848
    %v5850 = vrcp.pop %v5842
    %v5851 = vmul.f32 %v5831, %v5850
    %v5852 = vrcp.pop %v5845
    %v5853 = vmul.f32 %v5833, %v5852
    %5854 = vrot.lane.b32.xlu0 %v4916, 48
    %v5855 = vpop.permute.xlu0 %5854
    %5856 = vrot.lane.b32.xlu0 %v4921, 48
    %v5857 = vpop.permute.xlu0 %5856
    %5858 = vrot.lane.b32.xlu0 %v4926, 48
    %v5859 = vpop.permute.xlu0 %5858
    %5860 = vrot.lane.b32.xlu0 %v4931, 48
    %v5861 = vpop.permute.xlu0 %5860
    %v5867 = vsel %vm635, %v5847, 0
    %v5870 = vsel %vm635, %v5849, 0
    %v5873 = vsel %vm635, %v5851, 0
    %v5876 = vsel %vm635, %v5853, 0
    %5878 = vmatprep.subr.mxu0 0.0
    %5879 = vmatpush1.msra.mxu0 %v5855
    %5880 = vmatprep.subr.mxu0 0.0
    %5881 = vmatpush1.msra.mxu0 %v5857
    %5882 = vmatprep.subr.mxu0 0.0
    %5883 = vmatpush1.msra.mxu0 %v5859
    %5884 = vmatprep.subr.mxu0 0.0
    %5885 = vmatpush1.msra.mxu0 %v5861
    %5886 = vmatprep.subr.mxu0 0.0
    %5887 = vmatpush1.msra.mxu0 0.0
    %5888 = vmatprep.subr.mxu0 0.0
    %5889 = vmatpush1.msra.mxu0 0.0
    %5890 = vmatprep.subr.mxu0 0.0
    %5891 = vmatpush1.msra.mxu0 0.0
    %5892 = vmatprep.subr.mxu0 0.0
    %5893 = vmatpush1.msra.mxu0 0.0
    %5894 = vmatprep.subr.mxu0 0.0
    %5895 = vmatpush1.msra.mxu0 0.0
    %5896 = vmatprep.subr.mxu0 0.0
    %5897 = vmatpush1.msra.mxu0 0.0
    %5898 = vmatprep.subr.mxu0 0.0
    %5899 = vmatpush1.msra.mxu0 0.0
    %5900 = vmatprep.subr.mxu0 0.0
    %5901 = vmatpush1.msra.mxu0 0.0
    %5902 = vmatprep.subr.mxu0 0.0
    %5903 = vmatpush1.msra.mxu0 0.0
    %5904 = vmatprep.subr.mxu0 0.0
    %5905 = vmatpush1.msra.mxu0 0.0
    %5906 = vmatprep.subr.mxu0 0.0
    %5907 = vmatpush1.msra.mxu0 0.0
    %5908 = vmatprep.subr.mxu0 0.0
    %5909 = vmatpush1.msra.mxu0 0.0
    %5910 = vmatprep.subr.mxu0 0.0
    %5911 = vmatpush1.msra.mxu0 0.0
    %5912 = vmatprep.subr.mxu0 0.0
    %5913 = vmatpush1.msra.mxu0 0.0
    %5914 = vmatprep.subr.mxu0 0.0
    %5915 = vmatpush1.msra.mxu0 0.0
    %5916 = vmatprep.subr.mxu0 0.0
    %5917 = vmatpush1.msra.mxu0 0.0
    %5918 = vmatprep.subr.mxu0 0.0
    %5919 = vmatpush1.msra.mxu0 0.0
    %5920 = vmatprep.subr.mxu0 0.0
    %5921 = vmatpush1.msra.mxu0 0.0
    %5922 = vmatprep.subr.mxu0 0.0
    %5923 = vmatpush1.msra.mxu0 0.0
    %5924 = vmatprep.subr.mxu0 0.0
    %5925 = vmatpush1.msra.mxu0 0.0
    %5926 = vmatprep.subr.mxu0 0.0
    %5927 = vmatpush1.msra.mxu0 0.0
    %5928 = vmatprep.subr.mxu0 0.0
    %5929 = vmatpush1.msra.mxu0 0.0
    %5930 = vmatprep.subr.mxu0 0.0
    %5931 = vmatpush1.msra.mxu0 0.0
    %5932 = vmatprep.subr.mxu0 0.0
    %5933 = vmatpush1.msra.mxu0 0.0
    %5934 = vmatprep.subr.mxu0 0.0
    %5935 = vmatpush1.msra.mxu0 0.0
    %5936 = vmatprep.subr.mxu0 0.0
    %5937 = vmatpush1.msra.mxu0 0.0
    %5938 = vmatprep.subr.mxu0 0.0
    %5939 = vmatpush1.msra.mxu0 0.0
    %5940 = vmatprep.subr.mxu0 0.0
    %5941 = vmatpush1.msra.mxu0 0.0
    %5942 = vmatprep.mubr.f32.mxu0 0.0
    %5943 = vmatmul.mubr.f32.gmra.mrb[0].mxu0 %v5867
    %v5944 = vpop.f32.mrb[0].mxu0
    %v5945 = vadd.f32 0.0, %v5944
    %v5946 = vpop.f32.mrb[0].mxu0
    %5947 = vmatprep.mubr.f32.mxu0 0.0
    %5948 = vmatmul.mubr.f32.gmra.mrb[0].mxu0 %v5870
    %v5949 = vpop.f32.mrb[0].mxu0
    %v5950 = vadd.f32 0.0, %v5949
    %v5951 = vpop.f32.mrb[0].mxu0
    %5952 = vmatprep.mubr.f32.mxu0 0.0
    %5953 = vmatmul.mubr.f32.gmra.mrb[0].mxu0 %v5873
    %v5954 = vpop.f32.mrb[0].mxu0
    %v5955 = vadd.f32 0.0, %v5954
    %v5956 = vpop.f32.mrb[0].mxu0
    %5957 = vmatprep.mubr.f32.mxu0 0.0
    %5958 = vmatmul.mubr.f32.gmra.mrb[0].mxu0 %v5876
    %v5959 = vpop.f32.mrb[0].mxu0
    %v5960 = vadd.f32 0.0, %v5959
    %v5961 = vpop.f32.mrb[0].mxu0
    %5962 = vdwg.mxu0
    %v5964 = vsel %vm2943, %v5945, 0
    %v5967 = vsel %vm2943, %v5950, 0
    %v5970 = vsel %vm2943, %v5955, 0
    %v5973 = vsel %vm2943, %v5960, 0
    %5975 = vmatprep.subr.mxu0 0.0
    %5976 = vmatpush1.msra.mxu0 %v4937
    %5977 = vmatprep.subr.mxu0 0.0
    %5978 = vmatpush1.msra.mxu0 0.0
    %5979 = vmatprep.subr.mxu0 0.0
    %5980 = vmatpush1.msra.mxu0 0.0
    %5981 = vmatprep.subr.mxu0 0.0
    %5982 = vmatpush1.msra.mxu0 0.0
    %5983 = vmatprep.subr.mxu0 0.0
    %5984 = vmatpush1.msra.mxu0 0.0
    %5985 = vmatprep.subr.mxu0 0.0
    %5986 = vmatpush1.msra.mxu0 0.0
    %5987 = vmatprep.subr.mxu0 0.0
    %5988 = vmatpush1.msra.mxu0 0.0
    %5989 = vmatprep.subr.mxu0 0.0
    %5990 = vmatpush1.msra.mxu0 0.0
    %5991 = vmatprep.subr.mxu0 0.0
    %5992 = vmatpush1.msra.mxu0 0.0
    %5993 = vmatprep.subr.mxu0 0.0
    %5994 = vmatpush1.msra.mxu0 0.0
    %5995 = vmatprep.subr.mxu0 0.0
    %5996 = vmatpush1.msra.mxu0 0.0
    %5997 = vmatprep.subr.mxu0 0.0
    %5998 = vmatpush1.msra.mxu0 0.0
    %5999 = vmatprep.subr.mxu0 0.0
    %6000 = vmatpush1.msra.mxu0 0.0
    %6001 = vmatprep.subr.mxu0 0.0
    %6002 = vmatpush1.msra.mxu0 0.0
    %6003 = vmatprep.subr.mxu0 0.0
    %6004 = vmatpush1.msra.mxu0 0.0
    %6005 = vmatprep.subr.mxu0 0.0
    %6006 = vmatpush1.msra.mxu0 0.0
    %6007 = vmatprep.subr.mxu0 0.0
    %6008 = vmatpush1.msra.mxu0 0.0
    %6009 = vmatprep.subr.mxu0 0.0
    %6010 = vmatpush1.msra.mxu0 0.0
    %6011 = vmatprep.subr.mxu0 0.0
    %6012 = vmatpush1.msra.mxu0 0.0
    %6013 = vmatprep.subr.mxu0 0.0
    %6014 = vmatpush1.msra.mxu0 0.0
    %6015 = vmatprep.subr.mxu0 0.0
    %6016 = vmatpush1.msra.mxu0 0.0
    %6017 = vmatprep.subr.mxu0 0.0
    %6018 = vmatpush1.msra.mxu0 0.0
    %6019 = vmatprep.subr.mxu0 0.0
    %6020 = vmatpush1.msra.mxu0 0.0
    %6021 = vmatprep.subr.mxu0 0.0
    %6022 = vmatpush1.msra.mxu0 0.0
    %6023 = vmatprep.subr.mxu0 0.0
    %6024 = vmatpush1.msra.mxu0 0.0
    %6025 = vmatprep.subr.mxu0 0.0
    %6026 = vmatpush1.msra.mxu0 0.0
    %6027 = vmatprep.subr.mxu0 0.0
    %6028 = vmatpush1.msra.mxu0 0.0
    %6029 = vmatprep.subr.mxu0 0.0
    %6030 = vmatpush1.msra.mxu0 0.0
    %6031 = vmatprep.subr.mxu0 0.0
    %6032 = vmatpush1.msra.mxu0 0.0
    %6033 = vmatprep.subr.mxu0 0.0
    %6034 = vmatpush1.msra.mxu0 0.0
    %6035 = vmatprep.subr.mxu0 0.0
    %6036 = vmatpush1.msra.mxu0 0.0
    %6037 = vmatprep.subr.mxu0 0.0
    %6038 = vmatpush1.msra.mxu0 0.0
    %6039 = vmatprep.mubr.f32.mxu0 0.0
    %6040 = vmatmul.mubr.f32.gmra.mrb[0].mxu0 %v5964
    %v6041 = vpop.f32.mrb[0].mxu0
    %v6042 = vadd.f32 0.0, %v6041
    %v6043 = vpop.f32.mrb[0].mxu0
    %6044 = vmatprep.mubr.f32.mxu0 0.0
    %6045 = vmatmul.mubr.f32.gmra.mrb[0].mxu0 %v5967
    %v6046 = vpop.f32.mrb[0].mxu0
    %v6047 = vadd.f32 0.0, %v6046
    %v6048 = vpop.f32.mrb[0].mxu0
    %6049 = vmatprep.mubr.f32.mxu0 0.0
    %6050 = vmatmul.mubr.f32.gmra.mrb[0].mxu0 %v5970
    %v6051 = vpop.f32.mrb[0].mxu0
    %v6052 = vadd.f32 0.0, %v6051
    %v6053 = vpop.f32.mrb[0].mxu0
    %6054 = vmatprep.mubr.f32.mxu0 0.0
    %6055 = vmatmul.mubr.f32.gmra.mrb[0].mxu0 %v5973
    %v6056 = vpop.f32.mrb[0].mxu0
    %v6057 = vadd.f32 0.0, %v6056
    %v6058 = vpop.f32.mrb[0].mxu0
    %6059 = vdwg.mxu0
    %v6060 = vadd.f32 %v5667, %v6042
    %v6061 = vadd.f32 %v5672, %v6047
    %v6062 = vadd.f32 %v5677, %v6052
    %v6063 = vadd.f32 %v5682, %v6057
    %6064 = vrot.lane.b32.xlu0 %v4916, 104
    %v6065 = vpop.permute.xlu0 %6064
    %6066 = vrot.lane.b32.xlu0 %v4921, 104
    %v6067 = vpop.permute.xlu0 %6066
    %6068 = vrot.lane.b32.xlu0 %v4926, 104
    %v6069 = vpop.permute.xlu0 %6068
    %6070 = vrot.lane.b32.xlu0 %v4931, 104
    %v6071 = vpop.permute.xlu0 %6070
    %6072 = vrot.lane.b32.xlu0 %v4916, 72
    %v6073 = vpop.permute.xlu0 %6072
    %6074 = vrot.lane.b32.xlu0 %v4921, 72
    %v6075 = vpop.permute.xlu0 %6074
    %6076 = vrot.lane.b32.xlu0 %v4926, 72
    %v6077 = vpop.permute.xlu0 %6076
    %6078 = vrot.lane.b32.xlu0 %v4931, 72
    %v6079 = vpop.permute.xlu0 %6078
    %v6080 = vsel %vm2943, %v6065, 0
    %v6082 = vsel %vm2943, %v6067, 0
    %v6084 = vsel %vm2943, %v6069, 0
    %v6086 = vsel %vm2943, %v6071, 0
    %v6088 = vsel %vm2943, %v6073, 0
    %v6090 = vsel %vm2943, %v6075, 0
    %v6092 = vsel %vm2943, %v6077, 0
    %v6094 = vsel %vm2943, %v6079, 0
    %6096 = vmatprep.subr.mxu0 0.0
    %6097 = vmatpush1.xpose.msra.mxu0 %v6088
    %6098 = vmatprep.subr.mxu0 0.0
    %6099 = vmatpush1.xpose.msra.mxu0 %v6090
    %6100 = vmatprep.subr.mxu0 0.0
    %6101 = vmatpush1.xpose.msra.mxu0 %v6092
    %6102 = vmatprep.subr.mxu0 0.0
    %6103 = vmatpush1.xpose.msra.mxu0 %v6094
    %6104 = vmatprep.subr.mxu0 0.0
    %6105 = vmatpush1.xpose.msra.mxu0 0.0
    %6106 = vmatprep.subr.mxu0 0.0
    %6107 = vmatpush1.xpose.msra.mxu0 0.0
    %6108 = vmatprep.subr.mxu0 0.0
    %6109 = vmatpush1.xpose.msra.mxu0 0.0
    %6110 = vmatprep.subr.mxu0 0.0
    %6111 = vmatpush1.xpose.msra.mxu0 0.0
    %6112 = vmatprep.subr.mxu0 0.0
    %6113 = vmatpush1.xpose.msra.mxu0 0.0
    %6114 = vmatprep.subr.mxu0 0.0
    %6115 = vmatpush1.xpose.msra.mxu0 0.0
    %6116 = vmatprep.subr.mxu0 0.0
    %6117 = vmatpush1.xpose.msra.mxu0 0.0
    %6118 = vmatprep.subr.mxu0 0.0
    %6119 = vmatpush1.xpose.msra.mxu0 0.0
    %6120 = vmatprep.subr.mxu0 0.0
    %6121 = vmatpush1.xpose.msra.mxu0 0.0
    %6122 = vmatprep.subr.mxu0 0.0
    %6123 = vmatpush1.xpose.msra.mxu0 0.0
    %6124 = vmatprep.subr.mxu0 0.0
    %6125 = vmatpush1.xpose.msra.mxu0 0.0
    %6126 = vmatprep.subr.mxu0 0.0
    %6127 = vmatpush1.xpose.msra.mxu0 0.0
    %6128 = vmatprep.subr.mxu0 0.0
    %6129 = vmatpush1.xpose.msra.mxu0 0.0
    %6130 = vmatprep.subr.mxu0 0.0
    %6131 = vmatpush1.xpose.msra.mxu0 0.0
    %6132 = vmatprep.subr.mxu0 0.0
    %6133 = vmatpush1.xpose.msra.mxu0 0.0
    %6134 = vmatprep.subr.mxu0 0.0
    %6135 = vmatpush1.xpose.msra.mxu0 0.0
    %6136 = vmatprep.subr.mxu0 0.0
    %6137 = vmatpush1.xpose.msra.mxu0 0.0
    %6138 = vmatprep.subr.mxu0 0.0
    %6139 = vmatpush1.xpose.msra.mxu0 0.0
    %6140 = vmatprep.subr.mxu0 0.0
    %6141 = vmatpush1.xpose.msra.mxu0 0.0
    %6142 = vmatprep.subr.mxu0 0.0
    %6143 = vmatpush1.xpose.msra.mxu0 0.0
    %6144 = vmatprep.subr.mxu0 0.0
    %6145 = vmatpush1.xpose.msra.mxu0 0.0
    %6146 = vmatprep.subr.mxu0 0.0
    %6147 = vmatpush1.xpose.msra.mxu0 0.0
    %6148 = vmatprep.subr.mxu0 0.0
    %6149 = vmatpush1.xpose.msra.mxu0 0.0
    %6150 = vmatprep.subr.mxu0 0.0
    %6151 = vmatpush1.xpose.msra.mxu0 0.0
    %6152 = vmatprep.subr.mxu0 0.0
    %6153 = vmatpush1.xpose.msra.mxu0 0.0
    %6154 = vmatprep.subr.mxu0 0.0
    %6155 = vmatpush1.xpose.msra.mxu0 0.0
    %6156 = vmatprep.subr.mxu0 0.0
    %6157 = vmatpush1.xpose.msra.mxu0 0.0
    %6158 = vmatprep.subr.mxu0 0.0
    %6159 = vmatpush1.xpose.msra.mxu0 0.0
    %6160 = vmatprep.mubr.f32.mxu0 0.0
    %6161 = vmatmul.mubr.f32.gmra.mrb[0].mxu0 %v6080
    %v6162 = vpop.f32.mrb[0].mxu0
    %v6163 = vadd.f32 0.0, %v6162
    %v6164 = vpop.f32.mrb[0].mxu0
    %6165 = vmatprep.mubr.f32.mxu0 0.0
    %6166 = vmatmul.mubr.f32.gmra.mrb[0].mxu0 %v6082
    %v6167 = vpop.f32.mrb[0].mxu0
    %v6168 = vadd.f32 0.0, %v6167
    %v6169 = vpop.f32.mrb[0].mxu0
    %6170 = vmatprep.mubr.f32.mxu0 0.0
    %6171 = vmatmul.mubr.f32.gmra.mrb[0].mxu0 %v6084
    %v6172 = vpop.f32.mrb[0].mxu0
    %v6173 = vadd.f32 0.0, %v6172
    %v6174 = vpop.f32.mrb[0].mxu0
    %6175 = vmatprep.mubr.f32.mxu0 0.0
    %6176 = vmatmul.mubr.f32.gmra.mrb[0].mxu0 %v6086
    %v6177 = vpop.f32.mrb[0].mxu0
    %v6178 = vadd.f32 0.0, %v6177
    %v6179 = vpop.f32.mrb[0].mxu0
    %6180 = vdwg.mxu0
    %v6181 = vmul.f32 %v6163, 0.35355338
    %v6182 = vmul.f32 %v6168, 0.35355338
    %v6183 = vmul.f32 %v6173, 0.35355338
    %v6184 = vmul.f32 %v6178, 0.35355338
    %v6185 = vadd.f32 %v6181, %v2815
    %v6186 = vadd.f32 %v6182, %v2816
    %v6187 = vadd.f32 %v6183, %v2817
    %v6188 = vadd.f32 %v6184, %v2818
    %v6189 = vsel %vm635, %v6185, -inf
    %6190 = vmax.xlane.f32.xlu0 %v6189
    %v6191 = vpop.xlane.xlu0 %6190
    %v6192 = vsel %vm635, %v6186, -inf
    %6193 = vmax.xlane.f32.xlu0 %v6192
    %v6194 = vpop.xlane.xlu0 %6193
    %v6195 = vsel %vm635, %v6187, -inf
    %6196 = vmax.xlane.f32.xlu0 %v6195
    %v6197 = vpop.xlane.xlu0 %6196
    %v6198 = vsel %vm635, %v6188, -inf
    %6199 = vmax.xlane.f32.xlu0 %v6198
    %v6200 = vpop.xlane.xlu0 %6199
    %v6201 = vsub.f32 %v6185, %v6191
    %v6202 = vsub.f32 %v6186, %v6194
    %v6203 = vsub.f32 %v6187, %v6197
    %v6204 = vsub.f32 %v6188, %v6200
    %v6205 = vmul.f32 %v6201, 1.442695
    %v6206 = vpow.pop %v6205
    %v6207 = vmul.f32 %v6202, 1.442695
    %v6208 = vpow.pop %v6207
    %v6209 = vmul.f32 %v6203, 1.442695
    %v6210 = vpow.pop %v6209
    %v6211 = vmul.f32 %v6204, 1.442695
    %v6212 = vpow.pop %v6211
    %v6213 = vsel %vm635, %v6206, 0.0
    %6214 = vadd.xlane.f32.xlu0 %v6213
    %v6215 = vpop.xlane.xlu0 %6214
    %v6216 = vsel %vm635, %v6208, 0.0
    %6217 = vadd.xlane.f32.xlu0 %v6216
    %v6218 = vpop.xlane.xlu0 %6217
    %v6219 = vsel %vm635, %v6210, 0.0
    %6220 = vadd.xlane.f32.xlu0 %v6219
    %v6221 = vpop.xlane.xlu0 %6220
    %v6222 = vsel %vm635, %v6212, 0.0
    %6223 = vadd.xlane.f32.xlu0 %v6222
    %v6224 = vpop.xlane.xlu0 %6223
    %v6225 = vrcp.pop %v6215
    %v6226 = vmul.f32 %v6206, %v6225
    %v6227 = vrcp.pop %v6218
    %v6228 = vmul.f32 %v6208, %v6227
    %v6229 = vrcp.pop %v6221
    %v6230 = vmul.f32 %v6210, %v6229
    %v6231 = vrcp.pop %v6224
    %v6232 = vmul.f32 %v6212, %v6231
    %6233 = vrot.lane.b32.xlu0 %v4916, 40
    %v6234 = vpop.permute.xlu0 %6233
    %6235 = vrot.lane.b32.xlu0 %v4921, 40
    %v6236 = vpop.permute.xlu0 %6235
    %6237 = vrot.lane.b32.xlu0 %v4926, 40
    %v6238 = vpop.permute.xlu0 %6237
    %6239 = vrot.lane.b32.xlu0 %v4931, 40
    %v6240 = vpop.permute.xlu0 %6239
    %v6246 = vsel %vm635, %v6226, 0
    %v6249 = vsel %vm635, %v6228, 0
    %v6252 = vsel %vm635, %v6230, 0
    %v6255 = vsel %vm635, %v6232, 0
    %6257 = vmatprep.subr.mxu0 0.0
    %6258 = vmatpush1.msra.mxu0 %v6234
    %6259 = vmatprep.subr.mxu0 0.0
    %6260 = vmatpush1.msra.mxu0 %v6236
    %6261 = vmatprep.subr.mxu0 0.0
    %6262 = vmatpush1.msra.mxu0 %v6238
    %6263 = vmatprep.subr.mxu0 0.0
    %6264 = vmatpush1.msra.mxu0 %v6240
    %6265 = vmatprep.subr.mxu0 0.0
    %6266 = vmatpush1.msra.mxu0 0.0
    %6267 = vmatprep.subr.mxu0 0.0
    %6268 = vmatpush1.msra.mxu0 0.0
    %6269 = vmatprep.subr.mxu0 0.0
    %6270 = vmatpush1.msra.mxu0 0.0
    %6271 = vmatprep.subr.mxu0 0.0
    %6272 = vmatpush1.msra.mxu0 0.0
    %6273 = vmatprep.subr.mxu0 0.0
    %6274 = vmatpush1.msra.mxu0 0.0
    %6275 = vmatprep.subr.mxu0 0.0
    %6276 = vmatpush1.msra.mxu0 0.0
    %6277 = vmatprep.subr.mxu0 0.0
    %6278 = vmatpush1.msra.mxu0 0.0
    %6279 = vmatprep.subr.mxu0 0.0
    %6280 = vmatpush1.msra.mxu0 0.0
    %6281 = vmatprep.subr.mxu0 0.0
    %6282 = vmatpush1.msra.mxu0 0.0
    %6283 = vmatprep.subr.mxu0 0.0
    %6284 = vmatpush1.msra.mxu0 0.0
    %6285 = vmatprep.subr.mxu0 0.0
    %6286 = vmatpush1.msra.mxu0 0.0
    %6287 = vmatprep.subr.mxu0 0.0
    %6288 = vmatpush1.msra.mxu0 0.0
    %6289 = vmatprep.subr.mxu0 0.0
    %6290 = vmatpush1.msra.mxu0 0.0
    %6291 = vmatprep.subr.mxu0 0.0
    %6292 = vmatpush1.msra.mxu0 0.0
    %6293 = vmatprep.subr.mxu0 0.0
    %6294 = vmatpush1.msra.mxu0 0.0
    %6295 = vmatprep.subr.mxu0 0.0
    %6296 = vmatpush1.msra.mxu0 0.0
    %6297 = vmatprep.subr.mxu0 0.0
    %6298 = vmatpush1.msra.mxu0 0.0
    %6299 = vmatprep.subr.mxu0 0.0
    %6300 = vmatpush1.msra.mxu0 0.0
    %6301 = vmatprep.subr.mxu0 0.0
    %6302 = vmatpush1.msra.mxu0 0.0
    %6303 = vmatprep.subr.mxu0 0.0
    %6304 = vmatpush1.msra.mxu0 0.0
    %6305 = vmatprep.subr.mxu0 0.0
    %6306 = vmatpush1.msra.mxu0 0.0
    %6307 = vmatprep.subr.mxu0 0.0
    %6308 = vmatpush1.msra.mxu0 0.0
    %6309 = vmatprep.subr.mxu0 0.0
    %6310 = vmatpush1.msra.mxu0 0.0
    %6311 = vmatprep.subr.mxu0 0.0
    %6312 = vmatpush1.msra.mxu0 0.0
    %6313 = vmatprep.subr.mxu0 0.0
    %6314 = vmatpush1.msra.mxu0 0.0
    %6315 = vmatprep.subr.mxu0 0.0
    %6316 = vmatpush1.msra.mxu0 0.0
    %6317 = vmatprep.subr.mxu0 0.0
    %6318 = vmatpush1.msra.mxu0 0.0
    %6319 = vmatprep.subr.mxu0 0.0
    %6320 = vmatpush1.msra.mxu0 0.0
    %6321 = vmatprep.mubr.f32.mxu0 0.0
    %6322 = vmatmul.mubr.f32.gmra.mrb[0].mxu0 %v6246
    %v6323 = vpop.f32.mrb[0].mxu0
    %v6324 = vadd.f32 0.0, %v6323
    %v6325 = vpop.f32.mrb[0].mxu0
    %6326 = vmatprep.mubr.f32.mxu0 0.0
    %6327 = vmatmul.mubr.f32.gmra.mrb[0].mxu0 %v6249
    %v6328 = vpop.f32.mrb[0].mxu0
    %v6329 = vadd.f32 0.0, %v6328
    %v6330 = vpop.f32.mrb[0].mxu0
    %6331 = vmatprep.mubr.f32.mxu0 0.0
    %6332 = vmatmul.mubr.f32.gmra.mrb[0].mxu0 %v6252
    %v6333 = vpop.f32.mrb[0].mxu0
    %v6334 = vadd.f32 0.0, %v6333
    %v6335 = vpop.f32.mrb[0].mxu0
    %6336 = vmatprep.mubr.f32.mxu0 0.0
    %6337 = vmatmul.mubr.f32.gmra.mrb[0].mxu0 %v6255
    %v6338 = vpop.f32.mrb[0].mxu0
    %v6339 = vadd.f32 0.0, %v6338
    %v6340 = vpop.f32.mrb[0].mxu0
    %6341 = vdwg.mxu0
    %v6343 = vsel %vm2943, %v6324, 0
    %v6346 = vsel %vm2943, %v6329, 0
    %v6349 = vsel %vm2943, %v6334, 0
    %v6352 = vsel %vm2943, %v6339, 0
    %6354 = vmatprep.subr.mxu0 0.0
    %6355 = vmatpush1.msra.mxu0 %v4938
    %6356 = vmatprep.subr.mxu0 0.0
    %6357 = vmatpush1.msra.mxu0 0.0
    %6358 = vmatprep.subr.mxu0 0.0
    %6359 = vmatpush1.msra.mxu0 0.0
    %6360 = vmatprep.subr.mxu0 0.0
    %6361 = vmatpush1.msra.mxu0 0.0
    %6362 = vmatprep.subr.mxu0 0.0
    %6363 = vmatpush1.msra.mxu0 0.0
    %6364 = vmatprep.subr.mxu0 0.0
    %6365 = vmatpush1.msra.mxu0 0.0
    %6366 = vmatprep.subr.mxu0 0.0
    %6367 = vmatpush1.msra.mxu0 0.0
    %6368 = vmatprep.subr.mxu0 0.0
    %6369 = vmatpush1.msra.mxu0 0.0
    %6370 = vmatprep.subr.mxu0 0.0
    %6371 = vmatpush1.msra.mxu0 0.0
    %6372 = vmatprep.subr.mxu0 0.0
    %6373 = vmatpush1.msra.mxu0 0.0
    %6374 = vmatprep.subr.mxu0 0.0
    %6375 = vmatpush1.msra.mxu0 0.0
    %6376 = vmatprep.subr.mxu0 0.0
    %6377 = vmatpush1.msra.mxu0 0.0
    %6378 = vmatprep.subr.mxu0 0.0
    %6379 = vmatpush1.msra.mxu0 0.0
    %6380 = vmatprep.subr.mxu0 0.0
    %6381 = vmatpush1.msra.mxu0 0.0
    %6382 = vmatprep.subr.mxu0 0.0
    %6383 = vmatpush1.msra.mxu0 0.0
    %6384 = vmatprep.subr.mxu0 0.0
    %6385 = vmatpush1.msra.mxu0 0.0
    %6386 = vmatprep.subr.mxu0 0.0
    %6387 = vmatpush1.msra.mxu0 0.0
    %6388 = vmatprep.subr.mxu0 0.0
    %6389 = vmatpush1.msra.mxu0 0.0
    %6390 = vmatprep.subr.mxu0 0.0
    %6391 = vmatpush1.msra.mxu0 0.0
    %6392 = vmatprep.subr.mxu0 0.0
    %6393 = vmatpush1.msra.mxu0 0.0
    %6394 = vmatprep.subr.mxu0 0.0
    %6395 = vmatpush1.msra.mxu0 0.0
    %6396 = vmatprep.subr.mxu0 0.0
    %6397 = vmatpush1.msra.mxu0 0.0
    %6398 = vmatprep.subr.mxu0 0.0
    %6399 = vmatpush1.msra.mxu0 0.0
    %6400 = vmatprep.subr.mxu0 0.0
    %6401 = vmatpush1.msra.mxu0 0.0
    %6402 = vmatprep.subr.mxu0 0.0
    %6403 = vmatpush1.msra.mxu0 0.0
    %6404 = vmatprep.subr.mxu0 0.0
    %6405 = vmatpush1.msra.mxu0 0.0
    %6406 = vmatprep.subr.mxu0 0.0
    %6407 = vmatpush1.msra.mxu0 0.0
    %6408 = vmatprep.subr.mxu0 0.0
    %6409 = vmatpush1.msra.mxu0 0.0
    %6410 = vmatprep.subr.mxu0 0.0
    %6411 = vmatpush1.msra.mxu0 0.0
    %6412 = vmatprep.subr.mxu0 0.0
    %6413 = vmatpush1.msra.mxu0 0.0
    %6414 = vmatprep.subr.mxu0 0.0
    %6415 = vmatpush1.msra.mxu0 0.0
    %6416 = vmatprep.subr.mxu0 0.0
    %6417 = vmatpush1.msra.mxu0 0.0
    %6418 = vmatprep.mubr.f32.mxu0 0.0
    %6419 = vmatmul.mubr.f32.gmra.mrb[0].mxu0 %v6343
    %v6420 = vpop.f32.mrb[0].mxu0
    %v6421 = vadd.f32 0.0, %v6420
    %v6422 = vpop.f32.mrb[0].mxu0
    %6423 = vmatprep.mubr.f32.mxu0 0.0
    %6424 = vmatmul.mubr.f32.gmra.mrb[0].mxu0 %v6346
    %v6425 = vpop.f32.mrb[0].mxu0
    %v6426 = vadd.f32 0.0, %v6425
    %v6427 = vpop.f32.mrb[0].mxu0
    %6428 = vmatprep.mubr.f32.mxu0 0.0
    %6429 = vmatmul.mubr.f32.gmra.mrb[0].mxu0 %v6349
    %v6430 = vpop.f32.mrb[0].mxu0
    %v6431 = vadd.f32 0.0, %v6430
    %v6432 = vpop.f32.mrb[0].mxu0
    %6433 = vmatprep.mubr.f32.mxu0 0.0
    %6434 = vmatmul.mubr.f32.gmra.mrb[0].mxu0 %v6352
    %v6435 = vpop.f32.mrb[0].mxu0
    %v6436 = vadd.f32 0.0, %v6435
    %v6437 = vpop.f32.mrb[0].mxu0
    %6438 = vdwg.mxu0
    %v6439 = vadd.f32 %v6060, %v6421
    %v6440 = vadd.f32 %v6061, %v6426
    %v6441 = vadd.f32 %v6062, %v6431
    %v6442 = vadd.f32 %v6063, %v6436
    %s6443 = scalar_lea.vmem %s9, 1
    %v6444 = vld [vmem:[%s6443] sm:$0x1]
    %v6446 = vlaneseq
    %v6447 = vshrl.u32 %v6446, 7
    %v6448 = vsub.s32 0, %v6447
    %v6449 = vrot.slane %v6444, %v6448
    %v6451 = vadd.f32 %v6439, %v6449
    %v6452 = vadd.f32 %v6440, %v6449
    %v6453 = vadd.f32 %v6441, %v6449
    %v6454 = vadd.f32 %v6442, %v6449
    %v6455 = vadd.f32 %v4820, %v6451
    %v6456 = vadd.f32 %v4821, %v6452
    %v6457 = vadd.f32 %v4822, %v6453
    %v6458 = vadd.f32 %v4823, %v6454
    %s6459 = scalar_lea.vmem %s10, 1
    %v6460 = vld [vmem:[%s6459] sm:$0x1]
    %s6461 = scalar_lea.vmem %s11, 1
    %v6462 = vld [vmem:[%s6461] sm:$0x1]
    %v6463 = vsel %vm635, %v6455, 0.0
    %6464 = vadd.xlane.f32.xlu0 %v6463
    %v6465 = vpop.xlane.xlu0 %6464
    %v6466 = vsel %vm635, %v6456, 0.0
    %6467 = vadd.xlane.f32.xlu0 %v6466
    %v6468 = vpop.xlane.xlu0 %6467
    %v6469 = vsel %vm635, %v6457, 0.0
    %6470 = vadd.xlane.f32.xlu0 %v6469
    %v6471 = vpop.xlane.xlu0 %6470
    %v6472 = vsel %vm635, %v6458, 0.0
    %6473 = vadd.xlane.f32.xlu0 %v6472
    %v6474 = vpop.xlane.xlu0 %6473
    %v6475 = vmul.f32 %v6465, %v4465
    %v6476 = vmul.f32 %v6468, %v4465
    %v6477 = vmul.f32 %v6471, %v4465
    %v6478 = vmul.f32 %v6474, %v4465
    %v6479 = vsub.f32 %v6455, %v6475
    %v6480 = vsub.f32 %v6456, %v6476
    %v6481 = vsub.f32 %v6457, %v6477
    %v6482 = vsub.f32 %v6458, %v6478
    %v6483 = vmul.f32 %v6479, %v6479
    %v6484 = vmul.f32 %v6480, %v6480
    %v6485 = vmul.f32 %v6481, %v6481
    %v6486 = vmul.f32 %v6482, %v6482
    %v6487 = vsel %vm635, %v6483, 0.0
    %6488 = vadd.xlane.f32.xlu0 %v6487
    %v6489 = vpop.xlane.xlu0 %6488
    %v6490 = vsel %vm635, %v6484, 0.0
    %6491 = vadd.xlane.f32.xlu0 %v6490
    %v6492 = vpop.xlane.xlu0 %6491
    %v6493 = vsel %vm635, %v6485, 0.0
    %6494 = vadd.xlane.f32.xlu0 %v6493
    %v6495 = vpop.xlane.xlu0 %6494
    %v6496 = vsel %vm635, %v6486, 0.0
    %6497 = vadd.xlane.f32.xlu0 %v6496
    %v6498 = vpop.xlane.xlu0 %6497
    %v6499 = vmul.f32 %v6489, %v4465
    %v6500 = vmul.f32 %v6492, %v4465
    %v6501 = vmul.f32 %v6495, %v4465
    %v6502 = vmul.f32 %v6498, %v4465
    %v6503 = vadd.f32 %v6499, 1e-05
    %v6504 = vadd.f32 %v6500, 1e-05
    %v6505 = vadd.f32 %v6501, 1e-05
    %v6506 = vadd.f32 %v6502, 1e-05
    %v6507 = vrsqrt.pop %v6503
    %v6508 = vrsqrt.pop %v6504
    %v6509 = vrsqrt.pop %v6505
    %v6510 = vrsqrt.pop %v6506
    %v6511 = vmul.f32 %v6479, %v6507
    %v6512 = vmul.f32 %v6480, %v6508
    %v6513 = vmul.f32 %v6481, %v6509
    %v6514 = vmul.f32 %v6482, %v6510
    %v6516 = vlaneseq
    %v6517 = vshrl.u32 %v6516, 7
    %v6518 = vsub.s32 0, %v6517
    %v6519 = vrot.slane %v6460, %v6518
    %v6521 = vmul.f32 %v6511, %v6519
    %v6522 = vmul.f32 %v6512, %v6519
    %v6523 = vmul.f32 %v6513, %v6519
    %v6524 = vmul.f32 %v6514, %v6519
    %v6526 = vlaneseq
    %v6527 = vshrl.u32 %v6526, 7
    %v6528 = vsub.s32 0, %v6527
    %v6529 = vrot.slane %v6462, %v6528
    %v6531 = vadd.f32 %v6521, %v6529
    %v6532 = vadd.f32 %v6522, %v6529
    %v6533 = vadd.f32 %v6523, %v6529
    %v6534 = vadd.f32 %v6524, %v6529
    %s6535 = scalar_lea.vmem %s12, 32
    %v6536 = vld [vmem:[%s6535] sm:$0xff]
    %v6537 = vld [vmem:[%s6535 + $0x8] sm:$0xff]
    %v6538 = vld [vmem:[%s6535 + $0x10] sm:$0xff]
    %v6539 = vld [vmem:[%s6535 + $0x18] sm:$0xff]
    %s6540 = scalar_lea.vmem %s13, 1
    %v6541 = vld [vmem:[%s6540] sm:$0x1]
    %v6543 = vlaneseq
    %v6544 = vshrl.u32 %v6543, 7
    %v6545 = vsub.s32 0, %v6544
    %v6546 = vrot.slane %v6541, %v6545
    %v6549 = vsel %vm635, %v6531, 0
    %v6552 = vsel %vm635, %v6532, 0
    %v6555 = vsel %vm635, %v6533, 0
    %v6558 = vsel %vm635, %v6534, 0
    %6560 = vmatprep.subr.mxu0 0.0
    %6561 = vmatpush1.msra.mxu0 %v6536
    %6562 = vmatprep.subr.mxu0 0.0
    %6563 = vmatpush1.msra.mxu0 %v6537
    %6564 = vmatprep.subr.mxu0 0.0
    %6565 = vmatpush1.msra.mxu0 %v6538
    %6566 = vmatprep.subr.mxu0 0.0
    %6567 = vmatpush1.msra.mxu0 %v6539
    %6568 = vmatprep.subr.mxu0 0.0
    %6569 = vmatpush1.msra.mxu0 0.0
    %6570 = vmatprep.subr.mxu0 0.0
    %6571 = vmatpush1.msra.mxu0 0.0
    %6572 = vmatprep.subr.mxu0 0.0
    %6573 = vmatpush1.msra.mxu0 0.0
    %6574 = vmatprep.subr.mxu0 0.0
    %6575 = vmatpush1.msra.mxu0 0.0
    %6576 = vmatprep.subr.mxu0 0.0
    %6577 = vmatpush1.msra.mxu0 0.0
    %6578 = vmatprep.subr.mxu0 0.0
    %6579 = vmatpush1.msra.mxu0 0.0
    %6580 = vmatprep.subr.mxu0 0.0
    %6581 = vmatpush1.msra.mxu0 0.0
    %6582 = vmatprep.subr.mxu0 0.0
    %6583 = vmatpush1.msra.mxu0 0.0
    %6584 = vmatprep.subr.mxu0 0.0
    %6585 = vmatpush1.msra.mxu0 0.0
    %6586 = vmatprep.subr.mxu0 0.0
    %6587 = vmatpush1.msra.mxu0 0.0
    %6588 = vmatprep.subr.mxu0 0.0
    %6589 = vmatpush1.msra.mxu0 0.0
    %6590 = vmatprep.subr.mxu0 0.0
    %6591 = vmatpush1.msra.mxu0 0.0
    %6592 = vmatprep.subr.mxu0 0.0
    %6593 = vmatpush1.msra.mxu0 0.0
    %6594 = vmatprep.subr.mxu0 0.0
    %6595 = vmatpush1.msra.mxu0 0.0
    %6596 = vmatprep.subr.mxu0 0.0
    %6597 = vmatpush1.msra.mxu0 0.0
    %6598 = vmatprep.subr.mxu0 0.0
    %6599 = vmatpush1.msra.mxu0 0.0
    %6600 = vmatprep.subr.mxu0 0.0
    %6601 = vmatpush1.msra.mxu0 0.0
    %6602 = vmatprep.subr.mxu0 0.0
    %6603 = vmatpush1.msra.mxu0 0.0
    %6604 = vmatprep.subr.mxu0 0.0
    %6605 = vmatpush1.msra.mxu0 0.0
    %6606 = vmatprep.subr.mxu0 0.0
    %6607 = vmatpush1.msra.mxu0 0.0
    %6608 = vmatprep.subr.mxu0 0.0
    %6609 = vmatpush1.msra.mxu0 0.0
    %6610 = vmatprep.subr.mxu0 0.0
    %6611 = vmatpush1.msra.mxu0 0.0
    %6612 = vmatprep.subr.mxu0 0.0
    %6613 = vmatpush1.msra.mxu0 0.0
    %6614 = vmatprep.subr.mxu0 0.0
    %6615 = vmatpush1.msra.mxu0 0.0
    %6616 = vmatprep.subr.mxu0 0.0
    %6617 = vmatpush1.msra.mxu0 0.0
    %6618 = vmatprep.subr.mxu0 0.0
    %6619 = vmatpush1.msra.mxu0 0.0
    %6620 = vmatprep.subr.mxu0 0.0
    %6621 = vmatpush1.msra.mxu0 0.0
    %6622 = vmatprep.subr.mxu0 0.0
    %6623 = vmatpush1.msra.mxu0 0.0
    %6624 = vmatprep.mubr.f32.mxu0 0.0
    %6625 = vmatmul.mubr.f32.gmra.mrb[0].mxu0 %v6549
    %v6626 = vpop.f32.mrb[0].mxu0
    %v6627 = vadd.f32 %v6546, %v6626
    %v6628 = vpop.f32.mrb[0].mxu0
    %6629 = vmatprep.mubr.f32.mxu0 0.0
    %6630 = vmatmul.mubr.f32.gmra.mrb[0].mxu0 %v6552
    %v6631 = vpop.f32.mrb[0].mxu0
    %v6632 = vadd.f32 %v6546, %v6631
    %v6633 = vpop.f32.mrb[0].mxu0
    %6634 = vmatprep.mubr.f32.mxu0 0.0
    %6635 = vmatmul.mubr.f32.gmra.mrb[0].mxu0 %v6555
    %v6636 = vpop.f32.mrb[0].mxu0
    %v6637 = vadd.f32 %v6546, %v6636
    %v6638 = vpop.f32.mrb[0].mxu0
    %6639 = vmatprep.mubr.f32.mxu0 0.0
    %6640 = vmatmul.mubr.f32.gmra.mrb[0].mxu0 %v6558
    %v6641 = vpop.f32.mrb[0].mxu0
    %v6642 = vadd.f32 %v6546, %v6641
    %v6643 = vpop.f32.mrb[0].mxu0
    %6644 = vdwg.mxu0
    %v6645 = vmax.f32 %v6627, 0.0
    %v6646 = vmax.f32 %v6632, 0.0
    %v6647 = vmax.f32 %v6637, 0.0
    %v6648 = vmax.f32 %v6642, 0.0
    %s6649 = scalar_lea.vmem %s14, 32
    %v6650 = vld [vmem:[%s6649] sm:$0xff]
    %v6651 = vld [vmem:[%s6649 + $0x8] sm:$0xff]
    %v6652 = vld [vmem:[%s6649 + $0x10] sm:$0xff]
    %v6653 = vld [vmem:[%s6649 + $0x18] sm:$0xff]
    %s6654 = scalar_lea.vmem %s15, 1
    %v6655 = vld [vmem:[%s6654] sm:$0x1]
    %v6657 = vlaneseq
    %v6658 = vshrl.u32 %v6657, 7
    %v6659 = vsub.s32 0, %v6658
    %v6660 = vrot.slane %v6655, %v6659
    %v6663 = vsel %vm635, %v6645, 0
    %v6666 = vsel %vm635, %v6646, 0
    %v6669 = vsel %vm635, %v6647, 0
    %v6672 = vsel %vm635, %v6648, 0
    %6674 = vmatprep.subr.mxu0 0.0
    %6675 = vmatpush1.msra.mxu0 %v6650
    %6676 = vmatprep.subr.mxu0 0.0
    %6677 = vmatpush1.msra.mxu0 %v6651
    %6678 = vmatprep.subr.mxu0 0.0
    %6679 = vmatpush1.msra.mxu0 %v6652
    %6680 = vmatprep.subr.mxu0 0.0
    %6681 = vmatpush1.msra.mxu0 %v6653
    %6682 = vmatprep.subr.mxu0 0.0
    %6683 = vmatpush1.msra.mxu0 0.0
    %6684 = vmatprep.subr.mxu0 0.0
    %6685 = vmatpush1.msra.mxu0 0.0
    %6686 = vmatprep.subr.mxu0 0.0
    %6687 = vmatpush1.msra.mxu0 0.0
    %6688 = vmatprep.subr.mxu0 0.0
    %6689 = vmatpush1.msra.mxu0 0.0
    %6690 = vmatprep.subr.mxu0 0.0
    %6691 = vmatpush1.msra.mxu0 0.0
    %6692 = vmatprep.subr.mxu0 0.0
    %6693 = vmatpush1.msra.mxu0 0.0
    %6694 = vmatprep.subr.mxu0 0.0
    %6695 = vmatpush1.msra.mxu0 0.0
    %6696 = vmatprep.subr.mxu0 0.0
    %6697 = vmatpush1.msra.mxu0 0.0
    %6698 = vmatprep.subr.mxu0 0.0
    %6699 = vmatpush1.msra.mxu0 0.0
    %6700 = vmatprep.subr.mxu0 0.0
    %6701 = vmatpush1.msra.mxu0 0.0
    %6702 = vmatprep.subr.mxu0 0.0
    %6703 = vmatpush1.msra.mxu0 0.0
    %6704 = vmatprep.subr.mxu0 0.0
    %6705 = vmatpush1.msra.mxu0 0.0
    %6706 = vmatprep.subr.mxu0 0.0
    %6707 = vmatpush1.msra.mxu0 0.0
    %6708 = vmatprep.subr.mxu0 0.0
    %6709 = vmatpush1.msra.mxu0 0.0
    %6710 = vmatprep.subr.mxu0 0.0
    %6711 = vmatpush1.msra.mxu0 0.0
    %6712 = vmatprep.subr.mxu0 0.0
    %6713 = vmatpush1.msra.mxu0 0.0
    %6714 = vmatprep.subr.mxu0 0.0
    %6715 = vmatpush1.msra.mxu0 0.0
    %6716 = vmatprep.subr.mxu0 0.0
    %6717 = vmatpush1.msra.mxu0 0.0
    %6718 = vmatprep.subr.mxu0 0.0
    %6719 = vmatpush1.msra.mxu0 0.0
    %6720 = vmatprep.subr.mxu0 0.0
    %6721 = vmatpush1.msra.mxu0 0.0
    %6722 = vmatprep.subr.mxu0 0.0
    %6723 = vmatpush1.msra.mxu0 0.0
    %6724 = vmatprep.subr.mxu0 0.0
    %6725 = vmatpush1.msra.mxu0 0.0
    %6726 = vmatprep.subr.mxu0 0.0
    %6727 = vmatpush1.msra.mxu0 0.0
    %6728 = vmatprep.subr.mxu0 0.0
    %6729 = vmatpush1.msra.mxu0 0.0
    %6730 = vmatprep.subr.mxu0 0.0
    %6731 = vmatpush1.msra.mxu0 0.0
    %6732 = vmatprep.subr.mxu0 0.0
    %6733 = vmatpush1.msra.mxu0 0.0
    %6734 = vmatprep.subr.mxu0 0.0
    %6735 = vmatpush1.msra.mxu0 0.0
    %6736 = vmatprep.subr.mxu0 0.0
    %6737 = vmatpush1.msra.mxu0 0.0
    %6738 = vmatprep.mubr.f32.mxu0 0.0
    %6739 = vmatmul.mubr.f32.gmra.mrb[0].mxu0 %v6663
    %v6740 = vpop.f32.mrb[0].mxu0
    %v6741 = vadd.f32 %v6660, %v6740
    %v6742 = vpop.f32.mrb[0].mxu0
    %6743 = vmatprep.mubr.f32.mxu0 0.0
    %6744 = vmatmul.mubr.f32.gmra.mrb[0].mxu0 %v6666
    %v6745 = vpop.f32.mrb[0].mxu0
    %v6746 = vadd.f32 %v6660, %v6745
    %v6747 = vpop.f32.mrb[0].mxu0
    %6748 = vmatprep.mubr.f32.mxu0 0.0
    %6749 = vmatmul.mubr.f32.gmra.mrb[0].mxu0 %v6669
    %v6750 = vpop.f32.mrb[0].mxu0
    %v6751 = vadd.f32 %v6660, %v6750
    %v6752 = vpop.f32.mrb[0].mxu0
    %6753 = vmatprep.mubr.f32.mxu0 0.0
    %6754 = vmatmul.mubr.f32.gmra.mrb[0].mxu0 %v6672
    %v6755 = vpop.f32.mrb[0].mxu0
    %v6756 = vadd.f32 %v6660, %v6755
    %v6757 = vpop.f32.mrb[0].mxu0
    %6758 = vdwg.mxu0
    %v6759 = vadd.f32 %v6531, %v6741
    %v6760 = vadd.f32 %v6532, %v6746
    %v6761 = vadd.f32 %v6533, %v6751
    %v6762 = vadd.f32 %v6534, %v6756
    %s6763 = scalar_lea.vmem [#allocation8], 1
    %v6764 = vld [vmem:[%s6763] sm:$0x1]
    %s6765 = scalar_lea.vmem %s17, 1
    %v6766 = vld [vmem:[%s6765] sm:$0x1]
    %v6767 = vsel %vm635, %v6759, 0.0
    %6768 = vadd.xlane.f32.xlu0 %v6767
    %v6769 = vpop.xlane.xlu0 %6768
    %v6770 = vsel %vm635, %v6760, 0.0
    %6771 = vadd.xlane.f32.xlu0 %v6770
    %v6772 = vpop.xlane.xlu0 %6771
    %v6773 = vsel %vm635, %v6761, 0.0
    %6774 = vadd.xlane.f32.xlu0 %v6773
    %v6775 = vpop.xlane.xlu0 %6774
    %v6776 = vsel %vm635, %v6762, 0.0
    %6777 = vadd.xlane.f32.xlu0 %v6776
    %v6778 = vpop.xlane.xlu0 %6777
    %v6779 = vmul.f32 %v6769, %v4465
    %v6780 = vmul.f32 %v6772, %v4465
    %v6781 = vmul.f32 %v6775, %v4465
    %v6782 = vmul.f32 %v6778, %v4465
    %v6783 = vsub.f32 %v6759, %v6779
    %v6784 = vsub.f32 %v6760, %v6780
    %v6785 = vsub.f32 %v6761, %v6781
    %v6786 = vsub.f32 %v6762, %v6782
    %v6787 = vmul.f32 %v6783, %v6783
    %v6788 = vmul.f32 %v6784, %v6784
    %v6789 = vmul.f32 %v6785, %v6785
    %v6790 = vmul.f32 %v6786, %v6786
    %v6791 = vsel %vm635, %v6787, 0.0
    %6792 = vadd.xlane.f32.xlu0 %v6791
    %v6793 = vpop.xlane.xlu0 %6792
    %v6794 = vsel %vm635, %v6788, 0.0
    %6795 = vadd.xlane.f32.xlu0 %v6794
    %v6796 = vpop.xlane.xlu0 %6795
    %v6797 = vsel %vm635, %v6789, 0.0
    %6798 = vadd.xlane.f32.xlu0 %v6797
    %v6799 = vpop.xlane.xlu0 %6798
    %v6800 = vsel %vm635, %v6790, 0.0
    %6801 = vadd.xlane.f32.xlu0 %v6800
    %v6802 = vpop.xlane.xlu0 %6801
    %v6803 = vmul.f32 %v6793, %v4465
    %v6804 = vmul.f32 %v6796, %v4465
    %v6805 = vmul.f32 %v6799, %v4465
    %v6806 = vmul.f32 %v6802, %v4465
    %v6807 = vadd.f32 %v6803, 1e-05
    %v6808 = vadd.f32 %v6804, 1e-05
    %v6809 = vadd.f32 %v6805, 1e-05
    %v6810 = vadd.f32 %v6806, 1e-05
    %v6811 = vrsqrt.pop %v6807
    %v6812 = vrsqrt.pop %v6808
    %v6813 = vrsqrt.pop %v6809
    %v6814 = vrsqrt.pop %v6810
    %v6815 = vmul.f32 %v6783, %v6811
    %v6816 = vmul.f32 %v6784, %v6812
    %v6817 = vmul.f32 %v6785, %v6813
    %v6818 = vmul.f32 %v6786, %v6814
    %v6820 = vlaneseq
    %v6821 = vshrl.u32 %v6820, 7
    %v6822 = vsub.s32 0, %v6821
    %v6823 = vrot.slane %v6764, %v6822
    %v6825 = vmul.f32 %v6815, %v6823
    %v6826 = vmul.f32 %v6816, %v6823
    %v6827 = vmul.f32 %v6817, %v6823
    %v6828 = vmul.f32 %v6818, %v6823
    %v6830 = vlaneseq
    %v6831 = vshrl.u32 %v6830, 7
    %v6832 = vsub.s32 0, %v6831
    %v6833 = vrot.slane %v6766, %v6832
    %v6835 = vadd.f32 %v6825, %v6833
    %v6836 = vadd.f32 %v6826, %v6833
    %v6837 = vadd.f32 %v6827, %v6833
    %v6838 = vadd.f32 %v6828, %v6833
    %v6839 = vld [vmem:[%s18] sm:$0xff]
    %v6840 = vld [vmem:[%s18 + $0x8] sm:$0xff]
    %v6841 = vld [vmem:[%s18 + $0x10] sm:$0xff]
    %v6842 = vld [vmem:[%s18 + $0x18] sm:$0xff]
    %v6843 = vld [vmem:[%s18 + $0x20] sm:$0xff]
    %v6844 = vld [vmem:[%s18 + $0x28] sm:$0xff]
    %v6845 = vld [vmem:[%s18 + $0x30] sm:$0xff]
    %v6846 = vld [vmem:[%s18 + $0x38] sm:$0xff]
    %v6847 = vld [vmem:[%s18 + $0x40] sm:$0xff]
    %v6848 = vld [vmem:[%s18 + $0x48] sm:$0xff]
    %v6849 = vld [vmem:[%s18 + $0x50] sm:$0xff]
    %v6850 = vld [vmem:[%s18 + $0x58] sm:$0xff]
    %v6852 = vsel %vm635, %v6835, 0
    %v6855 = vsel %vm635, %v6836, 0
    %v6858 = vsel %vm635, %v6837, 0
    %v6861 = vsel %vm635, %v6838, 0
    %6863 = vmatprep.subr.mxu0 %v6840
    %6864 = vmatpush1.msra.mxu0 %v6839
    %6865 = vmatprep.subr.mxu0 %v6843
    %6866 = vmatpush1.msra.mxu0 %v6842
    %6867 = vmatprep.subr.mxu0 %v6846
    %6868 = vmatpush1.msra.mxu0 %v6845
    %6869 = vmatprep.subr.mxu0 %v6849
    %6870 = vmatpush1.msra.mxu0 %v6848
    %6871 = vmatprep.subr.mxu0 0.0
    %6872 = vmatpush1.msra.mxu0 0.0
    %6873 = vmatprep.subr.mxu0 0.0
    %6874 = vmatpush1.msra.mxu0 0.0
    %6875 = vmatprep.subr.mxu0 0.0
    %6876 = vmatpush1.msra.mxu0 0.0
    %6877 = vmatprep.subr.mxu0 0.0
    %6878 = vmatpush1.msra.mxu0 0.0
    %6879 = vmatprep.subr.mxu0 0.0
    %6880 = vmatpush1.msra.mxu0 0.0
    %6881 = vmatprep.subr.mxu0 0.0
    %6882 = vmatpush1.msra.mxu0 0.0
    %6883 = vmatprep.subr.mxu0 0.0
    %6884 = vmatpush1.msra.mxu0 0.0
    %6885 = vmatprep.subr.mxu0 0.0
    %6886 = vmatpush1.msra.mxu0 0.0
    %6887 = vmatprep.subr.mxu0 0.0
    %6888 = vmatpush1.msra.mxu0 0.0
    %6889 = vmatprep.subr.mxu0 0.0
    %6890 = vmatpush1.msra.mxu0 0.0
    %6891 = vmatprep.subr.mxu0 0.0
    %6892 = vmatpush1.msra.mxu0 0.0
    %6893 = vmatprep.subr.mxu0 0.0
    %6894 = vmatpush1.msra.mxu0 0.0
    %6895 = vmatprep.subr.mxu0 0.0
    %6896 = vmatpush1.msra.mxu0 0.0
    %6897 = vmatprep.subr.mxu0 0.0
    %6898 = vmatpush1.msra.mxu0 0.0
    %6899 = vmatprep.subr.mxu0 0.0
    %6900 = vmatpush1.msra.mxu0 0.0
    %6901 = vmatprep.subr.mxu0 0.0
    %6902 = vmatpush1.msra.mxu0 0.0
    %6903 = vmatprep.subr.mxu0 0.0
    %6904 = vmatpush1.msra.mxu0 0.0
    %6905 = vmatprep.subr.mxu0 0.0
    %6906 = vmatpush1.msra.mxu0 0.0
    %6907 = vmatprep.subr.mxu0 0.0
    %6908 = vmatpush1.msra.mxu0 0.0
    %6909 = vmatprep.subr.mxu0 0.0
    %6910 = vmatpush1.msra.mxu0 0.0
    %6911 = vmatprep.subr.mxu0 0.0
    %6912 = vmatpush1.msra.mxu0 0.0
    %6913 = vmatprep.subr.mxu0 0.0
    %6914 = vmatpush1.msra.mxu0 0.0
    %6915 = vmatprep.subr.mxu0 0.0
    %6916 = vmatpush1.msra.mxu0 0.0
    %6917 = vmatprep.subr.mxu0 0.0
    %6918 = vmatpush1.msra.mxu0 0.0
    %6919 = vmatprep.subr.mxu0 0.0
    %6920 = vmatpush1.msra.mxu0 0.0
    %6921 = vmatprep.subr.mxu0 0.0
    %6922 = vmatpush1.msra.mxu0 0.0
    %6923 = vmatprep.subr.mxu0 0.0
    %6924 = vmatpush1.msra.mxu0 0.0
    %6925 = vmatprep.subr.mxu0 0.0
    %6926 = vmatpush1.msra.mxu0 0.0
    %6927 = vmatprep.mubr.f32.mxu0 0.0
    %6928 = vmatmul.mubr.f32.gmra.mrb[0].mxu0 %v6852
    %v6929 = vpop.f32.mrb[0].mxu0
    %v6930 = vadd.f32 0.0, %v6929
    %v6931 = vpop.f32.mrb[0].mxu0
    %v6932 = vadd.f32 0.0, %v6931
    %6933 = vmatprep.mubr.f32.mxu0 0.0
    %6934 = vmatmul.mubr.f32.gmra.mrb[0].mxu0 %v6855
    %v6935 = vpop.f32.mrb[0].mxu0
    %v6936 = vadd.f32 0.0, %v6935
    %v6937 = vpop.f32.mrb[0].mxu0
    %v6938 = vadd.f32 0.0, %v6937
    %6939 = vmatprep.mubr.f32.mxu0 0.0
    %6940 = vmatmul.mubr.f32.gmra.mrb[0].mxu0 %v6858
    %v6941 = vpop.f32.mrb[0].mxu0
    %v6942 = vadd.f32 0.0, %v6941
    %v6943 = vpop.f32.mrb[0].mxu0
    %v6944 = vadd.f32 0.0, %v6943
    %6945 = vmatprep.mubr.f32.mxu0 0.0
    %6946 = vmatmul.mubr.f32.gmra.mrb[0].mxu0 %v6861
    %v6947 = vpop.f32.mrb[0].mxu0
    %v6948 = vadd.f32 0.0, %v6947
    %v6949 = vpop.f32.mrb[0].mxu0
    %v6950 = vadd.f32 0.0, %v6949
    %6951 = vdwg.mxu0
    %6952 = vmatprep.subr.mxu0 0.0
    %6953 = vmatpush1.msra.mxu0 %v6841
    %6954 = vmatprep.subr.mxu0 0.0
    %6955 = vmatpush1.msra.mxu0 %v6844
    %6956 = vmatprep.subr.mxu0 0.0
    %6957 = vmatpush1.msra.mxu0 %v6847
    %6958 = vmatprep.subr.mxu0 0.0
    %6959 = vmatpush1.msra.mxu0 %v6850
    %6960 = vmatprep.subr.mxu0 0.0
    %6961 = vmatpush1.msra.mxu0 0.0
    %6962 = vmatprep.subr.mxu0 0.0
    %6963 = vmatpush1.msra.mxu0 0.0
    %6964 = vmatprep.subr.mxu0 0.0
    %6965 = vmatpush1.msra.mxu0 0.0
    %6966 = vmatprep.subr.mxu0 0.0
    %6967 = vmatpush1.msra.mxu0 0.0
    %6968 = vmatprep.subr.mxu0 0.0
    %6969 = vmatpush1.msra.mxu0 0.0
    %6970 = vmatprep.subr.mxu0 0.0
    %6971 = vmatpush1.msra.mxu0 0.0
    %6972 = vmatprep.subr.mxu0 0.0
    %6973 = vmatpush1.msra.mxu0 0.0
    %6974 = vmatprep.subr.mxu0 0.0
    %6975 = vmatpush1.msra.mxu0 0.0
    %6976 = vmatprep.subr.mxu0 0.0
    %6977 = vmatpush1.msra.mxu0 0.0
    %6978 = vmatprep.subr.mxu0 0.0
    %6979 = vmatpush1.msra.mxu0 0.0
    %6980 = vmatprep.subr.mxu0 0.0
    %6981 = vmatpush1.msra.mxu0 0.0
    %6982 = vmatprep.subr.mxu0 0.0
    %6983 = vmatpush1.msra.mxu0 0.0
    %6984 = vmatprep.subr.mxu0 0.0
    %6985 = vmatpush1.msra.mxu0 0.0
    %6986 = vmatprep.subr.mxu0 0.0
    %6987 = vmatpush1.msra.mxu0 0.0
    %6988 = vmatprep.subr.mxu0 0.0
    %6989 = vmatpush1.msra.mxu0 0.0
    %6990 = vmatprep.subr.mxu0 0.0
    %6991 = vmatpush1.msra.mxu0 0.0
    %6992 = vmatprep.subr.mxu0 0.0
    %6993 = vmatpush1.msra.mxu0 0.0
    %6994 = vmatprep.subr.mxu0 0.0
    %6995 = vmatpush1.msra.mxu0 0.0
    %6996 = vmatprep.subr.mxu0 0.0
    %6997 = vmatpush1.msra.mxu0 0.0
    %6998 = vmatprep.subr.mxu0 0.0
    %6999 = vmatpush1.msra.mxu0 0.0
    %7000 = vmatprep.subr.mxu0 0.0
    %7001 = vmatpush1.msra.mxu0 0.0
    %7002 = vmatprep.subr.mxu0 0.0
    %7003 = vmatpush1.msra.mxu0 0.0
    %7004 = vmatprep.subr.mxu0 0.0
    %7005 = vmatpush1.msra.mxu0 0.0
    %7006 = vmatprep.subr.mxu0 0.0
    %7007 = vmatpush1.msra.mxu0 0.0
    %7008 = vmatprep.subr.mxu0 0.0
    %7009 = vmatpush1.msra.mxu0 0.0
    %7010 = vmatprep.subr.mxu0 0.0
    %7011 = vmatpush1.msra.mxu0 0.0
    %7012 = vmatprep.subr.mxu0 0.0
    %7013 = vmatpush1.msra.mxu0 0.0
    %7014 = vmatprep.subr.mxu0 0.0
    %7015 = vmatpush1.msra.mxu0 0.0
    %7016 = vmatprep.mubr.f32.mxu0 0.0
    %7017 = vmatmul.mubr.f32.gmra.mrb[0].mxu0 %v6852
    %v7018 = vpop.f32.mrb[0].mxu0
    %v7019 = vadd.f32 0.0, %v7018
    %v7020 = vpop.f32.mrb[0].mxu0
    %7021 = vmatprep.mubr.f32.mxu0 0.0
    %7022 = vmatmul.mubr.f32.gmra.mrb[0].mxu0 %v6855
    %v7023 = vpop.f32.mrb[0].mxu0
    %v7024 = vadd.f32 0.0, %v7023
    %v7025 = vpop.f32.mrb[0].mxu0
    %7026 = vmatprep.mubr.f32.mxu0 0.0
    %7027 = vmatmul.mubr.f32.gmra.mrb[0].mxu0 %v6858
    %v7028 = vpop.f32.mrb[0].mxu0
    %v7029 = vadd.f32 0.0, %v7028
    %v7030 = vpop.f32.mrb[0].mxu0
    %7031 = vmatprep.mubr.f32.mxu0 0.0
    %7032 = vmatmul.mubr.f32.gmra.mrb[0].mxu0 %v6861
    %v7033 = vpop.f32.mrb[0].mxu0
    %v7034 = vadd.f32 0.0, %v7033
    %v7035 = vpop.f32.mrb[0].mxu0
    %7036 = vdwg.mxu0
    %v7037 = vld [vmem:[%s19] sm:$0xff]
    %v7038 = vld [vmem:[%s19 + $0x8] sm:$0xff]
    %v7039 = vld [vmem:[%s19 + $0x10] sm:$0xff]
    %v7040 = vld [vmem:[%s19 + $0x18] sm:$0xff]
    %v7041 = vld [vmem:[%s19 + $0x20] sm:$0xff]
    %v7042 = vld [vmem:[%s19 + $0x28] sm:$0xff]
    %v7043 = vld [vmem:[%s19 + $0x30] sm:$0xff]
    %v7044 = vld [vmem:[%s19 + $0x38] sm:$0xff]
    %v7045 = vld [vmem:[%s19 + $0x40] sm:$0xff]
    %v7046 = vld [vmem:[%s19 + $0x48] sm:$0xff]
    %v7047 = vld [vmem:[%s19 + $0x50] sm:$0xff]
    %v7048 = vld [vmem:[%s19 + $0x58] sm:$0xff]
    %v7049 = vmul.f32 %v6930, %v7037
    %v7050 = vmul.f32 %v6932, %v7038
    %v7051 = vmul.f32 %v7019, %v7039
    %v7052 = vmul.f32 %v6936, %v7040
    %v7053 = vmul.f32 %v6938, %v7041
    %v7054 = vmul.f32 %v7024, %v7042
    %v7055 = vmul.f32 %v6942, %v7043
    %v7056 = vmul.f32 %v6944, %v7044
    %v7057 = vmul.f32 %v7029, %v7045
    %v7058 = vmul.f32 %v6948, %v7046
    %v7059 = vmul.f32 %v6950, %v7047
    %v7060 = vmul.f32 %v7034, %v7048
    %v7061 = vadd.f32 %v7049, 0.0
    %v7062 = vadd.f32 %v7052, 0.0
    %v7063 = vadd.f32 %v7055, 0.0
    %v7064 = vadd.f32 %v7058, 0.0
    %7069 = vrot.lane.b32.xlu0 %v7049, 96
    %v7070 = vpop.permute.xlu0 %7069
    %7071 = vrot.lane.b32.xlu0 %v7052, 96
    %v7072 = vpop.permute.xlu0 %7071
    %7073 = vrot.lane.b32.xlu0 %v7055, 96
    %v7074 = vpop.permute.xlu0 %7073
    %7075 = vrot.lane.b32.xlu0 %v7058, 96
    %v7076 = vpop.permute.xlu0 %7075
    %v7081 = vadd.f32 %v7061, %v7070
    %v7082 = vadd.f32 %v7062, %v7072
    %v7083 = vadd.f32 %v7063, %v7074
    %v7084 = vadd.f32 %v7064, %v7076
    %7085 = vrot.lane.b32.xlu0 %v7049, 64
    %v7086 = vpop.permute.xlu0 %7085
    %7087 = vrot.lane.b32.xlu0 %v7052, 64
    %v7088 = vpop.permute.xlu0 %7087
    %7089 = vrot.lane.b32.xlu0 %v7055, 64
    %v7090 = vpop.permute.xlu0 %7089
    %7091 = vrot.lane.b32.xlu0 %v7058, 64
    %v7092 = vpop.permute.xlu0 %7091
    %v7097 = vadd.f32 %v7081, %v7086
    %v7098 = vadd.f32 %v7082, %v7088
    %v7099 = vadd.f32 %v7083, %v7090
    %v7100 = vadd.f32 %v7084, %v7092
    %7101 = vrot.lane.b32.xlu0 %v7049, 32
    %v7102 = vpop.permute.xlu0 %7101
    %7103 = vrot.lane.b32.xlu0 %v7052, 32
    %v7104 = vpop.permute.xlu0 %7103
    %7105 = vrot.lane.b32.xlu0 %v7055, 32
    %v7106 = vpop.permute.xlu0 %7105
    %7107 = vrot.lane.b32.xlu0 %v7058, 32
    %v7108 = vpop.permute.xlu0 %7107
    %v7113 = vadd.f32 %v7097, %v7102
    %v7114 = vadd.f32 %v7098, %v7104
    %v7115 = vadd.f32 %v7099, %v7106
    %v7116 = vadd.f32 %v7100, %v7108
    %v7117 = vadd.f32 %v7113, %v7050
    %v7118 = vadd.f32 %v7114, %v7053
    %v7119 = vadd.f32 %v7115, %v7056
    %v7120 = vadd.f32 %v7116, %v7059
    %7125 = vrot.lane.b32.xlu0 %v7050, 96
    %v7126 = vpop.permute.xlu0 %7125
    %7127 = vrot.lane.b32.xlu0 %v7053, 96
    %v7128 = vpop.permute.xlu0 %7127
    %7129 = vrot.lane.b32.xlu0 %v7056, 96
    %v7130 = vpop.permute.xlu0 %7129
    %7131 = vrot.lane.b32.xlu0 %v7059, 96
    %v7132 = vpop.permute.xlu0 %7131
    %v7137 = vadd.f32 %v7117, %v7126
    %v7138 = vadd.f32 %v7118, %v7128
    %v7139 = vadd.f32 %v7119, %v7130
    %v7140 = vadd.f32 %v7120, %v7132
    %7141 = vrot.lane.b32.xlu0 %v7050, 64
    %v7142 = vpop.permute.xlu0 %7141
    %7143 = vrot.lane.b32.xlu0 %v7053, 64
    %v7144 = vpop.permute.xlu0 %7143
    %7145 = vrot.lane.b32.xlu0 %v7056, 64
    %v7146 = vpop.permute.xlu0 %7145
    %7147 = vrot.lane.b32.xlu0 %v7059, 64
    %v7148 = vpop.permute.xlu0 %7147
    %v7153 = vadd.f32 %v7137, %v7142
    %v7154 = vadd.f32 %v7138, %v7144
    %v7155 = vadd.f32 %v7139, %v7146
    %v7156 = vadd.f32 %v7140, %v7148
    %7157 = vrot.lane.b32.xlu0 %v7050, 32
    %v7158 = vpop.permute.xlu0 %7157
    %7159 = vrot.lane.b32.xlu0 %v7053, 32
    %v7160 = vpop.permute.xlu0 %7159
    %7161 = vrot.lane.b32.xlu0 %v7056, 32
    %v7162 = vpop.permute.xlu0 %7161
    %7163 = vrot.lane.b32.xlu0 %v7059, 32
    %v7164 = vpop.permute.xlu0 %7163
    %v7169 = vadd.f32 %v7153, %v7158
    %v7170 = vadd.f32 %v7154, %v7160
    %v7171 = vadd.f32 %v7155, %v7162
    %v7172 = vadd.f32 %v7156, %v7164
    %v7173 = vadd.f32 %v7169, %v7051
    %v7174 = vadd.f32 %v7170, %v7054
    %v7175 = vadd.f32 %v7171, %v7057
    %v7176 = vadd.f32 %v7172, %v7060
    %7181 = vrot.lane.b32.xlu0 %v7051, 96
    %v7182 = vpop.permute.xlu0 %7181
    %7183 = vrot.lane.b32.xlu0 %v7054, 96
    %v7184 = vpop.permute.xlu0 %7183
    %7185 = vrot.lane.b32.xlu0 %v7057, 96
    %v7186 = vpop.permute.xlu0 %7185
    %7187 = vrot.lane.b32.xlu0 %v7060, 96
    %v7188 = vpop.permute.xlu0 %7187
    %v7193 = vadd.f32 %v7173, %v7182
    %v7194 = vadd.f32 %v7174, %v7184
    %v7195 = vadd.f32 %v7175, %v7186
    %v7196 = vadd.f32 %v7176, %v7188
    %7197 = vrot.lane.b32.xlu0 %v7051, 64
    %v7198 = vpop.permute.xlu0 %7197
    %7199 = vrot.lane.b32.xlu0 %v7054, 64
    %v7200 = vpop.permute.xlu0 %7199
    %7201 = vrot.lane.b32.xlu0 %v7057, 64
    %v7202 = vpop.permute.xlu0 %7201
    %7203 = vrot.lane.b32.xlu0 %v7060, 64
    %v7204 = vpop.permute.xlu0 %7203
    %v7209 = vadd.f32 %v7193, %v7198
    %v7210 = vadd.f32 %v7194, %v7200
    %v7211 = vadd.f32 %v7195, %v7202
    %v7212 = vadd.f32 %v7196, %v7204
    %v7213 = vld [vmem:[#allocation10] sm:$0x3]
    %v7214 = vld [vmem:[#allocation11] sm:$0x1]
    %v7216 = vlaneseq
    %v7217 = vshrl.u32 %v7216, 7
    %v7218 = vsub.s32 0, %v7217
    %v7219 = vrot.slane %v7214, %v7218
    %v7222 = vsel %vm635, %v7213, 0
    %7224 = vmatprep.subr.mxu0 0.0
    %7225 = vmatpush1.msra.mxu0 %v7209
    %7226 = vmatprep.subr.mxu0 0.0
    %7227 = vmatpush1.msra.mxu0 %v7210
    %7228 = vmatprep.subr.mxu0 0.0
    %7229 = vmatpush1.msra.mxu0 %v7211
    %7230 = vmatprep.subr.mxu0 0.0
    %7231 = vmatpush1.msra.mxu0 %v7212
    %7232 = vmatprep.subr.mxu0 0.0
    %7233 = vmatpush1.msra.mxu0 0.0
    %7234 = vmatprep.subr.mxu0 0.0
    %7235 = vmatpush1.msra.mxu0 0.0
    %7236 = vmatprep.subr.mxu0 0.0
    %7237 = vmatpush1.msra.mxu0 0.0
    %7238 = vmatprep.subr.mxu0 0.0
    %7239 = vmatpush1.msra.mxu0 0.0
    %7240 = vmatprep.subr.mxu0 0.0
    %7241 = vmatpush1.msra.mxu0 0.0
    %7242 = vmatprep.subr.mxu0 0.0
    %7243 = vmatpush1.msra.mxu0 0.0
    %7244 = vmatprep.subr.mxu0 0.0
    %7245 = vmatpush1.msra.mxu0 0.0
    %7246 = vmatprep.subr.mxu0 0.0
    %7247 = vmatpush1.msra.mxu0 0.0
    %7248 = vmatprep.subr.mxu0 0.0
    %7249 = vmatpush1.msra.mxu0 0.0
    %7250 = vmatprep.subr.mxu0 0.0
    %7251 = vmatpush1.msra.mxu0 0.0
    %7252 = vmatprep.subr.mxu0 0.0
    %7253 = vmatpush1.msra.mxu0 0.0
    %7254 = vmatprep.subr.mxu0 0.0
    %7255 = vmatpush1.msra.mxu0 0.0
    %7256 = vmatprep.subr.mxu0 0.0
    %7257 = vmatpush1.msra.mxu0 0.0
    %7258 = vmatprep.subr.mxu0 0.0
    %7259 = vmatpush1.msra.mxu0 0.0
    %7260 = vmatprep.subr.mxu0 0.0
    %7261 = vmatpush1.msra.mxu0 0.0
    %7262 = vmatprep.subr.mxu0 0.0
    %7263 = vmatpush1.msra.mxu0 0.0
    %7264 = vmatprep.subr.mxu0 0.0
    %7265 = vmatpush1.msra.mxu0 0.0
    %7266 = vmatprep.subr.mxu0 0.0
    %7267 = vmatpush1.msra.mxu0 0.0
    %7268 = vmatprep.subr.mxu0 0.0
    %7269 = vmatpush1.msra.mxu0 0.0
    %7270 = vmatprep.subr.mxu0 0.0
    %7271 = vmatpush1.msra.mxu0 0.0
    %7272 = vmatprep.subr.mxu0 0.0
    %7273 = vmatpush1.msra.mxu0 0.0
    %7274 = vmatprep.subr.mxu0 0.0
    %7275 = vmatpush1.msra.mxu0 0.0
    %7276 = vmatprep.subr.mxu0 0.0
    %7277 = vmatpush1.msra.mxu0 0.0
    %7278 = vmatprep.subr.mxu0 0.0
    %7279 = vmatpush1.msra.mxu0 0.0
    %7280 = vmatprep.subr.mxu0 0.0
    %7281 = vmatpush1.msra.mxu0 0.0
    %7282 = vmatprep.subr.mxu0 0.0
    %7283 = vmatpush1.msra.mxu0 0.0
    %7284 = vmatprep.subr.mxu0 0.0
    %7285 = vmatpush1.msra.mxu0 0.0
    %7286 = vmatprep.subr.mxu0 0.0
    %7287 = vmatpush1.msra.mxu0 0.0
    %7288 = vmatprep.mubr.f32.mxu0 0.0
    %7289 = vmatmul.mubr.f32.gmra.mrb[0].mxu0 %v7222
    %v7290 = vpop.f32.mrb[0].mxu0
    %v7291 = vadd.f32 %v7219, %v7290
    %v7292 = vpop.f32.mrb[0].mxu0
    %7293 = vdwg.mxu0
    %v7294 = vmax.f32 %v7291, 0.0
    %v7295 = vld [vmem:[%s22] sm:$0xff]
    %v7296 = vld [vmem:[%s22 + $0x8] sm:$0xff]
    %v7297 = vld [vmem:[%s22 + $0x10] sm:$0xff]
    %v7298 = vld [vmem:[%s22 + $0x18] sm:$0xff]
    %v7299 = vld [vmem:[#allocation13] sm:$0x1]
    %v7301 = vlaneseq
    %v7302 = vshrl.u32 %v7301, 7
    %v7303 = vsub.s32 0, %v7302
    %v7304 = vrot.slane %v7299, %v7303
    %v7307 = vsel %vm635, %v7294, 0
    %7309 = vmatprep.subr.mxu0 0.0
    %7310 = vmatpush1.msra.mxu0 %v7295
    %7311 = vmatprep.subr.mxu0 0.0
    %7312 = vmatpush1.msra.mxu0 %v7296
    %7313 = vmatprep.subr.mxu0 0.0
    %7314 = vmatpush1.msra.mxu0 %v7297
    %7315 = vmatprep.subr.mxu0 0.0
    %7316 = vmatpush1.msra.mxu0 %v7298
    %7317 = vmatprep.subr.mxu0 0.0
    %7318 = vmatpush1.msra.mxu0 0.0
    %7319 = vmatprep.subr.mxu0 0.0
    %7320 = vmatpush1.msra.mxu0 0.0
    %7321 = vmatprep.subr.mxu0 0.0
    %7322 = vmatpush1.msra.mxu0 0.0
    %7323 = vmatprep.subr.mxu0 0.0
    %7324 = vmatpush1.msra.mxu0 0.0
    %7325 = vmatprep.subr.mxu0 0.0
    %7326 = vmatpush1.msra.mxu0 0.0
    %7327 = vmatprep.subr.mxu0 0.0
    %7328 = vmatpush1.msra.mxu0 0.0
    %7329 = vmatprep.subr.mxu0 0.0
    %7330 = vmatpush1.msra.mxu0 0.0
    %7331 = vmatprep.subr.mxu0 0.0
    %7332 = vmatpush1.msra.mxu0 0.0
    %7333 = vmatprep.subr.mxu0 0.0
    %7334 = vmatpush1.msra.mxu0 0.0
    %7335 = vmatprep.subr.mxu0 0.0
    %7336 = vmatpush1.msra.mxu0 0.0
    %7337 = vmatprep.subr.mxu0 0.0
    %7338 = vmatpush1.msra.mxu0 0.0
    %7339 = vmatprep.subr.mxu0 0.0
    %7340 = vmatpush1.msra.mxu0 0.0
    %7341 = vmatprep.subr.mxu0 0.0
    %7342 = vmatpush1.msra.mxu0 0.0
    %7343 = vmatprep.subr.mxu0 0.0
    %7344 = vmatpush1.msra.mxu0 0.0
    %7345 = vmatprep.subr.mxu0 0.0
    %7346 = vmatpush1.msra.mxu0 0.0
    %7347 = vmatprep.subr.mxu0 0.0
    %7348 = vmatpush1.msra.mxu0 0.0
    %7349 = vmatprep.subr.mxu0 0.0
    %7350 = vmatpush1.msra.mxu0 0.0
    %7351 = vmatprep.subr.mxu0 0.0
    %7352 = vmatpush1.msra.mxu0 0.0
    %7353 = vmatprep.subr.mxu0 0.0
    %7354 = vmatpush1.msra.mxu0 0.0
    %7355 = vmatprep.subr.mxu0 0.0
    %7356 = vmatpush1.msra.mxu0 0.0
    %7357 = vmatprep.subr.mxu0 0.0
    %7358 = vmatpush1.msra.mxu0 0.0
    %7359 = vmatprep.subr.mxu0 0.0
    %7360 = vmatpush1.msra.mxu0 0.0
    %7361 = vmatprep.subr.mxu0 0.0
    %7362 = vmatpush1.msra.mxu0 0.0
    %7363 = vmatprep.subr.mxu0 0.0
    %7364 = vmatpush1.msra.mxu0 0.0
    %7365 = vmatprep.subr.mxu0 0.0
    %7366 = vmatpush1.msra.mxu0 0.0
    %7367 = vmatprep.subr.mxu0 0.0
    %7368 = vmatpush1.msra.mxu0 0.0
    %7369 = vmatprep.subr.mxu0 0.0
    %7370 = vmatpush1.msra.mxu0 0.0
    %7371 = vmatprep.subr.mxu0 0.0
    %7372 = vmatpush1.msra.mxu0 0.0
    %7373 = vmatprep.mubr.f32.mxu0 0.0
    %7374 = vmatmul.mubr.f32.gmra.mrb[0].mxu0 %v7307
    %v7375 = vpop.f32.mrb[0].mxu0
    %v7376 = vadd.f32 %v7304, %v7375
    %v7377 = vpop.f32.mrb[0].mxu0
    %7378 = vdwg.mxu0
    %v7379 = vxor.u32 %v7376, 2147483648
    %v7380 = vmul.f32 %v7379, 1.442695
    %v7381 = vpow.pop %v7380
    %v7382 = vadd.f32 %v7381, 1.0
    %v7383 = vrcp.pop %v7382
    %v7384 = vmul.f32 1.0, %v7383
    %vm7385 = vcmask 17408
    %7386 = vst.msk [vmem:[#allocation14] sm:$0x3] %vm7385, %v7384
    // Predicated region
    $region118: #{lstm_transformer_forward.1} parent=1 // pred_check
      _
    $region119: #{lstm_transformer_forward.1} parent=1 // pred_check_branch
      %7388 = sbr.rel (0) target = $region121
    $region120: #{lstm_transformer_forward.1} parent=1 // pred_region
      %s7390 = ssub.s32 32, 32
      %7391 = vsyncadd [#allocation7], %s7390
      %s7393 = sshll.u32 [#allocation14], 4
      %s7394 = int_to_ptr.vmem [resolvable:$true] %s7393
      %7396 = dma.vmem_to_hbm [thread:$0]  %s7394, 32, %s24, [#allocation7]
    $region121: #{lstm_transformer_forward.1} parent=1 // pred_fallthru
      _
    // Predicated region
    $region122: #{lstm_transformer_forward.1} parent=1 // pred_check
      _
    $region123: #{lstm_transformer_forward.1} parent=1 // pred_check_branch
      %7398 = sbr.rel (0) target = $region125
    $region124: #{lstm_transformer_forward.1} parent=1 // pred_region
      %7399 = dma.done [#allocation7], 32
    $region125: #{lstm_transformer_forward.1} parent=1 // pred_fallthru
      _
    %7400 = vsyncpa [#allocation6], 1
    %7401 = vsyncpa [#allocation9], 1
    %7402 = vsyncpa [#allocation12], 1
    %7403 = vsyncpa [#allocation7], 1

</llo_original>
